<compile_context>
chip_gen: v5e
topology: v5e:2x2
jax: 0.10.0
libtpu: 0.0.40
codegen_flags: <defaults>
</compile_context>

<pallas_src>
import jax
import jax.numpy as jnp
from jax import lax
from jax.experimental import pallas as pl
from jax.experimental.pallas import tpu as pltpu

BN_EPS = 1e-5
LANES = 128


# ----------------------------------------------------------------------------
# Pass 1: fused 2x bilinear upsample + 3x3 conv (as shifted MXU matmuls)
#         + per-channel BatchNorm statistics (sum, sum of squares).
# ----------------------------------------------------------------------------
def _make_upsample_conv_stats_kernel(TR, W, Cin, Cpad):
    TR2 = 2 * TR          # upsampled rows produced per grid step
    R2 = TR2 + 2          # + one conv-halo row on each side

    def kernel(xt_ref, w_ref, y_ref, stats_ref, acc_ref):
        n = pl.program_id(0)
        t = pl.program_id(1)
        n_last = pl.num_programs(0) - 1
        t_last = pl.num_programs(1) - 1

        x = xt_ref[...]                                   # (TR+2, W+2, Cin) f32

        # ---- 2x bilinear upsample along rows (align_corners=False).  The tile is
        # edge-padded by the wrapper, so torch's clamp-at-border behaviour is exact.
        a = x[:-1, :, :]                                  # src rows r   .. r+TR
        b = x[1:, :, :]                                   # src rows r+1 .. r+TR+1
        r_ev = 0.75 * a + 0.25 * b                        # local up rows 0,2,...,TR2
        r_od = 0.25 * a + 0.75 * b                        # local up rows 1,3,...,TR2+1
        # rows lu=0 / lu=R2-1 are the 3x3 conv's zero padding at the image border
        top_keep = (t > 0).astype(jnp.float32)
        bot_keep = (t < t_last).astype(jnp.float32)
        r_ev = jnp.concatenate([r_ev[0:1] * top_keep, r_ev[1:]], axis=0)
        r_od = jnp.concatenate([r_od[:TR], r_od[TR:TR + 1] * bot_keep], axis=0)
        ru = jnp.stack([r_ev, r_od], axis=1).reshape(R2, W + 2, Cin)

        # ---- 2x bilinear upsample along columns, kept split by output-column
        # parity so no cross-sublane interleave is ever needed in-kernel.
        ca = ru[:, :W + 1, :]
        cb = ru[:, 1:W + 2, :]
        ce = 0.25 * ca + 0.75 * cb                        # up col 2j      (j = 0..W)
        co = 0.75 * ca + 0.25 * cb                        # up col 2j - 1  (j = 0..W)
        col = lax.broadcasted_iota(jnp.int32, (R2, W + 1, Cin), 1)
        ce = jnp.where(col == W, 0.0, ce)                 # up col 2W -> conv zero pad
        co = jnp.where(col == 0, 0.0, co)                 # up col -1 -> conv zero pad

        # ---- 3x3 conv: 9 taps x 2 parities as (TR2*W, Cin) x (Cin, Cpad) matmuls.
        def conv_phase(srcs, offs):
            acc = jnp.zeros((TR2 * W, Cpad), jnp.float32)
            for dy in range(3):
                for dx in range(3):
                    win = srcs[dx][dy:dy + TR2, offs[dx]:offs[dx] + W, :]
                    acc = acc + jnp.dot(win.reshape(TR2 * W, Cin),
                                        w_ref[dy * 3 + dx],
                                        preferred_element_type=jnp.float32)
            return acc

        ye = conv_phase((co, ce, co), (0, 0, 1))          # even output columns (2j)
        yo = conv_phase((ce, co, ce), (0, 1, 1))          # odd  output columns (2j+1)

        # ---- BatchNorm batch statistics: one pass of per-channel sum / sumsq.
        @pl.when(jnp.logical_and(n == 0, t == 0))
        def _():
            acc_ref[...] = jnp.zeros_like(acc_ref)

        acc_ref[0:1, :] += (jnp.sum(ye, axis=0, keepdims=True) +
                            jnp.sum(yo, axis=0, keepdims=True))
        acc_ref[1:2, :] += (jnp.sum(ye * ye, axis=0, keepdims=True) +
                            jnp.sum(yo * yo, axis=0, keepdims=True))

        @pl.when(jnp.logical_and(n == n_last, t == t_last))
        def _():
            stats_ref[...] = acc_ref[...]

        # lane-dense (last dim = 128) unmasked stores, one slab per column parity.
        y_ref[0] = ye.reshape(TR2, W, Cpad)
        y_ref[1] = yo.reshape(TR2, W, Cpad)

    return kernel


# ----------------------------------------------------------------------------
# Pass 2: folded BatchNorm affine + PReLU (elementwise, fully parallel tiles).
# ----------------------------------------------------------------------------
def _bn_prelu_kernel(y_ref, scale_ref, shift_ref, a_ref, o_ref):
    z = y_ref[...] * scale_ref[...] + shift_ref[...]
    a = a_ref[0]                                          # PReLU scalar from SMEM
    o_ref[...] = jnp.where(z > 0, z, a * z)


def _row_tile(h):
    for cand in (8, 4, 2, 1):
        if h % cand == 0:
            return cand
    return 1


# ----------------------------------------------------------------------------
# PSPUpsample forward
# ----------------------------------------------------------------------------
@jax.jit
def psp_upsample_forward(x_nchw, conv_w, conv_b, bn_gamma, bn_beta, prelu_a):
    """2x bilinear upsample -> 3x3 conv -> BatchNorm(train stats) -> PReLU."""
    del conv_b  # exactly cancelled by the batch-statistics mean subtraction
    N, Cin, H, W = x_nchw.shape
    Cout = conv_w.shape[0]
    assert W % 8 == 0, "kernel assumes W is a multiple of 8"
    # TODO(synk): general W would need wrapper-side padding of W to a multiple of 8.

    TR = _row_tile(H)                 # source rows consumed per grid step
    T = H // TR
    TR2 = 2 * TR
    Cpad = ((Cout + LANES - 1) // LANES) * LANES

    # layout glue (data movement only): NCHW -> NHWC, edge pad, halo'ed row tiles
    x_nhwc = jnp.transpose(x_nchw, (0, 2, 3, 1)).astype(jnp.float32)
    xp = jnp.pad(x_nhwc, ((0, 0), (1, 1), (1, 1), (0, 0)), mode="edge")
    xtiles = jnp.stack([xp[:, t * TR:t * TR + TR + 2] for t in range(T)], axis=1)
    # xtiles: (N, T, TR+2, W+2, Cin)

    # torch conv weight (Cout, Cin, 3, 3) -> (9, Cin, Cpad) with zero-padded lanes
    w9 = jnp.transpose(conv_w.astype(jnp.float32), (2, 3, 1, 0)).reshape(9, Cin, Cout)
    wpad = jnp.pad(w9, ((0, 0), (0, 0), (0, Cpad - Cout)))

    # --- pass 1: fused upsample + conv + BN statistics -----------------------
    y, stats = pl.pallas_call(
        _make_upsample_conv_stats_kernel(TR, W, Cin, Cpad),
        out_shape=(
            jax.ShapeDtypeStruct((N, 2, 2 * H, W, Cpad), jnp.float32),
            jax.ShapeDtypeStruct((2, Cpad), jnp.float32),
        ),
        grid=(N, T),
        in_specs=[
            pl.BlockSpec((None, None, TR + 2, W + 2, Cin),
                         lambda n, t: (n, t, 0, 0, 0)),
            pl.BlockSpec((9, Cin, Cpad), lambda n, t: (0, 0, 0)),
        ],
        out_specs=(
            pl.BlockSpec((None, 2, TR2, W, Cpad), lambda n, t: (n, 0, t, 0, 0)),
            pl.BlockSpec((2, Cpad), lambda n, t: (0, 0)),
        ),
        scratch_shapes=[pltpu.VMEM((2, Cpad), jnp.float32)],
        # BN statistics are a cross-grid reduction -> both axes "arbitrary".
        # TODO(synk): per-core partial stats would allow "parallel" on v7x megacore.
        compiler_params=pltpu.CompilerParams(
            dimension_semantics=("arbitrary", "arbitrary")),
    )(xtiles, wpad)

    # fold BN (training-mode batch stats, biased variance) into one scale/shift
    m_total = jnp.float32(N * (2 * H) * (2 * W))
    mean = stats[0] / m_total
    var = jnp.maximum(stats[1] / m_total - mean * mean, 0.0)
    gamma_p = jnp.pad(bn_gamma.astype(jnp.float32), (0, Cpad - Cout))
    beta_p = jnp.pad(bn_beta.astype(jnp.float32), (0, Cpad - Cout))
    scale = (gamma_p * lax.rsqrt(var + BN_EPS)).reshape(1, Cpad)
    shift = (beta_p - mean * scale[0]).reshape(1, Cpad)
    a_smem = prelu_a.reshape(1).astype(jnp.float32)

    # --- pass 2: normalise + PReLU (independent tiles -> megacore "parallel") --
    out = pl.pallas_call(
        _bn_prelu_kernel,
        out_shape=jax.ShapeDtypeStruct(y.shape, jnp.float32),
        grid=(N, T),
        in_specs=[
            pl.BlockSpec((None, 2, TR2, W, Cpad), lambda n, t: (n, 0, t, 0, 0)),
            pl.BlockSpec((1, Cpad), lambda n, t: (0, 0)),
            pl.BlockSpec((1, Cpad), lambda n, t: (0, 0)),
            pl.BlockSpec(memory_space=pltpu.MemorySpace.SMEM),
        ],
        out_specs=pl.BlockSpec((None, 2, TR2, W, Cpad), lambda n, t: (n, 0, t, 0, 0)),
        compiler_params=pltpu.CompilerParams(
            dimension_semantics=("parallel", "parallel")),
    )(y, scale, shift, a_smem)

    # un-split the output-column parity and return NCHW
    out = out[..., :Cout]                                 # (N, 2, 2H, W, Cout)
    out = jnp.transpose(out, (0, 4, 2, 3, 1))             # (N, Cout, 2H, W, 2)
    return out.reshape(N, Cout, 2 * H, 2 * W)


# ----------------------------------------------------------------------------
# Pure-JAX (non-Pallas) reference for a numeric cross-check.
# ----------------------------------------------------------------------------
def _upsample2x_bilinear_nhwc_ref(x):
    def phases(v, axis):
        m = v.shape[axis]
        first = lax.slice_in_dim(v, 0, 1, axis=axis)
        last = lax.slice_in_dim(v, m - 1, m, axis=axis)
        prev = jnp.concatenate([first, lax.slice_in_dim(v, 0, m - 1, axis=axis)], axis=axis)
        nxt = jnp.concatenate([lax.slice_in_dim(v, 1, m, axis=axis), last], axis=axis)
        return 0.25 * prev + 0.75 * v, 0.75 * v + 0.25 * nxt

    n, h, w, c = x.shape
    r_even, r_odd = phases(x, axis=1)
    ee, eo = phases(r_even, axis=2)
    oe, oo = phases(r_odd, axis=2)
    b0 = jnp.stack([ee, eo], axis=3)
    b1 = jnp.stack([oe, oo], axis=3)
    return jnp.stack([b0, b1], axis=2).reshape(n, 2 * h, 2 * w, c)


def _reference_forward(x_nchw, conv_w, conv_b, bn_gamma, bn_beta, prelu_a):
    n, cin, h, w = x_nchw.shape
    cout = conv_w.shape[0]
    up = _upsample2x_bilinear_nhwc_ref(jnp.transpose(x_nchw, (0, 2, 3, 1)))
    upp = jnp.pad(up, ((0, 0), (1, 1), (1, 1), (0, 0)))
    taps = [upp[:, dy:dy + 2 * h, dx:dx + 2 * w, :]
            for dy in range(3) for dx in range(3)]
    patches = jnp.stack(taps, axis=3).reshape(n * 2 * h * 2 * w, 9 * cin)
    wmat = jnp.transpose(conv_w, (2, 3, 1, 0)).reshape(9 * cin, cout)
    y = jnp.dot(patches, wmat, precision=lax.Precision.HIGHEST) + conv_b
    mean = jnp.mean(y, axis=0, keepdims=True)
    var = jnp.mean((y - mean) ** 2, axis=0, keepdims=True)
    z = (y - mean) * lax.rsqrt(var + BN_EPS) * bn_gamma + bn_beta
    z = jnp.where(z > 0, z, prelu_a * z).reshape(n, 2 * h, 2 * w, cout)
    return jnp.transpose(z, (0, 3, 1, 2))


# ----------------------------------------------------------------------------
# Deterministic example run
# ----------------------------------------------------------------------------
if __name__ == "__main__":
    N, Cin, H, W = 2, 4, 16, 16
    Cout = 8

    keys = jax.random.split(jax.random.PRNGKey(0), 5)
    x = jax.random.normal(keys[0], (N, Cin, H, W), dtype=jnp.float32)
    conv_w = 0.1 * jax.random.normal(keys[1], (Cout, Cin, 3, 3), dtype=jnp.float32)
    conv_b = 0.05 * jax.random.normal(keys[2], (Cout,), dtype=jnp.float32)
    bn_gamma = 1.0 + 0.1 * jax.random.normal(keys[3], (Cout,), dtype=jnp.float32)
    bn_beta = 0.05 * jax.random.normal(keys[4], (Cout,), dtype=jnp.float32)
    prelu_a = jnp.array(0.25, dtype=jnp.float32)          # nn.PReLU() default init

    out = psp_upsample_forward(x, conv_w, conv_b, bn_gamma, bn_beta, prelu_a)
    out = jax.block_until_ready(out)

    assert out.shape == (N, Cout, 2 * H, 2 * W), out.shape
    assert bool(jnp.all(jnp.isfinite(out)))

    ref = _reference_forward(x, conv_w, conv_b, bn_gamma, bn_beta, prelu_a)
    max_err = float(jnp.max(jnp.abs(out - ref)))
    assert max_err < 3e-2, f"max abs err vs reference: {max_err}"

    print("KERNEL_OK")
</pallas_src>

<mosaic_0001>
module attributes {stable_mosaic.version = 11 : i64} {
  func.func @_bn_prelu_kernel(%arg0: i32, %arg1: i32, %arg2: memref<1x2x16x16x128xf32, #tpu.memory_space<vmem>>, %arg3: memref<1x128xf32, #tpu.memory_space<vmem>>, %arg4: memref<1x128xf32, #tpu.memory_space<vmem>>, %arg5: memref<1xf32, #tpu.memory_space<smem>>, %arg6: memref<1x2x16x16x128xf32, #tpu.memory_space<vmem>>) attributes {dimension_semantics = [#tpu.dimension_semantics<parallel>, #tpu.dimension_semantics<parallel>], iteration_bounds = array<i64: 2, 2>, scalar_prefetch = 0 : i64, scratch_operands = 0 : i64, tpu.core_type = #tpu.core_type<tc>, window_params = [{transform_indices = @transform_0, window_bounds = array<i64: 1, 2, 16, 16, 128>}, {pipeline_mode = #tpu.pipeline_mode<synchronous>, transform_indices = @transform_1, window_bounds = array<i64: 1, 128>}, {pipeline_mode = #tpu.pipeline_mode<synchronous>, transform_indices = @transform_2, window_bounds = array<i64: 1, 128>}, {transform_indices = @transform_3, window_bounds = array<i64: 1>}, {transform_indices = @transform_4, window_bounds = array<i64: 1, 2, 16, 16, 128>}]} {
    %c0 = arith.constant 0 : index
    %c0_0 = arith.constant 0 : index
    %c0_1 = arith.constant 0 : index
    %c0_2 = arith.constant 0 : index
    %c0_3 = arith.constant 0 : index
    %0 = vector.load %arg2[%c0, %c0_0, %c0_1, %c0_2, %c0_3] : memref<1x2x16x16x128xf32, #tpu.memory_space<vmem>>, vector<1x2x16x16x128xf32>
    %1 = vector.shape_cast %0 : vector<1x2x16x16x128xf32> to vector<2x16x16x128xf32>
    %c0_4 = arith.constant 0 : index
    %c0_5 = arith.constant 0 : index
    %2 = vector.load %arg3[%c0_4, %c0_5] : memref<1x128xf32, #tpu.memory_space<vmem>>, vector<1x128xf32>
    %3 = vector.shape_cast %2 : vector<1x128xf32> to vector<1x1x1x128xf32>
    %4 = vector.broadcast %3 : vector<1x1x1x128xf32> to vector<2x16x16x128xf32>
    %5 = arith.mulf %1, %4 : vector<2x16x16x128xf32>
    %c0_6 = arith.constant 0 : index
    %c0_7 = arith.constant 0 : index
    %6 = vector.load %arg4[%c0_6, %c0_7] : memref<1x128xf32, #tpu.memory_space<vmem>>, vector<1x128xf32>
    %7 = vector.shape_cast %6 : vector<1x128xf32> to vector<1x1x1x128xf32>
    %8 = vector.broadcast %7 : vector<1x1x1x128xf32> to vector<2x16x16x128xf32>
    %9 = arith.addf %5, %8 : vector<2x16x16x128xf32>
    %c0_8 = arith.constant 0 : index
    %10 = memref.load %arg5[%c0_8] : memref<1xf32, #tpu.memory_space<smem>>
    %cst = arith.constant 0.000000e+00 : f32
    %11 = vector.broadcast %cst : f32 to vector<2x16x16x128xf32>
    %12 = arith.cmpf ogt, %9, %11 : vector<2x16x16x128xf32>
    %13 = vector.broadcast %10 : f32 to vector<2x16x16x128xf32>
    %14 = arith.mulf %13, %9 : vector<2x16x16x128xf32>
    %15 = arith.select %12, %9, %14 : vector<2x16x16x128xi1>, vector<2x16x16x128xf32>
    %c0_9 = arith.constant 0 : index
    %c0_10 = arith.constant 0 : index
    %c0_11 = arith.constant 0 : index
    %c0_12 = arith.constant 0 : index
    %c0_13 = arith.constant 0 : index
    %16 = vector.load %arg6[%c0_9, %c0_10, %c0_11, %c0_12, %c0_13] : memref<1x2x16x16x128xf32, #tpu.memory_space<vmem>>, vector<1x2x16x16x128xf32>
    %17 = vector.shape_cast %16 : vector<1x2x16x16x128xf32> to vector<2x16x16x128xf32>
    %18 = vector.shape_cast %15 : vector<2x16x16x128xf32> to vector<1x2x16x16x128xf32>
    tpu.vector_store %arg6[%c0_9, %c0_10, %c0_11, %c0_12, %c0_13], %18 {strides = array<i32>} : memref<1x2x16x16x128xf32, #tpu.memory_space<vmem>>, vector<1x2x16x16x128xf32>,
    return
  }
  func.func @transform_0(%arg0: i32, %arg1: i32) -> (i32, i32, i32, i32, i32) {
    %c0_i32 = arith.constant 0 : i32
    %c0_i32_0 = arith.constant 0 : i32
    %c0_i32_1 = arith.constant 0 : i32
    %c0_i32_2 = arith.constant 0 : i32
    return %arg0, %c0_i32, %arg1, %c0_i32_0, %c0_i32_1 : i32, i32, i32, i32, i32
  }
  func.func @transform_1(%arg0: i32, %arg1: i32) -> (i32, i32) {
    %c0_i32 = arith.constant 0 : i32
    %c0_i32_0 = arith.constant 0 : i32
    %c0_i32_1 = arith.constant 0 : i32
    return %c0_i32, %c0_i32_0 : i32, i32
  }
  func.func @transform_2(%arg0: i32, %arg1: i32) -> (i32, i32) {
    %c0_i32 = arith.constant 0 : i32
    %c0_i32_0 = arith.constant 0 : i32
    %c0_i32_1 = arith.constant 0 : i32
    return %c0_i32, %c0_i32_0 : i32, i32
  }
  func.func @transform_3(%arg0: i32, %arg1: i32) -> i32 {
    %c0_i32 = arith.constant 0 : i32
    %c0_i32_0 = arith.constant 0 : i32
    return %c0_i32 : i32
  }
  func.func @transform_4(%arg0: i32, %arg1: i32) -> (i32, i32, i32, i32, i32) {
    %c0_i32 = arith.constant 0 : i32
    %c0_i32_0 = arith.constant 0 : i32
    %c0_i32_1 = arith.constant 0 : i32
    %c0_i32_2 = arith.constant 0 : i32
    return %arg0, %c0_i32, %arg1, %c0_i32_0, %c0_i32_1 : i32, i32, i32, i32, i32
  }
}

module attributes {stable_mosaic.version = 11 : i64} {
  func.func @kernel(%arg0: i32, %arg1: i32, %arg2: memref<1x1x10x18x4xf32, #tpu.memory_space<vmem>>, %arg3: memref<9x4x128xf32, #tpu.memory_space<vmem>>, %arg4: memref<1x2x16x16x128xf32, #tpu.memory_space<vmem>>, %arg5: memref<2x128xf32, #tpu.memory_space<vmem>>, %arg6: memref<2x128xf32, #tpu.memory_space<vmem>>) attributes {dimension_semantics = [#tpu.dimension_semantics<arbitrary>, #tpu.dimension_semantics<arbitrary>], iteration_bounds = array<i64: 2, 2>, scalar_prefetch = 0 : i64, scratch_operands = 1 : i64, tpu.core_type = #tpu.core_type<tc>, window_params = [{transform_indices = @transform_0, window_bounds = array<i64: 1, 1, 10, 18, 4>}, {pipeline_mode = #tpu.pipeline_mode<synchronous>, transform_indices = @transform_1, window_bounds = array<i64: 9, 4, 128>}, {transform_indices = @transform_2, window_bounds = array<i64: 1, 2, 16, 16, 128>}, {pipeline_mode = #tpu.pipeline_mode<synchronous>, transform_indices = @transform_3, window_bounds = array<i64: 2, 128>}]} {
    %c0 = arith.constant 0 : index
    %c0_0 = arith.constant 0 : index
    %c0_1 = arith.constant 0 : index
    %c0_2 = arith.constant 0 : index
    %c0_3 = arith.constant 0 : index
    %0 = vector.load %arg2[%c0, %c0_0, %c0_1, %c0_2, %c0_3] : memref<1x1x10x18x4xf32, #tpu.memory_space<vmem>>, vector<1x1x10x18x4xf32>
    %1 = vector.shape_cast %0 : vector<1x1x10x18x4xf32> to vector<10x18x4xf32>
    %2 = vector.extract_strided_slice %1 {offsets = [0, 0, 0], sizes = [9, 18, 4], strides = [1, 1, 1]} : vector<10x18x4xf32> to vector<9x18x4xf32>
    %3 = vector.extract_strided_slice %1 {offsets = [1, 0, 0], sizes = [9, 18, 4], strides = [1, 1, 1]} : vector<10x18x4xf32> to vector<9x18x4xf32>
    %cst = arith.constant 7.500000e-01 : f32
    %4 = vector.broadcast %cst : f32 to vector<9x18x4xf32>
    %5 = arith.mulf %4, %2 : vector<9x18x4xf32>
    %cst_4 = arith.constant 2.500000e-01 : f32
    %6 = vector.broadcast %cst_4 : f32 to vector<9x18x4xf32>
    %7 = arith.mulf %6, %3 : vector<9x18x4xf32>
    %8 = arith.addf %5, %7 : vector<9x18x4xf32>
    %cst_5 = arith.constant 2.500000e-01 : f32
    %9 = vector.broadcast %cst_5 : f32 to vector<9x18x4xf32>
    %10 = arith.mulf %9, %2 : vector<9x18x4xf32>
    %cst_6 = arith.constant 7.500000e-01 : f32
    %11 = vector.broadcast %cst_6 : f32 to vector<9x18x4xf32>
    %12 = arith.mulf %11, %3 : vector<9x18x4xf32>
    %13 = arith.addf %10, %12 : vector<9x18x4xf32>
    %c0_i32 = arith.constant 0 : i32
    %14 = arith.cmpi sgt, %arg1, %c0_i32 : i32
    %15 = arith.extui %14 : i1 to i32
    %16 = arith.sitofp %15 : i32 to f32
    %c1_i32 = arith.constant 1 : i32
    %17 = arith.cmpi slt, %arg1, %c1_i32 : i32
    %18 = arith.extui %17 : i1 to i32
    %19 = arith.sitofp %18 : i32 to f32
    %20 = vector.extract_strided_slice %8 {offsets = [0, 0, 0], sizes = [1, 18, 4], strides = [1, 1, 1]} : vector<9x18x4xf32> to vector<1x18x4xf32>
    %21 = vector.broadcast %16 : f32 to vector<1x18x4xf32>
    %22 = arith.mulf %20, %21 : vector<1x18x4xf32>
    %23 = vector.extract_strided_slice %8 {offsets = [1, 0, 0], sizes = [8, 18, 4], strides = [1, 1, 1]} : vector<9x18x4xf32> to vector<8x18x4xf32>
    %24 = tpu.concatenate %22, %23 in 0 : vector<1x18x4xf32>, vector<8x18x4xf32> -> vector<9x18x4xf32>
    %25 = vector.extract_strided_slice %13 {offsets = [0, 0, 0], sizes = [8, 18, 4], strides = [1, 1, 1]} : vector<9x18x4xf32> to vector<8x18x4xf32>
    %26 = vector.extract_strided_slice %13 {offsets = [8, 0, 0], sizes = [1, 18, 4], strides = [1, 1, 1]} : vector<9x18x4xf32> to vector<1x18x4xf32>
    %27 = vector.broadcast %19 : f32 to vector<1x18x4xf32>
    %28 = arith.mulf %26, %27 : vector<1x18x4xf32>
    %29 = tpu.concatenate %25, %28 in 0 : vector<8x18x4xf32>, vector<1x18x4xf32> -> vector<9x18x4xf32>
    %30 = vector.shape_cast %24 : vector<9x18x4xf32> to vector<9x1x18x4xf32>
    %31 = vector.shape_cast %29 : vector<9x18x4xf32> to vector<9x1x18x4xf32>
    %32 = tpu.concatenate %30, %31 in 1 : vector<9x1x18x4xf32>, vector<9x1x18x4xf32> -> vector<9x2x18x4xf32>
    %33 = vector.shape_cast %32 : vector<9x2x18x4xf32> to vector<18x18x4xf32>
    %34 = vector.extract_strided_slice %33 {offsets = [0, 0, 0], sizes = [18, 17, 4], strides = [1, 1, 1]} : vector<18x18x4xf32> to vector<18x17x4xf32>
    %35 = vector.extract_strided_slice %33 {offsets = [0, 1, 0], sizes = [18, 17, 4], strides = [1, 1, 1]} : vector<18x18x4xf32> to vector<18x17x4xf32>
    %cst_7 = arith.constant 2.500000e-01 : f32
    %36 = vector.broadcast %cst_7 : f32 to vector<18x17x4xf32>
    %37 = arith.mulf %36, %34 : vector<18x17x4xf32>
    %cst_8 = arith.constant 7.500000e-01 : f32
    %38 = vector.broadcast %cst_8 : f32 to vector<18x17x4xf32>
    %39 = arith.mulf %38, %35 : vector<18x17x4xf32>
    %40 = arith.addf %37, %39 : vector<18x17x4xf32>
    %cst_9 = arith.constant 7.500000e-01 : f32
    %41 = vector.broadcast %cst_9 : f32 to vector<18x17x4xf32>
    %42 = arith.mulf %41, %34 : vector<18x17x4xf32>
    %cst_10 = arith.constant 2.500000e-01 : f32
    %43 = vector.broadcast %cst_10 : f32 to vector<18x17x4xf32>
    %44 = arith.mulf %43, %35 : vector<18x17x4xf32>
    %45 = arith.addf %42, %44 : vector<18x17x4xf32>
    %46 = tpu.iota {dimensions = array<i32: 1>} : vector<18x17x4xi32>
    %c16_i32 = arith.constant 16 : i32
    %47 = vector.broadcast %c16_i32 : i32 to vector<18x17x4xi32>
    %48 = arith.cmpi eq, %46, %47 : vector<18x17x4xi32>
    %cst_11 = arith.constant 0.000000e+00 : f32
    %49 = vector.broadcast %cst_11 : f32 to vector<18x17x4xf32>
    %50 = arith.select %48, %49, %40 : vector<18x17x4xi1>, vector<18x17x4xf32>
    %c0_i32_12 = arith.constant 0 : i32
    %51 = vector.broadcast %c0_i32_12 : i32 to vector<18x17x4xi32>
    %52 = arith.cmpi eq, %46, %51 : vector<18x17x4xi32>
    %cst_13 = arith.constant 0.000000e+00 : f32
    %53 = vector.broadcast %cst_13 : f32 to vector<18x17x4xf32>
    %54 = arith.select %52, %53, %45 : vector<18x17x4xi1>, vector<18x17x4xf32>
    %cst_14 = arith.constant 0.000000e+00 : f32
    %55 = vector.broadcast %cst_14 : f32 to vector<256x128xf32>
    %56 = vector.extract_strided_slice %54 {offsets = [0, 0, 0], sizes = [16, 16, 4], strides = [1, 1, 1]} : vector<18x17x4xf32> to vector<16x16x4xf32>
    %57 = vector.shape_cast %56 : vector<16x16x4xf32> to vector<256x4xf32>
    %c0_15 = arith.constant 0 : index
    %c0_16 = arith.constant 0 : index
    %c0_17 = arith.constant 0 : index
    %58 = vector.load %arg3[%c0_15, %c0_16, %c0_17] : memref<9x4x128xf32, #tpu.memory_space<vmem>>, vector<1x4x128xf32>
    %59 = vector.shape_cast %58 : vector<1x4x128xf32> to vector<4x128xf32>
    %cst_18 = arith.constant dense<0.000000e+00> : vector<256x128xf32>
    %60 = tpu.matmul %57, %59, %cst_18 {dimension_numbers = #tpu.dot_dimension_numbers<[1], [0], [0], [1], [0, 0, 1, 1], [], []>} : vector<256x4xf32>, vector<4x128xf32>, vector<256x128xf32> -> vector<256x128xf32>
    %61 = arith.addf %55, %60 : vector<256x128xf32>
    %62 = vector.extract_strided_slice %50 {offsets = [0, 0, 0], sizes = [16, 16, 4], strides = [1, 1, 1]} : vector<18x17x4xf32> to vector<16x16x4xf32>
    %63 = vector.shape_cast %62 : vector<16x16x4xf32> to vector<256x4xf32>
    %c1 = arith.constant 1 : index
    %c0_19 = arith.constant 0 : index
    %c0_20 = arith.constant 0 : index
    %64 = vector.load %arg3[%c1, %c0_19, %c0_20] : memref<9x4x128xf32, #tpu.memory_space<vmem>>, vector<1x4x128xf32>
    %65 = vector.shape_cast %64 : vector<1x4x128xf32> to vector<4x128xf32>
    %cst_21 = arith.constant dense<0.000000e+00> : vector<256x128xf32>
    %66 = tpu.matmul %63, %65, %cst_21 {dimension_numbers = #tpu.dot_dimension_numbers<[1], [0], [0], [1], [0, 0, 1, 1], [], []>} : vector<256x4xf32>, vector<4x128xf32>, vector<256x128xf32> -> vector<256x128xf32>
    %67 = arith.addf %61, %66 : vector<256x128xf32>
    %68 = vector.extract_strided_slice %54 {offsets = [0, 1, 0], sizes = [16, 16, 4], strides = [1, 1, 1]} : vector<18x17x4xf32> to vector<16x16x4xf32>
    %69 = vector.shape_cast %68 : vector<16x16x4xf32> to vector<256x4xf32>
    %c2 = arith.constant 2 : index
    %c0_22 = arith.constant 0 : index
    %c0_23 = arith.constant 0 : index
    %70 = vector.load %arg3[%c2, %c0_22, %c0_23] : memref<9x4x128xf32, #tpu.memory_space<vmem>>, vector<1x4x128xf32>
    %71 = vector.shape_cast %70 : vector<1x4x128xf32> to vector<4x128xf32>
    %cst_24 = arith.constant dense<0.000000e+00> : vector<256x128xf32>
    %72 = tpu.matmul %69, %71, %cst_24 {dimension_numbers = #tpu.dot_dimension_numbers<[1], [0], [0], [1], [0, 0, 1, 1], [], []>} : vector<256x4xf32>, vector<4x128xf32>, vector<256x128xf32> -> vector<256x128xf32>
    %73 = arith.addf %67, %72 : vector<256x128xf32>
    %74 = vector.extract_strided_slice %54 {offsets = [1, 0, 0], sizes = [16, 16, 4], strides = [1, 1, 1]} : vector<18x17x4xf32> to vector<16x16x4xf32>
    %75 = vector.shape_cast %74 : vector<16x16x4xf32> to vector<256x4xf32>
    %c3 = arith.constant 3 : index
    %c0_25 = arith.constant 0 : index
    %c0_26 = arith.constant 0 : index
    %76 = vector.load %arg3[%c3, %c0_25, %c0_26] : memref<9x4x128xf32, #tpu.memory_space<vmem>>, vector<1x4x128xf32>
    %77 = vector.shape_cast %76 : vector<1x4x128xf32> to vector<4x128xf32>
    %cst_27 = arith.constant dense<0.000000e+00> : vector<256x128xf32>
    %78 = tpu.matmul %75, %77, %cst_27 {dimension_numbers = #tpu.dot_dimension_numbers<[1], [0], [0], [1], [0, 0, 1, 1], [], []>} : vector<256x4xf32>, vector<4x128xf32>, vector<256x128xf32> -> vector<256x128xf32>
    %79 = arith.addf %73, %78 : vector<256x128xf32>
    %80 = vector.extract_strided_slice %50 {offsets = [1, 0, 0], sizes = [16, 16, 4], strides = [1, 1, 1]} : vector<18x17x4xf32> to vector<16x16x4xf32>
    %81 = vector.shape_cast %80 : vector<16x16x4xf32> to vector<256x4xf32>
    %c4 = arith.constant 4 : index
    %c0_28 = arith.constant 0 : index
    %c0_29 = arith.constant 0 : index
    %82 = vector.load %arg3[%c4, %c0_28, %c0_29] : memref<9x4x128xf32, #tpu.memory_space<vmem>>, vector<1x4x128xf32>
    %83 = vector.shape_cast %82 : vector<1x4x128xf32> to vector<4x128xf32>
    %cst_30 = arith.constant dense<0.000000e+00> : vector<256x128xf32>
    %84 = tpu.matmul %81, %83, %cst_30 {dimension_numbers = #tpu.dot_dimension_numbers<[1], [0], [0], [1], [0, 0, 1, 1], [], []>} : vector<256x4xf32>, vector<4x128xf32>, vector<256x128xf32> -> vector<256x128xf32>
    %85 = arith.addf %79, %84 : vector<256x128xf32>
    %86 = vector.extract_strided_slice %54 {offsets = [1, 1, 0], sizes = [16, 16, 4], strides = [1, 1, 1]} : vector<18x17x4xf32> to vector<16x16x4xf32>
    %87 = vector.shape_cast %86 : vector<16x16x4xf32> to vector<256x4xf32>
    %c5 = arith.constant 5 : index
    %c0_31 = arith.constant 0 : index
    %c0_32 = arith.constant 0 : index
    %88 = vector.load %arg3[%c5, %c0_31, %c0_32] : memref<9x4x128xf32, #tpu.memory_space<vmem>>, vector<1x4x128xf32>
    %89 = vector.shape_cast %88 : vector<1x4x128xf32> to vector<4x128xf32>
    %cst_33 = arith.constant dense<0.000000e+00> : vector<256x128xf32>
    %90 = tpu.matmul %87, %89, %cst_33 {dimension_numbers = #tpu.dot_dimension_numbers<[1], [0], [0], [1], [0, 0, 1, 1], [], []>} : vector<256x4xf32>, vector<4x128xf32>, vector<256x128xf32> -> vector<256x128xf32>
    %91 = arith.addf %85, %90 : vector<256x128xf32>
    %92 = vector.extract_strided_slice %54 {offsets = [2, 0, 0], sizes = [16, 16, 4], strides = [1, 1, 1]} : vector<18x17x4xf32> to vector<16x16x4xf32>
    %93 = vector.shape_cast %92 : vector<16x16x4xf32> to vector<256x4xf32>
    %c6 = arith.constant 6 : index
    %c0_34 = arith.constant 0 : index
    %c0_35 = arith.constant 0 : index
    %94 = vector.load %arg3[%c6, %c0_34, %c0_35] : memref<9x4x128xf32, #tpu.memory_space<vmem>>, vector<1x4x128xf32>
    %95 = vector.shape_cast %94 : vector<1x4x128xf32> to vector<4x128xf32>
    %cst_36 = arith.constant dense<0.000000e+00> : vector<256x128xf32>
    %96 = tpu.matmul %93, %95, %cst_36 {dimension_numbers = #tpu.dot_dimension_numbers<[1], [0], [0], [1], [0, 0, 1, 1], [], []>} : vector<256x4xf32>, vector<4x128xf32>, vector<256x128xf32> -> vector<256x128xf32>
    %97 = arith.addf %91, %96 : vector<256x128xf32>
    %98 = vector.extract_strided_slice %50 {offsets = [2, 0, 0], sizes = [16, 16, 4], strides = [1, 1, 1]} : vector<18x17x4xf32> to vector<16x16x4xf32>
    %99 = vector.shape_cast %98 : vector<16x16x4xf32> to vector<256x4xf32>
    %c7 = arith.constant 7 : index
    %c0_37 = arith.constant 0 : index
    %c0_38 = arith.constant 0 : index
    %100 = vector.load %arg3[%c7, %c0_37, %c0_38] : memref<9x4x128xf32, #tpu.memory_space<vmem>>, vector<1x4x128xf32>
    %101 = vector.shape_cast %100 : vector<1x4x128xf32> to vector<4x128xf32>
    %cst_39 = arith.constant dense<0.000000e+00> : vector<256x128xf32>
    %102 = tpu.matmul %99, %101, %cst_39 {dimension_numbers = #tpu.dot_dimension_numbers<[1], [0], [0], [1], [0, 0, 1, 1], [], []>} : vector<256x4xf32>, vector<4x128xf32>, vector<256x128xf32> -> vector<256x128xf32>
    %103 = arith.addf %97, %102 : vector<256x128xf32>
    %104 = vector.extract_strided_slice %54 {offsets = [2, 1, 0], sizes = [16, 16, 4], strides = [1, 1, 1]} : vector<18x17x4xf32> to vector<16x16x4xf32>
    %105 = vector.shape_cast %104 : vector<16x16x4xf32> to vector<256x4xf32>
    %c8 = arith.constant 8 : index
    %c0_40 = arith.constant 0 : index
    %c0_41 = arith.constant 0 : index
    %106 = vector.load %arg3[%c8, %c0_40, %c0_41] : memref<9x4x128xf32, #tpu.memory_space<vmem>>, vector<1x4x128xf32>
    %107 = vector.shape_cast %106 : vector<1x4x128xf32> to vector<4x128xf32>
    %cst_42 = arith.constant dense<0.000000e+00> : vector<256x128xf32>
    %108 = tpu.matmul %105, %107, %cst_42 {dimension_numbers = #tpu.dot_dimension_numbers<[1], [0], [0], [1], [0, 0, 1, 1], [], []>} : vector<256x4xf32>, vector<4x128xf32>, vector<256x128xf32> -> vector<256x128xf32>
    %109 = arith.addf %103, %108 : vector<256x128xf32>
    %cst_43 = arith.constant 0.000000e+00 : f32
    %110 = vector.broadcast %cst_43 : f32 to vector<256x128xf32>
    %111 = vector.extract_strided_slice %50 {offsets = [0, 0, 0], sizes = [16, 16, 4], strides = [1, 1, 1]} : vector<18x17x4xf32> to vector<16x16x4xf32>
    %112 = vector.shape_cast %111 : vector<16x16x4xf32> to vector<256x4xf32>
    %c0_44 = arith.constant 0 : index
    %c0_45 = arith.constant 0 : index
    %c0_46 = arith.constant 0 : index
    %113 = vector.load %arg3[%c0_44, %c0_45, %c0_46] : memref<9x4x128xf32, #tpu.memory_space<vmem>>, vector<1x4x128xf32>
    %114 = vector.shape_cast %113 : vector<1x4x128xf32> to vector<4x128xf32>
    %cst_47 = arith.constant dense<0.000000e+00> : vector<256x128xf32>
    %115 = tpu.matmul %112, %114, %cst_47 {dimension_numbers = #tpu.dot_dimension_numbers<[1], [0], [0], [1], [0, 0, 1, 1], [], []>} : vector<256x4xf32>, vector<4x128xf32>, vector<256x128xf32> -> vector<256x128xf32>
    %116 = arith.addf %110, %115 : vector<256x128xf32>
    %117 = vector.extract_strided_slice %54 {offsets = [0, 1, 0], sizes = [16, 16, 4], strides = [1, 1, 1]} : vector<18x17x4xf32> to vector<16x16x4xf32>
    %118 = vector.shape_cast %117 : vector<16x16x4xf32> to vector<256x4xf32>
    %c1_48 = arith.constant 1 : index
    %c0_49 = arith.constant 0 : index
    %c0_50 = arith.constant 0 : index
    %119 = vector.load %arg3[%c1_48, %c0_49, %c0_50] : memref<9x4x128xf32, #tpu.memory_space<vmem>>, vector<1x4x128xf32>
    %120 = vector.shape_cast %119 : vector<1x4x128xf32> to vector<4x128xf32>
    %cst_51 = arith.constant dense<0.000000e+00> : vector<256x128xf32>
    %121 = tpu.matmul %118, %120, %cst_51 {dimension_numbers = #tpu.dot_dimension_numbers<[1], [0], [0], [1], [0, 0, 1, 1], [], []>} : vector<256x4xf32>, vector<4x128xf32>, vector<256x128xf32> -> vector<256x128xf32>
    %122 = arith.addf %116, %121 : vector<256x128xf32>
    %123 = vector.extract_strided_slice %50 {offsets = [0, 1, 0], sizes = [16, 16, 4], strides = [1, 1, 1]} : vector<18x17x4xf32> to vector<16x16x4xf32>
    %124 = vector.shape_cast %123 : vector<16x16x4xf32> to vector<256x4xf32>
    %c2_52 = arith.constant 2 : index
    %c0_53 = arith.constant 0 : index
    %c0_54 = arith.constant 0 : index
    %125 = vector.load %arg3[%c2_52, %c0_53, %c0_54] : memref<9x4x128xf32, #tpu.memory_space<vmem>>, vector<1x4x128xf32>
    %126 = vector.shape_cast %125 : vector<1x4x128xf32> to vector<4x128xf32>
    %cst_55 = arith.constant dense<0.000000e+00> : vector<256x128xf32>
    %127 = tpu.matmul %124, %126, %cst_55 {dimension_numbers = #tpu.dot_dimension_numbers<[1], [0], [0], [1], [0, 0, 1, 1], [], []>} : vector<256x4xf32>, vector<4x128xf32>, vector<256x128xf32> -> vector<256x128xf32>
    %128 = arith.addf %122, %127 : vector<256x128xf32>
    %129 = vector.extract_strided_slice %50 {offsets = [1, 0, 0], sizes = [16, 16, 4], strides = [1, 1, 1]} : vector<18x17x4xf32> to vector<16x16x4xf32>
    %130 = vector.shape_cast %129 : vector<16x16x4xf32> to vector<256x4xf32>
    %c3_56 = arith.constant 3 : index
    %c0_57 = arith.constant 0 : index
    %c0_58 = arith.constant 0 : index
    %131 = vector.load %arg3[%c3_56, %c0_57, %c0_58] : memref<9x4x128xf32, #tpu.memory_space<vmem>>, vector<1x4x128xf32>
    %132 = vector.shape_cast %131 : vector<1x4x128xf32> to vector<4x128xf32>
    %cst_59 = arith.constant dense<0.000000e+00> : vector<256x128xf32>
    %133 = tpu.matmul %130, %132, %cst_59 {dimension_numbers = #tpu.dot_dimension_numbers<[1], [0], [0], [1], [0, 0, 1, 1], [], []>} : vector<256x4xf32>, vector<4x128xf32>, vector<256x128xf32> -> vector<256x128xf32>
    %134 = arith.addf %128, %133 : vector<256x128xf32>
    %135 = vector.extract_strided_slice %54 {offsets = [1, 1, 0], sizes = [16, 16, 4], strides = [1, 1, 1]} : vector<18x17x4xf32> to vector<16x16x4xf32>
    %136 = vector.shape_cast %135 : vector<16x16x4xf32> to vector<256x4xf32>
    %c4_60 = arith.constant 4 : index
    %c0_61 = arith.constant 0 : index
    %c0_62 = arith.constant 0 : index
    %137 = vector.load %arg3[%c4_60, %c0_61, %c0_62] : memref<9x4x128xf32, #tpu.memory_space<vmem>>, vector<1x4x128xf32>
    %138 = vector.shape_cast %137 : vector<1x4x128xf32> to vector<4x128xf32>
    %cst_63 = arith.constant dense<0.000000e+00> : vector<256x128xf32>
    %139 = tpu.matmul %136, %138, %cst_63 {dimension_numbers = #tpu.dot_dimension_numbers<[1], [0], [0], [1], [0, 0, 1, 1], [], []>} : vector<256x4xf32>, vector<4x128xf32>, vector<256x128xf32> -> vector<256x128xf32>
    %140 = arith.addf %134, %139 : vector<256x128xf32>
    %141 = vector.extract_strided_slice %50 {offsets = [1, 1, 0], sizes = [16, 16, 4], strides = [1, 1, 1]} : vector<18x17x4xf32> to vector<16x16x4xf32>
    %142 = vector.shape_cast %141 : vector<16x16x4xf32> to vector<256x4xf32>
    %c5_64 = arith.constant 5 : index
    %c0_65 = arith.constant 0 : index
    %c0_66 = arith.constant 0 : index
    %143 = vector.load %arg3[%c5_64, %c0_65, %c0_66] : memref<9x4x128xf32, #tpu.memory_space<vmem>>, vector<1x4x128xf32>
    %144 = vector.shape_cast %143 : vector<1x4x128xf32> to vector<4x128xf32>
    %cst_67 = arith.constant dense<0.000000e+00> : vector<256x128xf32>
    %145 = tpu.matmul %142, %144, %cst_67 {dimension_numbers = #tpu.dot_dimension_numbers<[1], [0], [0], [1], [0, 0, 1, 1], [], []>} : vector<256x4xf32>, vector<4x128xf32>, vector<256x128xf32> -> vector<256x128xf32>
    %146 = arith.addf %140, %145 : vector<256x128xf32>
    %147 = vector.extract_strided_slice %50 {offsets = [2, 0, 0], sizes = [16, 16, 4], strides = [1, 1, 1]} : vector<18x17x4xf32> to vector<16x16x4xf32>
    %148 = vector.shape_cast %147 : vector<16x16x4xf32> to vector<256x4xf32>
    %c6_68 = arith.constant 6 : index
    %c0_69 = arith.constant 0 : index
    %c0_70 = arith.constant 0 : index
    %149 = vector.load %arg3[%c6_68, %c0_69, %c0_70] : memref<9x4x128xf32, #tpu.memory_space<vmem>>, vector<1x4x128xf32>
    %150 = vector.shape_cast %149 : vector<1x4x128xf32> to vector<4x128xf32>
    %cst_71 = arith.constant dense<0.000000e+00> : vector<256x128xf32>
    %151 = tpu.matmul %148, %150, %cst_71 {dimension_numbers = #tpu.dot_dimension_numbers<[1], [0], [0], [1], [0, 0, 1, 1], [], []>} : vector<256x4xf32>, vector<4x128xf32>, vector<256x128xf32> -> vector<256x128xf32>
    %152 = arith.addf %146, %151 : vector<256x128xf32>
    %153 = vector.extract_strided_slice %54 {offsets = [2, 1, 0], sizes = [16, 16, 4], strides = [1, 1, 1]} : vector<18x17x4xf32> to vector<16x16x4xf32>
    %154 = vector.shape_cast %153 : vector<16x16x4xf32> to vector<256x4xf32>
    %c7_72 = arith.constant 7 : index
    %c0_73 = arith.constant 0 : index
    %c0_74 = arith.constant 0 : index
    %155 = vector.load %arg3[%c7_72, %c0_73, %c0_74] : memref<9x4x128xf32, #tpu.memory_space<vmem>>, vector<1x4x128xf32>
    %156 = vector.shape_cast %155 : vector<1x4x128xf32> to vector<4x128xf32>
    %cst_75 = arith.constant dense<0.000000e+00> : vector<256x128xf32>
    %157 = tpu.matmul %154, %156, %cst_75 {dimension_numbers = #tpu.dot_dimension_numbers<[1], [0], [0], [1], [0, 0, 1, 1], [], []>} : vector<256x4xf32>, vector<4x128xf32>, vector<256x128xf32> -> vector<256x128xf32>
    %158 = arith.addf %152, %157 : vector<256x128xf32>
    %159 = vector.extract_strided_slice %50 {offsets = [2, 1, 0], sizes = [16, 16, 4], strides = [1, 1, 1]} : vector<18x17x4xf32> to vector<16x16x4xf32>
    %160 = vector.shape_cast %159 : vector<16x16x4xf32> to vector<256x4xf32>
    %c8_76 = arith.constant 8 : index
    %c0_77 = arith.constant 0 : index
    %c0_78 = arith.constant 0 : index
    %161 = vector.load %arg3[%c8_76, %c0_77, %c0_78] : memref<9x4x128xf32, #tpu.memory_space<vmem>>, vector<1x4x128xf32>
    %162 = vector.shape_cast %161 : vector<1x4x128xf32> to vector<4x128xf32>
    %cst_79 = arith.constant dense<0.000000e+00> : vector<256x128xf32>
    %163 = tpu.matmul %160, %162, %cst_79 {dimension_numbers = #tpu.dot_dimension_numbers<[1], [0], [0], [1], [0, 0, 1, 1], [], []>} : vector<256x4xf32>, vector<4x128xf32>, vector<256x128xf32> -> vector<256x128xf32>
    %164 = arith.addf %158, %163 : vector<256x128xf32>
    %c0_i32_80 = arith.constant 0 : i32
    %165 = arith.cmpi eq, %arg0, %c0_i32_80 : i32
    %c0_i32_81 = arith.constant 0 : i32
    %166 = arith.cmpi eq, %arg1, %c0_i32_81 : i32
    %167 = arith.andi %165, %166 : i1
    %168 = arith.extui %167 : i1 to i32
    %c0_i32_82 = arith.constant 0 : i32
    %169 = arith.cmpi ne, %168, %c0_i32_82 : i32
    scf.if %169 {
      %cst_108 = arith.constant 0.000000e+00 : f32
      %201 = vector.broadcast %cst_108 : f32 to vector<2x128xf32>
      %c0_109 = arith.constant 0 : index
      %c0_110 = arith.constant 0 : index
      %202 = vector.load %arg6[%c0_109, %c0_110] : memref<2x128xf32, #tpu.memory_space<vmem>>, vector<2x128xf32>
      tpu.vector_store %arg6[%c0_109, %c0_110], %201 {strides = array<i32>} : memref<2x128xf32, #tpu.memory_space<vmem>>, vector<2x128xf32>,
    } else {
    }
    %c0_83 = arith.constant 0 : index
    %c0_84 = arith.constant 0 : index
    %170 = vector.load %arg6[%c0_83, %c0_84] : memref<2x128xf32, #tpu.memory_space<vmem>>, vector<1x128xf32>
    %cst_85 = arith.constant dense<0.000000e+00> : vector<128xf32>
    %171 = vector.multi_reduction <add>, %109, %cst_85 [0] : vector<256x128xf32> to vector<128xf32>
    %172 = vector.shape_cast %171 : vector<128xf32> to vector<1x128xf32>
    %cst_86 = arith.constant dense<0.000000e+00> : vector<128xf32>
    %173 = vector.multi_reduction <add>, %164, %cst_86 [0] : vector<256x128xf32> to vector<128xf32>
    %174 = vector.shape_cast %173 : vector<128xf32> to vector<1x128xf32>
    %175 = arith.addf %172, %174 : vector<1x128xf32>
    %176 = arith.addf %170, %175 : vector<1x128xf32>
    %c0_87 = arith.constant 0 : index
    %c0_88 = arith.constant 0 : index
    %177 = vector.load %arg6[%c0_87, %c0_88] : memref<2x128xf32, #tpu.memory_space<vmem>>, vector<1x128xf32>
    tpu.vector_store %arg6[%c0_87, %c0_88], %176 {strides = array<i32>} : memref<2x128xf32, #tpu.memory_space<vmem>>, vector<1x128xf32>,
    %c1_89 = arith.constant 1 : index
    %c0_90 = arith.constant 0 : index
    %178 = vector.load %arg6[%c1_89, %c0_90] : memref<2x128xf32, #tpu.memory_space<vmem>>, vector<1x128xf32>
    %179 = arith.mulf %109, %109 : vector<256x128xf32>
    %cst_91 = arith.constant dense<0.000000e+00> : vector<128xf32>
    %180 = vector.multi_reduction <add>, %179, %cst_91 [0] : vector<256x128xf32> to vector<128xf32>
    %181 = vector.shape_cast %180 : vector<128xf32> to vector<1x128xf32>
    %182 = arith.mulf %164, %164 : vector<256x128xf32>
    %cst_92 = arith.constant dense<0.000000e+00> : vector<128xf32>
    %183 = vector.multi_reduction <add>, %182, %cst_92 [0] : vector<256x128xf32> to vector<128xf32>
    %184 = vector.shape_cast %183 : vector<128xf32> to vector<1x128xf32>
    %185 = arith.addf %181, %184 : vector<1x128xf32>
    %186 = arith.addf %178, %185 : vector<1x128xf32>
    %c1_93 = arith.constant 1 : index
    %c0_94 = arith.constant 0 : index
    %187 = vector.load %arg6[%c1_93, %c0_94] : memref<2x128xf32, #tpu.memory_space<vmem>>, vector<1x128xf32>
    tpu.vector_store %arg6[%c1_93, %c0_94], %186 {strides = array<i32>} : memref<2x128xf32, #tpu.memory_space<vmem>>, vector<1x128xf32>,
    %c1_i32_95 = arith.constant 1 : i32
    %188 = arith.cmpi eq, %arg0, %c1_i32_95 : i32
    %c1_i32_96 = arith.constant 1 : i32
    %189 = arith.cmpi eq, %arg1, %c1_i32_96 : i32
    %190 = arith.andi %188, %189 : i1
    %191 = arith.extui %190 : i1 to i32
    %c0_i32_97 = arith.constant 0 : i32
    %192 = arith.cmpi ne, %191, %c0_i32_97 : i32
    scf.if %192 {
      %c0_108 = arith.constant 0 : index
      %c0_109 = arith.constant 0 : index
      %201 = vector.load %arg6[%c0_108, %c0_109] : memref<2x128xf32, #tpu.memory_space<vmem>>, vector<2x128xf32>
      %c0_110 = arith.constant 0 : index
      %c0_111 = arith.constant 0 : index
      %202 = vector.load %arg5[%c0_110, %c0_111] : memref<2x128xf32, #tpu.memory_space<vmem>>, vector<2x128xf32>
      tpu.vector_store %arg5[%c0_110, %c0_111], %201 {strides = array<i32>} : memref<2x128xf32, #tpu.memory_space<vmem>>, vector<2x128xf32>,
    } else {
    }
    %193 = vector.shape_cast %109 : vector<256x128xf32> to vector<16x16x128xf32>
    %c0_98 = arith.constant 0 : index
    %c0_99 = arith.constant 0 : index
    %c0_100 = arith.constant 0 : index
    %c0_101 = arith.constant 0 : index
    %c0_102 = arith.constant 0 : index
    %194 = vector.load %arg4[%c0_98, %c0_99, %c0_100, %c0_101, %c0_102] : memref<1x2x16x16x128xf32, #tpu.memory_space<vmem>>, vector<1x1x16x16x128xf32>
    %195 = vector.shape_cast %194 : vector<1x1x16x16x128xf32> to vector<16x16x128xf32>
    %196 = vector.shape_cast %193 : vector<16x16x128xf32> to vector<1x1x16x16x128xf32>
    tpu.vector_store %arg4[%c0_98, %c0_99, %c0_100, %c0_101, %c0_102], %196 {strides = array<i32>} : memref<1x2x16x16x128xf32, #tpu.memory_space<vmem>>, vector<1x1x16x16x128xf32>,
    %197 = vector.shape_cast %164 : vector<256x128xf32> to vector<16x16x128xf32>
    %c0_103 = arith.constant 0 : index
    %c1_104 = arith.constant 1 : index
    %c0_105 = arith.constant 0 : index
    %c0_106 = arith.constant 0 : index
    %c0_107 = arith.constant 0 : index
    %198 = vector.load %arg4[%c0_103, %c1_104, %c0_105, %c0_106, %c0_107] : memref<1x2x16x16x128xf32, #tpu.memory_space<vmem>>, vector<1x1x16x16x128xf32>
    %199 = vector.shape_cast %198 : vector<1x1x16x16x128xf32> to vector<16x16x128xf32>
    %200 = vector.shape_cast %197 : vector<16x16x128xf32> to vector<1x1x16x16x128xf32>
    tpu.vector_store %arg4[%c0_103, %c1_104, %c0_105, %c0_106, %c0_107], %200 {strides = array<i32>} : memref<1x2x16x16x128xf32, #tpu.memory_space<vmem>>, vector<1x1x16x16x128xf32>,
    return
  }
  func.func @transform_0(%arg0: i32, %arg1: i32) -> (i32, i32, i32, i32, i32) {
    %c0_i32 = arith.constant 0 : i32
    %c0_i32_0 = arith.constant 0 : i32
    %c0_i32_1 = arith.constant 0 : i32
    %c0_i32_2 = arith.constant 0 : i32
    return %arg0, %arg1, %c0_i32, %c0_i32_0, %c0_i32_1 : i32, i32, i32, i32, i32
  }
  func.func @transform_1(%arg0: i32, %arg1: i32) -> (i32, i32, i32) {
    %c0_i32 = arith.constant 0 : i32
    %c0_i32_0 = arith.constant 0 : i32
    %c0_i32_1 = arith.constant 0 : i32
    %c0_i32_2 = arith.constant 0 : i32
    return %c0_i32, %c0_i32_0, %c0_i32_1 : i32, i32, i32
  }
  func.func @transform_2(%arg0: i32, %arg1: i32) -> (i32, i32, i32, i32, i32) {
    %c0_i32 = arith.constant 0 : i32
    %c0_i32_0 = arith.constant 0 : i32
    %c0_i32_1 = arith.constant 0 : i32
    %c0_i32_2 = arith.constant 0 : i32
    return %arg0, %c0_i32, %arg1, %c0_i32_0, %c0_i32_1 : i32, i32, i32, i32, i32
  }
  func.func @transform_3(%arg0: i32, %arg1: i32) -> (i32, i32) {
    %c0_i32 = arith.constant 0 : i32
    %c0_i32_0 = arith.constant 0 : i32
    %c0_i32_1 = arith.constant 0 : i32
    return %c0_i32, %c0_i32_0 : i32, i32
  }
}

</mosaic_0001>

<llo_original>
// kernel: psp_upsample_forward.3
$region0: #{psp_upsample_forward.3}
  #allocation0 [shape = 'u32[]', space=smem, size = 0x4, offset = 0x4, fixed_abs, tag = 'smem constant byte address 0x4 - core index']
  #allocation1 [shape = 'u32[72,128]{1,0:T(1,128)}', space=vmem, size = 0x9000, scoped, tag = 'internal scratch']
  #allocation2 [shape = 'f32[1]{0:T(128)S(6)}', space=smem, size = 0x200, scoped, tag = 'scoped memory for psp_upsample_forward.3']
  %s0 = inlined_call_operand.vmem [shape: f32[2,2,32,16,128], index: 0, kind: input, shape index: {}]
  %s1 = inlined_call_operand.vmem [shape: f32[1,128], index: 1, kind: input, shape index: {}]
  %s2 = inlined_call_operand.vmem [shape: f32[1,128], index: 2, kind: input, shape index: {}]
  %s3 = inlined_call_operand.<no memory space> [shape: f32[1], index: 3, kind: input, shape index: {}]
  %s4 = inlined_call_operand.vmem [shape: f32[2,2,32,16,128], index: 4, kind: output, shape index: {}]
  %s5 = sld [smem:[#allocation0]]
  $region121: #{psp_upsample_forward.3} parent=0
    _
  %s7 = ssub.s32 1, %s5
  %s8 = scalar_select 0, %s7, %s5
  %9 = sst [smem:[#allocation2]] %s3
  $region1: #{psp_upsample_forward.3} parent=0
    #allocation3 [shape = 'u8[524288]{0}', space=vmem, size = 0x80000, scoped, tag = 'input window, operand 0']
    #allocation4 [shape = 'u8[524288]{0}', space=vmem, size = 0x80000, scoped, tag = 'output window, operand 0']
    loop: start=0, step=1, limit=6
    $region2: #{psp_upsample_forward.3} parent=1 // loop_pre_header
      _
    $region3: #{psp_upsample_forward.3} parent=1 // loop_header
      %s11 = sphi 0, %s15
      %p12 = scmp.ge.s32.totalorder %s11, 6
      %s18 = sphi 0, %s30
      %s19 = sphi 0, %s26
      %s20 = sphi 0, %s18
      %s21 = sphi 0, %s19
      %s22 = sphi 0, %s20
      %s23 = sphi 0, %s21
      %s35 = sphi 0, %s37
      %s38 = sphi 0, %s35
      %s39 = sphi 0, %s38
      %s55 = sphi 0, %s39
      %s59 = sphi 0, %s59
      %s61 = sphi 0, %s59
      %s62 = sphi 0, %s61
      %s76 = sphi 0, %s62
      %s80 = sphi 0, %s80
      %s82 = sphi 0, %s80
      %s83 = sphi 0, %s82
      %s97 = sphi 0, %s83
      %s101 = sphi 0, %s101
      %s103 = sphi 0, %s101
      %s104 = sphi 0, %s103
      %s118 = sphi 0, %s104
      %s126 = sphi 0, %s128
      %s129 = sphi 0, %s126
      %s130 = sphi 0, %s129
      %s146 = sphi 0, %s130
    $region4: #{psp_upsample_forward.3} parent=1 // loop_header_branch
      %14 = sbr.rel (%p12) target = $region8
    $region5: #{psp_upsample_forward.3} parent=1 // loop_body
      %s16 = ssub.s32 %s11, 1
      %s17 = ssub.s32 %s11, 2
      %s24 = sadd.s32 1, %s19
      %p25 = scmp.ge.s32.totalorder %s24, 2
      %s26 = scalar_select %p25, 0, %s24
      %s27 = sadd.s32 1, %s18
      %s28 = scalar_select %p25, %s27, %s18
      %p29 = scmp.ge.s32.totalorder %s28, 2
      %s30 = scalar_select %p29, 0, %s28
      %s31 = ssub.s32 %s18, %s30
      %s32 = ssub.s32 %s19, %s26
      %s33 = sor.u32 %s31, %s32
      %p34 = scmp.eq.s32.totalorder %s33, 0
      %s36 = sadd.s32 %s35, 1
      %s37 = scalar_select %p34, %s35, %s36
      %p40 = pneg %p34
      %p41 = scmp.eq.s32.totalorder %s11, 3
      %p42 = por %p40, %p41
      %p43 = scmp.ne.s32.totalorder %s35, %s38
      %p44 = scmp.eq.s32.totalorder %s11, 0
      %p45 = por %p43, %p44
      %p46 = scmp.ne.s32.totalorder %s35, %s38
      %p47 = scmp.eq.s32.totalorder %s16, 3
      %p48 = por %p46, %p47
      %p49 = scmp.ne.s32.totalorder %s38, %s39
      %p50 = scmp.eq.s32.totalorder %s16, 0
      %p51 = por %p49, %p50
      %p52 = scmp.ne.s32.totalorder %s38, %s39
      %p53 = scmp.eq.s32.totalorder %s17, 3
      %p54 = por %p52, %p53
      %p56 = scmp.ne.s32.totalorder %s39, %s55
      %p57 = scmp.eq.s32.totalorder %s17, 0
      %p58 = por %p56, %p57
      %s60 = sadd.s32 %s59, 1
      %p63 = scmp.eq.s32.totalorder %s11, 3
      %p64 = scmp.ne.s32.totalorder %s59, %s61
      %p65 = scmp.eq.s32.totalorder %s11, 0
      %p66 = por %p64, %p65
      %p67 = scmp.ne.s32.totalorder %s59, %s61
      %p68 = scmp.eq.s32.totalorder %s16, 3
      %p69 = por %p67, %p68
      %p70 = scmp.ne.s32.totalorder %s61, %s62
      %p71 = scmp.eq.s32.totalorder %s16, 0
      %p72 = por %p70, %p71
      %p73 = scmp.ne.s32.totalorder %s61, %s62
      %p74 = scmp.eq.s32.totalorder %s17, 3
      %p75 = por %p73, %p74
      %p77 = scmp.ne.s32.totalorder %s62, %s76
      %p78 = scmp.eq.s32.totalorder %s17, 0
      %p79 = por %p77, %p78
      %s81 = sadd.s32 %s80, 1
      %p84 = scmp.eq.s32.totalorder %s11, 3
      %p85 = scmp.ne.s32.totalorder %s80, %s82
      %p86 = scmp.eq.s32.totalorder %s11, 0
      %p87 = por %p85, %p86
      %p88 = scmp.ne.s32.totalorder %s80, %s82
      %p89 = scmp.eq.s32.totalorder %s16, 3
      %p90 = por %p88, %p89
      %p91 = scmp.ne.s32.totalorder %s82, %s83
      %p92 = scmp.eq.s32.totalorder %s16, 0
      %p93 = por %p91, %p92
      %p94 = scmp.ne.s32.totalorder %s82, %s83
      %p95 = scmp.eq.s32.totalorder %s17, 3
      %p96 = por %p94, %p95
      %p98 = scmp.ne.s32.totalorder %s83, %s97
      %p99 = scmp.eq.s32.totalorder %s17, 0
      %p100 = por %p98, %p99
      %s102 = sadd.s32 %s101, 1
      %p105 = scmp.eq.s32.totalorder %s11, 3
      %p106 = scmp.ne.s32.totalorder %s101, %s103
      %p107 = scmp.eq.s32.totalorder %s11, 0
      %p108 = por %p106, %p107
      %p109 = scmp.ne.s32.totalorder %s101, %s103
      %p110 = scmp.eq.s32.totalorder %s16, 3
      %p111 = por %p109, %p110
      %p112 = scmp.ne.s32.totalorder %s103, %s104
      %p113 = scmp.eq.s32.totalorder %s16, 0
      %p114 = por %p112, %p113
      %p115 = scmp.ne.s32.totalorder %s103, %s104
      %p116 = scmp.eq.s32.totalorder %s17, 3
      %p117 = por %p115, %p116
      %p119 = scmp.ne.s32.totalorder %s104, %s118
      %p120 = scmp.eq.s32.totalorder %s17, 0
      %p121 = por %p119, %p120
      %s122 = ssub.s32 %s18, %s30
      %s123 = ssub.s32 %s19, %s26
      %s124 = sor.u32 %s122, %s123
      %p125 = scmp.eq.s32.totalorder %s124, 0
      %s127 = sadd.s32 %s126, 1
      %s128 = scalar_select %p125, %s126, %s127
      %p131 = pneg %p125
      %p132 = scmp.eq.s32.totalorder %s11, 3
      %p133 = por %p131, %p132
      %p134 = scmp.ne.s32.totalorder %s126, %s129
      %p135 = scmp.eq.s32.totalorder %s11, 0
      %p136 = por %p134, %p135
      %p137 = scmp.ne.s32.totalorder %s126, %s129
      %p138 = scmp.eq.s32.totalorder %s16, 3
      %p139 = por %p137, %p138
      %p140 = scmp.ne.s32.totalorder %s129, %s130
      %p141 = scmp.eq.s32.totalorder %s16, 0
      %p142 = por %p140, %p141
      %p143 = scmp.ne.s32.totalorder %s129, %s130
      %p144 = scmp.eq.s32.totalorder %s17, 3
      %p145 = por %p143, %p144
      %p147 = scmp.ne.s32.totalorder %s130, %s146
      %p148 = scmp.eq.s32.totalorder %s17, 0
      %p149 = por %p147, %p148
      %p150 = scmp.le.s32.totalorder 1, %s11
      %p151 = scmp.lt.s32.totalorder %s11, 5
      %p152 = pnand %p150, %p151
      %p153 = pneg %p152
      // Predicated region
      $region9: #{psp_upsample_forward.3} parent=5 // pred_check
        _
      $region10: #{psp_upsample_forward.3} parent=5 // pred_check_branch
        %155 = sbr.rel (%p152) target = $region12
      $region11: #{psp_upsample_forward.3} parent=5 // pred_region
        %s156 = ssub.s32 %s11, 1
        // Predicated region
        $region13: #{psp_upsample_forward.3} parent=11 // pred_check
          %p157 = pneg %p72
        $region14: #{psp_upsample_forward.3} parent=11 // pred_check_branch
          %159 = sbr.rel (%p157) target = $region16
        $region15: #{psp_upsample_forward.3} parent=11 // pred_region
          _
        $region16: #{psp_upsample_forward.3} parent=11 // pred_fallthru
          _
        // Predicated region
        $region17: #{psp_upsample_forward.3} parent=11 // pred_check
          %p160 = pneg %p93
        $region18: #{psp_upsample_forward.3} parent=11 // pred_check_branch
          %162 = sbr.rel (%p160) target = $region20
        $region19: #{psp_upsample_forward.3} parent=11 // pred_region
          _
        $region20: #{psp_upsample_forward.3} parent=11 // pred_fallthru
          _
        // Predicated region
        $region21: #{psp_upsample_forward.3} parent=11 // pred_check
          %p163 = pneg %p114
        $region22: #{psp_upsample_forward.3} parent=11 // pred_check_branch
          %165 = sbr.rel (%p163) target = $region24
        $region23: #{psp_upsample_forward.3} parent=11 // pred_region
          _
        $region24: #{psp_upsample_forward.3} parent=11 // pred_fallthru
          _
      $region12: #{psp_upsample_forward.3} parent=5 // pred_fallthru
        _
      %p166 = scmp.lt.s32.totalorder %s11, 4
      // Predicated region
      $region25: #{psp_upsample_forward.3} parent=5 // pred_check
        %p167 = pneg %p166
      $region26: #{psp_upsample_forward.3} parent=5 // pred_check_branch
        %169 = sbr.rel (%p167) target = $region28
      $region27: #{psp_upsample_forward.3} parent=5 // pred_region
        // Predicated region
        $region29: #{psp_upsample_forward.3} parent=27 // pred_check
          %p170 = pneg %p45
        $region30: #{psp_upsample_forward.3} parent=27 // pred_check_branch
          %172 = sbr.rel (%p170) target = $region32
        $region31: #{psp_upsample_forward.3} parent=27 // pred_region
          %s173 = sand.u32 %s35, 1
          %s174 = sand.u32 %s35, 1
          %s175 = smul.addr %s174, 512
          %s176 = scalar_lea.vmem [#allocation3], %s175
          %s177 = smul.u32 16, %s19
          %s178 = smul.addr %s177, 2
          %s179 = smul.addr %s18, 128
          %s180 = sadd.s32 %s178, %s179
          %s181 = smul.addr %s180, 8
          %s182 = scalar_lea.vmem %s0, %s181
          // Predicated region
          $region33: #{psp_upsample_forward.3} parent=31 // pred_check
            _
          $region34: #{psp_upsample_forward.3} parent=31 // pred_check_branch
            %184 = sbr.rel (0) target = $region36
          $region35: #{psp_upsample_forward.3} parent=31 // pred_region
            // Predicated region
            $region37: #{psp_upsample_forward.3} parent=35 // pred_check
              _
            $region38: #{psp_upsample_forward.3} parent=35 // pred_check_branch
              %186 = sbr.rel (0) target = $region40
            $region39: #{psp_upsample_forward.3} parent=35 // pred_region
              // Predicated region
              $region52: #{psp_upsample_forward.3} parent=39 // pred_check
                _
              $region53: #{psp_upsample_forward.3} parent=39 // pred_check_branch
                %328 = sbr.rel (0) target = $region55
              $region54: #{psp_upsample_forward.3} parent=39 // pred_region
                loop: start=0, step=1, limit=1
                $region56: #{psp_upsample_forward.3} parent=54 // loop_pre_header
                  _
                $region57: #{psp_upsample_forward.3} parent=54 // loop_header
                  %s330 = sphi 0, %s334
                  %p331 = scmp.ge.s32.totalorder %s330, 1
                  %s335 = sphi %s182, %s182
                  %s336 = sphi %s176, %s176
                $region58: #{psp_upsample_forward.3} parent=54 // loop_header_branch
                  %333 = sbr.rel (%p331) target = $region62
                $region59: #{psp_upsample_forward.3} parent=54 // loop_body
                  %v337 = vld [vmem:[%s335] sm:$0xff]
                  %338 = vst [vmem:[%s336] sm:$0xff] %v337
                  %v339 = vld [vmem:[%s335 + $0x8] sm:$0xff]
                  %340 = vst [vmem:[%s336 + $0x8] sm:$0xff] %v339
                  %v341 = vld [vmem:[%s335 + $0x10] sm:$0xff]
                  %342 = vst [vmem:[%s336 + $0x10] sm:$0xff] %v341
                  %v343 = vld [vmem:[%s335 + $0x18] sm:$0xff]
                  %344 = vst [vmem:[%s336 + $0x18] sm:$0xff] %v343
                  %v345 = vld [vmem:[%s335 + $0x20] sm:$0xff]
                  %346 = vst [vmem:[%s336 + $0x20] sm:$0xff] %v345
                  %v347 = vld [vmem:[%s335 + $0x28] sm:$0xff]
                  %348 = vst [vmem:[%s336 + $0x28] sm:$0xff] %v347
                  %v349 = vld [vmem:[%s335 + $0x30] sm:$0xff]
                  %350 = vst [vmem:[%s336 + $0x30] sm:$0xff] %v349
                  %v351 = vld [vmem:[%s335 + $0x38] sm:$0xff]
                  %352 = vst [vmem:[%s336 + $0x38] sm:$0xff] %v351
                  %v353 = vld [vmem:[%s335 + $0x40] sm:$0xff]
                  %354 = vst [vmem:[%s336 + $0x40] sm:$0xff] %v353
                  %v355 = vld [vmem:[%s335 + $0x48] sm:$0xff]
                  %356 = vst [vmem:[%s336 + $0x48] sm:$0xff] %v355
                  %v357 = vld [vmem:[%s335 + $0x50] sm:$0xff]
                  %358 = vst [vmem:[%s336 + $0x50] sm:$0xff] %v357
                  %v359 = vld [vmem:[%s335 + $0x58] sm:$0xff]
                  %360 = vst [vmem:[%s336 + $0x58] sm:$0xff] %v359
                  %v361 = vld [vmem:[%s335 + $0x60] sm:$0xff]
                  %362 = vst [vmem:[%s336 + $0x60] sm:$0xff] %v361
                  %v363 = vld [vmem:[%s335 + $0x68] sm:$0xff]
                  %364 = vst [vmem:[%s336 + $0x68] sm:$0xff] %v363
                  %v365 = vld [vmem:[%s335 + $0x70] sm:$0xff]
                  %366 = vst [vmem:[%s336 + $0x70] sm:$0xff] %v365
                  %v367 = vld [vmem:[%s335 + $0x78] sm:$0xff]
                  %368 = vst [vmem:[%s336 + $0x78] sm:$0xff] %v367
                  %v369 = vld [vmem:[%s335 + $0x80] sm:$0xff]
                  %370 = vst [vmem:[%s336 + $0x80] sm:$0xff] %v369
                  %v371 = vld [vmem:[%s335 + $0x88] sm:$0xff]
                  %372 = vst [vmem:[%s336 + $0x88] sm:$0xff] %v371
                  %v373 = vld [vmem:[%s335 + $0x90] sm:$0xff]
                  %374 = vst [vmem:[%s336 + $0x90] sm:$0xff] %v373
                  %v375 = vld [vmem:[%s335 + $0x98] sm:$0xff]
                  %376 = vst [vmem:[%s336 + $0x98] sm:$0xff] %v375
                  %v377 = vld [vmem:[%s335 + $0xa0] sm:$0xff]
                  %378 = vst [vmem:[%s336 + $0xa0] sm:$0xff] %v377
                  %v379 = vld [vmem:[%s335 + $0xa8] sm:$0xff]
                  %380 = vst [vmem:[%s336 + $0xa8] sm:$0xff] %v379
                  %v381 = vld [vmem:[%s335 + $0xb0] sm:$0xff]
                  %382 = vst [vmem:[%s336 + $0xb0] sm:$0xff] %v381
                  %v383 = vld [vmem:[%s335 + $0xb8] sm:$0xff]
                  %384 = vst [vmem:[%s336 + $0xb8] sm:$0xff] %v383
                  %v385 = vld [vmem:[%s335 + $0xc0] sm:$0xff]
                  %386 = vst [vmem:[%s336 + $0xc0] sm:$0xff] %v385
                  %v387 = vld [vmem:[%s335 + $0xc8] sm:$0xff]
                  %388 = vst [vmem:[%s336 + $0xc8] sm:$0xff] %v387
                  %v389 = vld [vmem:[%s335 + $0xd0] sm:$0xff]
                  %390 = vst [vmem:[%s336 + $0xd0] sm:$0xff] %v389
                  %v391 = vld [vmem:[%s335 + $0xd8] sm:$0xff]
                  %392 = vst [vmem:[%s336 + $0xd8] sm:$0xff] %v391
                  %v393 = vld [vmem:[%s335 + $0xe0] sm:$0xff]
                  %394 = vst [vmem:[%s336 + $0xe0] sm:$0xff] %v393
                  %v395 = vld [vmem:[%s335 + $0xe8] sm:$0xff]
                  %396 = vst [vmem:[%s336 + $0xe8] sm:$0xff] %v395
                  %v397 = vld [vmem:[%s335 + $0xf0] sm:$0xff]
                  %398 = vst [vmem:[%s336 + $0xf0] sm:$0xff] %v397
                  %v399 = vld [vmem:[%s335 + $0xf8] sm:$0xff]
                  %400 = vst [vmem:[%s336 + $0xf8] sm:$0xff] %v399
                  %v401 = vld [vmem:[%s335 + $0x200] sm:$0xff]
                  %402 = vst [vmem:[%s336 + $0x100] sm:$0xff] %v401
                  %v403 = vld [vmem:[%s335 + $0x208] sm:$0xff]
                  %404 = vst [vmem:[%s336 + $0x108] sm:$0xff] %v403
                  %v405 = vld [vmem:[%s335 + $0x210] sm:$0xff]
                  %406 = vst [vmem:[%s336 + $0x110] sm:$0xff] %v405
                  %v407 = vld [vmem:[%s335 + $0x218] sm:$0xff]
                  %408 = vst [vmem:[%s336 + $0x118] sm:$0xff] %v407
                  %v409 = vld [vmem:[%s335 + $0x220] sm:$0xff]
                  %410 = vst [vmem:[%s336 + $0x120] sm:$0xff] %v409
                  %v411 = vld [vmem:[%s335 + $0x228] sm:$0xff]
                  %412 = vst [vmem:[%s336 + $0x128] sm:$0xff] %v411
                  %v413 = vld [vmem:[%s335 + $0x230] sm:$0xff]
                  %414 = vst [vmem:[%s336 + $0x130] sm:$0xff] %v413
                  %v415 = vld [vmem:[%s335 + $0x238] sm:$0xff]
                  %416 = vst [vmem:[%s336 + $0x138] sm:$0xff] %v415
                  %v417 = vld [vmem:[%s335 + $0x240] sm:$0xff]
                  %418 = vst [vmem:[%s336 + $0x140] sm:$0xff] %v417
                  %v419 = vld [vmem:[%s335 + $0x248] sm:$0xff]
                  %420 = vst [vmem:[%s336 + $0x148] sm:$0xff] %v419
                  %v421 = vld [vmem:[%s335 + $0x250] sm:$0xff]
                  %422 = vst [vmem:[%s336 + $0x150] sm:$0xff] %v421
                  %v423 = vld [vmem:[%s335 + $0x258] sm:$0xff]
                  %424 = vst [vmem:[%s336 + $0x158] sm:$0xff] %v423
                  %v425 = vld [vmem:[%s335 + $0x260] sm:$0xff]
                  %426 = vst [vmem:[%s336 + $0x160] sm:$0xff] %v425
                  %v427 = vld [vmem:[%s335 + $0x268] sm:$0xff]
                  %428 = vst [vmem:[%s336 + $0x168] sm:$0xff] %v427
                  %v429 = vld [vmem:[%s335 + $0x270] sm:$0xff]
                  %430 = vst [vmem:[%s336 + $0x170] sm:$0xff] %v429
                  %v431 = vld [vmem:[%s335 + $0x278] sm:$0xff]
                  %432 = vst [vmem:[%s336 + $0x178] sm:$0xff] %v431
                  %v433 = vld [vmem:[%s335 + $0x280] sm:$0xff]
                  %434 = vst [vmem:[%s336 + $0x180] sm:$0xff] %v433
                  %v435 = vld [vmem:[%s335 + $0x288] sm:$0xff]
                  %436 = vst [vmem:[%s336 + $0x188] sm:$0xff] %v435
                  %v437 = vld [vmem:[%s335 + $0x290] sm:$0xff]
                  %438 = vst [vmem:[%s336 + $0x190] sm:$0xff] %v437
                  %v439 = vld [vmem:[%s335 + $0x298] sm:$0xff]
                  %440 = vst [vmem:[%s336 + $0x198] sm:$0xff] %v439
                  %v441 = vld [vmem:[%s335 + $0x2a0] sm:$0xff]
                  %442 = vst [vmem:[%s336 + $0x1a0] sm:$0xff] %v441
                  %v443 = vld [vmem:[%s335 + $0x2a8] sm:$0xff]
                  %444 = vst [vmem:[%s336 + $0x1a8] sm:$0xff] %v443
                  %v445 = vld [vmem:[%s335 + $0x2b0] sm:$0xff]
                  %446 = vst [vmem:[%s336 + $0x1b0] sm:$0xff] %v445
                  %v447 = vld [vmem:[%s335 + $0x2b8] sm:$0xff]
                  %448 = vst [vmem:[%s336 + $0x1b8] sm:$0xff] %v447
                  %v449 = vld [vmem:[%s335 + $0x2c0] sm:$0xff]
                  %450 = vst [vmem:[%s336 + $0x1c0] sm:$0xff] %v449
                  %v451 = vld [vmem:[%s335 + $0x2c8] sm:$0xff]
                  %452 = vst [vmem:[%s336 + $0x1c8] sm:$0xff] %v451
                  %v453 = vld [vmem:[%s335 + $0x2d0] sm:$0xff]
                  %454 = vst [vmem:[%s336 + $0x1d0] sm:$0xff] %v453
                  %v455 = vld [vmem:[%s335 + $0x2d8] sm:$0xff]
                  %456 = vst [vmem:[%s336 + $0x1d8] sm:$0xff] %v455
                  %v457 = vld [vmem:[%s335 + $0x2e0] sm:$0xff]
                  %458 = vst [vmem:[%s336 + $0x1e0] sm:$0xff] %v457
                  %v459 = vld [vmem:[%s335 + $0x2e8] sm:$0xff]
                  %460 = vst [vmem:[%s336 + $0x1e8] sm:$0xff] %v459
                  %v461 = vld [vmem:[%s335 + $0x2f0] sm:$0xff]
                  %462 = vst [vmem:[%s336 + $0x1f0] sm:$0xff] %v461
                  %v463 = vld [vmem:[%s335 + $0x2f8] sm:$0xff]
                  %464 = vst [vmem:[%s336 + $0x1f8] sm:$0xff] %v463
                $region60: #{psp_upsample_forward.3} parent=54 // loop_footer
                  %s334 = sadd.s32 1, %s330
                $region61: #{psp_upsample_forward.3} parent=54 // loop_footer_branch
                  %329 = sbr.rel target = $region57
                $region62: #{psp_upsample_forward.3} parent=54 // loop_exit
                  _
              $region55: #{psp_upsample_forward.3} parent=39 // pred_fallthru
                _
              // Predicated region
              $region63: #{psp_upsample_forward.3} parent=39 // pred_check
                _
              $region64: #{psp_upsample_forward.3} parent=39 // pred_check_branch
                %466 = sbr.rel target = $region66
              $region65: #{psp_upsample_forward.3} parent=39 // pred_region
                _
              $region66: #{psp_upsample_forward.3} parent=39 // pred_fallthru
                _
            $region40: #{psp_upsample_forward.3} parent=35 // pred_fallthru
              _
            // Predicated region
            $region41: #{psp_upsample_forward.3} parent=35 // pred_check
              _
            $region42: #{psp_upsample_forward.3} parent=35 // pred_check_branch
              %188 = sbr.rel target = $region44
            $region43: #{psp_upsample_forward.3} parent=35 // pred_region
              %s190 = ssub.s32 256, 1
              loop: start=0, step=1, limit=1
              $region45: #{psp_upsample_forward.3} parent=43 // loop_pre_header
                _
              $region46: #{psp_upsample_forward.3} parent=43 // loop_header
                %s192 = sphi 0, %s196
                %p193 = scmp.ge.s32.totalorder %s192, 1
                %s197 = sphi %s182, %s182
                %s198 = sphi %s176, %s176
              $region47: #{psp_upsample_forward.3} parent=43 // loop_header_branch
                %195 = sbr.rel (%p193) target = $region51
              $region48: #{psp_upsample_forward.3} parent=43 // loop_body
                %v199 = vld [vmem:[%s197] sm:%s190]
                %200 = vst [vmem:[%s198] sm:%s190] %v199
                %v201 = vld [vmem:[%s197 + $0x8] sm:%s190]
                %202 = vst [vmem:[%s198 + $0x8] sm:%s190] %v201
                %v203 = vld [vmem:[%s197 + $0x10] sm:%s190]
                %204 = vst [vmem:[%s198 + $0x10] sm:%s190] %v203
                %v205 = vld [vmem:[%s197 + $0x18] sm:%s190]
                %206 = vst [vmem:[%s198 + $0x18] sm:%s190] %v205
                %v207 = vld [vmem:[%s197 + $0x20] sm:%s190]
                %208 = vst [vmem:[%s198 + $0x20] sm:%s190] %v207
                %v209 = vld [vmem:[%s197 + $0x28] sm:%s190]
                %210 = vst [vmem:[%s198 + $0x28] sm:%s190] %v209
                %v211 = vld [vmem:[%s197 + $0x30] sm:%s190]
                %212 = vst [vmem:[%s198 + $0x30] sm:%s190] %v211
                %v213 = vld [vmem:[%s197 + $0x38] sm:%s190]
                %214 = vst [vmem:[%s198 + $0x38] sm:%s190] %v213
                %v215 = vld [vmem:[%s197 + $0x40] sm:%s190]
                %216 = vst [vmem:[%s198 + $0x40] sm:%s190] %v215
                %v217 = vld [vmem:[%s197 + $0x48] sm:%s190]
                %218 = vst [vmem:[%s198 + $0x48] sm:%s190] %v217
                %v219 = vld [vmem:[%s197 + $0x50] sm:%s190]
                %220 = vst [vmem:[%s198 + $0x50] sm:%s190] %v219
                %v221 = vld [vmem:[%s197 + $0x58] sm:%s190]
                %222 = vst [vmem:[%s198 + $0x58] sm:%s190] %v221
                %v223 = vld [vmem:[%s197 + $0x60] sm:%s190]
                %224 = vst [vmem:[%s198 + $0x60] sm:%s190] %v223
                %v225 = vld [vmem:[%s197 + $0x68] sm:%s190]
                %226 = vst [vmem:[%s198 + $0x68] sm:%s190] %v225
                %v227 = vld [vmem:[%s197 + $0x70] sm:%s190]
                %228 = vst [vmem:[%s198 + $0x70] sm:%s190] %v227
                %v229 = vld [vmem:[%s197 + $0x78] sm:%s190]
                %230 = vst [vmem:[%s198 + $0x78] sm:%s190] %v229
                %v231 = vld [vmem:[%s197 + $0x80] sm:%s190]
                %232 = vst [vmem:[%s198 + $0x80] sm:%s190] %v231
                %v233 = vld [vmem:[%s197 + $0x88] sm:%s190]
                %234 = vst [vmem:[%s198 + $0x88] sm:%s190] %v233
                %v235 = vld [vmem:[%s197 + $0x90] sm:%s190]
                %236 = vst [vmem:[%s198 + $0x90] sm:%s190] %v235
                %v237 = vld [vmem:[%s197 + $0x98] sm:%s190]
                %238 = vst [vmem:[%s198 + $0x98] sm:%s190] %v237
                %v239 = vld [vmem:[%s197 + $0xa0] sm:%s190]
                %240 = vst [vmem:[%s198 + $0xa0] sm:%s190] %v239
                %v241 = vld [vmem:[%s197 + $0xa8] sm:%s190]
                %242 = vst [vmem:[%s198 + $0xa8] sm:%s190] %v241
                %v243 = vld [vmem:[%s197 + $0xb0] sm:%s190]
                %244 = vst [vmem:[%s198 + $0xb0] sm:%s190] %v243
                %v245 = vld [vmem:[%s197 + $0xb8] sm:%s190]
                %246 = vst [vmem:[%s198 + $0xb8] sm:%s190] %v245
                %v247 = vld [vmem:[%s197 + $0xc0] sm:%s190]
                %248 = vst [vmem:[%s198 + $0xc0] sm:%s190] %v247
                %v249 = vld [vmem:[%s197 + $0xc8] sm:%s190]
                %250 = vst [vmem:[%s198 + $0xc8] sm:%s190] %v249
                %v251 = vld [vmem:[%s197 + $0xd0] sm:%s190]
                %252 = vst [vmem:[%s198 + $0xd0] sm:%s190] %v251
                %v253 = vld [vmem:[%s197 + $0xd8] sm:%s190]
                %254 = vst [vmem:[%s198 + $0xd8] sm:%s190] %v253
                %v255 = vld [vmem:[%s197 + $0xe0] sm:%s190]
                %256 = vst [vmem:[%s198 + $0xe0] sm:%s190] %v255
                %v257 = vld [vmem:[%s197 + $0xe8] sm:%s190]
                %258 = vst [vmem:[%s198 + $0xe8] sm:%s190] %v257
                %v259 = vld [vmem:[%s197 + $0xf0] sm:%s190]
                %260 = vst [vmem:[%s198 + $0xf0] sm:%s190] %v259
                %v261 = vld [vmem:[%s197 + $0xf8] sm:%s190]
                %262 = vst [vmem:[%s198 + $0xf8] sm:%s190] %v261
                %v263 = vld [vmem:[%s197 + $0x200] sm:%s190]
                %264 = vst [vmem:[%s198 + $0x100] sm:%s190] %v263
                %v265 = vld [vmem:[%s197 + $0x208] sm:%s190]
                %266 = vst [vmem:[%s198 + $0x108] sm:%s190] %v265
                %v267 = vld [vmem:[%s197 + $0x210] sm:%s190]
                %268 = vst [vmem:[%s198 + $0x110] sm:%s190] %v267
                %v269 = vld [vmem:[%s197 + $0x218] sm:%s190]
                %270 = vst [vmem:[%s198 + $0x118] sm:%s190] %v269
                %v271 = vld [vmem:[%s197 + $0x220] sm:%s190]
                %272 = vst [vmem:[%s198 + $0x120] sm:%s190] %v271
                %v273 = vld [vmem:[%s197 + $0x228] sm:%s190]
                %274 = vst [vmem:[%s198 + $0x128] sm:%s190] %v273
                %v275 = vld [vmem:[%s197 + $0x230] sm:%s190]
                %276 = vst [vmem:[%s198 + $0x130] sm:%s190] %v275
                %v277 = vld [vmem:[%s197 + $0x238] sm:%s190]
                %278 = vst [vmem:[%s198 + $0x138] sm:%s190] %v277
                %v279 = vld [vmem:[%s197 + $0x240] sm:%s190]
                %280 = vst [vmem:[%s198 + $0x140] sm:%s190] %v279
                %v281 = vld [vmem:[%s197 + $0x248] sm:%s190]
                %282 = vst [vmem:[%s198 + $0x148] sm:%s190] %v281
                %v283 = vld [vmem:[%s197 + $0x250] sm:%s190]
                %284 = vst [vmem:[%s198 + $0x150] sm:%s190] %v283
                %v285 = vld [vmem:[%s197 + $0x258] sm:%s190]
                %286 = vst [vmem:[%s198 + $0x158] sm:%s190] %v285
                %v287 = vld [vmem:[%s197 + $0x260] sm:%s190]
                %288 = vst [vmem:[%s198 + $0x160] sm:%s190] %v287
                %v289 = vld [vmem:[%s197 + $0x268] sm:%s190]
                %290 = vst [vmem:[%s198 + $0x168] sm:%s190] %v289
                %v291 = vld [vmem:[%s197 + $0x270] sm:%s190]
                %292 = vst [vmem:[%s198 + $0x170] sm:%s190] %v291
                %v293 = vld [vmem:[%s197 + $0x278] sm:%s190]
                %294 = vst [vmem:[%s198 + $0x178] sm:%s190] %v293
                %v295 = vld [vmem:[%s197 + $0x280] sm:%s190]
                %296 = vst [vmem:[%s198 + $0x180] sm:%s190] %v295
                %v297 = vld [vmem:[%s197 + $0x288] sm:%s190]
                %298 = vst [vmem:[%s198 + $0x188] sm:%s190] %v297
                %v299 = vld [vmem:[%s197 + $0x290] sm:%s190]
                %300 = vst [vmem:[%s198 + $0x190] sm:%s190] %v299
                %v301 = vld [vmem:[%s197 + $0x298] sm:%s190]
                %302 = vst [vmem:[%s198 + $0x198] sm:%s190] %v301
                %v303 = vld [vmem:[%s197 + $0x2a0] sm:%s190]
                %304 = vst [vmem:[%s198 + $0x1a0] sm:%s190] %v303
                %v305 = vld [vmem:[%s197 + $0x2a8] sm:%s190]
                %306 = vst [vmem:[%s198 + $0x1a8] sm:%s190] %v305
                %v307 = vld [vmem:[%s197 + $0x2b0] sm:%s190]
                %308 = vst [vmem:[%s198 + $0x1b0] sm:%s190] %v307
                %v309 = vld [vmem:[%s197 + $0x2b8] sm:%s190]
                %310 = vst [vmem:[%s198 + $0x1b8] sm:%s190] %v309
                %v311 = vld [vmem:[%s197 + $0x2c0] sm:%s190]
                %312 = vst [vmem:[%s198 + $0x1c0] sm:%s190] %v311
                %v313 = vld [vmem:[%s197 + $0x2c8] sm:%s190]
                %314 = vst [vmem:[%s198 + $0x1c8] sm:%s190] %v313
                %v315 = vld [vmem:[%s197 + $0x2d0] sm:%s190]
                %316 = vst [vmem:[%s198 + $0x1d0] sm:%s190] %v315
                %v317 = vld [vmem:[%s197 + $0x2d8] sm:%s190]
                %318 = vst [vmem:[%s198 + $0x1d8] sm:%s190] %v317
                %v319 = vld [vmem:[%s197 + $0x2e0] sm:%s190]
                %320 = vst [vmem:[%s198 + $0x1e0] sm:%s190] %v319
                %v321 = vld [vmem:[%s197 + $0x2e8] sm:%s190]
                %322 = vst [vmem:[%s198 + $0x1e8] sm:%s190] %v321
                %v323 = vld [vmem:[%s197 + $0x2f0] sm:%s190]
                %324 = vst [vmem:[%s198 + $0x1f0] sm:%s190] %v323
                %v325 = vld [vmem:[%s197 + $0x2f8] sm:%s190]
                %326 = vst [vmem:[%s198 + $0x1f8] sm:%s190] %v325
              $region49: #{psp_upsample_forward.3} parent=43 // loop_footer
                %s196 = sadd.s32 1, %s192
              $region50: #{psp_upsample_forward.3} parent=43 // loop_footer_branch
                %191 = sbr.rel target = $region46
              $region51: #{psp_upsample_forward.3} parent=43 // loop_exit
                _
            $region44: #{psp_upsample_forward.3} parent=35 // pred_fallthru
              _
          $region36: #{psp_upsample_forward.3} parent=31 // pred_fallthru
            _
          %467 = vnop
        $region32: #{psp_upsample_forward.3} parent=27 // pred_fallthru
          _
      $region28: #{psp_upsample_forward.3} parent=5 // pred_fallthru
        _
      %p468 = scmp.le.s32.totalorder 1, %s11
      %p469 = scmp.lt.s32.totalorder %s11, 5
      %p470 = pnand %p468, %p469
      %p471 = pneg %p470
      // Predicated region
      $region67: #{psp_upsample_forward.3} parent=5 // pred_check
        _
      $region68: #{psp_upsample_forward.3} parent=5 // pred_check_branch
        %473 = sbr.rel (%p470) target = $region70
      $region69: #{psp_upsample_forward.3} parent=5 // pred_region
        %s474 = ssub.s32 %s11, 1
        %s475 = sand.u32 %s38, 1
        %s476 = sand.u32 %s38, 1
        %s477 = smul.addr %s476, 512
        %s478 = scalar_lea.vmem [#allocation3], %s477
        // Predicated region
        $region71: #{psp_upsample_forward.3} parent=69 // pred_check
          %p479 = pneg %p51
        $region72: #{psp_upsample_forward.3} parent=69 // pred_check_branch
          %481 = sbr.rel (%p479) target = $region74
        $region73: #{psp_upsample_forward.3} parent=69 // pred_region
          _
        $region74: #{psp_upsample_forward.3} parent=69 // pred_fallthru
          _
        %s482 = sand.u32 %s38, 1
        %s483 = sand.u32 %s38, 1
        %s484 = smul.addr %s483, 512
        %s485 = scalar_lea.vmem [#allocation3], %s484
        %p486 = pneg %p51
        %p487 = pneg %p48
        %p488 = pneg %p72
        %p489 = pneg %p69
        %p490 = pneg %p93
        %p491 = pneg %p90
        %p492 = pneg %p114
        %p493 = pneg %p111
        %p494 = pneg %p142
        %p495 = pneg %p139
        %s496 = sand.u32 %s129, 1
        %s497 = sand.u32 %s129, 1
        %s498 = smul.addr %s497, 512
        %s499 = scalar_lea.vmem [#allocation4], %s498
        %s500 = smul.u32 16, %s21
        %s501 = smul.u32 16, %s21
        %v502 = vld [vmem:[%s478] sm:$0xff]
        %v503 = vld [vmem:[%s478 + $0x8] sm:$0xff]
        %v504 = vld [vmem:[%s478 + $0x10] sm:$0xff]
        %v505 = vld [vmem:[%s478 + $0x18] sm:$0xff]
        %v506 = vld [vmem:[%s478 + $0x20] sm:$0xff]
        %v507 = vld [vmem:[%s478 + $0x28] sm:$0xff]
        %v508 = vld [vmem:[%s478 + $0x30] sm:$0xff]
        %v509 = vld [vmem:[%s478 + $0x38] sm:$0xff]
        %v510 = vld [vmem:[%s478 + $0x40] sm:$0xff]
        %v511 = vld [vmem:[%s478 + $0x48] sm:$0xff]
        %v512 = vld [vmem:[%s478 + $0x50] sm:$0xff]
        %v513 = vld [vmem:[%s478 + $0x58] sm:$0xff]
        %v514 = vld [vmem:[%s478 + $0x60] sm:$0xff]
        %v515 = vld [vmem:[%s478 + $0x68] sm:$0xff]
        %v516 = vld [vmem:[%s478 + $0x70] sm:$0xff]
        %v517 = vld [vmem:[%s478 + $0x78] sm:$0xff]
        %v518 = vld [vmem:[%s478 + $0x80] sm:$0xff]
        %v519 = vld [vmem:[%s478 + $0x88] sm:$0xff]
        %v520 = vld [vmem:[%s478 + $0x90] sm:$0xff]
        %v521 = vld [vmem:[%s478 + $0x98] sm:$0xff]
        %v522 = vld [vmem:[%s478 + $0xa0] sm:$0xff]
        %v523 = vld [vmem:[%s478 + $0xa8] sm:$0xff]
        %v524 = vld [vmem:[%s478 + $0xb0] sm:$0xff]
        %v525 = vld [vmem:[%s478 + $0xb8] sm:$0xff]
        %v526 = vld [vmem:[%s478 + $0xc0] sm:$0xff]
        %v527 = vld [vmem:[%s478 + $0xc8] sm:$0xff]
        %v528 = vld [vmem:[%s478 + $0xd0] sm:$0xff]
        %v529 = vld [vmem:[%s478 + $0xd8] sm:$0xff]
        %v530 = vld [vmem:[%s478 + $0xe0] sm:$0xff]
        %v531 = vld [vmem:[%s478 + $0xe8] sm:$0xff]
        %v532 = vld [vmem:[%s478 + $0xf0] sm:$0xff]
        %v533 = vld [vmem:[%s478 + $0xf8] sm:$0xff]
        %v534 = vld [vmem:[%s478 + $0x100] sm:$0xff]
        %v535 = vld [vmem:[%s478 + $0x108] sm:$0xff]
        %v536 = vld [vmem:[%s478 + $0x110] sm:$0xff]
        %v537 = vld [vmem:[%s478 + $0x118] sm:$0xff]
        %v538 = vld [vmem:[%s478 + $0x120] sm:$0xff]
        %v539 = vld [vmem:[%s478 + $0x128] sm:$0xff]
        %v540 = vld [vmem:[%s478 + $0x130] sm:$0xff]
        %v541 = vld [vmem:[%s478 + $0x138] sm:$0xff]
        %v542 = vld [vmem:[%s478 + $0x140] sm:$0xff]
        %v543 = vld [vmem:[%s478 + $0x148] sm:$0xff]
        %v544 = vld [vmem:[%s478 + $0x150] sm:$0xff]
        %v545 = vld [vmem:[%s478 + $0x158] sm:$0xff]
        %v546 = vld [vmem:[%s478 + $0x160] sm:$0xff]
        %v547 = vld [vmem:[%s478 + $0x168] sm:$0xff]
        %v548 = vld [vmem:[%s478 + $0x170] sm:$0xff]
        %v549 = vld [vmem:[%s478 + $0x178] sm:$0xff]
        %v550 = vld [vmem:[%s478 + $0x180] sm:$0xff]
        %v551 = vld [vmem:[%s478 + $0x188] sm:$0xff]
        %v552 = vld [vmem:[%s478 + $0x190] sm:$0xff]
        %v553 = vld [vmem:[%s478 + $0x198] sm:$0xff]
        %v554 = vld [vmem:[%s478 + $0x1a0] sm:$0xff]
        %v555 = vld [vmem:[%s478 + $0x1a8] sm:$0xff]
        %v556 = vld [vmem:[%s478 + $0x1b0] sm:$0xff]
        %v557 = vld [vmem:[%s478 + $0x1b8] sm:$0xff]
        %v558 = vld [vmem:[%s478 + $0x1c0] sm:$0xff]
        %v559 = vld [vmem:[%s478 + $0x1c8] sm:$0xff]
        %v560 = vld [vmem:[%s478 + $0x1d0] sm:$0xff]
        %v561 = vld [vmem:[%s478 + $0x1d8] sm:$0xff]
        %v562 = vld [vmem:[%s478 + $0x1e0] sm:$0xff]
        %v563 = vld [vmem:[%s478 + $0x1e8] sm:$0xff]
        %v564 = vld [vmem:[%s478 + $0x1f0] sm:$0xff]
        %v565 = vld [vmem:[%s478 + $0x1f8] sm:$0xff]
        %v566 = vld [vmem:[%s1] sm:$0x1]
        %v568 = vperm.slane %v566, 0
        %v570 = vmul.f32 %v502, %v568
        %v571 = vmul.f32 %v503, %v568
        %v572 = vmul.f32 %v504, %v568
        %v573 = vmul.f32 %v505, %v568
        %v574 = vmul.f32 %v506, %v568
        %v575 = vmul.f32 %v507, %v568
        %v576 = vmul.f32 %v508, %v568
        %v577 = vmul.f32 %v509, %v568
        %v578 = vmul.f32 %v510, %v568
        %v579 = vmul.f32 %v511, %v568
        %v580 = vmul.f32 %v512, %v568
        %v581 = vmul.f32 %v513, %v568
        %v582 = vmul.f32 %v514, %v568
        %v583 = vmul.f32 %v515, %v568
        %v584 = vmul.f32 %v516, %v568
        %v585 = vmul.f32 %v517, %v568
        %v586 = vmul.f32 %v518, %v568
        %v587 = vmul.f32 %v519, %v568
        %v588 = vmul.f32 %v520, %v568
        %v589 = vmul.f32 %v521, %v568
        %v590 = vmul.f32 %v522, %v568
        %v591 = vmul.f32 %v523, %v568
        %v592 = vmul.f32 %v524, %v568
        %v593 = vmul.f32 %v525, %v568
        %v594 = vmul.f32 %v526, %v568
        %v595 = vmul.f32 %v527, %v568
        %v596 = vmul.f32 %v528, %v568
        %v597 = vmul.f32 %v529, %v568
        %v598 = vmul.f32 %v530, %v568
        %v599 = vmul.f32 %v531, %v568
        %v600 = vmul.f32 %v532, %v568
        %v601 = vmul.f32 %v533, %v568
        %v602 = vmul.f32 %v534, %v568
        %v603 = vmul.f32 %v535, %v568
        %v604 = vmul.f32 %v536, %v568
        %v605 = vmul.f32 %v537, %v568
        %v606 = vmul.f32 %v538, %v568
        %v607 = vmul.f32 %v539, %v568
        %v608 = vmul.f32 %v540, %v568
        %v609 = vmul.f32 %v541, %v568
        %v610 = vmul.f32 %v542, %v568
        %v611 = vmul.f32 %v543, %v568
        %v612 = vmul.f32 %v544, %v568
        %v613 = vmul.f32 %v545, %v568
        %v614 = vmul.f32 %v546, %v568
        %v615 = vmul.f32 %v547, %v568
        %v616 = vmul.f32 %v548, %v568
        %v617 = vmul.f32 %v549, %v568
        %v618 = vmul.f32 %v550, %v568
        %v619 = vmul.f32 %v551, %v568
        %v620 = vmul.f32 %v552, %v568
        %v621 = vmul.f32 %v553, %v568
        %v622 = vmul.f32 %v554, %v568
        %v623 = vmul.f32 %v555, %v568
        %v624 = vmul.f32 %v556, %v568
        %v625 = vmul.f32 %v557, %v568
        %v626 = vmul.f32 %v558, %v568
        %v627 = vmul.f32 %v559, %v568
        %v628 = vmul.f32 %v560, %v568
        %v629 = vmul.f32 %v561, %v568
        %v630 = vmul.f32 %v562, %v568
        %v631 = vmul.f32 %v563, %v568
        %v632 = vmul.f32 %v564, %v568
        %v633 = vmul.f32 %v565, %v568
        %v634 = vld [vmem:[%s2] sm:$0x1]
        %v636 = vperm.slane %v634, 0
        %v638 = vadd.f32 %v570, %v636
        %v639 = vadd.f32 %v571, %v636
        %v640 = vadd.f32 %v572, %v636
        %v641 = vadd.f32 %v573, %v636
        %v642 = vadd.f32 %v574, %v636
        %v643 = vadd.f32 %v575, %v636
        %v644 = vadd.f32 %v576, %v636
        %v645 = vadd.f32 %v577, %v636
        %v646 = vadd.f32 %v578, %v636
        %v647 = vadd.f32 %v579, %v636
        %v648 = vadd.f32 %v580, %v636
        %v649 = vadd.f32 %v581, %v636
        %v650 = vadd.f32 %v582, %v636
        %v651 = vadd.f32 %v583, %v636
        %v652 = vadd.f32 %v584, %v636
        %v653 = vadd.f32 %v585, %v636
        %v654 = vadd.f32 %v586, %v636
        %v655 = vadd.f32 %v587, %v636
        %v656 = vadd.f32 %v588, %v636
        %v657 = vadd.f32 %v589, %v636
        %v658 = vadd.f32 %v590, %v636
        %v659 = vadd.f32 %v591, %v636
        %v660 = vadd.f32 %v592, %v636
        %v661 = vadd.f32 %v593, %v636
        %v662 = vadd.f32 %v594, %v636
        %v663 = vadd.f32 %v595, %v636
        %v664 = vadd.f32 %v596, %v636
        %v665 = vadd.f32 %v597, %v636
        %v666 = vadd.f32 %v598, %v636
        %v667 = vadd.f32 %v599, %v636
        %v668 = vadd.f32 %v600, %v636
        %v669 = vadd.f32 %v601, %v636
        %v670 = vadd.f32 %v602, %v636
        %v671 = vadd.f32 %v603, %v636
        %v672 = vadd.f32 %v604, %v636
        %v673 = vadd.f32 %v605, %v636
        %v674 = vadd.f32 %v606, %v636
        %v675 = vadd.f32 %v607, %v636
        %v676 = vadd.f32 %v608, %v636
        %v677 = vadd.f32 %v609, %v636
        %v678 = vadd.f32 %v610, %v636
        %v679 = vadd.f32 %v611, %v636
        %v680 = vadd.f32 %v612, %v636
        %v681 = vadd.f32 %v613, %v636
        %v682 = vadd.f32 %v614, %v636
        %v683 = vadd.f32 %v615, %v636
        %v684 = vadd.f32 %v616, %v636
        %v685 = vadd.f32 %v617, %v636
        %v686 = vadd.f32 %v618, %v636
        %v687 = vadd.f32 %v619, %v636
        %v688 = vadd.f32 %v620, %v636
        %v689 = vadd.f32 %v621, %v636
        %v690 = vadd.f32 %v622, %v636
        %v691 = vadd.f32 %v623, %v636
        %v692 = vadd.f32 %v624, %v636
        %v693 = vadd.f32 %v625, %v636
        %v694 = vadd.f32 %v626, %v636
        %v695 = vadd.f32 %v627, %v636
        %v696 = vadd.f32 %v628, %v636
        %v697 = vadd.f32 %v629, %v636
        %v698 = vadd.f32 %v630, %v636
        %v699 = vadd.f32 %v631, %v636
        %v700 = vadd.f32 %v632, %v636
        %v701 = vadd.f32 %v633, %v636
        %s702 = sld [smem:[#allocation2]]
        %vm703 = vcmp.gt.f32.partialorder %v638, 0.0
        %vm704 = vcmp.gt.f32.partialorder %v639, 0.0
        %vm705 = vcmp.gt.f32.partialorder %v640, 0.0
        %vm706 = vcmp.gt.f32.partialorder %v641, 0.0
        %vm707 = vcmp.gt.f32.partialorder %v642, 0.0
        %vm708 = vcmp.gt.f32.partialorder %v643, 0.0
        %vm709 = vcmp.gt.f32.partialorder %v644, 0.0
        %vm710 = vcmp.gt.f32.partialorder %v645, 0.0
        %vm711 = vcmp.gt.f32.partialorder %v646, 0.0
        %vm712 = vcmp.gt.f32.partialorder %v647, 0.0
        %vm713 = vcmp.gt.f32.partialorder %v648, 0.0
        %vm714 = vcmp.gt.f32.partialorder %v649, 0.0
        %vm715 = vcmp.gt.f32.partialorder %v650, 0.0
        %vm716 = vcmp.gt.f32.partialorder %v651, 0.0
        %vm717 = vcmp.gt.f32.partialorder %v652, 0.0
        %vm718 = vcmp.gt.f32.partialorder %v653, 0.0
        %vm719 = vcmp.gt.f32.partialorder %v654, 0.0
        %vm720 = vcmp.gt.f32.partialorder %v655, 0.0
        %vm721 = vcmp.gt.f32.partialorder %v656, 0.0
        %vm722 = vcmp.gt.f32.partialorder %v657, 0.0
        %vm723 = vcmp.gt.f32.partialorder %v658, 0.0
        %vm724 = vcmp.gt.f32.partialorder %v659, 0.0
        %vm725 = vcmp.gt.f32.partialorder %v660, 0.0
        %vm726 = vcmp.gt.f32.partialorder %v661, 0.0
        %vm727 = vcmp.gt.f32.partialorder %v662, 0.0
        %vm728 = vcmp.gt.f32.partialorder %v663, 0.0
        %vm729 = vcmp.gt.f32.partialorder %v664, 0.0
        %vm730 = vcmp.gt.f32.partialorder %v665, 0.0
        %vm731 = vcmp.gt.f32.partialorder %v666, 0.0
        %vm732 = vcmp.gt.f32.partialorder %v667, 0.0
        %vm733 = vcmp.gt.f32.partialorder %v668, 0.0
        %vm734 = vcmp.gt.f32.partialorder %v669, 0.0
        %vm735 = vcmp.gt.f32.partialorder %v670, 0.0
        %vm736 = vcmp.gt.f32.partialorder %v671, 0.0
        %vm737 = vcmp.gt.f32.partialorder %v672, 0.0
        %vm738 = vcmp.gt.f32.partialorder %v673, 0.0
        %vm739 = vcmp.gt.f32.partialorder %v674, 0.0
        %vm740 = vcmp.gt.f32.partialorder %v675, 0.0
        %vm741 = vcmp.gt.f32.partialorder %v676, 0.0
        %vm742 = vcmp.gt.f32.partialorder %v677, 0.0
        %vm743 = vcmp.gt.f32.partialorder %v678, 0.0
        %vm744 = vcmp.gt.f32.partialorder %v679, 0.0
        %vm745 = vcmp.gt.f32.partialorder %v680, 0.0
        %vm746 = vcmp.gt.f32.partialorder %v681, 0.0
        %vm747 = vcmp.gt.f32.partialorder %v682, 0.0
        %vm748 = vcmp.gt.f32.partialorder %v683, 0.0
        %vm749 = vcmp.gt.f32.partialorder %v684, 0.0
        %vm750 = vcmp.gt.f32.partialorder %v685, 0.0
        %vm751 = vcmp.gt.f32.partialorder %v686, 0.0
        %vm752 = vcmp.gt.f32.partialorder %v687, 0.0
        %vm753 = vcmp.gt.f32.partialorder %v688, 0.0
        %vm754 = vcmp.gt.f32.partialorder %v689, 0.0
        %vm755 = vcmp.gt.f32.partialorder %v690, 0.0
        %vm756 = vcmp.gt.f32.partialorder %v691, 0.0
        %vm757 = vcmp.gt.f32.partialorder %v692, 0.0
        %vm758 = vcmp.gt.f32.partialorder %v693, 0.0
        %vm759 = vcmp.gt.f32.partialorder %v694, 0.0
        %vm760 = vcmp.gt.f32.partialorder %v695, 0.0
        %vm761 = vcmp.gt.f32.partialorder %v696, 0.0
        %vm762 = vcmp.gt.f32.partialorder %v697, 0.0
        %vm763 = vcmp.gt.f32.partialorder %v698, 0.0
        %vm764 = vcmp.gt.f32.partialorder %v699, 0.0
        %vm765 = vcmp.gt.f32.partialorder %v700, 0.0
        %vm766 = vcmp.gt.f32.partialorder %v701, 0.0
        %v767 = vstv %s702
        %v768 = vmul.f32 %v767, %v638
        %v769 = vmul.f32 %v767, %v639
        %v770 = vmul.f32 %v767, %v640
        %v771 = vmul.f32 %v767, %v641
        %v772 = vmul.f32 %v767, %v642
        %v773 = vmul.f32 %v767, %v643
        %v774 = vmul.f32 %v767, %v644
        %v775 = vmul.f32 %v767, %v645
        %v776 = vmul.f32 %v767, %v646
        %v777 = vmul.f32 %v767, %v647
        %v778 = vmul.f32 %v767, %v648
        %v779 = vmul.f32 %v767, %v649
        %v780 = vmul.f32 %v767, %v650
        %v781 = vmul.f32 %v767, %v651
        %v782 = vmul.f32 %v767, %v652
        %v783 = vmul.f32 %v767, %v653
        %v784 = vmul.f32 %v767, %v654
        %v785 = vmul.f32 %v767, %v655
        %v786 = vmul.f32 %v767, %v656
        %v787 = vmul.f32 %v767, %v657
        %v788 = vmul.f32 %v767, %v658
        %v789 = vmul.f32 %v767, %v659
        %v790 = vmul.f32 %v767, %v660
        %v791 = vmul.f32 %v767, %v661
        %v792 = vmul.f32 %v767, %v662
        %v793 = vmul.f32 %v767, %v663
        %v794 = vmul.f32 %v767, %v664
        %v795 = vmul.f32 %v767, %v665
        %v796 = vmul.f32 %v767, %v666
        %v797 = vmul.f32 %v767, %v667
        %v798 = vmul.f32 %v767, %v668
        %v799 = vmul.f32 %v767, %v669
        %v800 = vmul.f32 %v767, %v670
        %v801 = vmul.f32 %v767, %v671
        %v802 = vmul.f32 %v767, %v672
        %v803 = vmul.f32 %v767, %v673
        %v804 = vmul.f32 %v767, %v674
        %v805 = vmul.f32 %v767, %v675
        %v806 = vmul.f32 %v767, %v676
        %v807 = vmul.f32 %v767, %v677
        %v808 = vmul.f32 %v767, %v678
        %v809 = vmul.f32 %v767, %v679
        %v810 = vmul.f32 %v767, %v680
        %v811 = vmul.f32 %v767, %v681
        %v812 = vmul.f32 %v767, %v682
        %v813 = vmul.f32 %v767, %v683
        %v814 = vmul.f32 %v767, %v684
        %v815 = vmul.f32 %v767, %v685
        %v816 = vmul.f32 %v767, %v686
        %v817 = vmul.f32 %v767, %v687
        %v818 = vmul.f32 %v767, %v688
        %v819 = vmul.f32 %v767, %v689
        %v820 = vmul.f32 %v767, %v690
        %v821 = vmul.f32 %v767, %v691
        %v822 = vmul.f32 %v767, %v692
        %v823 = vmul.f32 %v767, %v693
        %v824 = vmul.f32 %v767, %v694
        %v825 = vmul.f32 %v767, %v695
        %v826 = vmul.f32 %v767, %v696
        %v827 = vmul.f32 %v767, %v697
        %v828 = vmul.f32 %v767, %v698
        %v829 = vmul.f32 %v767, %v699
        %v830 = vmul.f32 %v767, %v700
        %v831 = vmul.f32 %v767, %v701
        %v832 = vsel %vm703, %v638, %v768
        %v833 = vsel %vm704, %v639, %v769
        %v834 = vsel %vm705, %v640, %v770
        %v835 = vsel %vm706, %v641, %v771
        %v836 = vsel %vm707, %v642, %v772
        %v837 = vsel %vm708, %v643, %v773
        %v838 = vsel %vm709, %v644, %v774
        %v839 = vsel %vm710, %v645, %v775
        %v840 = vsel %vm711, %v646, %v776
        %v841 = vsel %vm712, %v647, %v777
        %v842 = vsel %vm713, %v648, %v778
        %v843 = vsel %vm714, %v649, %v779
        %v844 = vsel %vm715, %v650, %v780
        %v845 = vsel %vm716, %v651, %v781
        %v846 = vsel %vm717, %v652, %v782
        %v847 = vsel %vm718, %v653, %v783
        %v848 = vsel %vm719, %v654, %v784
        %v849 = vsel %vm720, %v655, %v785
        %v850 = vsel %vm721, %v656, %v786
        %v851 = vsel %vm722, %v657, %v787
        %v852 = vsel %vm723, %v658, %v788
        %v853 = vsel %vm724, %v659, %v789
        %v854 = vsel %vm725, %v660, %v790
        %v855 = vsel %vm726, %v661, %v791
        %v856 = vsel %vm727, %v662, %v792
        %v857 = vsel %vm728, %v663, %v793
        %v858 = vsel %vm729, %v664, %v794
        %v859 = vsel %vm730, %v665, %v795
        %v860 = vsel %vm731, %v666, %v796
        %v861 = vsel %vm732, %v667, %v797
        %v862 = vsel %vm733, %v668, %v798
        %v863 = vsel %vm734, %v669, %v799
        %v864 = vsel %vm735, %v670, %v800
        %v865 = vsel %vm736, %v671, %v801
        %v866 = vsel %vm737, %v672, %v802
        %v867 = vsel %vm738, %v673, %v803
        %v868 = vsel %vm739, %v674, %v804
        %v869 = vsel %vm740, %v675, %v805
        %v870 = vsel %vm741, %v676, %v806
        %v871 = vsel %vm742, %v677, %v807
        %v872 = vsel %vm743, %v678, %v808
        %v873 = vsel %vm744, %v679, %v809
        %v874 = vsel %vm745, %v680, %v810
        %v875 = vsel %vm746, %v681, %v811
        %v876 = vsel %vm747, %v682, %v812
        %v877 = vsel %vm748, %v683, %v813
        %v878 = vsel %vm749, %v684, %v814
        %v879 = vsel %vm750, %v685, %v815
        %v880 = vsel %vm751, %v686, %v816
        %v881 = vsel %vm752, %v687, %v817
        %v882 = vsel %vm753, %v688, %v818
        %v883 = vsel %vm754, %v689, %v819
        %v884 = vsel %vm755, %v690, %v820
        %v885 = vsel %vm756, %v691, %v821
        %v886 = vsel %vm757, %v692, %v822
        %v887 = vsel %vm758, %v693, %v823
        %v888 = vsel %vm759, %v694, %v824
        %v889 = vsel %vm760, %v695, %v825
        %v890 = vsel %vm761, %v696, %v826
        %v891 = vsel %vm762, %v697, %v827
        %v892 = vsel %vm763, %v698, %v828
        %v893 = vsel %vm764, %v699, %v829
        %v894 = vsel %vm765, %v700, %v830
        %v895 = vsel %vm766, %v701, %v831
        %896 = vst [vmem:[%s499] sm:$0xff] %v832
        %897 = vst [vmem:[%s499 + $0x8] sm:$0xff] %v833
        %898 = vst [vmem:[%s499 + $0x10] sm:$0xff] %v834
        %899 = vst [vmem:[%s499 + $0x18] sm:$0xff] %v835
        %900 = vst [vmem:[%s499 + $0x20] sm:$0xff] %v836
        %901 = vst [vmem:[%s499 + $0x28] sm:$0xff] %v837
        %902 = vst [vmem:[%s499 + $0x30] sm:$0xff] %v838
        %903 = vst [vmem:[%s499 + $0x38] sm:$0xff] %v839
        %904 = vst [vmem:[%s499 + $0x40] sm:$0xff] %v840
        %905 = vst [vmem:[%s499 + $0x48] sm:$0xff] %v841
        %906 = vst [vmem:[%s499 + $0x50] sm:$0xff] %v842
        %907 = vst [vmem:[%s499 + $0x58] sm:$0xff] %v843
        %908 = vst [vmem:[%s499 + $0x60] sm:$0xff] %v844
        %909 = vst [vmem:[%s499 + $0x68] sm:$0xff] %v845
        %910 = vst [vmem:[%s499 + $0x70] sm:$0xff] %v846
        %911 = vst [vmem:[%s499 + $0x78] sm:$0xff] %v847
        %912 = vst [vmem:[%s499 + $0x80] sm:$0xff] %v848
        %913 = vst [vmem:[%s499 + $0x88] sm:$0xff] %v849
        %914 = vst [vmem:[%s499 + $0x90] sm:$0xff] %v850
        %915 = vst [vmem:[%s499 + $0x98] sm:$0xff] %v851
        %916 = vst [vmem:[%s499 + $0xa0] sm:$0xff] %v852
        %917 = vst [vmem:[%s499 + $0xa8] sm:$0xff] %v853
        %918 = vst [vmem:[%s499 + $0xb0] sm:$0xff] %v854
        %919 = vst [vmem:[%s499 + $0xb8] sm:$0xff] %v855
        %920 = vst [vmem:[%s499 + $0xc0] sm:$0xff] %v856
        %921 = vst [vmem:[%s499 + $0xc8] sm:$0xff] %v857
        %922 = vst [vmem:[%s499 + $0xd0] sm:$0xff] %v858
        %923 = vst [vmem:[%s499 + $0xd8] sm:$0xff] %v859
        %924 = vst [vmem:[%s499 + $0xe0] sm:$0xff] %v860
        %925 = vst [vmem:[%s499 + $0xe8] sm:$0xff] %v861
        %926 = vst [vmem:[%s499 + $0xf0] sm:$0xff] %v862
        %927 = vst [vmem:[%s499 + $0xf8] sm:$0xff] %v863
        %928 = vst [vmem:[%s499 + $0x100] sm:$0xff] %v864
        %929 = vst [vmem:[%s499 + $0x108] sm:$0xff] %v865
        %930 = vst [vmem:[%s499 + $0x110] sm:$0xff] %v866
        %931 = vst [vmem:[%s499 + $0x118] sm:$0xff] %v867
        %932 = vst [vmem:[%s499 + $0x120] sm:$0xff] %v868
        %933 = vst [vmem:[%s499 + $0x128] sm:$0xff] %v869
        %934 = vst [vmem:[%s499 + $0x130] sm:$0xff] %v870
        %935 = vst [vmem:[%s499 + $0x138] sm:$0xff] %v871
        %936 = vst [vmem:[%s499 + $0x140] sm:$0xff] %v872
        %937 = vst [vmem:[%s499 + $0x148] sm:$0xff] %v873
        %938 = vst [vmem:[%s499 + $0x150] sm:$0xff] %v874
        %939 = vst [vmem:[%s499 + $0x158] sm:$0xff] %v875
        %940 = vst [vmem:[%s499 + $0x160] sm:$0xff] %v876
        %941 = vst [vmem:[%s499 + $0x168] sm:$0xff] %v877
        %942 = vst [vmem:[%s499 + $0x170] sm:$0xff] %v878
        %943 = vst [vmem:[%s499 + $0x178] sm:$0xff] %v879
        %944 = vst [vmem:[%s499 + $0x180] sm:$0xff] %v880
        %945 = vst [vmem:[%s499 + $0x188] sm:$0xff] %v881
        %946 = vst [vmem:[%s499 + $0x190] sm:$0xff] %v882
        %947 = vst [vmem:[%s499 + $0x198] sm:$0xff] %v883
        %948 = vst [vmem:[%s499 + $0x1a0] sm:$0xff] %v884
        %949 = vst [vmem:[%s499 + $0x1a8] sm:$0xff] %v885
        %950 = vst [vmem:[%s499 + $0x1b0] sm:$0xff] %v886
        %951 = vst [vmem:[%s499 + $0x1b8] sm:$0xff] %v887
        %952 = vst [vmem:[%s499 + $0x1c0] sm:$0xff] %v888
        %953 = vst [vmem:[%s499 + $0x1c8] sm:$0xff] %v889
        %954 = vst [vmem:[%s499 + $0x1d0] sm:$0xff] %v890
        %955 = vst [vmem:[%s499 + $0x1d8] sm:$0xff] %v891
        %956 = vst [vmem:[%s499 + $0x1e0] sm:$0xff] %v892
        %957 = vst [vmem:[%s499 + $0x1e8] sm:$0xff] %v893
        %958 = vst [vmem:[%s499 + $0x1f0] sm:$0xff] %v894
        %959 = vst [vmem:[%s499 + $0x1f8] sm:$0xff] %v895
        %s960 = sand.u32 %s129, 1
        %s961 = sand.u32 %s129, 1
        %s962 = smul.addr %s961, 512
        %s963 = scalar_lea.vmem [#allocation4], %s962
        // Predicated region
        $region75: #{psp_upsample_forward.3} parent=69 // pred_check
          %p964 = pneg %p139
        $region76: #{psp_upsample_forward.3} parent=69 // pred_check_branch
          %966 = sbr.rel (%p964) target = $region78
        $region77: #{psp_upsample_forward.3} parent=69 // pred_region
          %s967 = smul.u32 16, %s21
          %s968 = smul.addr %s967, 2
          %s969 = smul.addr %s20, 128
          %s970 = sadd.s32 %s968, %s969
          %s971 = smul.addr %s970, 8
          %s972 = scalar_lea.vmem %s4, %s971
          // Predicated region
          $region79: #{psp_upsample_forward.3} parent=77 // pred_check
            _
          $region80: #{psp_upsample_forward.3} parent=77 // pred_check_branch
            %974 = sbr.rel (0) target = $region82
          $region81: #{psp_upsample_forward.3} parent=77 // pred_region
            // Predicated region
            $region83: #{psp_upsample_forward.3} parent=81 // pred_check
              _
            $region84: #{psp_upsample_forward.3} parent=81 // pred_check_branch
              %976 = sbr.rel (0) target = $region86
            $region85: #{psp_upsample_forward.3} parent=81 // pred_region
              // Predicated region
              $region98: #{psp_upsample_forward.3} parent=85 // pred_check
                _
              $region99: #{psp_upsample_forward.3} parent=85 // pred_check_branch
                %1118 = sbr.rel (0) target = $region101
              $region100: #{psp_upsample_forward.3} parent=85 // pred_region
                loop: start=0, step=1, limit=1
                $region102: #{psp_upsample_forward.3} parent=100 // loop_pre_header
                  _
                $region103: #{psp_upsample_forward.3} parent=100 // loop_header
                  %s1120 = sphi 0, %s1124
                  %p1121 = scmp.ge.s32.totalorder %s1120, 1
                  %s1125 = sphi %s963, %s963
                  %s1126 = sphi %s972, %s972
                $region104: #{psp_upsample_forward.3} parent=100 // loop_header_branch
                  %1123 = sbr.rel (%p1121) target = $region108
                $region105: #{psp_upsample_forward.3} parent=100 // loop_body
                  %v1127 = vld [vmem:[%s1125] sm:$0xff]
                  %1128 = vst [vmem:[%s1126] sm:$0xff] %v1127
                  %v1129 = vld [vmem:[%s1125 + $0x8] sm:$0xff]
                  %1130 = vst [vmem:[%s1126 + $0x8] sm:$0xff] %v1129
                  %v1131 = vld [vmem:[%s1125 + $0x10] sm:$0xff]
                  %1132 = vst [vmem:[%s1126 + $0x10] sm:$0xff] %v1131
                  %v1133 = vld [vmem:[%s1125 + $0x18] sm:$0xff]
                  %1134 = vst [vmem:[%s1126 + $0x18] sm:$0xff] %v1133
                  %v1135 = vld [vmem:[%s1125 + $0x20] sm:$0xff]
                  %1136 = vst [vmem:[%s1126 + $0x20] sm:$0xff] %v1135
                  %v1137 = vld [vmem:[%s1125 + $0x28] sm:$0xff]
                  %1138 = vst [vmem:[%s1126 + $0x28] sm:$0xff] %v1137
                  %v1139 = vld [vmem:[%s1125 + $0x30] sm:$0xff]
                  %1140 = vst [vmem:[%s1126 + $0x30] sm:$0xff] %v1139
                  %v1141 = vld [vmem:[%s1125 + $0x38] sm:$0xff]
                  %1142 = vst [vmem:[%s1126 + $0x38] sm:$0xff] %v1141
                  %v1143 = vld [vmem:[%s1125 + $0x40] sm:$0xff]
                  %1144 = vst [vmem:[%s1126 + $0x40] sm:$0xff] %v1143
                  %v1145 = vld [vmem:[%s1125 + $0x48] sm:$0xff]
                  %1146 = vst [vmem:[%s1126 + $0x48] sm:$0xff] %v1145
                  %v1147 = vld [vmem:[%s1125 + $0x50] sm:$0xff]
                  %1148 = vst [vmem:[%s1126 + $0x50] sm:$0xff] %v1147
                  %v1149 = vld [vmem:[%s1125 + $0x58] sm:$0xff]
                  %1150 = vst [vmem:[%s1126 + $0x58] sm:$0xff] %v1149
                  %v1151 = vld [vmem:[%s1125 + $0x60] sm:$0xff]
                  %1152 = vst [vmem:[%s1126 + $0x60] sm:$0xff] %v1151
                  %v1153 = vld [vmem:[%s1125 + $0x68] sm:$0xff]
                  %1154 = vst [vmem:[%s1126 + $0x68] sm:$0xff] %v1153
                  %v1155 = vld [vmem:[%s1125 + $0x70] sm:$0xff]
                  %1156 = vst [vmem:[%s1126 + $0x70] sm:$0xff] %v1155
                  %v1157 = vld [vmem:[%s1125 + $0x78] sm:$0xff]
                  %1158 = vst [vmem:[%s1126 + $0x78] sm:$0xff] %v1157
                  %v1159 = vld [vmem:[%s1125 + $0x80] sm:$0xff]
                  %1160 = vst [vmem:[%s1126 + $0x80] sm:$0xff] %v1159
                  %v1161 = vld [vmem:[%s1125 + $0x88] sm:$0xff]
                  %1162 = vst [vmem:[%s1126 + $0x88] sm:$0xff] %v1161
                  %v1163 = vld [vmem:[%s1125 + $0x90] sm:$0xff]
                  %1164 = vst [vmem:[%s1126 + $0x90] sm:$0xff] %v1163
                  %v1165 = vld [vmem:[%s1125 + $0x98] sm:$0xff]
                  %1166 = vst [vmem:[%s1126 + $0x98] sm:$0xff] %v1165
                  %v1167 = vld [vmem:[%s1125 + $0xa0] sm:$0xff]
                  %1168 = vst [vmem:[%s1126 + $0xa0] sm:$0xff] %v1167
                  %v1169 = vld [vmem:[%s1125 + $0xa8] sm:$0xff]
                  %1170 = vst [vmem:[%s1126 + $0xa8] sm:$0xff] %v1169
                  %v1171 = vld [vmem:[%s1125 + $0xb0] sm:$0xff]
                  %1172 = vst [vmem:[%s1126 + $0xb0] sm:$0xff] %v1171
                  %v1173 = vld [vmem:[%s1125 + $0xb8] sm:$0xff]
                  %1174 = vst [vmem:[%s1126 + $0xb8] sm:$0xff] %v1173
                  %v1175 = vld [vmem:[%s1125 + $0xc0] sm:$0xff]
                  %1176 = vst [vmem:[%s1126 + $0xc0] sm:$0xff] %v1175
                  %v1177 = vld [vmem:[%s1125 + $0xc8] sm:$0xff]
                  %1178 = vst [vmem:[%s1126 + $0xc8] sm:$0xff] %v1177
                  %v1179 = vld [vmem:[%s1125 + $0xd0] sm:$0xff]
                  %1180 = vst [vmem:[%s1126 + $0xd0] sm:$0xff] %v1179
                  %v1181 = vld [vmem:[%s1125 + $0xd8] sm:$0xff]
                  %1182 = vst [vmem:[%s1126 + $0xd8] sm:$0xff] %v1181
                  %v1183 = vld [vmem:[%s1125 + $0xe0] sm:$0xff]
                  %1184 = vst [vmem:[%s1126 + $0xe0] sm:$0xff] %v1183
                  %v1185 = vld [vmem:[%s1125 + $0xe8] sm:$0xff]
                  %1186 = vst [vmem:[%s1126 + $0xe8] sm:$0xff] %v1185
                  %v1187 = vld [vmem:[%s1125 + $0xf0] sm:$0xff]
                  %1188 = vst [vmem:[%s1126 + $0xf0] sm:$0xff] %v1187
                  %v1189 = vld [vmem:[%s1125 + $0xf8] sm:$0xff]
                  %1190 = vst [vmem:[%s1126 + $0xf8] sm:$0xff] %v1189
                  %v1191 = vld [vmem:[%s1125 + $0x100] sm:$0xff]
                  %1192 = vst [vmem:[%s1126 + $0x200] sm:$0xff] %v1191
                  %v1193 = vld [vmem:[%s1125 + $0x108] sm:$0xff]
                  %1194 = vst [vmem:[%s1126 + $0x208] sm:$0xff] %v1193
                  %v1195 = vld [vmem:[%s1125 + $0x110] sm:$0xff]
                  %1196 = vst [vmem:[%s1126 + $0x210] sm:$0xff] %v1195
                  %v1197 = vld [vmem:[%s1125 + $0x118] sm:$0xff]
                  %1198 = vst [vmem:[%s1126 + $0x218] sm:$0xff] %v1197
                  %v1199 = vld [vmem:[%s1125 + $0x120] sm:$0xff]
                  %1200 = vst [vmem:[%s1126 + $0x220] sm:$0xff] %v1199
                  %v1201 = vld [vmem:[%s1125 + $0x128] sm:$0xff]
                  %1202 = vst [vmem:[%s1126 + $0x228] sm:$0xff] %v1201
                  %v1203 = vld [vmem:[%s1125 + $0x130] sm:$0xff]
                  %1204 = vst [vmem:[%s1126 + $0x230] sm:$0xff] %v1203
                  %v1205 = vld [vmem:[%s1125 + $0x138] sm:$0xff]
                  %1206 = vst [vmem:[%s1126 + $0x238] sm:$0xff] %v1205
                  %v1207 = vld [vmem:[%s1125 + $0x140] sm:$0xff]
                  %1208 = vst [vmem:[%s1126 + $0x240] sm:$0xff] %v1207
                  %v1209 = vld [vmem:[%s1125 + $0x148] sm:$0xff]
                  %1210 = vst [vmem:[%s1126 + $0x248] sm:$0xff] %v1209
                  %v1211 = vld [vmem:[%s1125 + $0x150] sm:$0xff]
                  %1212 = vst [vmem:[%s1126 + $0x250] sm:$0xff] %v1211
                  %v1213 = vld [vmem:[%s1125 + $0x158] sm:$0xff]
                  %1214 = vst [vmem:[%s1126 + $0x258] sm:$0xff] %v1213
                  %v1215 = vld [vmem:[%s1125 + $0x160] sm:$0xff]
                  %1216 = vst [vmem:[%s1126 + $0x260] sm:$0xff] %v1215
                  %v1217 = vld [vmem:[%s1125 + $0x168] sm:$0xff]
                  %1218 = vst [vmem:[%s1126 + $0x268] sm:$0xff] %v1217
                  %v1219 = vld [vmem:[%s1125 + $0x170] sm:$0xff]
                  %1220 = vst [vmem:[%s1126 + $0x270] sm:$0xff] %v1219
                  %v1221 = vld [vmem:[%s1125 + $0x178] sm:$0xff]
                  %1222 = vst [vmem:[%s1126 + $0x278] sm:$0xff] %v1221
                  %v1223 = vld [vmem:[%s1125 + $0x180] sm:$0xff]
                  %1224 = vst [vmem:[%s1126 + $0x280] sm:$0xff] %v1223
                  %v1225 = vld [vmem:[%s1125 + $0x188] sm:$0xff]
                  %1226 = vst [vmem:[%s1126 + $0x288] sm:$0xff] %v1225
                  %v1227 = vld [vmem:[%s1125 + $0x190] sm:$0xff]
                  %1228 = vst [vmem:[%s1126 + $0x290] sm:$0xff] %v1227
                  %v1229 = vld [vmem:[%s1125 + $0x198] sm:$0xff]
                  %1230 = vst [vmem:[%s1126 + $0x298] sm:$0xff] %v1229
                  %v1231 = vld [vmem:[%s1125 + $0x1a0] sm:$0xff]
                  %1232 = vst [vmem:[%s1126 + $0x2a0] sm:$0xff] %v1231
                  %v1233 = vld [vmem:[%s1125 + $0x1a8] sm:$0xff]
                  %1234 = vst [vmem:[%s1126 + $0x2a8] sm:$0xff] %v1233
                  %v1235 = vld [vmem:[%s1125 + $0x1b0] sm:$0xff]
                  %1236 = vst [vmem:[%s1126 + $0x2b0] sm:$0xff] %v1235
                  %v1237 = vld [vmem:[%s1125 + $0x1b8] sm:$0xff]
                  %1238 = vst [vmem:[%s1126 + $0x2b8] sm:$0xff] %v1237
                  %v1239 = vld [vmem:[%s1125 + $0x1c0] sm:$0xff]
                  %1240 = vst [vmem:[%s1126 + $0x2c0] sm:$0xff] %v1239
                  %v1241 = vld [vmem:[%s1125 + $0x1c8] sm:$0xff]
                  %1242 = vst [vmem:[%s1126 + $0x2c8] sm:$0xff] %v1241
                  %v1243 = vld [vmem:[%s1125 + $0x1d0] sm:$0xff]
                  %1244 = vst [vmem:[%s1126 + $0x2d0] sm:$0xff] %v1243
                  %v1245 = vld [vmem:[%s1125 + $0x1d8] sm:$0xff]
                  %1246 = vst [vmem:[%s1126 + $0x2d8] sm:$0xff] %v1245
                  %v1247 = vld [vmem:[%s1125 + $0x1e0] sm:$0xff]
                  %1248 = vst [vmem:[%s1126 + $0x2e0] sm:$0xff] %v1247
                  %v1249 = vld [vmem:[%s1125 + $0x1e8] sm:$0xff]
                  %1250 = vst [vmem:[%s1126 + $0x2e8] sm:$0xff] %v1249
                  %v1251 = vld [vmem:[%s1125 + $0x1f0] sm:$0xff]
                  %1252 = vst [vmem:[%s1126 + $0x2f0] sm:$0xff] %v1251
                  %v1253 = vld [vmem:[%s1125 + $0x1f8] sm:$0xff]
                  %1254 = vst [vmem:[%s1126 + $0x2f8] sm:$0xff] %v1253
                $region106: #{psp_upsample_forward.3} parent=100 // loop_footer
                  %s1124 = sadd.s32 1, %s1120
                $region107: #{psp_upsample_forward.3} parent=100 // loop_footer_branch
                  %1119 = sbr.rel target = $region103
                $region108: #{psp_upsample_forward.3} parent=100 // loop_exit
                  _
              $region101: #{psp_upsample_forward.3} parent=85 // pred_fallthru
                _
              // Predicated region
              $region109: #{psp_upsample_forward.3} parent=85 // pred_check
                _
              $region110: #{psp_upsample_forward.3} parent=85 // pred_check_branch
                %1256 = sbr.rel target = $region112
              $region111: #{psp_upsample_forward.3} parent=85 // pred_region
                _
              $region112: #{psp_upsample_forward.3} parent=85 // pred_fallthru
                _
            $region86: #{psp_upsample_forward.3} parent=81 // pred_fallthru
              _
            // Predicated region
            $region87: #{psp_upsample_forward.3} parent=81 // pred_check
              _
            $region88: #{psp_upsample_forward.3} parent=81 // pred_check_branch
              %978 = sbr.rel target = $region90
            $region89: #{psp_upsample_forward.3} parent=81 // pred_region
              %s980 = ssub.s32 256, 1
              loop: start=0, step=1, limit=1
              $region91: #{psp_upsample_forward.3} parent=89 // loop_pre_header
                _
              $region92: #{psp_upsample_forward.3} parent=89 // loop_header
                %s982 = sphi 0, %s986
                %p983 = scmp.ge.s32.totalorder %s982, 1
                %s987 = sphi %s963, %s963
                %s988 = sphi %s972, %s972
              $region93: #{psp_upsample_forward.3} parent=89 // loop_header_branch
                %985 = sbr.rel (%p983) target = $region97
              $region94: #{psp_upsample_forward.3} parent=89 // loop_body
                %v989 = vld [vmem:[%s987] sm:%s980]
                %990 = vst [vmem:[%s988] sm:%s980] %v989
                %v991 = vld [vmem:[%s987 + $0x8] sm:%s980]
                %992 = vst [vmem:[%s988 + $0x8] sm:%s980] %v991
                %v993 = vld [vmem:[%s987 + $0x10] sm:%s980]
                %994 = vst [vmem:[%s988 + $0x10] sm:%s980] %v993
                %v995 = vld [vmem:[%s987 + $0x18] sm:%s980]
                %996 = vst [vmem:[%s988 + $0x18] sm:%s980] %v995
                %v997 = vld [vmem:[%s987 + $0x20] sm:%s980]
                %998 = vst [vmem:[%s988 + $0x20] sm:%s980] %v997
                %v999 = vld [vmem:[%s987 + $0x28] sm:%s980]
                %1000 = vst [vmem:[%s988 + $0x28] sm:%s980] %v999
                %v1001 = vld [vmem:[%s987 + $0x30] sm:%s980]
                %1002 = vst [vmem:[%s988 + $0x30] sm:%s980] %v1001
                %v1003 = vld [vmem:[%s987 + $0x38] sm:%s980]
                %1004 = vst [vmem:[%s988 + $0x38] sm:%s980] %v1003
                %v1005 = vld [vmem:[%s987 + $0x40] sm:%s980]
                %1006 = vst [vmem:[%s988 + $0x40] sm:%s980] %v1005
                %v1007 = vld [vmem:[%s987 + $0x48] sm:%s980]
                %1008 = vst [vmem:[%s988 + $0x48] sm:%s980] %v1007
                %v1009 = vld [vmem:[%s987 + $0x50] sm:%s980]
                %1010 = vst [vmem:[%s988 + $0x50] sm:%s980] %v1009
                %v1011 = vld [vmem:[%s987 + $0x58] sm:%s980]
                %1012 = vst [vmem:[%s988 + $0x58] sm:%s980] %v1011
                %v1013 = vld [vmem:[%s987 + $0x60] sm:%s980]
                %1014 = vst [vmem:[%s988 + $0x60] sm:%s980] %v1013
                %v1015 = vld [vmem:[%s987 + $0x68] sm:%s980]
                %1016 = vst [vmem:[%s988 + $0x68] sm:%s980] %v1015
                %v1017 = vld [vmem:[%s987 + $0x70] sm:%s980]
                %1018 = vst [vmem:[%s988 + $0x70] sm:%s980] %v1017
                %v1019 = vld [vmem:[%s987 + $0x78] sm:%s980]
                %1020 = vst [vmem:[%s988 + $0x78] sm:%s980] %v1019
                %v1021 = vld [vmem:[%s987 + $0x80] sm:%s980]
                %1022 = vst [vmem:[%s988 + $0x80] sm:%s980] %v1021
                %v1023 = vld [vmem:[%s987 + $0x88] sm:%s980]
                %1024 = vst [vmem:[%s988 + $0x88] sm:%s980] %v1023
                %v1025 = vld [vmem:[%s987 + $0x90] sm:%s980]
                %1026 = vst [vmem:[%s988 + $0x90] sm:%s980] %v1025
                %v1027 = vld [vmem:[%s987 + $0x98] sm:%s980]
                %1028 = vst [vmem:[%s988 + $0x98] sm:%s980] %v1027
                %v1029 = vld [vmem:[%s987 + $0xa0] sm:%s980]
                %1030 = vst [vmem:[%s988 + $0xa0] sm:%s980] %v1029
                %v1031 = vld [vmem:[%s987 + $0xa8] sm:%s980]
                %1032 = vst [vmem:[%s988 + $0xa8] sm:%s980] %v1031
                %v1033 = vld [vmem:[%s987 + $0xb0] sm:%s980]
                %1034 = vst [vmem:[%s988 + $0xb0] sm:%s980] %v1033
                %v1035 = vld [vmem:[%s987 + $0xb8] sm:%s980]
                %1036 = vst [vmem:[%s988 + $0xb8] sm:%s980] %v1035
                %v1037 = vld [vmem:[%s987 + $0xc0] sm:%s980]
                %1038 = vst [vmem:[%s988 + $0xc0] sm:%s980] %v1037
                %v1039 = vld [vmem:[%s987 + $0xc8] sm:%s980]
                %1040 = vst [vmem:[%s988 + $0xc8] sm:%s980] %v1039
                %v1041 = vld [vmem:[%s987 + $0xd0] sm:%s980]
                %1042 = vst [vmem:[%s988 + $0xd0] sm:%s980] %v1041
                %v1043 = vld [vmem:[%s987 + $0xd8] sm:%s980]
                %1044 = vst [vmem:[%s988 + $0xd8] sm:%s980] %v1043
                %v1045 = vld [vmem:[%s987 + $0xe0] sm:%s980]
                %1046 = vst [vmem:[%s988 + $0xe0] sm:%s980] %v1045
                %v1047 = vld [vmem:[%s987 + $0xe8] sm:%s980]
                %1048 = vst [vmem:[%s988 + $0xe8] sm:%s980] %v1047
                %v1049 = vld [vmem:[%s987 + $0xf0] sm:%s980]
                %1050 = vst [vmem:[%s988 + $0xf0] sm:%s980] %v1049
                %v1051 = vld [vmem:[%s987 + $0xf8] sm:%s980]
                %1052 = vst [vmem:[%s988 + $0xf8] sm:%s980] %v1051
                %v1053 = vld [vmem:[%s987 + $0x100] sm:%s980]
                %1054 = vst [vmem:[%s988 + $0x200] sm:%s980] %v1053
                %v1055 = vld [vmem:[%s987 + $0x108] sm:%s980]
                %1056 = vst [vmem:[%s988 + $0x208] sm:%s980] %v1055
                %v1057 = vld [vmem:[%s987 + $0x110] sm:%s980]
                %1058 = vst [vmem:[%s988 + $0x210] sm:%s980] %v1057
                %v1059 = vld [vmem:[%s987 + $0x118] sm:%s980]
                %1060 = vst [vmem:[%s988 + $0x218] sm:%s980] %v1059
                %v1061 = vld [vmem:[%s987 + $0x120] sm:%s980]
                %1062 = vst [vmem:[%s988 + $0x220] sm:%s980] %v1061
                %v1063 = vld [vmem:[%s987 + $0x128] sm:%s980]
                %1064 = vst [vmem:[%s988 + $0x228] sm:%s980] %v1063
                %v1065 = vld [vmem:[%s987 + $0x130] sm:%s980]
                %1066 = vst [vmem:[%s988 + $0x230] sm:%s980] %v1065
                %v1067 = vld [vmem:[%s987 + $0x138] sm:%s980]
                %1068 = vst [vmem:[%s988 + $0x238] sm:%s980] %v1067
                %v1069 = vld [vmem:[%s987 + $0x140] sm:%s980]
                %1070 = vst [vmem:[%s988 + $0x240] sm:%s980] %v1069
                %v1071 = vld [vmem:[%s987 + $0x148] sm:%s980]
                %1072 = vst [vmem:[%s988 + $0x248] sm:%s980] %v1071
                %v1073 = vld [vmem:[%s987 + $0x150] sm:%s980]
                %1074 = vst [vmem:[%s988 + $0x250] sm:%s980] %v1073
                %v1075 = vld [vmem:[%s987 + $0x158] sm:%s980]
                %1076 = vst [vmem:[%s988 + $0x258] sm:%s980] %v1075
                %v1077 = vld [vmem:[%s987 + $0x160] sm:%s980]
                %1078 = vst [vmem:[%s988 + $0x260] sm:%s980] %v1077
                %v1079 = vld [vmem:[%s987 + $0x168] sm:%s980]
                %1080 = vst [vmem:[%s988 + $0x268] sm:%s980] %v1079
                %v1081 = vld [vmem:[%s987 + $0x170] sm:%s980]
                %1082 = vst [vmem:[%s988 + $0x270] sm:%s980] %v1081
                %v1083 = vld [vmem:[%s987 + $0x178] sm:%s980]
                %1084 = vst [vmem:[%s988 + $0x278] sm:%s980] %v1083
                %v1085 = vld [vmem:[%s987 + $0x180] sm:%s980]
                %1086 = vst [vmem:[%s988 + $0x280] sm:%s980] %v1085
                %v1087 = vld [vmem:[%s987 + $0x188] sm:%s980]
                %1088 = vst [vmem:[%s988 + $0x288] sm:%s980] %v1087
                %v1089 = vld [vmem:[%s987 + $0x190] sm:%s980]
                %1090 = vst [vmem:[%s988 + $0x290] sm:%s980] %v1089
                %v1091 = vld [vmem:[%s987 + $0x198] sm:%s980]
                %1092 = vst [vmem:[%s988 + $0x298] sm:%s980] %v1091
                %v1093 = vld [vmem:[%s987 + $0x1a0] sm:%s980]
                %1094 = vst [vmem:[%s988 + $0x2a0] sm:%s980] %v1093
                %v1095 = vld [vmem:[%s987 + $0x1a8] sm:%s980]
                %1096 = vst [vmem:[%s988 + $0x2a8] sm:%s980] %v1095
                %v1097 = vld [vmem:[%s987 + $0x1b0] sm:%s980]
                %1098 = vst [vmem:[%s988 + $0x2b0] sm:%s980] %v1097
                %v1099 = vld [vmem:[%s987 + $0x1b8] sm:%s980]
                %1100 = vst [vmem:[%s988 + $0x2b8] sm:%s980] %v1099
                %v1101 = vld [vmem:[%s987 + $0x1c0] sm:%s980]
                %1102 = vst [vmem:[%s988 + $0x2c0] sm:%s980] %v1101
                %v1103 = vld [vmem:[%s987 + $0x1c8] sm:%s980]
                %1104 = vst [vmem:[%s988 + $0x2c8] sm:%s980] %v1103
                %v1105 = vld [vmem:[%s987 + $0x1d0] sm:%s980]
                %1106 = vst [vmem:[%s988 + $0x2d0] sm:%s980] %v1105
                %v1107 = vld [vmem:[%s987 + $0x1d8] sm:%s980]
                %1108 = vst [vmem:[%s988 + $0x2d8] sm:%s980] %v1107
                %v1109 = vld [vmem:[%s987 + $0x1e0] sm:%s980]
                %1110 = vst [vmem:[%s988 + $0x2e0] sm:%s980] %v1109
                %v1111 = vld [vmem:[%s987 + $0x1e8] sm:%s980]
                %1112 = vst [vmem:[%s988 + $0x2e8] sm:%s980] %v1111
                %v1113 = vld [vmem:[%s987 + $0x1f0] sm:%s980]
                %1114 = vst [vmem:[%s988 + $0x2f0] sm:%s980] %v1113
                %v1115 = vld [vmem:[%s987 + $0x1f8] sm:%s980]
                %1116 = vst [vmem:[%s988 + $0x2f8] sm:%s980] %v1115
              $region95: #{psp_upsample_forward.3} parent=89 // loop_footer
                %s986 = sadd.s32 1, %s982
              $region96: #{psp_upsample_forward.3} parent=89 // loop_footer_branch
                %981 = sbr.rel target = $region92
              $region97: #{psp_upsample_forward.3} parent=89 // loop_exit
                _
            $region90: #{psp_upsample_forward.3} parent=81 // pred_fallthru
              _
          $region82: #{psp_upsample_forward.3} parent=77 // pred_fallthru
            _
          %1257 = vnop
        $region78: #{psp_upsample_forward.3} parent=69 // pred_fallthru
          _
      $region70: #{psp_upsample_forward.3} parent=5 // pred_fallthru
        _
      %p1258 = scmp.le.s32.totalorder 2, %s11
      // Predicated region
      $region113: #{psp_upsample_forward.3} parent=5 // pred_check
        %p1259 = pneg %p1258
      $region114: #{psp_upsample_forward.3} parent=5 // pred_check_branch
        %1261 = sbr.rel (%p1259) target = $region116
      $region115: #{psp_upsample_forward.3} parent=5 // pred_region
        %s1262 = ssub.s32 %s11, 2
        // Predicated region
        $region117: #{psp_upsample_forward.3} parent=115 // pred_check
          %p1263 = pneg %p145
        $region118: #{psp_upsample_forward.3} parent=115 // pred_check_branch
          %1265 = sbr.rel (%p1263) target = $region120
        $region119: #{psp_upsample_forward.3} parent=115 // pred_region
          %s1266 = sand.u32 %s130, 1
          %s1267 = sand.u32 %s130, 1
          %s1268 = smul.addr %s1267, 512
          %s1269 = scalar_lea.vmem [#allocation4], %s1268
        $region120: #{psp_upsample_forward.3} parent=115 // pred_fallthru
          _
      $region116: #{psp_upsample_forward.3} parent=5 // pred_fallthru
        _
    $region6: #{psp_upsample_forward.3} parent=1 // loop_footer
      %s15 = sadd.s32 1, %s11
    $region7: #{psp_upsample_forward.3} parent=1 // loop_footer_branch
      %10 = sbr.rel target = $region3
    $region8: #{psp_upsample_forward.3} parent=1 // loop_exit
      _

// kernel: psp_upsample_forward.2
$region0: #{psp_upsample_forward.2}
  #allocation0 [shape = 'u32[]', space=smem, size = 0x4, offset = 0x4, fixed_abs, tag = 'smem constant byte address 0x4 - core index']
  #allocation1 [shape = 'u32[72,128]{1,0:T(1,128)}', space=vmem, size = 0x9000, scoped, tag = 'internal scratch']
  #allocation2 [shape = 'f32[2,128]{1,0:T(2,128)}', space=vmem, size = 0x400, scoped, tag = 'scratch operand']
  %s0 = inlined_call_operand.vmem [shape: f32[2,2,10,18,4], index: 0, kind: input, shape index: {}]
  %s1 = inlined_call_operand.vmem [shape: f32[9,4,128], index: 1, kind: input, shape index: {}]
  %s2 = inlined_call_operand.vmem [shape: f32[2,2,32,16,128], index: 2, kind: output, shape index: {0}]
  %s3 = inlined_call_operand.vmem [shape: f32[2,128], index: 3, kind: output, shape index: {1}]
  %4 = xla_tuple %s2, %s3
  %s5 = sld [smem:[#allocation0]]
  $region91: #{psp_upsample_forward.2} parent=0
    _
  %s7 = ssub.s32 1, %s5
  %s8 = scalar_select 0, %s7, %s5
  $region1: #{psp_upsample_forward.2} parent=0
    #allocation3 [shape = 'u8[524288]{0}', space=vmem, size = 0x80000, scoped, tag = 'output window, operand 0']
    loop: start=0, step=1, limit=6
    $region2: #{psp_upsample_forward.2} parent=1 // loop_pre_header
      _
    $region3: #{psp_upsample_forward.2} parent=1 // loop_header
      %s10 = sphi 0, %s14
      %p11 = scmp.ge.s32.totalorder %s10, 6
      %s17 = sphi 0, %s29
      %s18 = sphi 0, %s25
      %s19 = sphi 0, %s17
      %s20 = sphi 0, %s18
      %s21 = sphi 0, %s19
      %s22 = sphi 0, %s20
      %s34 = sphi 0, %s36
      %s37 = sphi 0, %s34
      %s38 = sphi 0, %s37
      %s54 = sphi 0, %s38
      %s58 = sphi 0, %s58
      %s60 = sphi 0, %s58
      %s61 = sphi 0, %s60
      %s75 = sphi 0, %s61
      %s83 = sphi 0, %s85
      %s86 = sphi 0, %s83
      %s87 = sphi 0, %s86
      %s103 = sphi 0, %s87
      %s107 = sphi 0, %s107
      %s109 = sphi 0, %s107
      %s110 = sphi 0, %s109
      %s124 = sphi 0, %s110
    $region4: #{psp_upsample_forward.2} parent=1 // loop_header_branch
      %13 = sbr.rel (%p11) target = $region8
    $region5: #{psp_upsample_forward.2} parent=1 // loop_body
      %s15 = ssub.s32 %s10, 1
      %s16 = ssub.s32 %s10, 2
      %s23 = sadd.s32 1, %s18
      %p24 = scmp.ge.s32.totalorder %s23, 2
      %s25 = scalar_select %p24, 0, %s23
      %s26 = sadd.s32 1, %s17
      %s27 = scalar_select %p24, %s26, %s17
      %p28 = scmp.ge.s32.totalorder %s27, 2
      %s29 = scalar_select %p28, 0, %s27
      %s30 = ssub.s32 %s17, %s29
      %s31 = ssub.s32 %s18, %s25
      %s32 = sor.u32 %s30, %s31
      %p33 = scmp.eq.s32.totalorder %s32, 0
      %s35 = sadd.s32 %s34, 1
      %s36 = scalar_select %p33, %s34, %s35
      %p39 = pneg %p33
      %p40 = scmp.eq.s32.totalorder %s10, 3
      %p41 = por %p39, %p40
      %p42 = scmp.ne.s32.totalorder %s34, %s37
      %p43 = scmp.eq.s32.totalorder %s10, 0
      %p44 = por %p42, %p43
      %p45 = scmp.ne.s32.totalorder %s34, %s37
      %p46 = scmp.eq.s32.totalorder %s15, 3
      %p47 = por %p45, %p46
      %p48 = scmp.ne.s32.totalorder %s37, %s38
      %p49 = scmp.eq.s32.totalorder %s15, 0
      %p50 = por %p48, %p49
      %p51 = scmp.ne.s32.totalorder %s37, %s38
      %p52 = scmp.eq.s32.totalorder %s16, 3
      %p53 = por %p51, %p52
      %p55 = scmp.ne.s32.totalorder %s38, %s54
      %p56 = scmp.eq.s32.totalorder %s16, 0
      %p57 = por %p55, %p56
      %s59 = sadd.s32 %s58, 1
      %p62 = scmp.eq.s32.totalorder %s10, 3
      %p63 = scmp.ne.s32.totalorder %s58, %s60
      %p64 = scmp.eq.s32.totalorder %s10, 0
      %p65 = por %p63, %p64
      %p66 = scmp.ne.s32.totalorder %s58, %s60
      %p67 = scmp.eq.s32.totalorder %s15, 3
      %p68 = por %p66, %p67
      %p69 = scmp.ne.s32.totalorder %s60, %s61
      %p70 = scmp.eq.s32.totalorder %s15, 0
      %p71 = por %p69, %p70
      %p72 = scmp.ne.s32.totalorder %s60, %s61
      %p73 = scmp.eq.s32.totalorder %s16, 3
      %p74 = por %p72, %p73
      %p76 = scmp.ne.s32.totalorder %s61, %s75
      %p77 = scmp.eq.s32.totalorder %s16, 0
      %p78 = por %p76, %p77
      %s79 = ssub.s32 %s17, %s29
      %s80 = ssub.s32 %s18, %s25
      %s81 = sor.u32 %s79, %s80
      %p82 = scmp.eq.s32.totalorder %s81, 0
      %s84 = sadd.s32 %s83, 1
      %s85 = scalar_select %p82, %s83, %s84
      %p88 = pneg %p82
      %p89 = scmp.eq.s32.totalorder %s10, 3
      %p90 = por %p88, %p89
      %p91 = scmp.ne.s32.totalorder %s83, %s86
      %p92 = scmp.eq.s32.totalorder %s10, 0
      %p93 = por %p91, %p92
      %p94 = scmp.ne.s32.totalorder %s83, %s86
      %p95 = scmp.eq.s32.totalorder %s15, 3
      %p96 = por %p94, %p95
      %p97 = scmp.ne.s32.totalorder %s86, %s87
      %p98 = scmp.eq.s32.totalorder %s15, 0
      %p99 = por %p97, %p98
      %p100 = scmp.ne.s32.totalorder %s86, %s87
      %p101 = scmp.eq.s32.totalorder %s16, 3
      %p102 = por %p100, %p101
      %p104 = scmp.ne.s32.totalorder %s87, %s103
      %p105 = scmp.eq.s32.totalorder %s16, 0
      %p106 = por %p104, %p105
      %s108 = sadd.s32 %s107, 1
      %p111 = scmp.eq.s32.totalorder %s10, 3
      %p112 = scmp.ne.s32.totalorder %s107, %s109
      %p113 = scmp.eq.s32.totalorder %s10, 0
      %p114 = por %p112, %p113
      %p115 = scmp.ne.s32.totalorder %s107, %s109
      %p116 = scmp.eq.s32.totalorder %s15, 3
      %p117 = por %p115, %p116
      %p118 = scmp.ne.s32.totalorder %s109, %s110
      %p119 = scmp.eq.s32.totalorder %s15, 0
      %p120 = por %p118, %p119
      %p121 = scmp.ne.s32.totalorder %s109, %s110
      %p122 = scmp.eq.s32.totalorder %s16, 3
      %p123 = por %p121, %p122
      %p125 = scmp.ne.s32.totalorder %s110, %s124
      %p126 = scmp.eq.s32.totalorder %s16, 0
      %p127 = por %p125, %p126
      %p128 = scmp.le.s32.totalorder 1, %s10
      %p129 = scmp.lt.s32.totalorder %s10, 5
      %p130 = pnand %p128, %p129
      %p131 = pneg %p130
      // Predicated region
      $region9: #{psp_upsample_forward.2} parent=5 // pred_check
        _
      $region10: #{psp_upsample_forward.2} parent=5 // pred_check_branch
        %133 = sbr.rel (%p130) target = $region12
      $region11: #{psp_upsample_forward.2} parent=5 // pred_region
        %s134 = ssub.s32 %s10, 1
        // Predicated region
        $region13: #{psp_upsample_forward.2} parent=11 // pred_check
          %p135 = pneg %p71
        $region14: #{psp_upsample_forward.2} parent=11 // pred_check_branch
          %137 = sbr.rel (%p135) target = $region16
        $region15: #{psp_upsample_forward.2} parent=11 // pred_region
          _
        $region16: #{psp_upsample_forward.2} parent=11 // pred_fallthru
          _
      $region12: #{psp_upsample_forward.2} parent=5 // pred_fallthru
        _
      %p138 = scmp.lt.s32.totalorder %s10, 4
      // Predicated region
      $region17: #{psp_upsample_forward.2} parent=5 // pred_check
        %p139 = pneg %p138
      $region18: #{psp_upsample_forward.2} parent=5 // pred_check_branch
        %141 = sbr.rel (%p139) target = $region20
      $region19: #{psp_upsample_forward.2} parent=5 // pred_region
        // Predicated region
        $region21: #{psp_upsample_forward.2} parent=19 // pred_check
          %p142 = pneg %p44
        $region22: #{psp_upsample_forward.2} parent=19 // pred_check_branch
          %144 = sbr.rel (%p142) target = $region24
        $region23: #{psp_upsample_forward.2} parent=19 // pred_region
          %p145 = scmp.lt.s32.totalorder %s17, 1
          %s146 = scalar_select %p145, %s17, 1
          %p147 = scmp.lt.s32.totalorder %s18, 1
          %s148 = scalar_select %p147, %s18, 1
          %s149 = smul.addr %s148, 30
          %s150 = smul.addr %s146, 60
          %s151 = sadd.s32 %s149, %s150
          %s152 = smul.addr %s151, 8
          %s153 = scalar_lea.vmem %s0, %s152
        $region24: #{psp_upsample_forward.2} parent=19 // pred_fallthru
          _
      $region20: #{psp_upsample_forward.2} parent=5 // pred_fallthru
        _
      %p154 = scmp.le.s32.totalorder 1, %s10
      %p155 = scmp.lt.s32.totalorder %s10, 5
      %p156 = pnand %p154, %p155
      %p157 = pneg %p156
      // Predicated region
      $region25: #{psp_upsample_forward.2} parent=5 // pred_check
        _
      $region26: #{psp_upsample_forward.2} parent=5 // pred_check_branch
        %159 = sbr.rel (%p156) target = $region28
      $region27: #{psp_upsample_forward.2} parent=5 // pred_region
        %s160 = ssub.s32 %s10, 1
        %p161 = scmp.lt.s32.totalorder %s19, 1
        %s162 = scalar_select %p161, %s19, 1
        %p163 = scmp.lt.s32.totalorder %s20, 1
        %s164 = scalar_select %p163, %s20, 1
        %s165 = smul.addr %s164, 30
        %s166 = smul.addr %s162, 60
        %s167 = sadd.s32 %s165, %s166
        %s168 = smul.addr %s167, 8
        %s169 = scalar_lea.vmem %s0, %s168
        %p170 = pneg %p50
        %p171 = pneg %p47
        %p172 = pneg %p71
        %p173 = pneg %p68
        %p174 = pneg %p99
        %p175 = pneg %p96
        %s176 = sand.u32 %s86, 1
        %s177 = sand.u32 %s86, 1
        %s178 = smul.addr %s177, 512
        %s179 = scalar_lea.vmem [#allocation3], %s178
        %p180 = pneg %p120
        %p181 = pneg %p117
        %p182 = scmp.lt.s32.totalorder %s19, 1
        %s183 = scalar_select %p182, %s19, 1
        %p184 = scmp.lt.s32.totalorder %s20, 1
        %s185 = scalar_select %p184, %s20, 1
        %s186 = smul.addr %s185, 30
        %s187 = smul.addr %s183, 60
        %s188 = sadd.s32 %s186, %s187
        %s189 = smul.addr %s188, 8
        %s190 = scalar_lea.vmem %s0, %s189
        %s191 = smul.u32 16, %s20
        %v192 = vld [vmem:[%s190] sm:$0xff]
        %v193 = vld [vmem:[%s190 + $0x8] sm:$0xff]
        %v194 = vld [vmem:[%s190 + $0x10] sm:$0x3]
        %v195 = vld [vmem:[%s190 + $0x18] sm:$0xff]
        %v196 = vld [vmem:[%s190 + $0x20] sm:$0xff]
        %v197 = vld [vmem:[%s190 + $0x28] sm:$0x3]
        %v198 = vld [vmem:[%s190 + $0x30] sm:$0xff]
        %v199 = vld [vmem:[%s190 + $0x38] sm:$0xff]
        %v200 = vld [vmem:[%s190 + $0x40] sm:$0x3]
        %v201 = vld [vmem:[%s190 + $0x48] sm:$0xff]
        %v202 = vld [vmem:[%s190 + $0x50] sm:$0xff]
        %v203 = vld [vmem:[%s190 + $0x58] sm:$0x3]
        %v204 = vld [vmem:[%s190 + $0x60] sm:$0xff]
        %v205 = vld [vmem:[%s190 + $0x68] sm:$0xff]
        %v206 = vld [vmem:[%s190 + $0x70] sm:$0x3]
        %v207 = vld [vmem:[%s190 + $0x78] sm:$0xff]
        %v208 = vld [vmem:[%s190 + $0x80] sm:$0xff]
        %v209 = vld [vmem:[%s190 + $0x88] sm:$0x3]
        %v210 = vld [vmem:[%s190 + $0x90] sm:$0xff]
        %v211 = vld [vmem:[%s190 + $0x98] sm:$0xff]
        %v212 = vld [vmem:[%s190 + $0xa0] sm:$0x3]
        %v213 = vld [vmem:[%s190 + $0xa8] sm:$0xff]
        %v214 = vld [vmem:[%s190 + $0xb0] sm:$0xff]
        %v215 = vld [vmem:[%s190 + $0xb8] sm:$0x3]
        %v216 = vld [vmem:[%s190 + $0xc0] sm:$0xff]
        %v217 = vld [vmem:[%s190 + $0xc8] sm:$0xff]
        %v218 = vld [vmem:[%s190 + $0xd0] sm:$0x3]
        %v219 = vld [vmem:[%s190 + $0xd8] sm:$0xff]
        %v220 = vld [vmem:[%s190 + $0xe0] sm:$0xff]
        %v221 = vld [vmem:[%s190 + $0xe8] sm:$0x3]
        %v222 = vmul.f32 %v192, 0.75
        %v223 = vmul.f32 %v193, 0.75
        %v224 = vmul.f32 %v194, 0.75
        %v225 = vmul.f32 %v195, 0.75
        %v226 = vmul.f32 %v196, 0.75
        %v227 = vmul.f32 %v197, 0.75
        %v228 = vmul.f32 %v198, 0.75
        %v229 = vmul.f32 %v199, 0.75
        %v230 = vmul.f32 %v200, 0.75
        %v231 = vmul.f32 %v201, 0.75
        %v232 = vmul.f32 %v202, 0.75
        %v233 = vmul.f32 %v203, 0.75
        %v234 = vmul.f32 %v204, 0.75
        %v235 = vmul.f32 %v205, 0.75
        %v236 = vmul.f32 %v206, 0.75
        %v237 = vmul.f32 %v207, 0.75
        %v238 = vmul.f32 %v208, 0.75
        %v239 = vmul.f32 %v209, 0.75
        %v240 = vmul.f32 %v210, 0.75
        %v241 = vmul.f32 %v211, 0.75
        %v242 = vmul.f32 %v212, 0.75
        %v243 = vmul.f32 %v213, 0.75
        %v244 = vmul.f32 %v214, 0.75
        %v245 = vmul.f32 %v215, 0.75
        %v246 = vmul.f32 %v216, 0.75
        %v247 = vmul.f32 %v217, 0.75
        %v248 = vmul.f32 %v218, 0.75
        %v249 = vmul.f32 %v195, 0.25
        %v250 = vmul.f32 %v196, 0.25
        %v251 = vmul.f32 %v197, 0.25
        %v252 = vmul.f32 %v198, 0.25
        %v253 = vmul.f32 %v199, 0.25
        %v254 = vmul.f32 %v200, 0.25
        %v255 = vmul.f32 %v201, 0.25
        %v256 = vmul.f32 %v202, 0.25
        %v257 = vmul.f32 %v203, 0.25
        %v258 = vmul.f32 %v204, 0.25
        %v259 = vmul.f32 %v205, 0.25
        %v260 = vmul.f32 %v206, 0.25
        %v261 = vmul.f32 %v207, 0.25
        %v262 = vmul.f32 %v208, 0.25
        %v263 = vmul.f32 %v209, 0.25
        %v264 = vmul.f32 %v210, 0.25
        %v265 = vmul.f32 %v211, 0.25
        %v266 = vmul.f32 %v212, 0.25
        %v267 = vmul.f32 %v213, 0.25
        %v268 = vmul.f32 %v214, 0.25
        %v269 = vmul.f32 %v215, 0.25
        %v270 = vmul.f32 %v216, 0.25
        %v271 = vmul.f32 %v217, 0.25
        %v272 = vmul.f32 %v218, 0.25
        %v273 = vmul.f32 %v219, 0.25
        %v274 = vmul.f32 %v220, 0.25
        %v275 = vmul.f32 %v221, 0.25
        %v276 = vadd.f32 %v222, %v249
        %v277 = vadd.f32 %v223, %v250
        %v278 = vadd.f32 %v224, %v251
        %v279 = vadd.f32 %v225, %v252
        %v280 = vadd.f32 %v226, %v253
        %v281 = vadd.f32 %v227, %v254
        %v282 = vadd.f32 %v228, %v255
        %v283 = vadd.f32 %v229, %v256
        %v284 = vadd.f32 %v230, %v257
        %v285 = vadd.f32 %v231, %v258
        %v286 = vadd.f32 %v232, %v259
        %v287 = vadd.f32 %v233, %v260
        %v288 = vadd.f32 %v234, %v261
        %v289 = vadd.f32 %v235, %v262
        %v290 = vadd.f32 %v236, %v263
        %v291 = vadd.f32 %v237, %v264
        %v292 = vadd.f32 %v238, %v265
        %v293 = vadd.f32 %v239, %v266
        %v294 = vadd.f32 %v240, %v267
        %v295 = vadd.f32 %v241, %v268
        %v296 = vadd.f32 %v242, %v269
        %v297 = vadd.f32 %v243, %v270
        %v298 = vadd.f32 %v244, %v271
        %v299 = vadd.f32 %v245, %v272
        %v300 = vadd.f32 %v246, %v273
        %v301 = vadd.f32 %v247, %v274
        %v302 = vadd.f32 %v248, %v275
        %v303 = vmul.f32 %v192, 0.25
        %v304 = vmul.f32 %v193, 0.25
        %v305 = vmul.f32 %v194, 0.25
        %v306 = vmul.f32 %v219, 0.75
        %v307 = vmul.f32 %v220, 0.75
        %v308 = vmul.f32 %v221, 0.75
        %v309 = vadd.f32 %v303, %v225
        %v310 = vadd.f32 %v304, %v226
        %v311 = vadd.f32 %v305, %v227
        %v312 = vadd.f32 %v249, %v228
        %v313 = vadd.f32 %v250, %v229
        %v314 = vadd.f32 %v251, %v230
        %v315 = vadd.f32 %v252, %v231
        %v316 = vadd.f32 %v253, %v232
        %v317 = vadd.f32 %v254, %v233
        %v318 = vadd.f32 %v255, %v234
        %v319 = vadd.f32 %v256, %v235
        %v320 = vadd.f32 %v257, %v236
        %v321 = vadd.f32 %v258, %v237
        %v322 = vadd.f32 %v259, %v238
        %v323 = vadd.f32 %v260, %v239
        %v324 = vadd.f32 %v261, %v240
        %v325 = vadd.f32 %v262, %v241
        %v326 = vadd.f32 %v263, %v242
        %v327 = vadd.f32 %v264, %v243
        %v328 = vadd.f32 %v265, %v244
        %v329 = vadd.f32 %v266, %v245
        %v330 = vadd.f32 %v267, %v246
        %v331 = vadd.f32 %v268, %v247
        %v332 = vadd.f32 %v269, %v248
        %v333 = vadd.f32 %v270, %v306
        %v334 = vadd.f32 %v271, %v307
        %v335 = vadd.f32 %v272, %v308
        %p336 = scmp.gt.s32.totalorder %s20, 0
        %s337 = scalar_select %p336, 1, 0
        %s338 = scvt.s32.f32 %s337
        %p339 = scmp.lt.s32.totalorder %s20, 1
        %s340 = scalar_select %p339, 1, 0
        %s341 = scvt.s32.f32 %s340
        %v342 = vstv %s338
        %v343 = vmul.f32 %v276, %v342
        %v344 = vmul.f32 %v277, %v342
        %v345 = vmul.f32 %v278, %v342
        %v346 = vstv %s341
        %v347 = vmul.f32 %v333, %v346
        %v348 = vmul.f32 %v334, %v346
        %v349 = vmul.f32 %v335, %v346
        %v350 = vmul.f32 %v343, 0.25
        %v351 = vmul.f32 %v344, 0.25
        %v352 = vmul.f32 %v345, 0.25
        %v353 = vmul.f32 %v309, 0.25
        %v354 = vmul.f32 %v310, 0.25
        %v355 = vmul.f32 %v311, 0.25
        %v356 = vmul.f32 %v279, 0.25
        %v357 = vmul.f32 %v280, 0.25
        %v358 = vmul.f32 %v281, 0.25
        %v359 = vmul.f32 %v312, 0.25
        %v360 = vmul.f32 %v313, 0.25
        %v361 = vmul.f32 %v314, 0.25
        %v362 = vmul.f32 %v282, 0.25
        %v363 = vmul.f32 %v283, 0.25
        %v364 = vmul.f32 %v284, 0.25
        %v365 = vmul.f32 %v315, 0.25
        %v366 = vmul.f32 %v316, 0.25
        %v367 = vmul.f32 %v317, 0.25
        %v368 = vmul.f32 %v285, 0.25
        %v369 = vmul.f32 %v286, 0.25
        %v370 = vmul.f32 %v287, 0.25
        %v371 = vmul.f32 %v318, 0.25
        %v372 = vmul.f32 %v319, 0.25
        %v373 = vmul.f32 %v320, 0.25
        %v374 = vmul.f32 %v288, 0.25
        %v375 = vmul.f32 %v289, 0.25
        %v376 = vmul.f32 %v290, 0.25
        %v377 = vmul.f32 %v321, 0.25
        %v378 = vmul.f32 %v322, 0.25
        %v379 = vmul.f32 %v323, 0.25
        %v380 = vmul.f32 %v291, 0.25
        %v381 = vmul.f32 %v292, 0.25
        %v382 = vmul.f32 %v293, 0.25
        %v383 = vmul.f32 %v324, 0.25
        %v384 = vmul.f32 %v325, 0.25
        %v385 = vmul.f32 %v326, 0.25
        %v386 = vmul.f32 %v294, 0.25
        %v387 = vmul.f32 %v295, 0.25
        %v388 = vmul.f32 %v296, 0.25
        %v389 = vmul.f32 %v327, 0.25
        %v390 = vmul.f32 %v328, 0.25
        %v391 = vmul.f32 %v329, 0.25
        %v392 = vmul.f32 %v297, 0.25
        %v393 = vmul.f32 %v298, 0.25
        %v394 = vmul.f32 %v299, 0.25
        %v395 = vmul.f32 %v330, 0.25
        %v396 = vmul.f32 %v331, 0.25
        %v397 = vmul.f32 %v332, 0.25
        %v398 = vmul.f32 %v300, 0.25
        %v399 = vmul.f32 %v301, 0.25
        %v400 = vmul.f32 %v302, 0.25
        %v401 = vmul.f32 %v347, 0.25
        %v402 = vmul.f32 %v348, 0.25
        %v403 = vmul.f32 %v349, 0.25
        %v404 = vmul.f32 %v343, 0.75
        %v405 = vmul.f32 %v344, 0.75
        %v406 = vmul.f32 %v345, 0.75
        %v407 = vmul.f32 %v309, 0.75
        %v408 = vmul.f32 %v310, 0.75
        %v409 = vmul.f32 %v311, 0.75
        %v410 = vmul.f32 %v279, 0.75
        %v411 = vmul.f32 %v280, 0.75
        %v412 = vmul.f32 %v281, 0.75
        %v413 = vmul.f32 %v312, 0.75
        %v414 = vmul.f32 %v313, 0.75
        %v415 = vmul.f32 %v314, 0.75
        %v416 = vmul.f32 %v282, 0.75
        %v417 = vmul.f32 %v283, 0.75
        %v418 = vmul.f32 %v284, 0.75
        %v419 = vmul.f32 %v315, 0.75
        %v420 = vmul.f32 %v316, 0.75
        %v421 = vmul.f32 %v317, 0.75
        %v422 = vmul.f32 %v285, 0.75
        %v423 = vmul.f32 %v286, 0.75
        %v424 = vmul.f32 %v287, 0.75
        %v425 = vmul.f32 %v318, 0.75
        %v426 = vmul.f32 %v319, 0.75
        %v427 = vmul.f32 %v320, 0.75
        %v428 = vmul.f32 %v288, 0.75
        %v429 = vmul.f32 %v289, 0.75
        %v430 = vmul.f32 %v290, 0.75
        %v431 = vmul.f32 %v321, 0.75
        %v432 = vmul.f32 %v322, 0.75
        %v433 = vmul.f32 %v323, 0.75
        %v434 = vmul.f32 %v291, 0.75
        %v435 = vmul.f32 %v292, 0.75
        %v436 = vmul.f32 %v293, 0.75
        %v437 = vmul.f32 %v324, 0.75
        %v438 = vmul.f32 %v325, 0.75
        %v439 = vmul.f32 %v326, 0.75
        %v440 = vmul.f32 %v294, 0.75
        %v441 = vmul.f32 %v295, 0.75
        %v442 = vmul.f32 %v296, 0.75
        %v443 = vmul.f32 %v327, 0.75
        %v444 = vmul.f32 %v328, 0.75
        %v445 = vmul.f32 %v329, 0.75
        %v446 = vmul.f32 %v297, 0.75
        %v447 = vmul.f32 %v298, 0.75
        %v448 = vmul.f32 %v299, 0.75
        %v449 = vmul.f32 %v330, 0.75
        %v450 = vmul.f32 %v331, 0.75
        %v451 = vmul.f32 %v332, 0.75
        %v452 = vmul.f32 %v300, 0.75
        %v453 = vmul.f32 %v301, 0.75
        %v454 = vmul.f32 %v302, 0.75
        %v455 = vmul.f32 %v347, 0.75
        %v456 = vmul.f32 %v348, 0.75
        %v457 = vmul.f32 %v349, 0.75
        %vm512 = vcmask 1046528
        %v513 = vrot.slane %v404, 1
        %v514 = vrot.slane %v405, 1
        %v515 = vsel %vm512, %v513, %v514
        %v516 = vrot.slane %v406, 1
        %v517 = vsel %vm512, %v514, %v516
        %v518 = vrot.slane %v407, 1
        %v519 = vrot.slane %v408, 1
        %v520 = vsel %vm512, %v518, %v519
        %v521 = vrot.slane %v409, 1
        %v522 = vsel %vm512, %v519, %v521
        %v523 = vrot.slane %v410, 1
        %v524 = vrot.slane %v411, 1
        %v525 = vsel %vm512, %v523, %v524
        %v526 = vrot.slane %v412, 1
        %v527 = vsel %vm512, %v524, %v526
        %v528 = vrot.slane %v413, 1
        %v529 = vrot.slane %v414, 1
        %v530 = vsel %vm512, %v528, %v529
        %v531 = vrot.slane %v415, 1
        %v532 = vsel %vm512, %v529, %v531
        %v533 = vrot.slane %v416, 1
        %v534 = vrot.slane %v417, 1
        %v535 = vsel %vm512, %v533, %v534
        %v536 = vrot.slane %v418, 1
        %v537 = vsel %vm512, %v534, %v536
        %v538 = vrot.slane %v419, 1
        %v539 = vrot.slane %v420, 1
        %v540 = vsel %vm512, %v538, %v539
        %v541 = vrot.slane %v421, 1
        %v542 = vsel %vm512, %v539, %v541
        %v543 = vrot.slane %v422, 1
        %v544 = vrot.slane %v423, 1
        %v545 = vsel %vm512, %v543, %v544
        %v546 = vrot.slane %v424, 1
        %v547 = vsel %vm512, %v544, %v546
        %v548 = vrot.slane %v425, 1
        %v549 = vrot.slane %v426, 1
        %v550 = vsel %vm512, %v548, %v549
        %v551 = vrot.slane %v427, 1
        %v552 = vsel %vm512, %v549, %v551
        %v553 = vrot.slane %v428, 1
        %v554 = vrot.slane %v429, 1
        %v555 = vsel %vm512, %v553, %v554
        %v556 = vrot.slane %v430, 1
        %v557 = vsel %vm512, %v554, %v556
        %v558 = vrot.slane %v431, 1
        %v559 = vrot.slane %v432, 1
        %v560 = vsel %vm512, %v558, %v559
        %v561 = vrot.slane %v433, 1
        %v562 = vsel %vm512, %v559, %v561
        %v563 = vrot.slane %v434, 1
        %v564 = vrot.slane %v435, 1
        %v565 = vsel %vm512, %v563, %v564
        %v566 = vrot.slane %v436, 1
        %v567 = vsel %vm512, %v564, %v566
        %v568 = vrot.slane %v437, 1
        %v569 = vrot.slane %v438, 1
        %v570 = vsel %vm512, %v568, %v569
        %v571 = vrot.slane %v439, 1
        %v572 = vsel %vm512, %v569, %v571
        %v573 = vrot.slane %v440, 1
        %v574 = vrot.slane %v441, 1
        %v575 = vsel %vm512, %v573, %v574
        %v576 = vrot.slane %v442, 1
        %v577 = vsel %vm512, %v574, %v576
        %v578 = vrot.slane %v443, 1
        %v579 = vrot.slane %v444, 1
        %v580 = vsel %vm512, %v578, %v579
        %v581 = vrot.slane %v445, 1
        %v582 = vsel %vm512, %v579, %v581
        %v583 = vrot.slane %v446, 1
        %v584 = vrot.slane %v447, 1
        %v585 = vsel %vm512, %v583, %v584
        %v586 = vrot.slane %v448, 1
        %v587 = vsel %vm512, %v584, %v586
        %v588 = vrot.slane %v449, 1
        %v589 = vrot.slane %v450, 1
        %v590 = vsel %vm512, %v588, %v589
        %v591 = vrot.slane %v451, 1
        %v592 = vsel %vm512, %v589, %v591
        %v593 = vrot.slane %v452, 1
        %v594 = vrot.slane %v453, 1
        %v595 = vsel %vm512, %v593, %v594
        %v596 = vrot.slane %v454, 1
        %v597 = vsel %vm512, %v594, %v596
        %v598 = vrot.slane %v455, 1
        %v599 = vrot.slane %v456, 1
        %v600 = vsel %vm512, %v598, %v599
        %v601 = vrot.slane %v457, 1
        %v602 = vsel %vm512, %v599, %v601
        %v657 = vadd.f32 %v350, %v515
        %v658 = vadd.f32 %v351, %v517
        %v659 = vadd.f32 %v352, %v516
        %v660 = vadd.f32 %v353, %v520
        %v661 = vadd.f32 %v354, %v522
        %v662 = vadd.f32 %v355, %v521
        %v663 = vadd.f32 %v356, %v525
        %v664 = vadd.f32 %v357, %v527
        %v665 = vadd.f32 %v358, %v526
        %v666 = vadd.f32 %v359, %v530
        %v667 = vadd.f32 %v360, %v532
        %v668 = vadd.f32 %v361, %v531
        %v669 = vadd.f32 %v362, %v535
        %v670 = vadd.f32 %v363, %v537
        %v671 = vadd.f32 %v364, %v536
        %v672 = vadd.f32 %v365, %v540
        %v673 = vadd.f32 %v366, %v542
        %v674 = vadd.f32 %v367, %v541
        %v675 = vadd.f32 %v368, %v545
        %v676 = vadd.f32 %v369, %v547
        %v677 = vadd.f32 %v370, %v546
        %v678 = vadd.f32 %v371, %v550
        %v679 = vadd.f32 %v372, %v552
        %v680 = vadd.f32 %v373, %v551
        %v681 = vadd.f32 %v374, %v555
        %v682 = vadd.f32 %v375, %v557
        %v683 = vadd.f32 %v376, %v556
        %v684 = vadd.f32 %v377, %v560
        %v685 = vadd.f32 %v378, %v562
        %v686 = vadd.f32 %v379, %v561
        %v687 = vadd.f32 %v380, %v565
        %v688 = vadd.f32 %v381, %v567
        %v689 = vadd.f32 %v382, %v566
        %v690 = vadd.f32 %v383, %v570
        %v691 = vadd.f32 %v384, %v572
        %v692 = vadd.f32 %v385, %v571
        %v693 = vadd.f32 %v386, %v575
        %v694 = vadd.f32 %v387, %v577
        %v695 = vadd.f32 %v388, %v576
        %v696 = vadd.f32 %v389, %v580
        %v697 = vadd.f32 %v390, %v582
        %v698 = vadd.f32 %v391, %v581
        %v699 = vadd.f32 %v392, %v585
        %v700 = vadd.f32 %v393, %v587
        %v701 = vadd.f32 %v394, %v586
        %v702 = vadd.f32 %v395, %v590
        %v703 = vadd.f32 %v396, %v592
        %v704 = vadd.f32 %v397, %v591
        %v705 = vadd.f32 %v398, %v595
        %v706 = vadd.f32 %v399, %v597
        %v707 = vadd.f32 %v400, %v596
        %v708 = vadd.f32 %v401, %v600
        %v709 = vadd.f32 %v402, %v602
        %v710 = vadd.f32 %v403, %v601
        %v765 = vrot.slane %v350, 1
        %v766 = vrot.slane %v351, 1
        %v767 = vsel %vm512, %v765, %v766
        %v768 = vrot.slane %v352, 1
        %v769 = vsel %vm512, %v766, %v768
        %v770 = vrot.slane %v353, 1
        %v771 = vrot.slane %v354, 1
        %v772 = vsel %vm512, %v770, %v771
        %v773 = vrot.slane %v355, 1
        %v774 = vsel %vm512, %v771, %v773
        %v775 = vrot.slane %v356, 1
        %v776 = vrot.slane %v357, 1
        %v777 = vsel %vm512, %v775, %v776
        %v778 = vrot.slane %v358, 1
        %v779 = vsel %vm512, %v776, %v778
        %v780 = vrot.slane %v359, 1
        %v781 = vrot.slane %v360, 1
        %v782 = vsel %vm512, %v780, %v781
        %v783 = vrot.slane %v361, 1
        %v784 = vsel %vm512, %v781, %v783
        %v785 = vrot.slane %v362, 1
        %v786 = vrot.slane %v363, 1
        %v787 = vsel %vm512, %v785, %v786
        %v788 = vrot.slane %v364, 1
        %v789 = vsel %vm512, %v786, %v788
        %v790 = vrot.slane %v365, 1
        %v791 = vrot.slane %v366, 1
        %v792 = vsel %vm512, %v790, %v791
        %v793 = vrot.slane %v367, 1
        %v794 = vsel %vm512, %v791, %v793
        %v795 = vrot.slane %v368, 1
        %v796 = vrot.slane %v369, 1
        %v797 = vsel %vm512, %v795, %v796
        %v798 = vrot.slane %v370, 1
        %v799 = vsel %vm512, %v796, %v798
        %v800 = vrot.slane %v371, 1
        %v801 = vrot.slane %v372, 1
        %v802 = vsel %vm512, %v800, %v801
        %v803 = vrot.slane %v373, 1
        %v804 = vsel %vm512, %v801, %v803
        %v805 = vrot.slane %v374, 1
        %v806 = vrot.slane %v375, 1
        %v807 = vsel %vm512, %v805, %v806
        %v808 = vrot.slane %v376, 1
        %v809 = vsel %vm512, %v806, %v808
        %v810 = vrot.slane %v377, 1
        %v811 = vrot.slane %v378, 1
        %v812 = vsel %vm512, %v810, %v811
        %v813 = vrot.slane %v379, 1
        %v814 = vsel %vm512, %v811, %v813
        %v815 = vrot.slane %v380, 1
        %v816 = vrot.slane %v381, 1
        %v817 = vsel %vm512, %v815, %v816
        %v818 = vrot.slane %v382, 1
        %v819 = vsel %vm512, %v816, %v818
        %v820 = vrot.slane %v383, 1
        %v821 = vrot.slane %v384, 1
        %v822 = vsel %vm512, %v820, %v821
        %v823 = vrot.slane %v385, 1
        %v824 = vsel %vm512, %v821, %v823
        %v825 = vrot.slane %v386, 1
        %v826 = vrot.slane %v387, 1
        %v827 = vsel %vm512, %v825, %v826
        %v828 = vrot.slane %v388, 1
        %v829 = vsel %vm512, %v826, %v828
        %v830 = vrot.slane %v389, 1
        %v831 = vrot.slane %v390, 1
        %v832 = vsel %vm512, %v830, %v831
        %v833 = vrot.slane %v391, 1
        %v834 = vsel %vm512, %v831, %v833
        %v835 = vrot.slane %v392, 1
        %v836 = vrot.slane %v393, 1
        %v837 = vsel %vm512, %v835, %v836
        %v838 = vrot.slane %v394, 1
        %v839 = vsel %vm512, %v836, %v838
        %v840 = vrot.slane %v395, 1
        %v841 = vrot.slane %v396, 1
        %v842 = vsel %vm512, %v840, %v841
        %v843 = vrot.slane %v397, 1
        %v844 = vsel %vm512, %v841, %v843
        %v845 = vrot.slane %v398, 1
        %v846 = vrot.slane %v399, 1
        %v847 = vsel %vm512, %v845, %v846
        %v848 = vrot.slane %v400, 1
        %v849 = vsel %vm512, %v846, %v848
        %v850 = vrot.slane %v401, 1
        %v851 = vrot.slane %v402, 1
        %v852 = vsel %vm512, %v850, %v851
        %v853 = vrot.slane %v403, 1
        %v854 = vsel %vm512, %v851, %v853
        %v909 = vadd.f32 %v404, %v767
        %v910 = vadd.f32 %v405, %v769
        %v911 = vadd.f32 %v406, %v768
        %v912 = vadd.f32 %v407, %v772
        %v913 = vadd.f32 %v408, %v774
        %v914 = vadd.f32 %v409, %v773
        %v915 = vadd.f32 %v410, %v777
        %v916 = vadd.f32 %v411, %v779
        %v917 = vadd.f32 %v412, %v778
        %v918 = vadd.f32 %v413, %v782
        %v919 = vadd.f32 %v414, %v784
        %v920 = vadd.f32 %v415, %v783
        %v921 = vadd.f32 %v416, %v787
        %v922 = vadd.f32 %v417, %v789
        %v923 = vadd.f32 %v418, %v788
        %v924 = vadd.f32 %v419, %v792
        %v925 = vadd.f32 %v420, %v794
        %v926 = vadd.f32 %v421, %v793
        %v927 = vadd.f32 %v422, %v797
        %v928 = vadd.f32 %v423, %v799
        %v929 = vadd.f32 %v424, %v798
        %v930 = vadd.f32 %v425, %v802
        %v931 = vadd.f32 %v426, %v804
        %v932 = vadd.f32 %v427, %v803
        %v933 = vadd.f32 %v428, %v807
        %v934 = vadd.f32 %v429, %v809
        %v935 = vadd.f32 %v430, %v808
        %v936 = vadd.f32 %v431, %v812
        %v937 = vadd.f32 %v432, %v814
        %v938 = vadd.f32 %v433, %v813
        %v939 = vadd.f32 %v434, %v817
        %v940 = vadd.f32 %v435, %v819
        %v941 = vadd.f32 %v436, %v818
        %v942 = vadd.f32 %v437, %v822
        %v943 = vadd.f32 %v438, %v824
        %v944 = vadd.f32 %v439, %v823
        %v945 = vadd.f32 %v440, %v827
        %v946 = vadd.f32 %v441, %v829
        %v947 = vadd.f32 %v442, %v828
        %v948 = vadd.f32 %v443, %v832
        %v949 = vadd.f32 %v444, %v834
        %v950 = vadd.f32 %v445, %v833
        %v951 = vadd.f32 %v446, %v837
        %v952 = vadd.f32 %v447, %v839
        %v953 = vadd.f32 %v448, %v838
        %v954 = vadd.f32 %v449, %v842
        %v955 = vadd.f32 %v450, %v844
        %v956 = vadd.f32 %v451, %v843
        %v957 = vadd.f32 %v452, %v847
        %v958 = vadd.f32 %v453, %v849
        %v959 = vadd.f32 %v454, %v848
        %v960 = vadd.f32 %v455, %v852
        %v961 = vadd.f32 %v456, %v854
        %v962 = vadd.f32 %v457, %v853
        %v963 = vlaneseq
        %v964 = vshrl.u32 %v963, 7
        %v965 = vadd.s32 %v964, 8
        %v966 = vadd.s32 %v964, 16
        %vm967 = vcmp.eq.s32.totalorder %v964, 16
        %vm968 = vcmp.eq.s32.totalorder %v965, 16
        %vm969 = vcmp.eq.s32.totalorder %v966, 16
        %v970 = vsel %vm967, 0.0, %v657
        %v971 = vsel %vm968, 0.0, %v658
        %v972 = vsel %vm969, 0.0, %v659
        %v973 = vsel %vm967, 0.0, %v660
        %v974 = vsel %vm968, 0.0, %v661
        %v975 = vsel %vm969, 0.0, %v662
        %v976 = vsel %vm967, 0.0, %v663
        %v977 = vsel %vm968, 0.0, %v664
        %v978 = vsel %vm969, 0.0, %v665
        %v979 = vsel %vm967, 0.0, %v666
        %v980 = vsel %vm968, 0.0, %v667
        %v981 = vsel %vm969, 0.0, %v668
        %v982 = vsel %vm967, 0.0, %v669
        %v983 = vsel %vm968, 0.0, %v670
        %v984 = vsel %vm969, 0.0, %v671
        %v985 = vsel %vm967, 0.0, %v672
        %v986 = vsel %vm968, 0.0, %v673
        %v987 = vsel %vm969, 0.0, %v674
        %v988 = vsel %vm967, 0.0, %v675
        %v989 = vsel %vm968, 0.0, %v676
        %v990 = vsel %vm969, 0.0, %v677
        %v991 = vsel %vm967, 0.0, %v678
        %v992 = vsel %vm968, 0.0, %v679
        %v993 = vsel %vm969, 0.0, %v680
        %v994 = vsel %vm967, 0.0, %v681
        %v995 = vsel %vm968, 0.0, %v682
        %v996 = vsel %vm969, 0.0, %v683
        %v997 = vsel %vm967, 0.0, %v684
        %v998 = vsel %vm968, 0.0, %v685
        %v999 = vsel %vm969, 0.0, %v686
        %v1000 = vsel %vm967, 0.0, %v687
        %v1001 = vsel %vm968, 0.0, %v688
        %v1002 = vsel %vm969, 0.0, %v689
        %v1003 = vsel %vm967, 0.0, %v690
        %v1004 = vsel %vm968, 0.0, %v691
        %v1005 = vsel %vm969, 0.0, %v692
        %v1006 = vsel %vm967, 0.0, %v693
        %v1007 = vsel %vm968, 0.0, %v694
        %v1008 = vsel %vm969, 0.0, %v695
        %v1009 = vsel %vm967, 0.0, %v696
        %v1010 = vsel %vm968, 0.0, %v697
        %v1011 = vsel %vm969, 0.0, %v698
        %v1012 = vsel %vm967, 0.0, %v699
        %v1013 = vsel %vm968, 0.0, %v700
        %v1014 = vsel %vm969, 0.0, %v701
        %v1015 = vsel %vm967, 0.0, %v702
        %v1016 = vsel %vm968, 0.0, %v703
        %v1017 = vsel %vm969, 0.0, %v704
        %v1018 = vsel %vm967, 0.0, %v705
        %v1019 = vsel %vm968, 0.0, %v706
        %v1020 = vsel %vm969, 0.0, %v707
        %v1021 = vsel %vm967, 0.0, %v708
        %v1022 = vsel %vm968, 0.0, %v709
        %v1023 = vsel %vm969, 0.0, %v710
        %vm1024 = vcmp.eq.s32.totalorder %v964, 0
        %vm1025 = vcmp.eq.s32.totalorder %v965, 0
        %vm1026 = vcmp.eq.s32.totalorder %v966, 0
        %v1027 = vsel %vm1024, 0.0, %v909
        %v1028 = vsel %vm1025, 0.0, %v910
        %v1029 = vsel %vm1026, 0.0, %v911
        %v1030 = vsel %vm1024, 0.0, %v912
        %v1031 = vsel %vm1025, 0.0, %v913
        %v1032 = vsel %vm1026, 0.0, %v914
        %v1033 = vsel %vm1024, 0.0, %v915
        %v1034 = vsel %vm1025, 0.0, %v916
        %v1035 = vsel %vm1026, 0.0, %v917
        %v1036 = vsel %vm1024, 0.0, %v918
        %v1037 = vsel %vm1025, 0.0, %v919
        %v1038 = vsel %vm1026, 0.0, %v920
        %v1039 = vsel %vm1024, 0.0, %v921
        %v1040 = vsel %vm1025, 0.0, %v922
        %v1041 = vsel %vm1026, 0.0, %v923
        %v1042 = vsel %vm1024, 0.0, %v924
        %v1043 = vsel %vm1025, 0.0, %v925
        %v1044 = vsel %vm1026, 0.0, %v926
        %v1045 = vsel %vm1024, 0.0, %v927
        %v1046 = vsel %vm1025, 0.0, %v928
        %v1047 = vsel %vm1026, 0.0, %v929
        %v1048 = vsel %vm1024, 0.0, %v930
        %v1049 = vsel %vm1025, 0.0, %v931
        %v1050 = vsel %vm1026, 0.0, %v932
        %v1051 = vsel %vm1024, 0.0, %v933
        %v1052 = vsel %vm1025, 0.0, %v934
        %v1053 = vsel %vm1026, 0.0, %v935
        %v1054 = vsel %vm1024, 0.0, %v936
        %v1055 = vsel %vm1025, 0.0, %v937
        %v1056 = vsel %vm1026, 0.0, %v938
        %v1057 = vsel %vm1024, 0.0, %v939
        %v1058 = vsel %vm1025, 0.0, %v940
        %v1059 = vsel %vm1026, 0.0, %v941
        %v1060 = vsel %vm1024, 0.0, %v942
        %v1061 = vsel %vm1025, 0.0, %v943
        %v1062 = vsel %vm1026, 0.0, %v944
        %v1063 = vsel %vm1024, 0.0, %v945
        %v1064 = vsel %vm1025, 0.0, %v946
        %v1065 = vsel %vm1026, 0.0, %v947
        %v1066 = vsel %vm1024, 0.0, %v948
        %v1067 = vsel %vm1025, 0.0, %v949
        %v1068 = vsel %vm1026, 0.0, %v950
        %v1069 = vsel %vm1024, 0.0, %v951
        %v1070 = vsel %vm1025, 0.0, %v952
        %v1071 = vsel %vm1026, 0.0, %v953
        %v1072 = vsel %vm1024, 0.0, %v954
        %v1073 = vsel %vm1025, 0.0, %v955
        %v1074 = vsel %vm1026, 0.0, %v956
        %v1075 = vsel %vm1024, 0.0, %v957
        %v1076 = vsel %vm1025, 0.0, %v958
        %v1077 = vsel %vm1026, 0.0, %v959
        %v1078 = vsel %vm1024, 0.0, %v960
        %v1079 = vsel %vm1025, 0.0, %v961
        %v1080 = vsel %vm1026, 0.0, %v962
        %v1081 = vld [vmem:[%s1] sm:$0xf]
        %s1082 = scalar_lea.vmem %s1, 4
        %v1083 = vld [vmem:[%s1082] sm:$0xf]
        %vm1084 = vcmask 31744
        %v1086 = vsel %vm1084, %v970, 0
        %v1089 = vsel %vm1084, %v971, 0
        %v1092 = vsel %vm1084, %v973, 0
        %v1095 = vsel %vm1084, %v974, 0
        %v1098 = vsel %vm1084, %v976, 0
        %v1101 = vsel %vm1084, %v977, 0
        %v1104 = vsel %vm1084, %v979, 0
        %v1107 = vsel %vm1084, %v980, 0
        %v1110 = vsel %vm1084, %v982, 0
        %v1113 = vsel %vm1084, %v983, 0
        %v1116 = vsel %vm1084, %v985, 0
        %v1119 = vsel %vm1084, %v986, 0
        %v1122 = vsel %vm1084, %v988, 0
        %v1125 = vsel %vm1084, %v989, 0
        %v1128 = vsel %vm1084, %v991, 0
        %v1131 = vsel %vm1084, %v992, 0
        %v1134 = vsel %vm1084, %v994, 0
        %v1137 = vsel %vm1084, %v995, 0
        %v1140 = vsel %vm1084, %v997, 0
        %v1143 = vsel %vm1084, %v998, 0
        %v1146 = vsel %vm1084, %v1000, 0
        %v1149 = vsel %vm1084, %v1001, 0
        %v1152 = vsel %vm1084, %v1003, 0
        %v1155 = vsel %vm1084, %v1004, 0
        %v1158 = vsel %vm1084, %v1006, 0
        %v1161 = vsel %vm1084, %v1007, 0
        %v1164 = vsel %vm1084, %v1009, 0
        %v1167 = vsel %vm1084, %v1010, 0
        %v1170 = vsel %vm1084, %v1012, 0
        %v1173 = vsel %vm1084, %v1013, 0
        %v1176 = vsel %vm1084, %v1015, 0
        %v1179 = vsel %vm1084, %v1016, 0
        %vm1181 = vcmask 1043456
        %v1183 = vsel %vm1181, %v1083, 0
        %1185 = vmatpush.msra.mxu0 0.0
        %1186 = vmatpush.msra.mxu0 0.0
        %1187 = vmatpush.msra.mxu0 0.0
        %1188 = vmatpush.msra.mxu0 0.0
        %1189 = vmatpush.msra.mxu0 0.0
        %1190 = vmatpush.msra.mxu0 0.0
        %1191 = vmatpush.msra.mxu0 0.0
        %1192 = vmatpush.msra.mxu0 0.0
        %1193 = vmatpush.msra.mxu0 0.0
        %1194 = vmatpush.msra.mxu0 0.0
        %1195 = vmatpush.msra.mxu0 0.0
        %1196 = vmatpush.msra.mxu0 0.0
        %1197 = vmatpush.msra.mxu0 0.0
        %1198 = vmatpush.msra.mxu0 0.0
        %1199 = vmatpush.msra.mxu0 0.0
        %1200 = vmatpush.msra.mxu0 %v1183
        %1201 = vmatmul.f32.gmra.mxu0 %v1086
        %v1202 = vpop.f32.mrf.mxu0
        %v1203 = vadd.f32 0.0, %v1202
        %1204 = vmatmul.f32.gmra.mxu0 %v1089
        %v1205 = vpop.f32.mrf.mxu0
        %v1206 = vadd.f32 0.0, %v1205
        %1207 = vmatmul.f32.gmra.mxu0 %v1092
        %v1208 = vpop.f32.mrf.mxu0
        %v1209 = vadd.f32 0.0, %v1208
        %1210 = vmatmul.f32.gmra.mxu0 %v1095
        %v1211 = vpop.f32.mrf.mxu0
        %v1212 = vadd.f32 0.0, %v1211
        %1213 = vmatmul.f32.gmra.mxu0 %v1098
        %v1214 = vpop.f32.mrf.mxu0
        %v1215 = vadd.f32 0.0, %v1214
        %1216 = vmatmul.f32.gmra.mxu0 %v1101
        %v1217 = vpop.f32.mrf.mxu0
        %v1218 = vadd.f32 0.0, %v1217
        %1219 = vmatmul.f32.gmra.mxu0 %v1104
        %v1220 = vpop.f32.mrf.mxu0
        %v1221 = vadd.f32 0.0, %v1220
        %1222 = vmatmul.f32.gmra.mxu0 %v1107
        %v1223 = vpop.f32.mrf.mxu0
        %v1224 = vadd.f32 0.0, %v1223
        %1225 = vmatmul.f32.gmra.mxu0 %v1110
        %v1226 = vpop.f32.mrf.mxu0
        %v1227 = vadd.f32 0.0, %v1226
        %1228 = vmatmul.f32.gmra.mxu0 %v1113
        %v1229 = vpop.f32.mrf.mxu0
        %v1230 = vadd.f32 0.0, %v1229
        %1231 = vmatmul.f32.gmra.mxu0 %v1116
        %v1232 = vpop.f32.mrf.mxu0
        %v1233 = vadd.f32 0.0, %v1232
        %1234 = vmatmul.f32.gmra.mxu0 %v1119
        %v1235 = vpop.f32.mrf.mxu0
        %v1236 = vadd.f32 0.0, %v1235
        %1237 = vmatmul.f32.gmra.mxu0 %v1122
        %v1238 = vpop.f32.mrf.mxu0
        %v1239 = vadd.f32 0.0, %v1238
        %1240 = vmatmul.f32.gmra.mxu0 %v1125
        %v1241 = vpop.f32.mrf.mxu0
        %v1242 = vadd.f32 0.0, %v1241
        %1243 = vmatmul.f32.gmra.mxu0 %v1128
        %v1244 = vpop.f32.mrf.mxu0
        %v1245 = vadd.f32 0.0, %v1244
        %1246 = vmatmul.f32.gmra.mxu0 %v1131
        %v1247 = vpop.f32.mrf.mxu0
        %v1248 = vadd.f32 0.0, %v1247
        %1249 = vmatmul.f32.gmra.mxu0 %v1134
        %v1250 = vpop.f32.mrf.mxu0
        %v1251 = vadd.f32 0.0, %v1250
        %1252 = vmatmul.f32.gmra.mxu0 %v1137
        %v1253 = vpop.f32.mrf.mxu0
        %v1254 = vadd.f32 0.0, %v1253
        %1255 = vmatmul.f32.gmra.mxu0 %v1140
        %v1256 = vpop.f32.mrf.mxu0
        %v1257 = vadd.f32 0.0, %v1256
        %1258 = vmatmul.f32.gmra.mxu0 %v1143
        %v1259 = vpop.f32.mrf.mxu0
        %v1260 = vadd.f32 0.0, %v1259
        %1261 = vmatmul.f32.gmra.mxu0 %v1146
        %v1262 = vpop.f32.mrf.mxu0
        %v1263 = vadd.f32 0.0, %v1262
        %1264 = vmatmul.f32.gmra.mxu0 %v1149
        %v1265 = vpop.f32.mrf.mxu0
        %v1266 = vadd.f32 0.0, %v1265
        %1267 = vmatmul.f32.gmra.mxu0 %v1152
        %v1268 = vpop.f32.mrf.mxu0
        %v1269 = vadd.f32 0.0, %v1268
        %1270 = vmatmul.f32.gmra.mxu0 %v1155
        %v1271 = vpop.f32.mrf.mxu0
        %v1272 = vadd.f32 0.0, %v1271
        %1273 = vmatmul.f32.gmra.mxu0 %v1158
        %v1274 = vpop.f32.mrf.mxu0
        %v1275 = vadd.f32 0.0, %v1274
        %1276 = vmatmul.f32.gmra.mxu0 %v1161
        %v1277 = vpop.f32.mrf.mxu0
        %v1278 = vadd.f32 0.0, %v1277
        %1279 = vmatmul.f32.gmra.mxu0 %v1164
        %v1280 = vpop.f32.mrf.mxu0
        %v1281 = vadd.f32 0.0, %v1280
        %1282 = vmatmul.f32.gmra.mxu0 %v1167
        %v1283 = vpop.f32.mrf.mxu0
        %v1284 = vadd.f32 0.0, %v1283
        %1285 = vmatmul.f32.gmra.mxu0 %v1170
        %v1286 = vpop.f32.mrf.mxu0
        %v1287 = vadd.f32 0.0, %v1286
        %1288 = vmatmul.f32.gmra.mxu0 %v1173
        %v1289 = vpop.f32.mrf.mxu0
        %v1290 = vadd.f32 0.0, %v1289
        %1291 = vmatmul.f32.gmra.mxu0 %v1176
        %v1292 = vpop.f32.mrf.mxu0
        %v1293 = vadd.f32 0.0, %v1292
        %1294 = vmatmul.f32.gmra.mxu0 %v1179
        %v1295 = vpop.f32.mrf.mxu0
        %v1296 = vadd.f32 0.0, %v1295
        %1297 = vdwg.mxu0
        %v1299 = vsel %vm1084, %v1027, 0
        %v1302 = vsel %vm1084, %v1028, 0
        %v1305 = vsel %vm1084, %v1030, 0
        %v1308 = vsel %vm1084, %v1031, 0
        %v1311 = vsel %vm1084, %v1033, 0
        %v1314 = vsel %vm1084, %v1034, 0
        %v1317 = vsel %vm1084, %v1036, 0
        %v1320 = vsel %vm1084, %v1037, 0
        %v1323 = vsel %vm1084, %v1039, 0
        %v1326 = vsel %vm1084, %v1040, 0
        %v1329 = vsel %vm1084, %v1042, 0
        %v1332 = vsel %vm1084, %v1043, 0
        %v1335 = vsel %vm1084, %v1045, 0
        %v1338 = vsel %vm1084, %v1046, 0
        %v1341 = vsel %vm1084, %v1048, 0
        %v1344 = vsel %vm1084, %v1049, 0
        %v1347 = vsel %vm1084, %v1051, 0
        %v1350 = vsel %vm1084, %v1052, 0
        %v1353 = vsel %vm1084, %v1054, 0
        %v1356 = vsel %vm1084, %v1055, 0
        %v1359 = vsel %vm1084, %v1057, 0
        %v1362 = vsel %vm1084, %v1058, 0
        %v1365 = vsel %vm1084, %v1060, 0
        %v1368 = vsel %vm1084, %v1061, 0
        %v1371 = vsel %vm1084, %v1063, 0
        %v1374 = vsel %vm1084, %v1064, 0
        %v1377 = vsel %vm1084, %v1066, 0
        %v1380 = vsel %vm1084, %v1067, 0
        %v1383 = vsel %vm1084, %v1069, 0
        %v1386 = vsel %vm1084, %v1070, 0
        %v1389 = vsel %vm1084, %v1072, 0
        %v1392 = vsel %vm1084, %v1073, 0
        %v1395 = vsel %vm1181, %v1081, 0
        %1397 = vmatpush.msra.mxu0 0.0
        %1398 = vmatpush.msra.mxu0 0.0
        %1399 = vmatpush.msra.mxu0 0.0
        %1400 = vmatpush.msra.mxu0 0.0
        %1401 = vmatpush.msra.mxu0 0.0
        %1402 = vmatpush.msra.mxu0 0.0
        %1403 = vmatpush.msra.mxu0 0.0
        %1404 = vmatpush.msra.mxu0 0.0
        %1405 = vmatpush.msra.mxu0 0.0
        %1406 = vmatpush.msra.mxu0 0.0
        %1407 = vmatpush.msra.mxu0 0.0
        %1408 = vmatpush.msra.mxu0 0.0
        %1409 = vmatpush.msra.mxu0 0.0
        %1410 = vmatpush.msra.mxu0 0.0
        %1411 = vmatpush.msra.mxu0 0.0
        %1412 = vmatpush.msra.mxu0 %v1395
        %1413 = vmatmul.f32.gmra.mxu0 %v1299
        %v1414 = vpop.f32.mrf.mxu0
        %v1415 = vadd.f32 %v1203, %v1414
        %1416 = vmatmul.f32.gmra.mxu0 %v1302
        %v1417 = vpop.f32.mrf.mxu0
        %v1418 = vadd.f32 %v1206, %v1417
        %1419 = vmatmul.f32.gmra.mxu0 %v1305
        %v1420 = vpop.f32.mrf.mxu0
        %v1421 = vadd.f32 %v1209, %v1420
        %1422 = vmatmul.f32.gmra.mxu0 %v1308
        %v1423 = vpop.f32.mrf.mxu0
        %v1424 = vadd.f32 %v1212, %v1423
        %1425 = vmatmul.f32.gmra.mxu0 %v1311
        %v1426 = vpop.f32.mrf.mxu0
        %v1427 = vadd.f32 %v1215, %v1426
        %1428 = vmatmul.f32.gmra.mxu0 %v1314
        %v1429 = vpop.f32.mrf.mxu0
        %v1430 = vadd.f32 %v1218, %v1429
        %1431 = vmatmul.f32.gmra.mxu0 %v1317
        %v1432 = vpop.f32.mrf.mxu0
        %v1433 = vadd.f32 %v1221, %v1432
        %1434 = vmatmul.f32.gmra.mxu0 %v1320
        %v1435 = vpop.f32.mrf.mxu0
        %v1436 = vadd.f32 %v1224, %v1435
        %1437 = vmatmul.f32.gmra.mxu0 %v1323
        %v1438 = vpop.f32.mrf.mxu0
        %v1439 = vadd.f32 %v1227, %v1438
        %1440 = vmatmul.f32.gmra.mxu0 %v1326
        %v1441 = vpop.f32.mrf.mxu0
        %v1442 = vadd.f32 %v1230, %v1441
        %1443 = vmatmul.f32.gmra.mxu0 %v1329
        %v1444 = vpop.f32.mrf.mxu0
        %v1445 = vadd.f32 %v1233, %v1444
        %1446 = vmatmul.f32.gmra.mxu0 %v1332
        %v1447 = vpop.f32.mrf.mxu0
        %v1448 = vadd.f32 %v1236, %v1447
        %1449 = vmatmul.f32.gmra.mxu0 %v1335
        %v1450 = vpop.f32.mrf.mxu0
        %v1451 = vadd.f32 %v1239, %v1450
        %1452 = vmatmul.f32.gmra.mxu0 %v1338
        %v1453 = vpop.f32.mrf.mxu0
        %v1454 = vadd.f32 %v1242, %v1453
        %1455 = vmatmul.f32.gmra.mxu0 %v1341
        %v1456 = vpop.f32.mrf.mxu0
        %v1457 = vadd.f32 %v1245, %v1456
        %1458 = vmatmul.f32.gmra.mxu0 %v1344
        %v1459 = vpop.f32.mrf.mxu0
        %v1460 = vadd.f32 %v1248, %v1459
        %1461 = vmatmul.f32.gmra.mxu0 %v1347
        %v1462 = vpop.f32.mrf.mxu0
        %v1463 = vadd.f32 %v1251, %v1462
        %1464 = vmatmul.f32.gmra.mxu0 %v1350
        %v1465 = vpop.f32.mrf.mxu0
        %v1466 = vadd.f32 %v1254, %v1465
        %1467 = vmatmul.f32.gmra.mxu0 %v1353
        %v1468 = vpop.f32.mrf.mxu0
        %v1469 = vadd.f32 %v1257, %v1468
        %1470 = vmatmul.f32.gmra.mxu0 %v1356
        %v1471 = vpop.f32.mrf.mxu0
        %v1472 = vadd.f32 %v1260, %v1471
        %1473 = vmatmul.f32.gmra.mxu0 %v1359
        %v1474 = vpop.f32.mrf.mxu0
        %v1475 = vadd.f32 %v1263, %v1474
        %1476 = vmatmul.f32.gmra.mxu0 %v1362
        %v1477 = vpop.f32.mrf.mxu0
        %v1478 = vadd.f32 %v1266, %v1477
        %1479 = vmatmul.f32.gmra.mxu0 %v1365
        %v1480 = vpop.f32.mrf.mxu0
        %v1481 = vadd.f32 %v1269, %v1480
        %1482 = vmatmul.f32.gmra.mxu0 %v1368
        %v1483 = vpop.f32.mrf.mxu0
        %v1484 = vadd.f32 %v1272, %v1483
        %1485 = vmatmul.f32.gmra.mxu0 %v1371
        %v1486 = vpop.f32.mrf.mxu0
        %v1487 = vadd.f32 %v1275, %v1486
        %1488 = vmatmul.f32.gmra.mxu0 %v1374
        %v1489 = vpop.f32.mrf.mxu0
        %v1490 = vadd.f32 %v1278, %v1489
        %1491 = vmatmul.f32.gmra.mxu0 %v1377
        %v1492 = vpop.f32.mrf.mxu0
        %v1493 = vadd.f32 %v1281, %v1492
        %1494 = vmatmul.f32.gmra.mxu0 %v1380
        %v1495 = vpop.f32.mrf.mxu0
        %v1496 = vadd.f32 %v1284, %v1495
        %1497 = vmatmul.f32.gmra.mxu0 %v1383
        %v1498 = vpop.f32.mrf.mxu0
        %v1499 = vadd.f32 %v1287, %v1498
        %1500 = vmatmul.f32.gmra.mxu0 %v1386
        %v1501 = vpop.f32.mrf.mxu0
        %v1502 = vadd.f32 %v1290, %v1501
        %1503 = vmatmul.f32.gmra.mxu0 %v1389
        %v1504 = vpop.f32.mrf.mxu0
        %v1505 = vadd.f32 %v1293, %v1504
        %1506 = vmatmul.f32.gmra.mxu0 %v1392
        %v1507 = vpop.f32.mrf.mxu0
        %v1508 = vadd.f32 %v1296, %v1507
        %1509 = vdwg.mxu0
        %v1526 = vrot.slane %v1027, 1
        %v1527 = vrot.slane %v1028, 1
        %v1528 = vsel %vm512, %v1526, %v1527
        %v1529 = vrot.slane %v1029, 1
        %v1530 = vsel %vm512, %v1527, %v1529
        %v1531 = vrot.slane %v1030, 1
        %v1532 = vrot.slane %v1031, 1
        %v1533 = vsel %vm512, %v1531, %v1532
        %v1534 = vrot.slane %v1032, 1
        %v1535 = vsel %vm512, %v1532, %v1534
        %v1536 = vrot.slane %v1033, 1
        %v1537 = vrot.slane %v1034, 1
        %v1538 = vsel %vm512, %v1536, %v1537
        %v1539 = vrot.slane %v1035, 1
        %v1540 = vsel %vm512, %v1537, %v1539
        %v1541 = vrot.slane %v1036, 1
        %v1542 = vrot.slane %v1037, 1
        %v1543 = vsel %vm512, %v1541, %v1542
        %v1544 = vrot.slane %v1038, 1
        %v1545 = vsel %vm512, %v1542, %v1544
        %v1546 = vrot.slane %v1039, 1
        %v1547 = vrot.slane %v1040, 1
        %v1548 = vsel %vm512, %v1546, %v1547
        %v1549 = vrot.slane %v1041, 1
        %v1550 = vsel %vm512, %v1547, %v1549
        %v1551 = vrot.slane %v1042, 1
        %v1552 = vrot.slane %v1043, 1
        %v1553 = vsel %vm512, %v1551, %v1552
        %v1554 = vrot.slane %v1044, 1
        %v1555 = vsel %vm512, %v1552, %v1554
        %v1556 = vrot.slane %v1045, 1
        %v1557 = vrot.slane %v1046, 1
        %v1558 = vsel %vm512, %v1556, %v1557
        %v1559 = vrot.slane %v1047, 1
        %v1560 = vsel %vm512, %v1557, %v1559
        %v1561 = vrot.slane %v1048, 1
        %v1562 = vrot.slane %v1049, 1
        %v1563 = vsel %vm512, %v1561, %v1562
        %v1564 = vrot.slane %v1050, 1
        %v1565 = vsel %vm512, %v1562, %v1564
        %v1566 = vrot.slane %v1051, 1
        %v1567 = vrot.slane %v1052, 1
        %v1568 = vsel %vm512, %v1566, %v1567
        %v1569 = vrot.slane %v1053, 1
        %v1570 = vsel %vm512, %v1567, %v1569
        %v1571 = vrot.slane %v1054, 1
        %v1572 = vrot.slane %v1055, 1
        %v1573 = vsel %vm512, %v1571, %v1572
        %v1574 = vrot.slane %v1056, 1
        %v1575 = vsel %vm512, %v1572, %v1574
        %v1576 = vrot.slane %v1057, 1
        %v1577 = vrot.slane %v1058, 1
        %v1578 = vsel %vm512, %v1576, %v1577
        %v1579 = vrot.slane %v1059, 1
        %v1580 = vsel %vm512, %v1577, %v1579
        %v1581 = vrot.slane %v1060, 1
        %v1582 = vrot.slane %v1061, 1
        %v1583 = vsel %vm512, %v1581, %v1582
        %v1584 = vrot.slane %v1062, 1
        %v1585 = vsel %vm512, %v1582, %v1584
        %v1586 = vrot.slane %v1063, 1
        %v1587 = vrot.slane %v1064, 1
        %v1588 = vsel %vm512, %v1586, %v1587
        %v1589 = vrot.slane %v1065, 1
        %v1590 = vsel %vm512, %v1587, %v1589
        %v1591 = vrot.slane %v1066, 1
        %v1592 = vrot.slane %v1067, 1
        %v1593 = vsel %vm512, %v1591, %v1592
        %v1594 = vrot.slane %v1068, 1
        %v1595 = vsel %vm512, %v1592, %v1594
        %v1596 = vrot.slane %v1069, 1
        %v1597 = vrot.slane %v1070, 1
        %v1598 = vsel %vm512, %v1596, %v1597
        %v1599 = vrot.slane %v1071, 1
        %v1600 = vsel %vm512, %v1597, %v1599
        %v1601 = vrot.slane %v1072, 1
        %v1602 = vrot.slane %v1073, 1
        %v1603 = vsel %vm512, %v1601, %v1602
        %v1604 = vrot.slane %v1074, 1
        %v1605 = vsel %vm512, %v1602, %v1604
        %s1606 = scalar_lea.vmem %s1, 8
        %v1607 = vld [vmem:[%s1606] sm:$0xf]
        %v1608 = vsel %vm1084, %v1528, 0
        %v1610 = vsel %vm1084, %v1530, 0
        %v1612 = vsel %vm1084, %v1533, 0
        %v1614 = vsel %vm1084, %v1535, 0
        %v1616 = vsel %vm1084, %v1538, 0
        %v1618 = vsel %vm1084, %v1540, 0
        %v1620 = vsel %vm1084, %v1543, 0
        %v1622 = vsel %vm1084, %v1545, 0
        %v1624 = vsel %vm1084, %v1548, 0
        %v1626 = vsel %vm1084, %v1550, 0
        %v1628 = vsel %vm1084, %v1553, 0
        %v1630 = vsel %vm1084, %v1555, 0
        %v1632 = vsel %vm1084, %v1558, 0
        %v1634 = vsel %vm1084, %v1560, 0
        %v1636 = vsel %vm1084, %v1563, 0
        %v1638 = vsel %vm1084, %v1565, 0
        %v1640 = vsel %vm1084, %v1568, 0
        %v1642 = vsel %vm1084, %v1570, 0
        %v1644 = vsel %vm1084, %v1573, 0
        %v1646 = vsel %vm1084, %v1575, 0
        %v1648 = vsel %vm1084, %v1578, 0
        %v1650 = vsel %vm1084, %v1580, 0
        %v1652 = vsel %vm1084, %v1583, 0
        %v1654 = vsel %vm1084, %v1585, 0
        %v1656 = vsel %vm1084, %v1588, 0
        %v1658 = vsel %vm1084, %v1590, 0
        %v1660 = vsel %vm1084, %v1593, 0
        %v1662 = vsel %vm1084, %v1595, 0
        %v1664 = vsel %vm1084, %v1598, 0
        %v1666 = vsel %vm1084, %v1600, 0
        %v1668 = vsel %vm1084, %v1603, 0
        %v1670 = vsel %vm1084, %v1605, 0
        %v1673 = vsel %vm1181, %v1607, 0
        %1675 = vmatpush.msra.mxu0 0.0
        %1676 = vmatpush.msra.mxu0 0.0
        %1677 = vmatpush.msra.mxu0 0.0
        %1678 = vmatpush.msra.mxu0 0.0
        %1679 = vmatpush.msra.mxu0 0.0
        %1680 = vmatpush.msra.mxu0 0.0
        %1681 = vmatpush.msra.mxu0 0.0
        %1682 = vmatpush.msra.mxu0 0.0
        %1683 = vmatpush.msra.mxu0 0.0
        %1684 = vmatpush.msra.mxu0 0.0
        %1685 = vmatpush.msra.mxu0 0.0
        %1686 = vmatpush.msra.mxu0 0.0
        %1687 = vmatpush.msra.mxu0 0.0
        %1688 = vmatpush.msra.mxu0 0.0
        %1689 = vmatpush.msra.mxu0 0.0
        %1690 = vmatpush.msra.mxu0 %v1673
        %1691 = vmatmul.f32.gmra.mxu0 %v1608
        %v1692 = vpop.f32.mrf.mxu0
        %v1693 = vadd.f32 0.0, %v1692
        %1694 = vmatmul.f32.gmra.mxu0 %v1610
        %v1695 = vpop.f32.mrf.mxu0
        %v1696 = vadd.f32 0.0, %v1695
        %1697 = vmatmul.f32.gmra.mxu0 %v1612
        %v1698 = vpop.f32.mrf.mxu0
        %v1699 = vadd.f32 0.0, %v1698
        %1700 = vmatmul.f32.gmra.mxu0 %v1614
        %v1701 = vpop.f32.mrf.mxu0
        %v1702 = vadd.f32 0.0, %v1701
        %1703 = vmatmul.f32.gmra.mxu0 %v1616
        %v1704 = vpop.f32.mrf.mxu0
        %v1705 = vadd.f32 0.0, %v1704
        %1706 = vmatmul.f32.gmra.mxu0 %v1618
        %v1707 = vpop.f32.mrf.mxu0
        %v1708 = vadd.f32 0.0, %v1707
        %1709 = vmatmul.f32.gmra.mxu0 %v1620
        %v1710 = vpop.f32.mrf.mxu0
        %v1711 = vadd.f32 0.0, %v1710
        %1712 = vmatmul.f32.gmra.mxu0 %v1622
        %v1713 = vpop.f32.mrf.mxu0
        %v1714 = vadd.f32 0.0, %v1713
        %1715 = vmatmul.f32.gmra.mxu0 %v1624
        %v1716 = vpop.f32.mrf.mxu0
        %v1717 = vadd.f32 0.0, %v1716
        %1718 = vmatmul.f32.gmra.mxu0 %v1626
        %v1719 = vpop.f32.mrf.mxu0
        %v1720 = vadd.f32 0.0, %v1719
        %1721 = vmatmul.f32.gmra.mxu0 %v1628
        %v1722 = vpop.f32.mrf.mxu0
        %v1723 = vadd.f32 0.0, %v1722
        %1724 = vmatmul.f32.gmra.mxu0 %v1630
        %v1725 = vpop.f32.mrf.mxu0
        %v1726 = vadd.f32 0.0, %v1725
        %1727 = vmatmul.f32.gmra.mxu0 %v1632
        %v1728 = vpop.f32.mrf.mxu0
        %v1729 = vadd.f32 0.0, %v1728
        %1730 = vmatmul.f32.gmra.mxu0 %v1634
        %v1731 = vpop.f32.mrf.mxu0
        %v1732 = vadd.f32 0.0, %v1731
        %1733 = vmatmul.f32.gmra.mxu0 %v1636
        %v1734 = vpop.f32.mrf.mxu0
        %v1735 = vadd.f32 0.0, %v1734
        %1736 = vmatmul.f32.gmra.mxu0 %v1638
        %v1737 = vpop.f32.mrf.mxu0
        %v1738 = vadd.f32 0.0, %v1737
        %1739 = vmatmul.f32.gmra.mxu0 %v1640
        %v1740 = vpop.f32.mrf.mxu0
        %v1741 = vadd.f32 0.0, %v1740
        %1742 = vmatmul.f32.gmra.mxu0 %v1642
        %v1743 = vpop.f32.mrf.mxu0
        %v1744 = vadd.f32 0.0, %v1743
        %1745 = vmatmul.f32.gmra.mxu0 %v1644
        %v1746 = vpop.f32.mrf.mxu0
        %v1747 = vadd.f32 0.0, %v1746
        %1748 = vmatmul.f32.gmra.mxu0 %v1646
        %v1749 = vpop.f32.mrf.mxu0
        %v1750 = vadd.f32 0.0, %v1749
        %1751 = vmatmul.f32.gmra.mxu0 %v1648
        %v1752 = vpop.f32.mrf.mxu0
        %v1753 = vadd.f32 0.0, %v1752
        %1754 = vmatmul.f32.gmra.mxu0 %v1650
        %v1755 = vpop.f32.mrf.mxu0
        %v1756 = vadd.f32 0.0, %v1755
        %1757 = vmatmul.f32.gmra.mxu0 %v1652
        %v1758 = vpop.f32.mrf.mxu0
        %v1759 = vadd.f32 0.0, %v1758
        %1760 = vmatmul.f32.gmra.mxu0 %v1654
        %v1761 = vpop.f32.mrf.mxu0
        %v1762 = vadd.f32 0.0, %v1761
        %1763 = vmatmul.f32.gmra.mxu0 %v1656
        %v1764 = vpop.f32.mrf.mxu0
        %v1765 = vadd.f32 0.0, %v1764
        %1766 = vmatmul.f32.gmra.mxu0 %v1658
        %v1767 = vpop.f32.mrf.mxu0
        %v1768 = vadd.f32 0.0, %v1767
        %1769 = vmatmul.f32.gmra.mxu0 %v1660
        %v1770 = vpop.f32.mrf.mxu0
        %v1771 = vadd.f32 0.0, %v1770
        %1772 = vmatmul.f32.gmra.mxu0 %v1662
        %v1773 = vpop.f32.mrf.mxu0
        %v1774 = vadd.f32 0.0, %v1773
        %1775 = vmatmul.f32.gmra.mxu0 %v1664
        %v1776 = vpop.f32.mrf.mxu0
        %v1777 = vadd.f32 0.0, %v1776
        %1778 = vmatmul.f32.gmra.mxu0 %v1666
        %v1779 = vpop.f32.mrf.mxu0
        %v1780 = vadd.f32 0.0, %v1779
        %1781 = vmatmul.f32.gmra.mxu0 %v1668
        %v1782 = vpop.f32.mrf.mxu0
        %v1783 = vadd.f32 0.0, %v1782
        %1784 = vmatmul.f32.gmra.mxu0 %v1670
        %v1785 = vpop.f32.mrf.mxu0
        %v1786 = vadd.f32 0.0, %v1785
        %1787 = vdwg.mxu0
        %v1788 = vadd.f32 %v1415, %v1693
        %v1789 = vadd.f32 %v1418, %v1696
        %v1790 = vadd.f32 %v1421, %v1699
        %v1791 = vadd.f32 %v1424, %v1702
        %v1792 = vadd.f32 %v1427, %v1705
        %v1793 = vadd.f32 %v1430, %v1708
        %v1794 = vadd.f32 %v1433, %v1711
        %v1795 = vadd.f32 %v1436, %v1714
        %v1796 = vadd.f32 %v1439, %v1717
        %v1797 = vadd.f32 %v1442, %v1720
        %v1798 = vadd.f32 %v1445, %v1723
        %v1799 = vadd.f32 %v1448, %v1726
        %v1800 = vadd.f32 %v1451, %v1729
        %v1801 = vadd.f32 %v1454, %v1732
        %v1802 = vadd.f32 %v1457, %v1735
        %v1803 = vadd.f32 %v1460, %v1738
        %v1804 = vadd.f32 %v1463, %v1741
        %v1805 = vadd.f32 %v1466, %v1744
        %v1806 = vadd.f32 %v1469, %v1747
        %v1807 = vadd.f32 %v1472, %v1750
        %v1808 = vadd.f32 %v1475, %v1753
        %v1809 = vadd.f32 %v1478, %v1756
        %v1810 = vadd.f32 %v1481, %v1759
        %v1811 = vadd.f32 %v1484, %v1762
        %v1812 = vadd.f32 %v1487, %v1765
        %v1813 = vadd.f32 %v1490, %v1768
        %v1814 = vadd.f32 %v1493, %v1771
        %v1815 = vadd.f32 %v1496, %v1774
        %v1816 = vadd.f32 %v1499, %v1777
        %v1817 = vadd.f32 %v1502, %v1780
        %v1818 = vadd.f32 %v1505, %v1783
        %v1819 = vadd.f32 %v1508, %v1786
        %s1820 = scalar_lea.vmem %s1, 12
        %v1821 = vld [vmem:[%s1820] sm:$0xf]
        %v1823 = vsel %vm1084, %v1075, 0
        %v1826 = vsel %vm1084, %v1076, 0
        %v1829 = vsel %vm1181, %v1821, 0
        %1831 = vmatpush.msra.mxu0 0.0
        %1832 = vmatpush.msra.mxu0 0.0
        %1833 = vmatpush.msra.mxu0 0.0
        %1834 = vmatpush.msra.mxu0 0.0
        %1835 = vmatpush.msra.mxu0 0.0
        %1836 = vmatpush.msra.mxu0 0.0
        %1837 = vmatpush.msra.mxu0 0.0
        %1838 = vmatpush.msra.mxu0 0.0
        %1839 = vmatpush.msra.mxu0 0.0
        %1840 = vmatpush.msra.mxu0 0.0
        %1841 = vmatpush.msra.mxu0 0.0
        %1842 = vmatpush.msra.mxu0 0.0
        %1843 = vmatpush.msra.mxu0 0.0
        %1844 = vmatpush.msra.mxu0 0.0
        %1845 = vmatpush.msra.mxu0 0.0
        %1846 = vmatpush.msra.mxu0 %v1829
        %1847 = vmatmul.f32.gmra.mxu0 %v1305
        %v1848 = vpop.f32.mrf.mxu0
        %v1849 = vadd.f32 0.0, %v1848
        %1850 = vmatmul.f32.gmra.mxu0 %v1308
        %v1851 = vpop.f32.mrf.mxu0
        %v1852 = vadd.f32 0.0, %v1851
        %1853 = vmatmul.f32.gmra.mxu0 %v1311
        %v1854 = vpop.f32.mrf.mxu0
        %v1855 = vadd.f32 0.0, %v1854
        %1856 = vmatmul.f32.gmra.mxu0 %v1314
        %v1857 = vpop.f32.mrf.mxu0
        %v1858 = vadd.f32 0.0, %v1857
        %1859 = vmatmul.f32.gmra.mxu0 %v1317
        %v1860 = vpop.f32.mrf.mxu0
        %v1861 = vadd.f32 0.0, %v1860
        %1862 = vmatmul.f32.gmra.mxu0 %v1320
        %v1863 = vpop.f32.mrf.mxu0
        %v1864 = vadd.f32 0.0, %v1863
        %1865 = vmatmul.f32.gmra.mxu0 %v1323
        %v1866 = vpop.f32.mrf.mxu0
        %v1867 = vadd.f32 0.0, %v1866
        %1868 = vmatmul.f32.gmra.mxu0 %v1326
        %v1869 = vpop.f32.mrf.mxu0
        %v1870 = vadd.f32 0.0, %v1869
        %1871 = vmatmul.f32.gmra.mxu0 %v1329
        %v1872 = vpop.f32.mrf.mxu0
        %v1873 = vadd.f32 0.0, %v1872
        %1874 = vmatmul.f32.gmra.mxu0 %v1332
        %v1875 = vpop.f32.mrf.mxu0
        %v1876 = vadd.f32 0.0, %v1875
        %1877 = vmatmul.f32.gmra.mxu0 %v1335
        %v1878 = vpop.f32.mrf.mxu0
        %v1879 = vadd.f32 0.0, %v1878
        %1880 = vmatmul.f32.gmra.mxu0 %v1338
        %v1881 = vpop.f32.mrf.mxu0
        %v1882 = vadd.f32 0.0, %v1881
        %1883 = vmatmul.f32.gmra.mxu0 %v1341
        %v1884 = vpop.f32.mrf.mxu0
        %v1885 = vadd.f32 0.0, %v1884
        %1886 = vmatmul.f32.gmra.mxu0 %v1344
        %v1887 = vpop.f32.mrf.mxu0
        %v1888 = vadd.f32 0.0, %v1887
        %1889 = vmatmul.f32.gmra.mxu0 %v1347
        %v1890 = vpop.f32.mrf.mxu0
        %v1891 = vadd.f32 0.0, %v1890
        %1892 = vmatmul.f32.gmra.mxu0 %v1350
        %v1893 = vpop.f32.mrf.mxu0
        %v1894 = vadd.f32 0.0, %v1893
        %1895 = vmatmul.f32.gmra.mxu0 %v1353
        %v1896 = vpop.f32.mrf.mxu0
        %v1897 = vadd.f32 0.0, %v1896
        %1898 = vmatmul.f32.gmra.mxu0 %v1356
        %v1899 = vpop.f32.mrf.mxu0
        %v1900 = vadd.f32 0.0, %v1899
        %1901 = vmatmul.f32.gmra.mxu0 %v1359
        %v1902 = vpop.f32.mrf.mxu0
        %v1903 = vadd.f32 0.0, %v1902
        %1904 = vmatmul.f32.gmra.mxu0 %v1362
        %v1905 = vpop.f32.mrf.mxu0
        %v1906 = vadd.f32 0.0, %v1905
        %1907 = vmatmul.f32.gmra.mxu0 %v1365
        %v1908 = vpop.f32.mrf.mxu0
        %v1909 = vadd.f32 0.0, %v1908
        %1910 = vmatmul.f32.gmra.mxu0 %v1368
        %v1911 = vpop.f32.mrf.mxu0
        %v1912 = vadd.f32 0.0, %v1911
        %1913 = vmatmul.f32.gmra.mxu0 %v1371
        %v1914 = vpop.f32.mrf.mxu0
        %v1915 = vadd.f32 0.0, %v1914
        %1916 = vmatmul.f32.gmra.mxu0 %v1374
        %v1917 = vpop.f32.mrf.mxu0
        %v1918 = vadd.f32 0.0, %v1917
        %1919 = vmatmul.f32.gmra.mxu0 %v1377
        %v1920 = vpop.f32.mrf.mxu0
        %v1921 = vadd.f32 0.0, %v1920
        %1922 = vmatmul.f32.gmra.mxu0 %v1380
        %v1923 = vpop.f32.mrf.mxu0
        %v1924 = vadd.f32 0.0, %v1923
        %1925 = vmatmul.f32.gmra.mxu0 %v1383
        %v1926 = vpop.f32.mrf.mxu0
        %v1927 = vadd.f32 0.0, %v1926
        %1928 = vmatmul.f32.gmra.mxu0 %v1386
        %v1929 = vpop.f32.mrf.mxu0
        %v1930 = vadd.f32 0.0, %v1929
        %1931 = vmatmul.f32.gmra.mxu0 %v1389
        %v1932 = vpop.f32.mrf.mxu0
        %v1933 = vadd.f32 0.0, %v1932
        %1934 = vmatmul.f32.gmra.mxu0 %v1392
        %v1935 = vpop.f32.mrf.mxu0
        %v1936 = vadd.f32 0.0, %v1935
        %1937 = vmatmul.f32.gmra.mxu0 %v1823
        %v1938 = vpop.f32.mrf.mxu0
        %v1939 = vadd.f32 0.0, %v1938
        %1940 = vmatmul.f32.gmra.mxu0 %v1826
        %v1941 = vpop.f32.mrf.mxu0
        %v1942 = vadd.f32 0.0, %v1941
        %1943 = vdwg.mxu0
        %v1944 = vadd.f32 %v1788, %v1849
        %v1945 = vadd.f32 %v1789, %v1852
        %v1946 = vadd.f32 %v1790, %v1855
        %v1947 = vadd.f32 %v1791, %v1858
        %v1948 = vadd.f32 %v1792, %v1861
        %v1949 = vadd.f32 %v1793, %v1864
        %v1950 = vadd.f32 %v1794, %v1867
        %v1951 = vadd.f32 %v1795, %v1870
        %v1952 = vadd.f32 %v1796, %v1873
        %v1953 = vadd.f32 %v1797, %v1876
        %v1954 = vadd.f32 %v1798, %v1879
        %v1955 = vadd.f32 %v1799, %v1882
        %v1956 = vadd.f32 %v1800, %v1885
        %v1957 = vadd.f32 %v1801, %v1888
        %v1958 = vadd.f32 %v1802, %v1891
        %v1959 = vadd.f32 %v1803, %v1894
        %v1960 = vadd.f32 %v1804, %v1897
        %v1961 = vadd.f32 %v1805, %v1900
        %v1962 = vadd.f32 %v1806, %v1903
        %v1963 = vadd.f32 %v1807, %v1906
        %v1964 = vadd.f32 %v1808, %v1909
        %v1965 = vadd.f32 %v1809, %v1912
        %v1966 = vadd.f32 %v1810, %v1915
        %v1967 = vadd.f32 %v1811, %v1918
        %v1968 = vadd.f32 %v1812, %v1921
        %v1969 = vadd.f32 %v1813, %v1924
        %v1970 = vadd.f32 %v1814, %v1927
        %v1971 = vadd.f32 %v1815, %v1930
        %v1972 = vadd.f32 %v1816, %v1933
        %v1973 = vadd.f32 %v1817, %v1936
        %v1974 = vadd.f32 %v1818, %v1939
        %v1975 = vadd.f32 %v1819, %v1942
        %s1976 = scalar_lea.vmem %s1, 16
        %v1977 = vld [vmem:[%s1976] sm:$0xf]
        %v1979 = vsel %vm1084, %v1018, 0
        %v1982 = vsel %vm1084, %v1019, 0
        %v1985 = vsel %vm1181, %v1977, 0
        %1987 = vmatpush.msra.mxu0 0.0
        %1988 = vmatpush.msra.mxu0 0.0
        %1989 = vmatpush.msra.mxu0 0.0
        %1990 = vmatpush.msra.mxu0 0.0
        %1991 = vmatpush.msra.mxu0 0.0
        %1992 = vmatpush.msra.mxu0 0.0
        %1993 = vmatpush.msra.mxu0 0.0
        %1994 = vmatpush.msra.mxu0 0.0
        %1995 = vmatpush.msra.mxu0 0.0
        %1996 = vmatpush.msra.mxu0 0.0
        %1997 = vmatpush.msra.mxu0 0.0
        %1998 = vmatpush.msra.mxu0 0.0
        %1999 = vmatpush.msra.mxu0 0.0
        %2000 = vmatpush.msra.mxu0 0.0
        %2001 = vmatpush.msra.mxu0 0.0
        %2002 = vmatpush.msra.mxu0 %v1985
        %2003 = vmatmul.f32.gmra.mxu0 %v1092
        %v2004 = vpop.f32.mrf.mxu0
        %v2005 = vadd.f32 0.0, %v2004
        %2006 = vmatmul.f32.gmra.mxu0 %v1095
        %v2007 = vpop.f32.mrf.mxu0
        %v2008 = vadd.f32 0.0, %v2007
        %2009 = vmatmul.f32.gmra.mxu0 %v1098
        %v2010 = vpop.f32.mrf.mxu0
        %v2011 = vadd.f32 0.0, %v2010
        %2012 = vmatmul.f32.gmra.mxu0 %v1101
        %v2013 = vpop.f32.mrf.mxu0
        %v2014 = vadd.f32 0.0, %v2013
        %2015 = vmatmul.f32.gmra.mxu0 %v1104
        %v2016 = vpop.f32.mrf.mxu0
        %v2017 = vadd.f32 0.0, %v2016
        %2018 = vmatmul.f32.gmra.mxu0 %v1107
        %v2019 = vpop.f32.mrf.mxu0
        %v2020 = vadd.f32 0.0, %v2019
        %2021 = vmatmul.f32.gmra.mxu0 %v1110
        %v2022 = vpop.f32.mrf.mxu0
        %v2023 = vadd.f32 0.0, %v2022
        %2024 = vmatmul.f32.gmra.mxu0 %v1113
        %v2025 = vpop.f32.mrf.mxu0
        %v2026 = vadd.f32 0.0, %v2025
        %2027 = vmatmul.f32.gmra.mxu0 %v1116
        %v2028 = vpop.f32.mrf.mxu0
        %v2029 = vadd.f32 0.0, %v2028
        %2030 = vmatmul.f32.gmra.mxu0 %v1119
        %v2031 = vpop.f32.mrf.mxu0
        %v2032 = vadd.f32 0.0, %v2031
        %2033 = vmatmul.f32.gmra.mxu0 %v1122
        %v2034 = vpop.f32.mrf.mxu0
        %v2035 = vadd.f32 0.0, %v2034
        %2036 = vmatmul.f32.gmra.mxu0 %v1125
        %v2037 = vpop.f32.mrf.mxu0
        %v2038 = vadd.f32 0.0, %v2037
        %2039 = vmatmul.f32.gmra.mxu0 %v1128
        %v2040 = vpop.f32.mrf.mxu0
        %v2041 = vadd.f32 0.0, %v2040
        %2042 = vmatmul.f32.gmra.mxu0 %v1131
        %v2043 = vpop.f32.mrf.mxu0
        %v2044 = vadd.f32 0.0, %v2043
        %2045 = vmatmul.f32.gmra.mxu0 %v1134
        %v2046 = vpop.f32.mrf.mxu0
        %v2047 = vadd.f32 0.0, %v2046
        %2048 = vmatmul.f32.gmra.mxu0 %v1137
        %v2049 = vpop.f32.mrf.mxu0
        %v2050 = vadd.f32 0.0, %v2049
        %2051 = vmatmul.f32.gmra.mxu0 %v1140
        %v2052 = vpop.f32.mrf.mxu0
        %v2053 = vadd.f32 0.0, %v2052
        %2054 = vmatmul.f32.gmra.mxu0 %v1143
        %v2055 = vpop.f32.mrf.mxu0
        %v2056 = vadd.f32 0.0, %v2055
        %2057 = vmatmul.f32.gmra.mxu0 %v1146
        %v2058 = vpop.f32.mrf.mxu0
        %v2059 = vadd.f32 0.0, %v2058
        %2060 = vmatmul.f32.gmra.mxu0 %v1149
        %v2061 = vpop.f32.mrf.mxu0
        %v2062 = vadd.f32 0.0, %v2061
        %2063 = vmatmul.f32.gmra.mxu0 %v1152
        %v2064 = vpop.f32.mrf.mxu0
        %v2065 = vadd.f32 0.0, %v2064
        %2066 = vmatmul.f32.gmra.mxu0 %v1155
        %v2067 = vpop.f32.mrf.mxu0
        %v2068 = vadd.f32 0.0, %v2067
        %2069 = vmatmul.f32.gmra.mxu0 %v1158
        %v2070 = vpop.f32.mrf.mxu0
        %v2071 = vadd.f32 0.0, %v2070
        %2072 = vmatmul.f32.gmra.mxu0 %v1161
        %v2073 = vpop.f32.mrf.mxu0
        %v2074 = vadd.f32 0.0, %v2073
        %2075 = vmatmul.f32.gmra.mxu0 %v1164
        %v2076 = vpop.f32.mrf.mxu0
        %v2077 = vadd.f32 0.0, %v2076
        %2078 = vmatmul.f32.gmra.mxu0 %v1167
        %v2079 = vpop.f32.mrf.mxu0
        %v2080 = vadd.f32 0.0, %v2079
        %2081 = vmatmul.f32.gmra.mxu0 %v1170
        %v2082 = vpop.f32.mrf.mxu0
        %v2083 = vadd.f32 0.0, %v2082
        %2084 = vmatmul.f32.gmra.mxu0 %v1173
        %v2085 = vpop.f32.mrf.mxu0
        %v2086 = vadd.f32 0.0, %v2085
        %2087 = vmatmul.f32.gmra.mxu0 %v1176
        %v2088 = vpop.f32.mrf.mxu0
        %v2089 = vadd.f32 0.0, %v2088
        %2090 = vmatmul.f32.gmra.mxu0 %v1179
        %v2091 = vpop.f32.mrf.mxu0
        %v2092 = vadd.f32 0.0, %v2091
        %2093 = vmatmul.f32.gmra.mxu0 %v1979
        %v2094 = vpop.f32.mrf.mxu0
        %v2095 = vadd.f32 0.0, %v2094
        %2096 = vmatmul.f32.gmra.mxu0 %v1982
        %v2097 = vpop.f32.mrf.mxu0
        %v2098 = vadd.f32 0.0, %v2097
        %2099 = vdwg.mxu0
        %v2100 = vadd.f32 %v1944, %v2005
        %v2101 = vadd.f32 %v1945, %v2008
        %v2102 = vadd.f32 %v1946, %v2011
        %v2103 = vadd.f32 %v1947, %v2014
        %v2104 = vadd.f32 %v1948, %v2017
        %v2105 = vadd.f32 %v1949, %v2020
        %v2106 = vadd.f32 %v1950, %v2023
        %v2107 = vadd.f32 %v1951, %v2026
        %v2108 = vadd.f32 %v1952, %v2029
        %v2109 = vadd.f32 %v1953, %v2032
        %v2110 = vadd.f32 %v1954, %v2035
        %v2111 = vadd.f32 %v1955, %v2038
        %v2112 = vadd.f32 %v1956, %v2041
        %v2113 = vadd.f32 %v1957, %v2044
        %v2114 = vadd.f32 %v1958, %v2047
        %v2115 = vadd.f32 %v1959, %v2050
        %v2116 = vadd.f32 %v1960, %v2053
        %v2117 = vadd.f32 %v1961, %v2056
        %v2118 = vadd.f32 %v1962, %v2059
        %v2119 = vadd.f32 %v1963, %v2062
        %v2120 = vadd.f32 %v1964, %v2065
        %v2121 = vadd.f32 %v1965, %v2068
        %v2122 = vadd.f32 %v1966, %v2071
        %v2123 = vadd.f32 %v1967, %v2074
        %v2124 = vadd.f32 %v1968, %v2077
        %v2125 = vadd.f32 %v1969, %v2080
        %v2126 = vadd.f32 %v1970, %v2083
        %v2127 = vadd.f32 %v1971, %v2086
        %v2128 = vadd.f32 %v1972, %v2089
        %v2129 = vadd.f32 %v1973, %v2092
        %v2130 = vadd.f32 %v1974, %v2095
        %v2131 = vadd.f32 %v1975, %v2098
        %v2133 = vrot.slane %v1075, 1
        %v2134 = vrot.slane %v1076, 1
        %v2135 = vsel %vm512, %v2133, %v2134
        %v2136 = vrot.slane %v1077, 1
        %v2137 = vsel %vm512, %v2134, %v2136
        %s2138 = scalar_lea.vmem %s1, 20
        %v2139 = vld [vmem:[%s2138] sm:$0xf]
        %v2140 = vsel %vm1084, %v2135, 0
        %v2142 = vsel %vm1084, %v2137, 0
        %v2145 = vsel %vm1181, %v2139, 0
        %2147 = vmatpush.msra.mxu0 0.0
        %2148 = vmatpush.msra.mxu0 0.0
        %2149 = vmatpush.msra.mxu0 0.0
        %2150 = vmatpush.msra.mxu0 0.0
        %2151 = vmatpush.msra.mxu0 0.0
        %2152 = vmatpush.msra.mxu0 0.0
        %2153 = vmatpush.msra.mxu0 0.0
        %2154 = vmatpush.msra.mxu0 0.0
        %2155 = vmatpush.msra.mxu0 0.0
        %2156 = vmatpush.msra.mxu0 0.0
        %2157 = vmatpush.msra.mxu0 0.0
        %2158 = vmatpush.msra.mxu0 0.0
        %2159 = vmatpush.msra.mxu0 0.0
        %2160 = vmatpush.msra.mxu0 0.0
        %2161 = vmatpush.msra.mxu0 0.0
        %2162 = vmatpush.msra.mxu0 %v2145
        %2163 = vmatmul.f32.gmra.mxu0 %v1612
        %v2164 = vpop.f32.mrf.mxu0
        %v2165 = vadd.f32 0.0, %v2164
        %2166 = vmatmul.f32.gmra.mxu0 %v1614
        %v2167 = vpop.f32.mrf.mxu0
        %v2168 = vadd.f32 0.0, %v2167
        %2169 = vmatmul.f32.gmra.mxu0 %v1616
        %v2170 = vpop.f32.mrf.mxu0
        %v2171 = vadd.f32 0.0, %v2170
        %2172 = vmatmul.f32.gmra.mxu0 %v1618
        %v2173 = vpop.f32.mrf.mxu0
        %v2174 = vadd.f32 0.0, %v2173
        %2175 = vmatmul.f32.gmra.mxu0 %v1620
        %v2176 = vpop.f32.mrf.mxu0
        %v2177 = vadd.f32 0.0, %v2176
        %2178 = vmatmul.f32.gmra.mxu0 %v1622
        %v2179 = vpop.f32.mrf.mxu0
        %v2180 = vadd.f32 0.0, %v2179
        %2181 = vmatmul.f32.gmra.mxu0 %v1624
        %v2182 = vpop.f32.mrf.mxu0
        %v2183 = vadd.f32 0.0, %v2182
        %2184 = vmatmul.f32.gmra.mxu0 %v1626
        %v2185 = vpop.f32.mrf.mxu0
        %v2186 = vadd.f32 0.0, %v2185
        %2187 = vmatmul.f32.gmra.mxu0 %v1628
        %v2188 = vpop.f32.mrf.mxu0
        %v2189 = vadd.f32 0.0, %v2188
        %2190 = vmatmul.f32.gmra.mxu0 %v1630
        %v2191 = vpop.f32.mrf.mxu0
        %v2192 = vadd.f32 0.0, %v2191
        %2193 = vmatmul.f32.gmra.mxu0 %v1632
        %v2194 = vpop.f32.mrf.mxu0
        %v2195 = vadd.f32 0.0, %v2194
        %2196 = vmatmul.f32.gmra.mxu0 %v1634
        %v2197 = vpop.f32.mrf.mxu0
        %v2198 = vadd.f32 0.0, %v2197
        %2199 = vmatmul.f32.gmra.mxu0 %v1636
        %v2200 = vpop.f32.mrf.mxu0
        %v2201 = vadd.f32 0.0, %v2200
        %2202 = vmatmul.f32.gmra.mxu0 %v1638
        %v2203 = vpop.f32.mrf.mxu0
        %v2204 = vadd.f32 0.0, %v2203
        %2205 = vmatmul.f32.gmra.mxu0 %v1640
        %v2206 = vpop.f32.mrf.mxu0
        %v2207 = vadd.f32 0.0, %v2206
        %2208 = vmatmul.f32.gmra.mxu0 %v1642
        %v2209 = vpop.f32.mrf.mxu0
        %v2210 = vadd.f32 0.0, %v2209
        %2211 = vmatmul.f32.gmra.mxu0 %v1644
        %v2212 = vpop.f32.mrf.mxu0
        %v2213 = vadd.f32 0.0, %v2212
        %2214 = vmatmul.f32.gmra.mxu0 %v1646
        %v2215 = vpop.f32.mrf.mxu0
        %v2216 = vadd.f32 0.0, %v2215
        %2217 = vmatmul.f32.gmra.mxu0 %v1648
        %v2218 = vpop.f32.mrf.mxu0
        %v2219 = vadd.f32 0.0, %v2218
        %2220 = vmatmul.f32.gmra.mxu0 %v1650
        %v2221 = vpop.f32.mrf.mxu0
        %v2222 = vadd.f32 0.0, %v2221
        %2223 = vmatmul.f32.gmra.mxu0 %v1652
        %v2224 = vpop.f32.mrf.mxu0
        %v2225 = vadd.f32 0.0, %v2224
        %2226 = vmatmul.f32.gmra.mxu0 %v1654
        %v2227 = vpop.f32.mrf.mxu0
        %v2228 = vadd.f32 0.0, %v2227
        %2229 = vmatmul.f32.gmra.mxu0 %v1656
        %v2230 = vpop.f32.mrf.mxu0
        %v2231 = vadd.f32 0.0, %v2230
        %2232 = vmatmul.f32.gmra.mxu0 %v1658
        %v2233 = vpop.f32.mrf.mxu0
        %v2234 = vadd.f32 0.0, %v2233
        %2235 = vmatmul.f32.gmra.mxu0 %v1660
        %v2236 = vpop.f32.mrf.mxu0
        %v2237 = vadd.f32 0.0, %v2236
        %2238 = vmatmul.f32.gmra.mxu0 %v1662
        %v2239 = vpop.f32.mrf.mxu0
        %v2240 = vadd.f32 0.0, %v2239
        %2241 = vmatmul.f32.gmra.mxu0 %v1664
        %v2242 = vpop.f32.mrf.mxu0
        %v2243 = vadd.f32 0.0, %v2242
        %2244 = vmatmul.f32.gmra.mxu0 %v1666
        %v2245 = vpop.f32.mrf.mxu0
        %v2246 = vadd.f32 0.0, %v2245
        %2247 = vmatmul.f32.gmra.mxu0 %v1668
        %v2248 = vpop.f32.mrf.mxu0
        %v2249 = vadd.f32 0.0, %v2248
        %2250 = vmatmul.f32.gmra.mxu0 %v1670
        %v2251 = vpop.f32.mrf.mxu0
        %v2252 = vadd.f32 0.0, %v2251
        %2253 = vmatmul.f32.gmra.mxu0 %v2140
        %v2254 = vpop.f32.mrf.mxu0
        %v2255 = vadd.f32 0.0, %v2254
        %2256 = vmatmul.f32.gmra.mxu0 %v2142
        %v2257 = vpop.f32.mrf.mxu0
        %v2258 = vadd.f32 0.0, %v2257
        %2259 = vdwg.mxu0
        %v2260 = vadd.f32 %v2100, %v2165
        %v2261 = vadd.f32 %v2101, %v2168
        %v2262 = vadd.f32 %v2102, %v2171
        %v2263 = vadd.f32 %v2103, %v2174
        %v2264 = vadd.f32 %v2104, %v2177
        %v2265 = vadd.f32 %v2105, %v2180
        %v2266 = vadd.f32 %v2106, %v2183
        %v2267 = vadd.f32 %v2107, %v2186
        %v2268 = vadd.f32 %v2108, %v2189
        %v2269 = vadd.f32 %v2109, %v2192
        %v2270 = vadd.f32 %v2110, %v2195
        %v2271 = vadd.f32 %v2111, %v2198
        %v2272 = vadd.f32 %v2112, %v2201
        %v2273 = vadd.f32 %v2113, %v2204
        %v2274 = vadd.f32 %v2114, %v2207
        %v2275 = vadd.f32 %v2115, %v2210
        %v2276 = vadd.f32 %v2116, %v2213
        %v2277 = vadd.f32 %v2117, %v2216
        %v2278 = vadd.f32 %v2118, %v2219
        %v2279 = vadd.f32 %v2119, %v2222
        %v2280 = vadd.f32 %v2120, %v2225
        %v2281 = vadd.f32 %v2121, %v2228
        %v2282 = vadd.f32 %v2122, %v2231
        %v2283 = vadd.f32 %v2123, %v2234
        %v2284 = vadd.f32 %v2124, %v2237
        %v2285 = vadd.f32 %v2125, %v2240
        %v2286 = vadd.f32 %v2126, %v2243
        %v2287 = vadd.f32 %v2127, %v2246
        %v2288 = vadd.f32 %v2128, %v2249
        %v2289 = vadd.f32 %v2129, %v2252
        %v2290 = vadd.f32 %v2130, %v2255
        %v2291 = vadd.f32 %v2131, %v2258
        %s2292 = scalar_lea.vmem %s1, 24
        %v2293 = vld [vmem:[%s2292] sm:$0xf]
        %v2295 = vsel %vm1084, %v1078, 0
        %v2298 = vsel %vm1084, %v1079, 0
        %v2301 = vsel %vm1181, %v2293, 0
        %2303 = vmatpush.msra.mxu0 0.0
        %2304 = vmatpush.msra.mxu0 0.0
        %2305 = vmatpush.msra.mxu0 0.0
        %2306 = vmatpush.msra.mxu0 0.0
        %2307 = vmatpush.msra.mxu0 0.0
        %2308 = vmatpush.msra.mxu0 0.0
        %2309 = vmatpush.msra.mxu0 0.0
        %2310 = vmatpush.msra.mxu0 0.0
        %2311 = vmatpush.msra.mxu0 0.0
        %2312 = vmatpush.msra.mxu0 0.0
        %2313 = vmatpush.msra.mxu0 0.0
        %2314 = vmatpush.msra.mxu0 0.0
        %2315 = vmatpush.msra.mxu0 0.0
        %2316 = vmatpush.msra.mxu0 0.0
        %2317 = vmatpush.msra.mxu0 0.0
        %2318 = vmatpush.msra.mxu0 %v2301
        %2319 = vmatmul.f32.gmra.mxu0 %v1311
        %v2320 = vpop.f32.mrf.mxu0
        %v2321 = vadd.f32 0.0, %v2320
        %2322 = vmatmul.f32.gmra.mxu0 %v1314
        %v2323 = vpop.f32.mrf.mxu0
        %v2324 = vadd.f32 0.0, %v2323
        %2325 = vmatmul.f32.gmra.mxu0 %v1317
        %v2326 = vpop.f32.mrf.mxu0
        %v2327 = vadd.f32 0.0, %v2326
        %2328 = vmatmul.f32.gmra.mxu0 %v1320
        %v2329 = vpop.f32.mrf.mxu0
        %v2330 = vadd.f32 0.0, %v2329
        %2331 = vmatmul.f32.gmra.mxu0 %v1323
        %v2332 = vpop.f32.mrf.mxu0
        %v2333 = vadd.f32 0.0, %v2332
        %2334 = vmatmul.f32.gmra.mxu0 %v1326
        %v2335 = vpop.f32.mrf.mxu0
        %v2336 = vadd.f32 0.0, %v2335
        %2337 = vmatmul.f32.gmra.mxu0 %v1329
        %v2338 = vpop.f32.mrf.mxu0
        %v2339 = vadd.f32 0.0, %v2338
        %2340 = vmatmul.f32.gmra.mxu0 %v1332
        %v2341 = vpop.f32.mrf.mxu0
        %v2342 = vadd.f32 0.0, %v2341
        %2343 = vmatmul.f32.gmra.mxu0 %v1335
        %v2344 = vpop.f32.mrf.mxu0
        %v2345 = vadd.f32 0.0, %v2344
        %2346 = vmatmul.f32.gmra.mxu0 %v1338
        %v2347 = vpop.f32.mrf.mxu0
        %v2348 = vadd.f32 0.0, %v2347
        %2349 = vmatmul.f32.gmra.mxu0 %v1341
        %v2350 = vpop.f32.mrf.mxu0
        %v2351 = vadd.f32 0.0, %v2350
        %2352 = vmatmul.f32.gmra.mxu0 %v1344
        %v2353 = vpop.f32.mrf.mxu0
        %v2354 = vadd.f32 0.0, %v2353
        %2355 = vmatmul.f32.gmra.mxu0 %v1347
        %v2356 = vpop.f32.mrf.mxu0
        %v2357 = vadd.f32 0.0, %v2356
        %2358 = vmatmul.f32.gmra.mxu0 %v1350
        %v2359 = vpop.f32.mrf.mxu0
        %v2360 = vadd.f32 0.0, %v2359
        %2361 = vmatmul.f32.gmra.mxu0 %v1353
        %v2362 = vpop.f32.mrf.mxu0
        %v2363 = vadd.f32 0.0, %v2362
        %2364 = vmatmul.f32.gmra.mxu0 %v1356
        %v2365 = vpop.f32.mrf.mxu0
        %v2366 = vadd.f32 0.0, %v2365
        %2367 = vmatmul.f32.gmra.mxu0 %v1359
        %v2368 = vpop.f32.mrf.mxu0
        %v2369 = vadd.f32 0.0, %v2368
        %2370 = vmatmul.f32.gmra.mxu0 %v1362
        %v2371 = vpop.f32.mrf.mxu0
        %v2372 = vadd.f32 0.0, %v2371
        %2373 = vmatmul.f32.gmra.mxu0 %v1365
        %v2374 = vpop.f32.mrf.mxu0
        %v2375 = vadd.f32 0.0, %v2374
        %2376 = vmatmul.f32.gmra.mxu0 %v1368
        %v2377 = vpop.f32.mrf.mxu0
        %v2378 = vadd.f32 0.0, %v2377
        %2379 = vmatmul.f32.gmra.mxu0 %v1371
        %v2380 = vpop.f32.mrf.mxu0
        %v2381 = vadd.f32 0.0, %v2380
        %2382 = vmatmul.f32.gmra.mxu0 %v1374
        %v2383 = vpop.f32.mrf.mxu0
        %v2384 = vadd.f32 0.0, %v2383
        %2385 = vmatmul.f32.gmra.mxu0 %v1377
        %v2386 = vpop.f32.mrf.mxu0
        %v2387 = vadd.f32 0.0, %v2386
        %2388 = vmatmul.f32.gmra.mxu0 %v1380
        %v2389 = vpop.f32.mrf.mxu0
        %v2390 = vadd.f32 0.0, %v2389
        %2391 = vmatmul.f32.gmra.mxu0 %v1383
        %v2392 = vpop.f32.mrf.mxu0
        %v2393 = vadd.f32 0.0, %v2392
        %2394 = vmatmul.f32.gmra.mxu0 %v1386
        %v2395 = vpop.f32.mrf.mxu0
        %v2396 = vadd.f32 0.0, %v2395
        %2397 = vmatmul.f32.gmra.mxu0 %v1389
        %v2398 = vpop.f32.mrf.mxu0
        %v2399 = vadd.f32 0.0, %v2398
        %2400 = vmatmul.f32.gmra.mxu0 %v1392
        %v2401 = vpop.f32.mrf.mxu0
        %v2402 = vadd.f32 0.0, %v2401
        %2403 = vmatmul.f32.gmra.mxu0 %v1823
        %v2404 = vpop.f32.mrf.mxu0
        %v2405 = vadd.f32 0.0, %v2404
        %2406 = vmatmul.f32.gmra.mxu0 %v1826
        %v2407 = vpop.f32.mrf.mxu0
        %v2408 = vadd.f32 0.0, %v2407
        %2409 = vmatmul.f32.gmra.mxu0 %v2295
        %v2410 = vpop.f32.mrf.mxu0
        %v2411 = vadd.f32 0.0, %v2410
        %2412 = vmatmul.f32.gmra.mxu0 %v2298
        %v2413 = vpop.f32.mrf.mxu0
        %v2414 = vadd.f32 0.0, %v2413
        %2415 = vdwg.mxu0
        %v2416 = vadd.f32 %v2260, %v2321
        %v2417 = vadd.f32 %v2261, %v2324
        %v2418 = vadd.f32 %v2262, %v2327
        %v2419 = vadd.f32 %v2263, %v2330
        %v2420 = vadd.f32 %v2264, %v2333
        %v2421 = vadd.f32 %v2265, %v2336
        %v2422 = vadd.f32 %v2266, %v2339
        %v2423 = vadd.f32 %v2267, %v2342
        %v2424 = vadd.f32 %v2268, %v2345
        %v2425 = vadd.f32 %v2269, %v2348
        %v2426 = vadd.f32 %v2270, %v2351
        %v2427 = vadd.f32 %v2271, %v2354
        %v2428 = vadd.f32 %v2272, %v2357
        %v2429 = vadd.f32 %v2273, %v2360
        %v2430 = vadd.f32 %v2274, %v2363
        %v2431 = vadd.f32 %v2275, %v2366
        %v2432 = vadd.f32 %v2276, %v2369
        %v2433 = vadd.f32 %v2277, %v2372
        %v2434 = vadd.f32 %v2278, %v2375
        %v2435 = vadd.f32 %v2279, %v2378
        %v2436 = vadd.f32 %v2280, %v2381
        %v2437 = vadd.f32 %v2281, %v2384
        %v2438 = vadd.f32 %v2282, %v2387
        %v2439 = vadd.f32 %v2283, %v2390
        %v2440 = vadd.f32 %v2284, %v2393
        %v2441 = vadd.f32 %v2285, %v2396
        %v2442 = vadd.f32 %v2286, %v2399
        %v2443 = vadd.f32 %v2287, %v2402
        %v2444 = vadd.f32 %v2288, %v2405
        %v2445 = vadd.f32 %v2289, %v2408
        %v2446 = vadd.f32 %v2290, %v2411
        %v2447 = vadd.f32 %v2291, %v2414
        %s2448 = scalar_lea.vmem %s1, 28
        %v2449 = vld [vmem:[%s2448] sm:$0xf]
        %v2451 = vsel %vm1084, %v1021, 0
        %v2454 = vsel %vm1084, %v1022, 0
        %v2457 = vsel %vm1181, %v2449, 0
        %2459 = vmatpush.msra.mxu0 0.0
        %2460 = vmatpush.msra.mxu0 0.0
        %2461 = vmatpush.msra.mxu0 0.0
        %2462 = vmatpush.msra.mxu0 0.0
        %2463 = vmatpush.msra.mxu0 0.0
        %2464 = vmatpush.msra.mxu0 0.0
        %2465 = vmatpush.msra.mxu0 0.0
        %2466 = vmatpush.msra.mxu0 0.0
        %2467 = vmatpush.msra.mxu0 0.0
        %2468 = vmatpush.msra.mxu0 0.0
        %2469 = vmatpush.msra.mxu0 0.0
        %2470 = vmatpush.msra.mxu0 0.0
        %2471 = vmatpush.msra.mxu0 0.0
        %2472 = vmatpush.msra.mxu0 0.0
        %2473 = vmatpush.msra.mxu0 0.0
        %2474 = vmatpush.msra.mxu0 %v2457
        %2475 = vmatmul.f32.gmra.mxu0 %v1098
        %v2476 = vpop.f32.mrf.mxu0
        %v2477 = vadd.f32 0.0, %v2476
        %2478 = vmatmul.f32.gmra.mxu0 %v1101
        %v2479 = vpop.f32.mrf.mxu0
        %v2480 = vadd.f32 0.0, %v2479
        %2481 = vmatmul.f32.gmra.mxu0 %v1104
        %v2482 = vpop.f32.mrf.mxu0
        %v2483 = vadd.f32 0.0, %v2482
        %2484 = vmatmul.f32.gmra.mxu0 %v1107
        %v2485 = vpop.f32.mrf.mxu0
        %v2486 = vadd.f32 0.0, %v2485
        %2487 = vmatmul.f32.gmra.mxu0 %v1110
        %v2488 = vpop.f32.mrf.mxu0
        %v2489 = vadd.f32 0.0, %v2488
        %2490 = vmatmul.f32.gmra.mxu0 %v1113
        %v2491 = vpop.f32.mrf.mxu0
        %v2492 = vadd.f32 0.0, %v2491
        %2493 = vmatmul.f32.gmra.mxu0 %v1116
        %v2494 = vpop.f32.mrf.mxu0
        %v2495 = vadd.f32 0.0, %v2494
        %2496 = vmatmul.f32.gmra.mxu0 %v1119
        %v2497 = vpop.f32.mrf.mxu0
        %v2498 = vadd.f32 0.0, %v2497
        %2499 = vmatmul.f32.gmra.mxu0 %v1122
        %v2500 = vpop.f32.mrf.mxu0
        %v2501 = vadd.f32 0.0, %v2500
        %2502 = vmatmul.f32.gmra.mxu0 %v1125
        %v2503 = vpop.f32.mrf.mxu0
        %v2504 = vadd.f32 0.0, %v2503
        %2505 = vmatmul.f32.gmra.mxu0 %v1128
        %v2506 = vpop.f32.mrf.mxu0
        %v2507 = vadd.f32 0.0, %v2506
        %2508 = vmatmul.f32.gmra.mxu0 %v1131
        %v2509 = vpop.f32.mrf.mxu0
        %v2510 = vadd.f32 0.0, %v2509
        %2511 = vmatmul.f32.gmra.mxu0 %v1134
        %v2512 = vpop.f32.mrf.mxu0
        %v2513 = vadd.f32 0.0, %v2512
        %2514 = vmatmul.f32.gmra.mxu0 %v1137
        %v2515 = vpop.f32.mrf.mxu0
        %v2516 = vadd.f32 0.0, %v2515
        %2517 = vmatmul.f32.gmra.mxu0 %v1140
        %v2518 = vpop.f32.mrf.mxu0
        %v2519 = vadd.f32 0.0, %v2518
        %2520 = vmatmul.f32.gmra.mxu0 %v1143
        %v2521 = vpop.f32.mrf.mxu0
        %v2522 = vadd.f32 0.0, %v2521
        %2523 = vmatmul.f32.gmra.mxu0 %v1146
        %v2524 = vpop.f32.mrf.mxu0
        %v2525 = vadd.f32 0.0, %v2524
        %2526 = vmatmul.f32.gmra.mxu0 %v1149
        %v2527 = vpop.f32.mrf.mxu0
        %v2528 = vadd.f32 0.0, %v2527
        %2529 = vmatmul.f32.gmra.mxu0 %v1152
        %v2530 = vpop.f32.mrf.mxu0
        %v2531 = vadd.f32 0.0, %v2530
        %2532 = vmatmul.f32.gmra.mxu0 %v1155
        %v2533 = vpop.f32.mrf.mxu0
        %v2534 = vadd.f32 0.0, %v2533
        %2535 = vmatmul.f32.gmra.mxu0 %v1158
        %v2536 = vpop.f32.mrf.mxu0
        %v2537 = vadd.f32 0.0, %v2536
        %2538 = vmatmul.f32.gmra.mxu0 %v1161
        %v2539 = vpop.f32.mrf.mxu0
        %v2540 = vadd.f32 0.0, %v2539
        %2541 = vmatmul.f32.gmra.mxu0 %v1164
        %v2542 = vpop.f32.mrf.mxu0
        %v2543 = vadd.f32 0.0, %v2542
        %2544 = vmatmul.f32.gmra.mxu0 %v1167
        %v2545 = vpop.f32.mrf.mxu0
        %v2546 = vadd.f32 0.0, %v2545
        %2547 = vmatmul.f32.gmra.mxu0 %v1170
        %v2548 = vpop.f32.mrf.mxu0
        %v2549 = vadd.f32 0.0, %v2548
        %2550 = vmatmul.f32.gmra.mxu0 %v1173
        %v2551 = vpop.f32.mrf.mxu0
        %v2552 = vadd.f32 0.0, %v2551
        %2553 = vmatmul.f32.gmra.mxu0 %v1176
        %v2554 = vpop.f32.mrf.mxu0
        %v2555 = vadd.f32 0.0, %v2554
        %2556 = vmatmul.f32.gmra.mxu0 %v1179
        %v2557 = vpop.f32.mrf.mxu0
        %v2558 = vadd.f32 0.0, %v2557
        %2559 = vmatmul.f32.gmra.mxu0 %v1979
        %v2560 = vpop.f32.mrf.mxu0
        %v2561 = vadd.f32 0.0, %v2560
        %2562 = vmatmul.f32.gmra.mxu0 %v1982
        %v2563 = vpop.f32.mrf.mxu0
        %v2564 = vadd.f32 0.0, %v2563
        %2565 = vmatmul.f32.gmra.mxu0 %v2451
        %v2566 = vpop.f32.mrf.mxu0
        %v2567 = vadd.f32 0.0, %v2566
        %2568 = vmatmul.f32.gmra.mxu0 %v2454
        %v2569 = vpop.f32.mrf.mxu0
        %v2570 = vadd.f32 0.0, %v2569
        %2571 = vdwg.mxu0
        %v2572 = vadd.f32 %v2416, %v2477
        %v2573 = vadd.f32 %v2417, %v2480
        %v2574 = vadd.f32 %v2418, %v2483
        %v2575 = vadd.f32 %v2419, %v2486
        %v2576 = vadd.f32 %v2420, %v2489
        %v2577 = vadd.f32 %v2421, %v2492
        %v2578 = vadd.f32 %v2422, %v2495
        %v2579 = vadd.f32 %v2423, %v2498
        %v2580 = vadd.f32 %v2424, %v2501
        %v2581 = vadd.f32 %v2425, %v2504
        %v2582 = vadd.f32 %v2426, %v2507
        %v2583 = vadd.f32 %v2427, %v2510
        %v2584 = vadd.f32 %v2428, %v2513
        %v2585 = vadd.f32 %v2429, %v2516
        %v2586 = vadd.f32 %v2430, %v2519
        %v2587 = vadd.f32 %v2431, %v2522
        %v2588 = vadd.f32 %v2432, %v2525
        %v2589 = vadd.f32 %v2433, %v2528
        %v2590 = vadd.f32 %v2434, %v2531
        %v2591 = vadd.f32 %v2435, %v2534
        %v2592 = vadd.f32 %v2436, %v2537
        %v2593 = vadd.f32 %v2437, %v2540
        %v2594 = vadd.f32 %v2438, %v2543
        %v2595 = vadd.f32 %v2439, %v2546
        %v2596 = vadd.f32 %v2440, %v2549
        %v2597 = vadd.f32 %v2441, %v2552
        %v2598 = vadd.f32 %v2442, %v2555
        %v2599 = vadd.f32 %v2443, %v2558
        %v2600 = vadd.f32 %v2444, %v2561
        %v2601 = vadd.f32 %v2445, %v2564
        %v2602 = vadd.f32 %v2446, %v2567
        %v2603 = vadd.f32 %v2447, %v2570
        %v2605 = vrot.slane %v1078, 1
        %v2606 = vrot.slane %v1079, 1
        %v2607 = vsel %vm512, %v2605, %v2606
        %v2608 = vrot.slane %v1080, 1
        %v2609 = vsel %vm512, %v2606, %v2608
        %s2610 = scalar_lea.vmem %s1, 32
        %v2611 = vld [vmem:[%s2610] sm:$0xf]
        %v2612 = vsel %vm1084, %v2607, 0
        %v2614 = vsel %vm1084, %v2609, 0
        %v2617 = vsel %vm1181, %v2611, 0
        %2619 = vmatpush.msra.mxu0 0.0
        %2620 = vmatpush.msra.mxu0 0.0
        %2621 = vmatpush.msra.mxu0 0.0
        %2622 = vmatpush.msra.mxu0 0.0
        %2623 = vmatpush.msra.mxu0 0.0
        %2624 = vmatpush.msra.mxu0 0.0
        %2625 = vmatpush.msra.mxu0 0.0
        %2626 = vmatpush.msra.mxu0 0.0
        %2627 = vmatpush.msra.mxu0 0.0
        %2628 = vmatpush.msra.mxu0 0.0
        %2629 = vmatpush.msra.mxu0 0.0
        %2630 = vmatpush.msra.mxu0 0.0
        %2631 = vmatpush.msra.mxu0 0.0
        %2632 = vmatpush.msra.mxu0 0.0
        %2633 = vmatpush.msra.mxu0 0.0
        %2634 = vmatpush.msra.mxu0 %v2617
        %2635 = vmatmul.f32.gmra.mxu0 %v1616
        %v2636 = vpop.f32.mrf.mxu0
        %v2637 = vadd.f32 0.0, %v2636
        %2638 = vmatmul.f32.gmra.mxu0 %v1618
        %v2639 = vpop.f32.mrf.mxu0
        %v2640 = vadd.f32 0.0, %v2639
        %2641 = vmatmul.f32.gmra.mxu0 %v1620
        %v2642 = vpop.f32.mrf.mxu0
        %v2643 = vadd.f32 0.0, %v2642
        %2644 = vmatmul.f32.gmra.mxu0 %v1622
        %v2645 = vpop.f32.mrf.mxu0
        %v2646 = vadd.f32 0.0, %v2645
        %2647 = vmatmul.f32.gmra.mxu0 %v1624
        %v2648 = vpop.f32.mrf.mxu0
        %v2649 = vadd.f32 0.0, %v2648
        %2650 = vmatmul.f32.gmra.mxu0 %v1626
        %v2651 = vpop.f32.mrf.mxu0
        %v2652 = vadd.f32 0.0, %v2651
        %2653 = vmatmul.f32.gmra.mxu0 %v1628
        %v2654 = vpop.f32.mrf.mxu0
        %v2655 = vadd.f32 0.0, %v2654
        %2656 = vmatmul.f32.gmra.mxu0 %v1630
        %v2657 = vpop.f32.mrf.mxu0
        %v2658 = vadd.f32 0.0, %v2657
        %2659 = vmatmul.f32.gmra.mxu0 %v1632
        %v2660 = vpop.f32.mrf.mxu0
        %v2661 = vadd.f32 0.0, %v2660
        %2662 = vmatmul.f32.gmra.mxu0 %v1634
        %v2663 = vpop.f32.mrf.mxu0
        %v2664 = vadd.f32 0.0, %v2663
        %2665 = vmatmul.f32.gmra.mxu0 %v1636
        %v2666 = vpop.f32.mrf.mxu0
        %v2667 = vadd.f32 0.0, %v2666
        %2668 = vmatmul.f32.gmra.mxu0 %v1638
        %v2669 = vpop.f32.mrf.mxu0
        %v2670 = vadd.f32 0.0, %v2669
        %2671 = vmatmul.f32.gmra.mxu0 %v1640
        %v2672 = vpop.f32.mrf.mxu0
        %v2673 = vadd.f32 0.0, %v2672
        %2674 = vmatmul.f32.gmra.mxu0 %v1642
        %v2675 = vpop.f32.mrf.mxu0
        %v2676 = vadd.f32 0.0, %v2675
        %2677 = vmatmul.f32.gmra.mxu0 %v1644
        %v2678 = vpop.f32.mrf.mxu0
        %v2679 = vadd.f32 0.0, %v2678
        %2680 = vmatmul.f32.gmra.mxu0 %v1646
        %v2681 = vpop.f32.mrf.mxu0
        %v2682 = vadd.f32 0.0, %v2681
        %2683 = vmatmul.f32.gmra.mxu0 %v1648
        %v2684 = vpop.f32.mrf.mxu0
        %v2685 = vadd.f32 0.0, %v2684
        %2686 = vmatmul.f32.gmra.mxu0 %v1650
        %v2687 = vpop.f32.mrf.mxu0
        %v2688 = vadd.f32 0.0, %v2687
        %2689 = vmatmul.f32.gmra.mxu0 %v1652
        %v2690 = vpop.f32.mrf.mxu0
        %v2691 = vadd.f32 0.0, %v2690
        %2692 = vmatmul.f32.gmra.mxu0 %v1654
        %v2693 = vpop.f32.mrf.mxu0
        %v2694 = vadd.f32 0.0, %v2693
        %2695 = vmatmul.f32.gmra.mxu0 %v1656
        %v2696 = vpop.f32.mrf.mxu0
        %v2697 = vadd.f32 0.0, %v2696
        %2698 = vmatmul.f32.gmra.mxu0 %v1658
        %v2699 = vpop.f32.mrf.mxu0
        %v2700 = vadd.f32 0.0, %v2699
        %2701 = vmatmul.f32.gmra.mxu0 %v1660
        %v2702 = vpop.f32.mrf.mxu0
        %v2703 = vadd.f32 0.0, %v2702
        %2704 = vmatmul.f32.gmra.mxu0 %v1662
        %v2705 = vpop.f32.mrf.mxu0
        %v2706 = vadd.f32 0.0, %v2705
        %2707 = vmatmul.f32.gmra.mxu0 %v1664
        %v2708 = vpop.f32.mrf.mxu0
        %v2709 = vadd.f32 0.0, %v2708
        %2710 = vmatmul.f32.gmra.mxu0 %v1666
        %v2711 = vpop.f32.mrf.mxu0
        %v2712 = vadd.f32 0.0, %v2711
        %2713 = vmatmul.f32.gmra.mxu0 %v1668
        %v2714 = vpop.f32.mrf.mxu0
        %v2715 = vadd.f32 0.0, %v2714
        %2716 = vmatmul.f32.gmra.mxu0 %v1670
        %v2717 = vpop.f32.mrf.mxu0
        %v2718 = vadd.f32 0.0, %v2717
        %2719 = vmatmul.f32.gmra.mxu0 %v2140
        %v2720 = vpop.f32.mrf.mxu0
        %v2721 = vadd.f32 0.0, %v2720
        %2722 = vmatmul.f32.gmra.mxu0 %v2142
        %v2723 = vpop.f32.mrf.mxu0
        %v2724 = vadd.f32 0.0, %v2723
        %2725 = vmatmul.f32.gmra.mxu0 %v2612
        %v2726 = vpop.f32.mrf.mxu0
        %v2727 = vadd.f32 0.0, %v2726
        %2728 = vmatmul.f32.gmra.mxu0 %v2614
        %v2729 = vpop.f32.mrf.mxu0
        %v2730 = vadd.f32 0.0, %v2729
        %2731 = vdwg.mxu0
        %v2732 = vadd.f32 %v2572, %v2637
        %v2733 = vadd.f32 %v2573, %v2640
        %v2734 = vadd.f32 %v2574, %v2643
        %v2735 = vadd.f32 %v2575, %v2646
        %v2736 = vadd.f32 %v2576, %v2649
        %v2737 = vadd.f32 %v2577, %v2652
        %v2738 = vadd.f32 %v2578, %v2655
        %v2739 = vadd.f32 %v2579, %v2658
        %v2740 = vadd.f32 %v2580, %v2661
        %v2741 = vadd.f32 %v2581, %v2664
        %v2742 = vadd.f32 %v2582, %v2667
        %v2743 = vadd.f32 %v2583, %v2670
        %v2744 = vadd.f32 %v2584, %v2673
        %v2745 = vadd.f32 %v2585, %v2676
        %v2746 = vadd.f32 %v2586, %v2679
        %v2747 = vadd.f32 %v2587, %v2682
        %v2748 = vadd.f32 %v2588, %v2685
        %v2749 = vadd.f32 %v2589, %v2688
        %v2750 = vadd.f32 %v2590, %v2691
        %v2751 = vadd.f32 %v2591, %v2694
        %v2752 = vadd.f32 %v2592, %v2697
        %v2753 = vadd.f32 %v2593, %v2700
        %v2754 = vadd.f32 %v2594, %v2703
        %v2755 = vadd.f32 %v2595, %v2706
        %v2756 = vadd.f32 %v2596, %v2709
        %v2757 = vadd.f32 %v2597, %v2712
        %v2758 = vadd.f32 %v2598, %v2715
        %v2759 = vadd.f32 %v2599, %v2718
        %v2760 = vadd.f32 %v2600, %v2721
        %v2761 = vadd.f32 %v2601, %v2724
        %v2762 = vadd.f32 %v2602, %v2727
        %v2763 = vadd.f32 %v2603, %v2730
        %2764 = vmatpush.msra.mxu0 0.0
        %2765 = vmatpush.msra.mxu0 0.0
        %2766 = vmatpush.msra.mxu0 0.0
        %2767 = vmatpush.msra.mxu0 0.0
        %2768 = vmatpush.msra.mxu0 0.0
        %2769 = vmatpush.msra.mxu0 0.0
        %2770 = vmatpush.msra.mxu0 0.0
        %2771 = vmatpush.msra.mxu0 0.0
        %2772 = vmatpush.msra.mxu0 0.0
        %2773 = vmatpush.msra.mxu0 0.0
        %2774 = vmatpush.msra.mxu0 0.0
        %2775 = vmatpush.msra.mxu0 0.0
        %2776 = vmatpush.msra.mxu0 0.0
        %2777 = vmatpush.msra.mxu0 0.0
        %2778 = vmatpush.msra.mxu0 0.0
        %2779 = vmatpush.msra.mxu0 %v1183
        %2780 = vmatmul.f32.gmra.mxu0 %v1608
        %v2781 = vpop.f32.mrf.mxu0
        %v2782 = vadd.f32 0.0, %v2781
        %2783 = vmatmul.f32.gmra.mxu0 %v1610
        %v2784 = vpop.f32.mrf.mxu0
        %v2785 = vadd.f32 0.0, %v2784
        %2786 = vmatmul.f32.gmra.mxu0 %v1612
        %v2787 = vpop.f32.mrf.mxu0
        %v2788 = vadd.f32 0.0, %v2787
        %2789 = vmatmul.f32.gmra.mxu0 %v1614
        %v2790 = vpop.f32.mrf.mxu0
        %v2791 = vadd.f32 0.0, %v2790
        %2792 = vmatmul.f32.gmra.mxu0 %v1616
        %v2793 = vpop.f32.mrf.mxu0
        %v2794 = vadd.f32 0.0, %v2793
        %2795 = vmatmul.f32.gmra.mxu0 %v1618
        %v2796 = vpop.f32.mrf.mxu0
        %v2797 = vadd.f32 0.0, %v2796
        %2798 = vmatmul.f32.gmra.mxu0 %v1620
        %v2799 = vpop.f32.mrf.mxu0
        %v2800 = vadd.f32 0.0, %v2799
        %2801 = vmatmul.f32.gmra.mxu0 %v1622
        %v2802 = vpop.f32.mrf.mxu0
        %v2803 = vadd.f32 0.0, %v2802
        %2804 = vmatmul.f32.gmra.mxu0 %v1624
        %v2805 = vpop.f32.mrf.mxu0
        %v2806 = vadd.f32 0.0, %v2805
        %2807 = vmatmul.f32.gmra.mxu0 %v1626
        %v2808 = vpop.f32.mrf.mxu0
        %v2809 = vadd.f32 0.0, %v2808
        %2810 = vmatmul.f32.gmra.mxu0 %v1628
        %v2811 = vpop.f32.mrf.mxu0
        %v2812 = vadd.f32 0.0, %v2811
        %2813 = vmatmul.f32.gmra.mxu0 %v1630
        %v2814 = vpop.f32.mrf.mxu0
        %v2815 = vadd.f32 0.0, %v2814
        %2816 = vmatmul.f32.gmra.mxu0 %v1632
        %v2817 = vpop.f32.mrf.mxu0
        %v2818 = vadd.f32 0.0, %v2817
        %2819 = vmatmul.f32.gmra.mxu0 %v1634
        %v2820 = vpop.f32.mrf.mxu0
        %v2821 = vadd.f32 0.0, %v2820
        %2822 = vmatmul.f32.gmra.mxu0 %v1636
        %v2823 = vpop.f32.mrf.mxu0
        %v2824 = vadd.f32 0.0, %v2823
        %2825 = vmatmul.f32.gmra.mxu0 %v1638
        %v2826 = vpop.f32.mrf.mxu0
        %v2827 = vadd.f32 0.0, %v2826
        %2828 = vmatmul.f32.gmra.mxu0 %v1640
        %v2829 = vpop.f32.mrf.mxu0
        %v2830 = vadd.f32 0.0, %v2829
        %2831 = vmatmul.f32.gmra.mxu0 %v1642
        %v2832 = vpop.f32.mrf.mxu0
        %v2833 = vadd.f32 0.0, %v2832
        %2834 = vmatmul.f32.gmra.mxu0 %v1644
        %v2835 = vpop.f32.mrf.mxu0
        %v2836 = vadd.f32 0.0, %v2835
        %2837 = vmatmul.f32.gmra.mxu0 %v1646
        %v2838 = vpop.f32.mrf.mxu0
        %v2839 = vadd.f32 0.0, %v2838
        %2840 = vmatmul.f32.gmra.mxu0 %v1648
        %v2841 = vpop.f32.mrf.mxu0
        %v2842 = vadd.f32 0.0, %v2841
        %2843 = vmatmul.f32.gmra.mxu0 %v1650
        %v2844 = vpop.f32.mrf.mxu0
        %v2845 = vadd.f32 0.0, %v2844
        %2846 = vmatmul.f32.gmra.mxu0 %v1652
        %v2847 = vpop.f32.mrf.mxu0
        %v2848 = vadd.f32 0.0, %v2847
        %2849 = vmatmul.f32.gmra.mxu0 %v1654
        %v2850 = vpop.f32.mrf.mxu0
        %v2851 = vadd.f32 0.0, %v2850
        %2852 = vmatmul.f32.gmra.mxu0 %v1656
        %v2853 = vpop.f32.mrf.mxu0
        %v2854 = vadd.f32 0.0, %v2853
        %2855 = vmatmul.f32.gmra.mxu0 %v1658
        %v2856 = vpop.f32.mrf.mxu0
        %v2857 = vadd.f32 0.0, %v2856
        %2858 = vmatmul.f32.gmra.mxu0 %v1660
        %v2859 = vpop.f32.mrf.mxu0
        %v2860 = vadd.f32 0.0, %v2859
        %2861 = vmatmul.f32.gmra.mxu0 %v1662
        %v2862 = vpop.f32.mrf.mxu0
        %v2863 = vadd.f32 0.0, %v2862
        %2864 = vmatmul.f32.gmra.mxu0 %v1664
        %v2865 = vpop.f32.mrf.mxu0
        %v2866 = vadd.f32 0.0, %v2865
        %2867 = vmatmul.f32.gmra.mxu0 %v1666
        %v2868 = vpop.f32.mrf.mxu0
        %v2869 = vadd.f32 0.0, %v2868
        %2870 = vmatmul.f32.gmra.mxu0 %v1668
        %v2871 = vpop.f32.mrf.mxu0
        %v2872 = vadd.f32 0.0, %v2871
        %2873 = vmatmul.f32.gmra.mxu0 %v1670
        %v2874 = vpop.f32.mrf.mxu0
        %v2875 = vadd.f32 0.0, %v2874
        %2876 = vdwg.mxu0
        %2877 = vmatpush.msra.mxu0 0.0
        %2878 = vmatpush.msra.mxu0 0.0
        %2879 = vmatpush.msra.mxu0 0.0
        %2880 = vmatpush.msra.mxu0 0.0
        %2881 = vmatpush.msra.mxu0 0.0
        %2882 = vmatpush.msra.mxu0 0.0
        %2883 = vmatpush.msra.mxu0 0.0
        %2884 = vmatpush.msra.mxu0 0.0
        %2885 = vmatpush.msra.mxu0 0.0
        %2886 = vmatpush.msra.mxu0 0.0
        %2887 = vmatpush.msra.mxu0 0.0
        %2888 = vmatpush.msra.mxu0 0.0
        %2889 = vmatpush.msra.mxu0 0.0
        %2890 = vmatpush.msra.mxu0 0.0
        %2891 = vmatpush.msra.mxu0 0.0
        %2892 = vmatpush.msra.mxu0 %v1395
        %2893 = vmatmul.f32.gmra.mxu0 %v1086
        %v2894 = vpop.f32.mrf.mxu0
        %v2895 = vadd.f32 %v2782, %v2894
        %2896 = vmatmul.f32.gmra.mxu0 %v1089
        %v2897 = vpop.f32.mrf.mxu0
        %v2898 = vadd.f32 %v2785, %v2897
        %2899 = vmatmul.f32.gmra.mxu0 %v1092
        %v2900 = vpop.f32.mrf.mxu0
        %v2901 = vadd.f32 %v2788, %v2900
        %2902 = vmatmul.f32.gmra.mxu0 %v1095
        %v2903 = vpop.f32.mrf.mxu0
        %v2904 = vadd.f32 %v2791, %v2903
        %2905 = vmatmul.f32.gmra.mxu0 %v1098
        %v2906 = vpop.f32.mrf.mxu0
        %v2907 = vadd.f32 %v2794, %v2906
        %2908 = vmatmul.f32.gmra.mxu0 %v1101
        %v2909 = vpop.f32.mrf.mxu0
        %v2910 = vadd.f32 %v2797, %v2909
        %2911 = vmatmul.f32.gmra.mxu0 %v1104
        %v2912 = vpop.f32.mrf.mxu0
        %v2913 = vadd.f32 %v2800, %v2912
        %2914 = vmatmul.f32.gmra.mxu0 %v1107
        %v2915 = vpop.f32.mrf.mxu0
        %v2916 = vadd.f32 %v2803, %v2915
        %2917 = vmatmul.f32.gmra.mxu0 %v1110
        %v2918 = vpop.f32.mrf.mxu0
        %v2919 = vadd.f32 %v2806, %v2918
        %2920 = vmatmul.f32.gmra.mxu0 %v1113
        %v2921 = vpop.f32.mrf.mxu0
        %v2922 = vadd.f32 %v2809, %v2921
        %2923 = vmatmul.f32.gmra.mxu0 %v1116
        %v2924 = vpop.f32.mrf.mxu0
        %v2925 = vadd.f32 %v2812, %v2924
        %2926 = vmatmul.f32.gmra.mxu0 %v1119
        %v2927 = vpop.f32.mrf.mxu0
        %v2928 = vadd.f32 %v2815, %v2927
        %2929 = vmatmul.f32.gmra.mxu0 %v1122
        %v2930 = vpop.f32.mrf.mxu0
        %v2931 = vadd.f32 %v2818, %v2930
        %2932 = vmatmul.f32.gmra.mxu0 %v1125
        %v2933 = vpop.f32.mrf.mxu0
        %v2934 = vadd.f32 %v2821, %v2933
        %2935 = vmatmul.f32.gmra.mxu0 %v1128
        %v2936 = vpop.f32.mrf.mxu0
        %v2937 = vadd.f32 %v2824, %v2936
        %2938 = vmatmul.f32.gmra.mxu0 %v1131
        %v2939 = vpop.f32.mrf.mxu0
        %v2940 = vadd.f32 %v2827, %v2939
        %2941 = vmatmul.f32.gmra.mxu0 %v1134
        %v2942 = vpop.f32.mrf.mxu0
        %v2943 = vadd.f32 %v2830, %v2942
        %2944 = vmatmul.f32.gmra.mxu0 %v1137
        %v2945 = vpop.f32.mrf.mxu0
        %v2946 = vadd.f32 %v2833, %v2945
        %2947 = vmatmul.f32.gmra.mxu0 %v1140
        %v2948 = vpop.f32.mrf.mxu0
        %v2949 = vadd.f32 %v2836, %v2948
        %2950 = vmatmul.f32.gmra.mxu0 %v1143
        %v2951 = vpop.f32.mrf.mxu0
        %v2952 = vadd.f32 %v2839, %v2951
        %2953 = vmatmul.f32.gmra.mxu0 %v1146
        %v2954 = vpop.f32.mrf.mxu0
        %v2955 = vadd.f32 %v2842, %v2954
        %2956 = vmatmul.f32.gmra.mxu0 %v1149
        %v2957 = vpop.f32.mrf.mxu0
        %v2958 = vadd.f32 %v2845, %v2957
        %2959 = vmatmul.f32.gmra.mxu0 %v1152
        %v2960 = vpop.f32.mrf.mxu0
        %v2961 = vadd.f32 %v2848, %v2960
        %2962 = vmatmul.f32.gmra.mxu0 %v1155
        %v2963 = vpop.f32.mrf.mxu0
        %v2964 = vadd.f32 %v2851, %v2963
        %2965 = vmatmul.f32.gmra.mxu0 %v1158
        %v2966 = vpop.f32.mrf.mxu0
        %v2967 = vadd.f32 %v2854, %v2966
        %2968 = vmatmul.f32.gmra.mxu0 %v1161
        %v2969 = vpop.f32.mrf.mxu0
        %v2970 = vadd.f32 %v2857, %v2969
        %2971 = vmatmul.f32.gmra.mxu0 %v1164
        %v2972 = vpop.f32.mrf.mxu0
        %v2973 = vadd.f32 %v2860, %v2972
        %2974 = vmatmul.f32.gmra.mxu0 %v1167
        %v2975 = vpop.f32.mrf.mxu0
        %v2976 = vadd.f32 %v2863, %v2975
        %2977 = vmatmul.f32.gmra.mxu0 %v1170
        %v2978 = vpop.f32.mrf.mxu0
        %v2979 = vadd.f32 %v2866, %v2978
        %2980 = vmatmul.f32.gmra.mxu0 %v1173
        %v2981 = vpop.f32.mrf.mxu0
        %v2982 = vadd.f32 %v2869, %v2981
        %2983 = vmatmul.f32.gmra.mxu0 %v1176
        %v2984 = vpop.f32.mrf.mxu0
        %v2985 = vadd.f32 %v2872, %v2984
        %2986 = vmatmul.f32.gmra.mxu0 %v1179
        %v2987 = vpop.f32.mrf.mxu0
        %v2988 = vadd.f32 %v2875, %v2987
        %2989 = vdwg.mxu0
        %v3006 = vrot.slane %v970, 1
        %v3007 = vrot.slane %v971, 1
        %v3008 = vsel %vm512, %v3006, %v3007
        %v3009 = vrot.slane %v972, 1
        %v3010 = vsel %vm512, %v3007, %v3009
        %v3011 = vrot.slane %v973, 1
        %v3012 = vrot.slane %v974, 1
        %v3013 = vsel %vm512, %v3011, %v3012
        %v3014 = vrot.slane %v975, 1
        %v3015 = vsel %vm512, %v3012, %v3014
        %v3016 = vrot.slane %v976, 1
        %v3017 = vrot.slane %v977, 1
        %v3018 = vsel %vm512, %v3016, %v3017
        %v3019 = vrot.slane %v978, 1
        %v3020 = vsel %vm512, %v3017, %v3019
        %v3021 = vrot.slane %v979, 1
        %v3022 = vrot.slane %v980, 1
        %v3023 = vsel %vm512, %v3021, %v3022
        %v3024 = vrot.slane %v981, 1
        %v3025 = vsel %vm512, %v3022, %v3024
        %v3026 = vrot.slane %v982, 1
        %v3027 = vrot.slane %v983, 1
        %v3028 = vsel %vm512, %v3026, %v3027
        %v3029 = vrot.slane %v984, 1
        %v3030 = vsel %vm512, %v3027, %v3029
        %v3031 = vrot.slane %v985, 1
        %v3032 = vrot.slane %v986, 1
        %v3033 = vsel %vm512, %v3031, %v3032
        %v3034 = vrot.slane %v987, 1
        %v3035 = vsel %vm512, %v3032, %v3034
        %v3036 = vrot.slane %v988, 1
        %v3037 = vrot.slane %v989, 1
        %v3038 = vsel %vm512, %v3036, %v3037
        %v3039 = vrot.slane %v990, 1
        %v3040 = vsel %vm512, %v3037, %v3039
        %v3041 = vrot.slane %v991, 1
        %v3042 = vrot.slane %v992, 1
        %v3043 = vsel %vm512, %v3041, %v3042
        %v3044 = vrot.slane %v993, 1
        %v3045 = vsel %vm512, %v3042, %v3044
        %v3046 = vrot.slane %v994, 1
        %v3047 = vrot.slane %v995, 1
        %v3048 = vsel %vm512, %v3046, %v3047
        %v3049 = vrot.slane %v996, 1
        %v3050 = vsel %vm512, %v3047, %v3049
        %v3051 = vrot.slane %v997, 1
        %v3052 = vrot.slane %v998, 1
        %v3053 = vsel %vm512, %v3051, %v3052
        %v3054 = vrot.slane %v999, 1
        %v3055 = vsel %vm512, %v3052, %v3054
        %v3056 = vrot.slane %v1000, 1
        %v3057 = vrot.slane %v1001, 1
        %v3058 = vsel %vm512, %v3056, %v3057
        %v3059 = vrot.slane %v1002, 1
        %v3060 = vsel %vm512, %v3057, %v3059
        %v3061 = vrot.slane %v1003, 1
        %v3062 = vrot.slane %v1004, 1
        %v3063 = vsel %vm512, %v3061, %v3062
        %v3064 = vrot.slane %v1005, 1
        %v3065 = vsel %vm512, %v3062, %v3064
        %v3066 = vrot.slane %v1006, 1
        %v3067 = vrot.slane %v1007, 1
        %v3068 = vsel %vm512, %v3066, %v3067
        %v3069 = vrot.slane %v1008, 1
        %v3070 = vsel %vm512, %v3067, %v3069
        %v3071 = vrot.slane %v1009, 1
        %v3072 = vrot.slane %v1010, 1
        %v3073 = vsel %vm512, %v3071, %v3072
        %v3074 = vrot.slane %v1011, 1
        %v3075 = vsel %vm512, %v3072, %v3074
        %v3076 = vrot.slane %v1012, 1
        %v3077 = vrot.slane %v1013, 1
        %v3078 = vsel %vm512, %v3076, %v3077
        %v3079 = vrot.slane %v1014, 1
        %v3080 = vsel %vm512, %v3077, %v3079
        %v3081 = vrot.slane %v1015, 1
        %v3082 = vrot.slane %v1016, 1
        %v3083 = vsel %vm512, %v3081, %v3082
        %v3084 = vrot.slane %v1017, 1
        %v3085 = vsel %vm512, %v3082, %v3084
        %v3086 = vsel %vm1084, %v3008, 0
        %v3088 = vsel %vm1084, %v3010, 0
        %v3090 = vsel %vm1084, %v3013, 0
        %v3092 = vsel %vm1084, %v3015, 0
        %v3094 = vsel %vm1084, %v3018, 0
        %v3096 = vsel %vm1084, %v3020, 0
        %v3098 = vsel %vm1084, %v3023, 0
        %v3100 = vsel %vm1084, %v3025, 0
        %v3102 = vsel %vm1084, %v3028, 0
        %v3104 = vsel %vm1084, %v3030, 0
        %v3106 = vsel %vm1084, %v3033, 0
        %v3108 = vsel %vm1084, %v3035, 0
        %v3110 = vsel %vm1084, %v3038, 0
        %v3112 = vsel %vm1084, %v3040, 0
        %v3114 = vsel %vm1084, %v3043, 0
        %v3116 = vsel %vm1084, %v3045, 0
        %v3118 = vsel %vm1084, %v3048, 0
        %v3120 = vsel %vm1084, %v3050, 0
        %v3122 = vsel %vm1084, %v3053, 0
        %v3124 = vsel %vm1084, %v3055, 0
        %v3126 = vsel %vm1084, %v3058, 0
        %v3128 = vsel %vm1084, %v3060, 0
        %v3130 = vsel %vm1084, %v3063, 0
        %v3132 = vsel %vm1084, %v3065, 0
        %v3134 = vsel %vm1084, %v3068, 0
        %v3136 = vsel %vm1084, %v3070, 0
        %v3138 = vsel %vm1084, %v3073, 0
        %v3140 = vsel %vm1084, %v3075, 0
        %v3142 = vsel %vm1084, %v3078, 0
        %v3144 = vsel %vm1084, %v3080, 0
        %v3146 = vsel %vm1084, %v3083, 0
        %v3148 = vsel %vm1084, %v3085, 0
        %3150 = vmatpush.msra.mxu0 0.0
        %3151 = vmatpush.msra.mxu0 0.0
        %3152 = vmatpush.msra.mxu0 0.0
        %3153 = vmatpush.msra.mxu0 0.0
        %3154 = vmatpush.msra.mxu0 0.0
        %3155 = vmatpush.msra.mxu0 0.0
        %3156 = vmatpush.msra.mxu0 0.0
        %3157 = vmatpush.msra.mxu0 0.0
        %3158 = vmatpush.msra.mxu0 0.0
        %3159 = vmatpush.msra.mxu0 0.0
        %3160 = vmatpush.msra.mxu0 0.0
        %3161 = vmatpush.msra.mxu0 0.0
        %3162 = vmatpush.msra.mxu0 0.0
        %3163 = vmatpush.msra.mxu0 0.0
        %3164 = vmatpush.msra.mxu0 0.0
        %3165 = vmatpush.msra.mxu0 %v1673
        %3166 = vmatmul.f32.gmra.mxu0 %v3086
        %v3167 = vpop.f32.mrf.mxu0
        %v3168 = vadd.f32 0.0, %v3167
        %3169 = vmatmul.f32.gmra.mxu0 %v3088
        %v3170 = vpop.f32.mrf.mxu0
        %v3171 = vadd.f32 0.0, %v3170
        %3172 = vmatmul.f32.gmra.mxu0 %v3090
        %v3173 = vpop.f32.mrf.mxu0
        %v3174 = vadd.f32 0.0, %v3173
        %3175 = vmatmul.f32.gmra.mxu0 %v3092
        %v3176 = vpop.f32.mrf.mxu0
        %v3177 = vadd.f32 0.0, %v3176
        %3178 = vmatmul.f32.gmra.mxu0 %v3094
        %v3179 = vpop.f32.mrf.mxu0
        %v3180 = vadd.f32 0.0, %v3179
        %3181 = vmatmul.f32.gmra.mxu0 %v3096
        %v3182 = vpop.f32.mrf.mxu0
        %v3183 = vadd.f32 0.0, %v3182
        %3184 = vmatmul.f32.gmra.mxu0 %v3098
        %v3185 = vpop.f32.mrf.mxu0
        %v3186 = vadd.f32 0.0, %v3185
        %3187 = vmatmul.f32.gmra.mxu0 %v3100
        %v3188 = vpop.f32.mrf.mxu0
        %v3189 = vadd.f32 0.0, %v3188
        %3190 = vmatmul.f32.gmra.mxu0 %v3102
        %v3191 = vpop.f32.mrf.mxu0
        %v3192 = vadd.f32 0.0, %v3191
        %3193 = vmatmul.f32.gmra.mxu0 %v3104
        %v3194 = vpop.f32.mrf.mxu0
        %v3195 = vadd.f32 0.0, %v3194
        %3196 = vmatmul.f32.gmra.mxu0 %v3106
        %v3197 = vpop.f32.mrf.mxu0
        %v3198 = vadd.f32 0.0, %v3197
        %3199 = vmatmul.f32.gmra.mxu0 %v3108
        %v3200 = vpop.f32.mrf.mxu0
        %v3201 = vadd.f32 0.0, %v3200
        %3202 = vmatmul.f32.gmra.mxu0 %v3110
        %v3203 = vpop.f32.mrf.mxu0
        %v3204 = vadd.f32 0.0, %v3203
        %3205 = vmatmul.f32.gmra.mxu0 %v3112
        %v3206 = vpop.f32.mrf.mxu0
        %v3207 = vadd.f32 0.0, %v3206
        %3208 = vmatmul.f32.gmra.mxu0 %v3114
        %v3209 = vpop.f32.mrf.mxu0
        %v3210 = vadd.f32 0.0, %v3209
        %3211 = vmatmul.f32.gmra.mxu0 %v3116
        %v3212 = vpop.f32.mrf.mxu0
        %v3213 = vadd.f32 0.0, %v3212
        %3214 = vmatmul.f32.gmra.mxu0 %v3118
        %v3215 = vpop.f32.mrf.mxu0
        %v3216 = vadd.f32 0.0, %v3215
        %3217 = vmatmul.f32.gmra.mxu0 %v3120
        %v3218 = vpop.f32.mrf.mxu0
        %v3219 = vadd.f32 0.0, %v3218
        %3220 = vmatmul.f32.gmra.mxu0 %v3122
        %v3221 = vpop.f32.mrf.mxu0
        %v3222 = vadd.f32 0.0, %v3221
        %3223 = vmatmul.f32.gmra.mxu0 %v3124
        %v3224 = vpop.f32.mrf.mxu0
        %v3225 = vadd.f32 0.0, %v3224
        %3226 = vmatmul.f32.gmra.mxu0 %v3126
        %v3227 = vpop.f32.mrf.mxu0
        %v3228 = vadd.f32 0.0, %v3227
        %3229 = vmatmul.f32.gmra.mxu0 %v3128
        %v3230 = vpop.f32.mrf.mxu0
        %v3231 = vadd.f32 0.0, %v3230
        %3232 = vmatmul.f32.gmra.mxu0 %v3130
        %v3233 = vpop.f32.mrf.mxu0
        %v3234 = vadd.f32 0.0, %v3233
        %3235 = vmatmul.f32.gmra.mxu0 %v3132
        %v3236 = vpop.f32.mrf.mxu0
        %v3237 = vadd.f32 0.0, %v3236
        %3238 = vmatmul.f32.gmra.mxu0 %v3134
        %v3239 = vpop.f32.mrf.mxu0
        %v3240 = vadd.f32 0.0, %v3239
        %3241 = vmatmul.f32.gmra.mxu0 %v3136
        %v3242 = vpop.f32.mrf.mxu0
        %v3243 = vadd.f32 0.0, %v3242
        %3244 = vmatmul.f32.gmra.mxu0 %v3138
        %v3245 = vpop.f32.mrf.mxu0
        %v3246 = vadd.f32 0.0, %v3245
        %3247 = vmatmul.f32.gmra.mxu0 %v3140
        %v3248 = vpop.f32.mrf.mxu0
        %v3249 = vadd.f32 0.0, %v3248
        %3250 = vmatmul.f32.gmra.mxu0 %v3142
        %v3251 = vpop.f32.mrf.mxu0
        %v3252 = vadd.f32 0.0, %v3251
        %3253 = vmatmul.f32.gmra.mxu0 %v3144
        %v3254 = vpop.f32.mrf.mxu0
        %v3255 = vadd.f32 0.0, %v3254
        %3256 = vmatmul.f32.gmra.mxu0 %v3146
        %v3257 = vpop.f32.mrf.mxu0
        %v3258 = vadd.f32 0.0, %v3257
        %3259 = vmatmul.f32.gmra.mxu0 %v3148
        %v3260 = vpop.f32.mrf.mxu0
        %v3261 = vadd.f32 0.0, %v3260
        %3262 = vdwg.mxu0
        %v3263 = vadd.f32 %v2895, %v3168
        %v3264 = vadd.f32 %v2898, %v3171
        %v3265 = vadd.f32 %v2901, %v3174
        %v3266 = vadd.f32 %v2904, %v3177
        %v3267 = vadd.f32 %v2907, %v3180
        %v3268 = vadd.f32 %v2910, %v3183
        %v3269 = vadd.f32 %v2913, %v3186
        %v3270 = vadd.f32 %v2916, %v3189
        %v3271 = vadd.f32 %v2919, %v3192
        %v3272 = vadd.f32 %v2922, %v3195
        %v3273 = vadd.f32 %v2925, %v3198
        %v3274 = vadd.f32 %v2928, %v3201
        %v3275 = vadd.f32 %v2931, %v3204
        %v3276 = vadd.f32 %v2934, %v3207
        %v3277 = vadd.f32 %v2937, %v3210
        %v3278 = vadd.f32 %v2940, %v3213
        %v3279 = vadd.f32 %v2943, %v3216
        %v3280 = vadd.f32 %v2946, %v3219
        %v3281 = vadd.f32 %v2949, %v3222
        %v3282 = vadd.f32 %v2952, %v3225
        %v3283 = vadd.f32 %v2955, %v3228
        %v3284 = vadd.f32 %v2958, %v3231
        %v3285 = vadd.f32 %v2961, %v3234
        %v3286 = vadd.f32 %v2964, %v3237
        %v3287 = vadd.f32 %v2967, %v3240
        %v3288 = vadd.f32 %v2970, %v3243
        %v3289 = vadd.f32 %v2973, %v3246
        %v3290 = vadd.f32 %v2976, %v3249
        %v3291 = vadd.f32 %v2979, %v3252
        %v3292 = vadd.f32 %v2982, %v3255
        %v3293 = vadd.f32 %v2985, %v3258
        %v3294 = vadd.f32 %v2988, %v3261
        %3295 = vmatpush.msra.mxu0 0.0
        %3296 = vmatpush.msra.mxu0 0.0
        %3297 = vmatpush.msra.mxu0 0.0
        %3298 = vmatpush.msra.mxu0 0.0
        %3299 = vmatpush.msra.mxu0 0.0
        %3300 = vmatpush.msra.mxu0 0.0
        %3301 = vmatpush.msra.mxu0 0.0
        %3302 = vmatpush.msra.mxu0 0.0
        %3303 = vmatpush.msra.mxu0 0.0
        %3304 = vmatpush.msra.mxu0 0.0
        %3305 = vmatpush.msra.mxu0 0.0
        %3306 = vmatpush.msra.mxu0 0.0
        %3307 = vmatpush.msra.mxu0 0.0
        %3308 = vmatpush.msra.mxu0 0.0
        %3309 = vmatpush.msra.mxu0 0.0
        %3310 = vmatpush.msra.mxu0 %v1829
        %3311 = vmatmul.f32.gmra.mxu0 %v1092
        %v3312 = vpop.f32.mrf.mxu0
        %v3313 = vadd.f32 0.0, %v3312
        %3314 = vmatmul.f32.gmra.mxu0 %v1095
        %v3315 = vpop.f32.mrf.mxu0
        %v3316 = vadd.f32 0.0, %v3315
        %3317 = vmatmul.f32.gmra.mxu0 %v1098
        %v3318 = vpop.f32.mrf.mxu0
        %v3319 = vadd.f32 0.0, %v3318
        %3320 = vmatmul.f32.gmra.mxu0 %v1101
        %v3321 = vpop.f32.mrf.mxu0
        %v3322 = vadd.f32 0.0, %v3321
        %3323 = vmatmul.f32.gmra.mxu0 %v1104
        %v3324 = vpop.f32.mrf.mxu0
        %v3325 = vadd.f32 0.0, %v3324
        %3326 = vmatmul.f32.gmra.mxu0 %v1107
        %v3327 = vpop.f32.mrf.mxu0
        %v3328 = vadd.f32 0.0, %v3327
        %3329 = vmatmul.f32.gmra.mxu0 %v1110
        %v3330 = vpop.f32.mrf.mxu0
        %v3331 = vadd.f32 0.0, %v3330
        %3332 = vmatmul.f32.gmra.mxu0 %v1113
        %v3333 = vpop.f32.mrf.mxu0
        %v3334 = vadd.f32 0.0, %v3333
        %3335 = vmatmul.f32.gmra.mxu0 %v1116
        %v3336 = vpop.f32.mrf.mxu0
        %v3337 = vadd.f32 0.0, %v3336
        %3338 = vmatmul.f32.gmra.mxu0 %v1119
        %v3339 = vpop.f32.mrf.mxu0
        %v3340 = vadd.f32 0.0, %v3339
        %3341 = vmatmul.f32.gmra.mxu0 %v1122
        %v3342 = vpop.f32.mrf.mxu0
        %v3343 = vadd.f32 0.0, %v3342
        %3344 = vmatmul.f32.gmra.mxu0 %v1125
        %v3345 = vpop.f32.mrf.mxu0
        %v3346 = vadd.f32 0.0, %v3345
        %3347 = vmatmul.f32.gmra.mxu0 %v1128
        %v3348 = vpop.f32.mrf.mxu0
        %v3349 = vadd.f32 0.0, %v3348
        %3350 = vmatmul.f32.gmra.mxu0 %v1131
        %v3351 = vpop.f32.mrf.mxu0
        %v3352 = vadd.f32 0.0, %v3351
        %3353 = vmatmul.f32.gmra.mxu0 %v1134
        %v3354 = vpop.f32.mrf.mxu0
        %v3355 = vadd.f32 0.0, %v3354
        %3356 = vmatmul.f32.gmra.mxu0 %v1137
        %v3357 = vpop.f32.mrf.mxu0
        %v3358 = vadd.f32 0.0, %v3357
        %3359 = vmatmul.f32.gmra.mxu0 %v1140
        %v3360 = vpop.f32.mrf.mxu0
        %v3361 = vadd.f32 0.0, %v3360
        %3362 = vmatmul.f32.gmra.mxu0 %v1143
        %v3363 = vpop.f32.mrf.mxu0
        %v3364 = vadd.f32 0.0, %v3363
        %3365 = vmatmul.f32.gmra.mxu0 %v1146
        %v3366 = vpop.f32.mrf.mxu0
        %v3367 = vadd.f32 0.0, %v3366
        %3368 = vmatmul.f32.gmra.mxu0 %v1149
        %v3369 = vpop.f32.mrf.mxu0
        %v3370 = vadd.f32 0.0, %v3369
        %3371 = vmatmul.f32.gmra.mxu0 %v1152
        %v3372 = vpop.f32.mrf.mxu0
        %v3373 = vadd.f32 0.0, %v3372
        %3374 = vmatmul.f32.gmra.mxu0 %v1155
        %v3375 = vpop.f32.mrf.mxu0
        %v3376 = vadd.f32 0.0, %v3375
        %3377 = vmatmul.f32.gmra.mxu0 %v1158
        %v3378 = vpop.f32.mrf.mxu0
        %v3379 = vadd.f32 0.0, %v3378
        %3380 = vmatmul.f32.gmra.mxu0 %v1161
        %v3381 = vpop.f32.mrf.mxu0
        %v3382 = vadd.f32 0.0, %v3381
        %3383 = vmatmul.f32.gmra.mxu0 %v1164
        %v3384 = vpop.f32.mrf.mxu0
        %v3385 = vadd.f32 0.0, %v3384
        %3386 = vmatmul.f32.gmra.mxu0 %v1167
        %v3387 = vpop.f32.mrf.mxu0
        %v3388 = vadd.f32 0.0, %v3387
        %3389 = vmatmul.f32.gmra.mxu0 %v1170
        %v3390 = vpop.f32.mrf.mxu0
        %v3391 = vadd.f32 0.0, %v3390
        %3392 = vmatmul.f32.gmra.mxu0 %v1173
        %v3393 = vpop.f32.mrf.mxu0
        %v3394 = vadd.f32 0.0, %v3393
        %3395 = vmatmul.f32.gmra.mxu0 %v1176
        %v3396 = vpop.f32.mrf.mxu0
        %v3397 = vadd.f32 0.0, %v3396
        %3398 = vmatmul.f32.gmra.mxu0 %v1179
        %v3399 = vpop.f32.mrf.mxu0
        %v3400 = vadd.f32 0.0, %v3399
        %3401 = vmatmul.f32.gmra.mxu0 %v1979
        %v3402 = vpop.f32.mrf.mxu0
        %v3403 = vadd.f32 0.0, %v3402
        %3404 = vmatmul.f32.gmra.mxu0 %v1982
        %v3405 = vpop.f32.mrf.mxu0
        %v3406 = vadd.f32 0.0, %v3405
        %3407 = vdwg.mxu0
        %v3408 = vadd.f32 %v3263, %v3313
        %v3409 = vadd.f32 %v3264, %v3316
        %v3410 = vadd.f32 %v3265, %v3319
        %v3411 = vadd.f32 %v3266, %v3322
        %v3412 = vadd.f32 %v3267, %v3325
        %v3413 = vadd.f32 %v3268, %v3328
        %v3414 = vadd.f32 %v3269, %v3331
        %v3415 = vadd.f32 %v3270, %v3334
        %v3416 = vadd.f32 %v3271, %v3337
        %v3417 = vadd.f32 %v3272, %v3340
        %v3418 = vadd.f32 %v3273, %v3343
        %v3419 = vadd.f32 %v3274, %v3346
        %v3420 = vadd.f32 %v3275, %v3349
        %v3421 = vadd.f32 %v3276, %v3352
        %v3422 = vadd.f32 %v3277, %v3355
        %v3423 = vadd.f32 %v3278, %v3358
        %v3424 = vadd.f32 %v3279, %v3361
        %v3425 = vadd.f32 %v3280, %v3364
        %v3426 = vadd.f32 %v3281, %v3367
        %v3427 = vadd.f32 %v3282, %v3370
        %v3428 = vadd.f32 %v3283, %v3373
        %v3429 = vadd.f32 %v3284, %v3376
        %v3430 = vadd.f32 %v3285, %v3379
        %v3431 = vadd.f32 %v3286, %v3382
        %v3432 = vadd.f32 %v3287, %v3385
        %v3433 = vadd.f32 %v3288, %v3388
        %v3434 = vadd.f32 %v3289, %v3391
        %v3435 = vadd.f32 %v3290, %v3394
        %v3436 = vadd.f32 %v3291, %v3397
        %v3437 = vadd.f32 %v3292, %v3400
        %v3438 = vadd.f32 %v3293, %v3403
        %v3439 = vadd.f32 %v3294, %v3406
        %3440 = vmatpush.msra.mxu0 0.0
        %3441 = vmatpush.msra.mxu0 0.0
        %3442 = vmatpush.msra.mxu0 0.0
        %3443 = vmatpush.msra.mxu0 0.0
        %3444 = vmatpush.msra.mxu0 0.0
        %3445 = vmatpush.msra.mxu0 0.0
        %3446 = vmatpush.msra.mxu0 0.0
        %3447 = vmatpush.msra.mxu0 0.0
        %3448 = vmatpush.msra.mxu0 0.0
        %3449 = vmatpush.msra.mxu0 0.0
        %3450 = vmatpush.msra.mxu0 0.0
        %3451 = vmatpush.msra.mxu0 0.0
        %3452 = vmatpush.msra.mxu0 0.0
        %3453 = vmatpush.msra.mxu0 0.0
        %3454 = vmatpush.msra.mxu0 0.0
        %3455 = vmatpush.msra.mxu0 %v1985
        %3456 = vmatmul.f32.gmra.mxu0 %v1612
        %v3457 = vpop.f32.mrf.mxu0
        %v3458 = vadd.f32 0.0, %v3457
        %3459 = vmatmul.f32.gmra.mxu0 %v1614
        %v3460 = vpop.f32.mrf.mxu0
        %v3461 = vadd.f32 0.0, %v3460
        %3462 = vmatmul.f32.gmra.mxu0 %v1616
        %v3463 = vpop.f32.mrf.mxu0
        %v3464 = vadd.f32 0.0, %v3463
        %3465 = vmatmul.f32.gmra.mxu0 %v1618
        %v3466 = vpop.f32.mrf.mxu0
        %v3467 = vadd.f32 0.0, %v3466
        %3468 = vmatmul.f32.gmra.mxu0 %v1620
        %v3469 = vpop.f32.mrf.mxu0
        %v3470 = vadd.f32 0.0, %v3469
        %3471 = vmatmul.f32.gmra.mxu0 %v1622
        %v3472 = vpop.f32.mrf.mxu0
        %v3473 = vadd.f32 0.0, %v3472
        %3474 = vmatmul.f32.gmra.mxu0 %v1624
        %v3475 = vpop.f32.mrf.mxu0
        %v3476 = vadd.f32 0.0, %v3475
        %3477 = vmatmul.f32.gmra.mxu0 %v1626
        %v3478 = vpop.f32.mrf.mxu0
        %v3479 = vadd.f32 0.0, %v3478
        %3480 = vmatmul.f32.gmra.mxu0 %v1628
        %v3481 = vpop.f32.mrf.mxu0
        %v3482 = vadd.f32 0.0, %v3481
        %3483 = vmatmul.f32.gmra.mxu0 %v1630
        %v3484 = vpop.f32.mrf.mxu0
        %v3485 = vadd.f32 0.0, %v3484
        %3486 = vmatmul.f32.gmra.mxu0 %v1632
        %v3487 = vpop.f32.mrf.mxu0
        %v3488 = vadd.f32 0.0, %v3487
        %3489 = vmatmul.f32.gmra.mxu0 %v1634
        %v3490 = vpop.f32.mrf.mxu0
        %v3491 = vadd.f32 0.0, %v3490
        %3492 = vmatmul.f32.gmra.mxu0 %v1636
        %v3493 = vpop.f32.mrf.mxu0
        %v3494 = vadd.f32 0.0, %v3493
        %3495 = vmatmul.f32.gmra.mxu0 %v1638
        %v3496 = vpop.f32.mrf.mxu0
        %v3497 = vadd.f32 0.0, %v3496
        %3498 = vmatmul.f32.gmra.mxu0 %v1640
        %v3499 = vpop.f32.mrf.mxu0
        %v3500 = vadd.f32 0.0, %v3499
        %3501 = vmatmul.f32.gmra.mxu0 %v1642
        %v3502 = vpop.f32.mrf.mxu0
        %v3503 = vadd.f32 0.0, %v3502
        %3504 = vmatmul.f32.gmra.mxu0 %v1644
        %v3505 = vpop.f32.mrf.mxu0
        %v3506 = vadd.f32 0.0, %v3505
        %3507 = vmatmul.f32.gmra.mxu0 %v1646
        %v3508 = vpop.f32.mrf.mxu0
        %v3509 = vadd.f32 0.0, %v3508
        %3510 = vmatmul.f32.gmra.mxu0 %v1648
        %v3511 = vpop.f32.mrf.mxu0
        %v3512 = vadd.f32 0.0, %v3511
        %3513 = vmatmul.f32.gmra.mxu0 %v1650
        %v3514 = vpop.f32.mrf.mxu0
        %v3515 = vadd.f32 0.0, %v3514
        %3516 = vmatmul.f32.gmra.mxu0 %v1652
        %v3517 = vpop.f32.mrf.mxu0
        %v3518 = vadd.f32 0.0, %v3517
        %3519 = vmatmul.f32.gmra.mxu0 %v1654
        %v3520 = vpop.f32.mrf.mxu0
        %v3521 = vadd.f32 0.0, %v3520
        %3522 = vmatmul.f32.gmra.mxu0 %v1656
        %v3523 = vpop.f32.mrf.mxu0
        %v3524 = vadd.f32 0.0, %v3523
        %3525 = vmatmul.f32.gmra.mxu0 %v1658
        %v3526 = vpop.f32.mrf.mxu0
        %v3527 = vadd.f32 0.0, %v3526
        %3528 = vmatmul.f32.gmra.mxu0 %v1660
        %v3529 = vpop.f32.mrf.mxu0
        %v3530 = vadd.f32 0.0, %v3529
        %3531 = vmatmul.f32.gmra.mxu0 %v1662
        %v3532 = vpop.f32.mrf.mxu0
        %v3533 = vadd.f32 0.0, %v3532
        %3534 = vmatmul.f32.gmra.mxu0 %v1664
        %v3535 = vpop.f32.mrf.mxu0
        %v3536 = vadd.f32 0.0, %v3535
        %3537 = vmatmul.f32.gmra.mxu0 %v1666
        %v3538 = vpop.f32.mrf.mxu0
        %v3539 = vadd.f32 0.0, %v3538
        %3540 = vmatmul.f32.gmra.mxu0 %v1668
        %v3541 = vpop.f32.mrf.mxu0
        %v3542 = vadd.f32 0.0, %v3541
        %3543 = vmatmul.f32.gmra.mxu0 %v1670
        %v3544 = vpop.f32.mrf.mxu0
        %v3545 = vadd.f32 0.0, %v3544
        %3546 = vmatmul.f32.gmra.mxu0 %v2140
        %v3547 = vpop.f32.mrf.mxu0
        %v3548 = vadd.f32 0.0, %v3547
        %3549 = vmatmul.f32.gmra.mxu0 %v2142
        %v3550 = vpop.f32.mrf.mxu0
        %v3551 = vadd.f32 0.0, %v3550
        %3552 = vdwg.mxu0
        %v3553 = vadd.f32 %v3408, %v3458
        %v3554 = vadd.f32 %v3409, %v3461
        %v3555 = vadd.f32 %v3410, %v3464
        %v3556 = vadd.f32 %v3411, %v3467
        %v3557 = vadd.f32 %v3412, %v3470
        %v3558 = vadd.f32 %v3413, %v3473
        %v3559 = vadd.f32 %v3414, %v3476
        %v3560 = vadd.f32 %v3415, %v3479
        %v3561 = vadd.f32 %v3416, %v3482
        %v3562 = vadd.f32 %v3417, %v3485
        %v3563 = vadd.f32 %v3418, %v3488
        %v3564 = vadd.f32 %v3419, %v3491
        %v3565 = vadd.f32 %v3420, %v3494
        %v3566 = vadd.f32 %v3421, %v3497
        %v3567 = vadd.f32 %v3422, %v3500
        %v3568 = vadd.f32 %v3423, %v3503
        %v3569 = vadd.f32 %v3424, %v3506
        %v3570 = vadd.f32 %v3425, %v3509
        %v3571 = vadd.f32 %v3426, %v3512
        %v3572 = vadd.f32 %v3427, %v3515
        %v3573 = vadd.f32 %v3428, %v3518
        %v3574 = vadd.f32 %v3429, %v3521
        %v3575 = vadd.f32 %v3430, %v3524
        %v3576 = vadd.f32 %v3431, %v3527
        %v3577 = vadd.f32 %v3432, %v3530
        %v3578 = vadd.f32 %v3433, %v3533
        %v3579 = vadd.f32 %v3434, %v3536
        %v3580 = vadd.f32 %v3435, %v3539
        %v3581 = vadd.f32 %v3436, %v3542
        %v3582 = vadd.f32 %v3437, %v3545
        %v3583 = vadd.f32 %v3438, %v3548
        %v3584 = vadd.f32 %v3439, %v3551
        %v3586 = vrot.slane %v1018, 1
        %v3587 = vrot.slane %v1019, 1
        %v3588 = vsel %vm512, %v3586, %v3587
        %v3589 = vrot.slane %v1020, 1
        %v3590 = vsel %vm512, %v3587, %v3589
        %v3591 = vsel %vm1084, %v3588, 0
        %v3593 = vsel %vm1084, %v3590, 0
        %3595 = vmatpush.msra.mxu0 0.0
        %3596 = vmatpush.msra.mxu0 0.0
        %3597 = vmatpush.msra.mxu0 0.0
        %3598 = vmatpush.msra.mxu0 0.0
        %3599 = vmatpush.msra.mxu0 0.0
        %3600 = vmatpush.msra.mxu0 0.0
        %3601 = vmatpush.msra.mxu0 0.0
        %3602 = vmatpush.msra.mxu0 0.0
        %3603 = vmatpush.msra.mxu0 0.0
        %3604 = vmatpush.msra.mxu0 0.0
        %3605 = vmatpush.msra.mxu0 0.0
        %3606 = vmatpush.msra.mxu0 0.0
        %3607 = vmatpush.msra.mxu0 0.0
        %3608 = vmatpush.msra.mxu0 0.0
        %3609 = vmatpush.msra.mxu0 0.0
        %3610 = vmatpush.msra.mxu0 %v2145
        %3611 = vmatmul.f32.gmra.mxu0 %v3090
        %v3612 = vpop.f32.mrf.mxu0
        %v3613 = vadd.f32 0.0, %v3612
        %3614 = vmatmul.f32.gmra.mxu0 %v3092
        %v3615 = vpop.f32.mrf.mxu0
        %v3616 = vadd.f32 0.0, %v3615
        %3617 = vmatmul.f32.gmra.mxu0 %v3094
        %v3618 = vpop.f32.mrf.mxu0
        %v3619 = vadd.f32 0.0, %v3618
        %3620 = vmatmul.f32.gmra.mxu0 %v3096
        %v3621 = vpop.f32.mrf.mxu0
        %v3622 = vadd.f32 0.0, %v3621
        %3623 = vmatmul.f32.gmra.mxu0 %v3098
        %v3624 = vpop.f32.mrf.mxu0
        %v3625 = vadd.f32 0.0, %v3624
        %3626 = vmatmul.f32.gmra.mxu0 %v3100
        %v3627 = vpop.f32.mrf.mxu0
        %v3628 = vadd.f32 0.0, %v3627
        %3629 = vmatmul.f32.gmra.mxu0 %v3102
        %v3630 = vpop.f32.mrf.mxu0
        %v3631 = vadd.f32 0.0, %v3630
        %3632 = vmatmul.f32.gmra.mxu0 %v3104
        %v3633 = vpop.f32.mrf.mxu0
        %v3634 = vadd.f32 0.0, %v3633
        %3635 = vmatmul.f32.gmra.mxu0 %v3106
        %v3636 = vpop.f32.mrf.mxu0
        %v3637 = vadd.f32 0.0, %v3636
        %3638 = vmatmul.f32.gmra.mxu0 %v3108
        %v3639 = vpop.f32.mrf.mxu0
        %v3640 = vadd.f32 0.0, %v3639
        %3641 = vmatmul.f32.gmra.mxu0 %v3110
        %v3642 = vpop.f32.mrf.mxu0
        %v3643 = vadd.f32 0.0, %v3642
        %3644 = vmatmul.f32.gmra.mxu0 %v3112
        %v3645 = vpop.f32.mrf.mxu0
        %v3646 = vadd.f32 0.0, %v3645
        %3647 = vmatmul.f32.gmra.mxu0 %v3114
        %v3648 = vpop.f32.mrf.mxu0
        %v3649 = vadd.f32 0.0, %v3648
        %3650 = vmatmul.f32.gmra.mxu0 %v3116
        %v3651 = vpop.f32.mrf.mxu0
        %v3652 = vadd.f32 0.0, %v3651
        %3653 = vmatmul.f32.gmra.mxu0 %v3118
        %v3654 = vpop.f32.mrf.mxu0
        %v3655 = vadd.f32 0.0, %v3654
        %3656 = vmatmul.f32.gmra.mxu0 %v3120
        %v3657 = vpop.f32.mrf.mxu0
        %v3658 = vadd.f32 0.0, %v3657
        %3659 = vmatmul.f32.gmra.mxu0 %v3122
        %v3660 = vpop.f32.mrf.mxu0
        %v3661 = vadd.f32 0.0, %v3660
        %3662 = vmatmul.f32.gmra.mxu0 %v3124
        %v3663 = vpop.f32.mrf.mxu0
        %v3664 = vadd.f32 0.0, %v3663
        %3665 = vmatmul.f32.gmra.mxu0 %v3126
        %v3666 = vpop.f32.mrf.mxu0
        %v3667 = vadd.f32 0.0, %v3666
        %3668 = vmatmul.f32.gmra.mxu0 %v3128
        %v3669 = vpop.f32.mrf.mxu0
        %v3670 = vadd.f32 0.0, %v3669
        %3671 = vmatmul.f32.gmra.mxu0 %v3130
        %v3672 = vpop.f32.mrf.mxu0
        %v3673 = vadd.f32 0.0, %v3672
        %3674 = vmatmul.f32.gmra.mxu0 %v3132
        %v3675 = vpop.f32.mrf.mxu0
        %v3676 = vadd.f32 0.0, %v3675
        %3677 = vmatmul.f32.gmra.mxu0 %v3134
        %v3678 = vpop.f32.mrf.mxu0
        %v3679 = vadd.f32 0.0, %v3678
        %3680 = vmatmul.f32.gmra.mxu0 %v3136
        %v3681 = vpop.f32.mrf.mxu0
        %v3682 = vadd.f32 0.0, %v3681
        %3683 = vmatmul.f32.gmra.mxu0 %v3138
        %v3684 = vpop.f32.mrf.mxu0
        %v3685 = vadd.f32 0.0, %v3684
        %3686 = vmatmul.f32.gmra.mxu0 %v3140
        %v3687 = vpop.f32.mrf.mxu0
        %v3688 = vadd.f32 0.0, %v3687
        %3689 = vmatmul.f32.gmra.mxu0 %v3142
        %v3690 = vpop.f32.mrf.mxu0
        %v3691 = vadd.f32 0.0, %v3690
        %3692 = vmatmul.f32.gmra.mxu0 %v3144
        %v3693 = vpop.f32.mrf.mxu0
        %v3694 = vadd.f32 0.0, %v3693
        %3695 = vmatmul.f32.gmra.mxu0 %v3146
        %v3696 = vpop.f32.mrf.mxu0
        %v3697 = vadd.f32 0.0, %v3696
        %3698 = vmatmul.f32.gmra.mxu0 %v3148
        %v3699 = vpop.f32.mrf.mxu0
        %v3700 = vadd.f32 0.0, %v3699
        %3701 = vmatmul.f32.gmra.mxu0 %v3591
        %v3702 = vpop.f32.mrf.mxu0
        %v3703 = vadd.f32 0.0, %v3702
        %3704 = vmatmul.f32.gmra.mxu0 %v3593
        %v3705 = vpop.f32.mrf.mxu0
        %v3706 = vadd.f32 0.0, %v3705
        %3707 = vdwg.mxu0
        %v3708 = vadd.f32 %v3553, %v3613
        %v3709 = vadd.f32 %v3554, %v3616
        %v3710 = vadd.f32 %v3555, %v3619
        %v3711 = vadd.f32 %v3556, %v3622
        %v3712 = vadd.f32 %v3557, %v3625
        %v3713 = vadd.f32 %v3558, %v3628
        %v3714 = vadd.f32 %v3559, %v3631
        %v3715 = vadd.f32 %v3560, %v3634
        %v3716 = vadd.f32 %v3561, %v3637
        %v3717 = vadd.f32 %v3562, %v3640
        %v3718 = vadd.f32 %v3563, %v3643
        %v3719 = vadd.f32 %v3564, %v3646
        %v3720 = vadd.f32 %v3565, %v3649
        %v3721 = vadd.f32 %v3566, %v3652
        %v3722 = vadd.f32 %v3567, %v3655
        %v3723 = vadd.f32 %v3568, %v3658
        %v3724 = vadd.f32 %v3569, %v3661
        %v3725 = vadd.f32 %v3570, %v3664
        %v3726 = vadd.f32 %v3571, %v3667
        %v3727 = vadd.f32 %v3572, %v3670
        %v3728 = vadd.f32 %v3573, %v3673
        %v3729 = vadd.f32 %v3574, %v3676
        %v3730 = vadd.f32 %v3575, %v3679
        %v3731 = vadd.f32 %v3576, %v3682
        %v3732 = vadd.f32 %v3577, %v3685
        %v3733 = vadd.f32 %v3578, %v3688
        %v3734 = vadd.f32 %v3579, %v3691
        %v3735 = vadd.f32 %v3580, %v3694
        %v3736 = vadd.f32 %v3581, %v3697
        %v3737 = vadd.f32 %v3582, %v3700
        %v3738 = vadd.f32 %v3583, %v3703
        %v3739 = vadd.f32 %v3584, %v3706
        %3740 = vmatpush.msra.mxu0 0.0
        %3741 = vmatpush.msra.mxu0 0.0
        %3742 = vmatpush.msra.mxu0 0.0
        %3743 = vmatpush.msra.mxu0 0.0
        %3744 = vmatpush.msra.mxu0 0.0
        %3745 = vmatpush.msra.mxu0 0.0
        %3746 = vmatpush.msra.mxu0 0.0
        %3747 = vmatpush.msra.mxu0 0.0
        %3748 = vmatpush.msra.mxu0 0.0
        %3749 = vmatpush.msra.mxu0 0.0
        %3750 = vmatpush.msra.mxu0 0.0
        %3751 = vmatpush.msra.mxu0 0.0
        %3752 = vmatpush.msra.mxu0 0.0
        %3753 = vmatpush.msra.mxu0 0.0
        %3754 = vmatpush.msra.mxu0 0.0
        %3755 = vmatpush.msra.mxu0 %v2301
        %3756 = vmatmul.f32.gmra.mxu0 %v1098
        %v3757 = vpop.f32.mrf.mxu0
        %v3758 = vadd.f32 0.0, %v3757
        %3759 = vmatmul.f32.gmra.mxu0 %v1101
        %v3760 = vpop.f32.mrf.mxu0
        %v3761 = vadd.f32 0.0, %v3760
        %3762 = vmatmul.f32.gmra.mxu0 %v1104
        %v3763 = vpop.f32.mrf.mxu0
        %v3764 = vadd.f32 0.0, %v3763
        %3765 = vmatmul.f32.gmra.mxu0 %v1107
        %v3766 = vpop.f32.mrf.mxu0
        %v3767 = vadd.f32 0.0, %v3766
        %3768 = vmatmul.f32.gmra.mxu0 %v1110
        %v3769 = vpop.f32.mrf.mxu0
        %v3770 = vadd.f32 0.0, %v3769
        %3771 = vmatmul.f32.gmra.mxu0 %v1113
        %v3772 = vpop.f32.mrf.mxu0
        %v3773 = vadd.f32 0.0, %v3772
        %3774 = vmatmul.f32.gmra.mxu0 %v1116
        %v3775 = vpop.f32.mrf.mxu0
        %v3776 = vadd.f32 0.0, %v3775
        %3777 = vmatmul.f32.gmra.mxu0 %v1119
        %v3778 = vpop.f32.mrf.mxu0
        %v3779 = vadd.f32 0.0, %v3778
        %3780 = vmatmul.f32.gmra.mxu0 %v1122
        %v3781 = vpop.f32.mrf.mxu0
        %v3782 = vadd.f32 0.0, %v3781
        %3783 = vmatmul.f32.gmra.mxu0 %v1125
        %v3784 = vpop.f32.mrf.mxu0
        %v3785 = vadd.f32 0.0, %v3784
        %3786 = vmatmul.f32.gmra.mxu0 %v1128
        %v3787 = vpop.f32.mrf.mxu0
        %v3788 = vadd.f32 0.0, %v3787
        %3789 = vmatmul.f32.gmra.mxu0 %v1131
        %v3790 = vpop.f32.mrf.mxu0
        %v3791 = vadd.f32 0.0, %v3790
        %3792 = vmatmul.f32.gmra.mxu0 %v1134
        %v3793 = vpop.f32.mrf.mxu0
        %v3794 = vadd.f32 0.0, %v3793
        %3795 = vmatmul.f32.gmra.mxu0 %v1137
        %v3796 = vpop.f32.mrf.mxu0
        %v3797 = vadd.f32 0.0, %v3796
        %3798 = vmatmul.f32.gmra.mxu0 %v1140
        %v3799 = vpop.f32.mrf.mxu0
        %v3800 = vadd.f32 0.0, %v3799
        %3801 = vmatmul.f32.gmra.mxu0 %v1143
        %v3802 = vpop.f32.mrf.mxu0
        %v3803 = vadd.f32 0.0, %v3802
        %3804 = vmatmul.f32.gmra.mxu0 %v1146
        %v3805 = vpop.f32.mrf.mxu0
        %v3806 = vadd.f32 0.0, %v3805
        %3807 = vmatmul.f32.gmra.mxu0 %v1149
        %v3808 = vpop.f32.mrf.mxu0
        %v3809 = vadd.f32 0.0, %v3808
        %3810 = vmatmul.f32.gmra.mxu0 %v1152
        %v3811 = vpop.f32.mrf.mxu0
        %v3812 = vadd.f32 0.0, %v3811
        %3813 = vmatmul.f32.gmra.mxu0 %v1155
        %v3814 = vpop.f32.mrf.mxu0
        %v3815 = vadd.f32 0.0, %v3814
        %3816 = vmatmul.f32.gmra.mxu0 %v1158
        %v3817 = vpop.f32.mrf.mxu0
        %v3818 = vadd.f32 0.0, %v3817
        %3819 = vmatmul.f32.gmra.mxu0 %v1161
        %v3820 = vpop.f32.mrf.mxu0
        %v3821 = vadd.f32 0.0, %v3820
        %3822 = vmatmul.f32.gmra.mxu0 %v1164
        %v3823 = vpop.f32.mrf.mxu0
        %v3824 = vadd.f32 0.0, %v3823
        %3825 = vmatmul.f32.gmra.mxu0 %v1167
        %v3826 = vpop.f32.mrf.mxu0
        %v3827 = vadd.f32 0.0, %v3826
        %3828 = vmatmul.f32.gmra.mxu0 %v1170
        %v3829 = vpop.f32.mrf.mxu0
        %v3830 = vadd.f32 0.0, %v3829
        %3831 = vmatmul.f32.gmra.mxu0 %v1173
        %v3832 = vpop.f32.mrf.mxu0
        %v3833 = vadd.f32 0.0, %v3832
        %3834 = vmatmul.f32.gmra.mxu0 %v1176
        %v3835 = vpop.f32.mrf.mxu0
        %v3836 = vadd.f32 0.0, %v3835
        %3837 = vmatmul.f32.gmra.mxu0 %v1179
        %v3838 = vpop.f32.mrf.mxu0
        %v3839 = vadd.f32 0.0, %v3838
        %3840 = vmatmul.f32.gmra.mxu0 %v1979
        %v3841 = vpop.f32.mrf.mxu0
        %v3842 = vadd.f32 0.0, %v3841
        %3843 = vmatmul.f32.gmra.mxu0 %v1982
        %v3844 = vpop.f32.mrf.mxu0
        %v3845 = vadd.f32 0.0, %v3844
        %3846 = vmatmul.f32.gmra.mxu0 %v2451
        %v3847 = vpop.f32.mrf.mxu0
        %v3848 = vadd.f32 0.0, %v3847
        %3849 = vmatmul.f32.gmra.mxu0 %v2454
        %v3850 = vpop.f32.mrf.mxu0
        %v3851 = vadd.f32 0.0, %v3850
        %3852 = vdwg.mxu0
        %v3853 = vadd.f32 %v3708, %v3758
        %v3854 = vadd.f32 %v3709, %v3761
        %v3855 = vadd.f32 %v3710, %v3764
        %v3856 = vadd.f32 %v3711, %v3767
        %v3857 = vadd.f32 %v3712, %v3770
        %v3858 = vadd.f32 %v3713, %v3773
        %v3859 = vadd.f32 %v3714, %v3776
        %v3860 = vadd.f32 %v3715, %v3779
        %v3861 = vadd.f32 %v3716, %v3782
        %v3862 = vadd.f32 %v3717, %v3785
        %v3863 = vadd.f32 %v3718, %v3788
        %v3864 = vadd.f32 %v3719, %v3791
        %v3865 = vadd.f32 %v3720, %v3794
        %v3866 = vadd.f32 %v3721, %v3797
        %v3867 = vadd.f32 %v3722, %v3800
        %v3868 = vadd.f32 %v3723, %v3803
        %v3869 = vadd.f32 %v3724, %v3806
        %v3870 = vadd.f32 %v3725, %v3809
        %v3871 = vadd.f32 %v3726, %v3812
        %v3872 = vadd.f32 %v3727, %v3815
        %v3873 = vadd.f32 %v3728, %v3818
        %v3874 = vadd.f32 %v3729, %v3821
        %v3875 = vadd.f32 %v3730, %v3824
        %v3876 = vadd.f32 %v3731, %v3827
        %v3877 = vadd.f32 %v3732, %v3830
        %v3878 = vadd.f32 %v3733, %v3833
        %v3879 = vadd.f32 %v3734, %v3836
        %v3880 = vadd.f32 %v3735, %v3839
        %v3881 = vadd.f32 %v3736, %v3842
        %v3882 = vadd.f32 %v3737, %v3845
        %v3883 = vadd.f32 %v3738, %v3848
        %v3884 = vadd.f32 %v3739, %v3851
        %3885 = vmatpush.msra.mxu0 0.0
        %3886 = vmatpush.msra.mxu0 0.0
        %3887 = vmatpush.msra.mxu0 0.0
        %3888 = vmatpush.msra.mxu0 0.0
        %3889 = vmatpush.msra.mxu0 0.0
        %3890 = vmatpush.msra.mxu0 0.0
        %3891 = vmatpush.msra.mxu0 0.0
        %3892 = vmatpush.msra.mxu0 0.0
        %3893 = vmatpush.msra.mxu0 0.0
        %3894 = vmatpush.msra.mxu0 0.0
        %3895 = vmatpush.msra.mxu0 0.0
        %3896 = vmatpush.msra.mxu0 0.0
        %3897 = vmatpush.msra.mxu0 0.0
        %3898 = vmatpush.msra.mxu0 0.0
        %3899 = vmatpush.msra.mxu0 0.0
        %3900 = vmatpush.msra.mxu0 %v2457
        %3901 = vmatmul.f32.gmra.mxu0 %v1616
        %v3902 = vpop.f32.mrf.mxu0
        %v3903 = vadd.f32 0.0, %v3902
        %3904 = vmatmul.f32.gmra.mxu0 %v1618
        %v3905 = vpop.f32.mrf.mxu0
        %v3906 = vadd.f32 0.0, %v3905
        %3907 = vmatmul.f32.gmra.mxu0 %v1620
        %v3908 = vpop.f32.mrf.mxu0
        %v3909 = vadd.f32 0.0, %v3908
        %3910 = vmatmul.f32.gmra.mxu0 %v1622
        %v3911 = vpop.f32.mrf.mxu0
        %v3912 = vadd.f32 0.0, %v3911
        %3913 = vmatmul.f32.gmra.mxu0 %v1624
        %v3914 = vpop.f32.mrf.mxu0
        %v3915 = vadd.f32 0.0, %v3914
        %3916 = vmatmul.f32.gmra.mxu0 %v1626
        %v3917 = vpop.f32.mrf.mxu0
        %v3918 = vadd.f32 0.0, %v3917
        %3919 = vmatmul.f32.gmra.mxu0 %v1628
        %v3920 = vpop.f32.mrf.mxu0
        %v3921 = vadd.f32 0.0, %v3920
        %3922 = vmatmul.f32.gmra.mxu0 %v1630
        %v3923 = vpop.f32.mrf.mxu0
        %v3924 = vadd.f32 0.0, %v3923
        %3925 = vmatmul.f32.gmra.mxu0 %v1632
        %v3926 = vpop.f32.mrf.mxu0
        %v3927 = vadd.f32 0.0, %v3926
        %3928 = vmatmul.f32.gmra.mxu0 %v1634
        %v3929 = vpop.f32.mrf.mxu0
        %v3930 = vadd.f32 0.0, %v3929
        %3931 = vmatmul.f32.gmra.mxu0 %v1636
        %v3932 = vpop.f32.mrf.mxu0
        %v3933 = vadd.f32 0.0, %v3932
        %3934 = vmatmul.f32.gmra.mxu0 %v1638
        %v3935 = vpop.f32.mrf.mxu0
        %v3936 = vadd.f32 0.0, %v3935
        %3937 = vmatmul.f32.gmra.mxu0 %v1640
        %v3938 = vpop.f32.mrf.mxu0
        %v3939 = vadd.f32 0.0, %v3938
        %3940 = vmatmul.f32.gmra.mxu0 %v1642
        %v3941 = vpop.f32.mrf.mxu0
        %v3942 = vadd.f32 0.0, %v3941
        %3943 = vmatmul.f32.gmra.mxu0 %v1644
        %v3944 = vpop.f32.mrf.mxu0
        %v3945 = vadd.f32 0.0, %v3944
        %3946 = vmatmul.f32.gmra.mxu0 %v1646
        %v3947 = vpop.f32.mrf.mxu0
        %v3948 = vadd.f32 0.0, %v3947
        %3949 = vmatmul.f32.gmra.mxu0 %v1648
        %v3950 = vpop.f32.mrf.mxu0
        %v3951 = vadd.f32 0.0, %v3950
        %3952 = vmatmul.f32.gmra.mxu0 %v1650
        %v3953 = vpop.f32.mrf.mxu0
        %v3954 = vadd.f32 0.0, %v3953
        %3955 = vmatmul.f32.gmra.mxu0 %v1652
        %v3956 = vpop.f32.mrf.mxu0
        %v3957 = vadd.f32 0.0, %v3956
        %3958 = vmatmul.f32.gmra.mxu0 %v1654
        %v3959 = vpop.f32.mrf.mxu0
        %v3960 = vadd.f32 0.0, %v3959
        %3961 = vmatmul.f32.gmra.mxu0 %v1656
        %v3962 = vpop.f32.mrf.mxu0
        %v3963 = vadd.f32 0.0, %v3962
        %3964 = vmatmul.f32.gmra.mxu0 %v1658
        %v3965 = vpop.f32.mrf.mxu0
        %v3966 = vadd.f32 0.0, %v3965
        %3967 = vmatmul.f32.gmra.mxu0 %v1660
        %v3968 = vpop.f32.mrf.mxu0
        %v3969 = vadd.f32 0.0, %v3968
        %3970 = vmatmul.f32.gmra.mxu0 %v1662
        %v3971 = vpop.f32.mrf.mxu0
        %v3972 = vadd.f32 0.0, %v3971
        %3973 = vmatmul.f32.gmra.mxu0 %v1664
        %v3974 = vpop.f32.mrf.mxu0
        %v3975 = vadd.f32 0.0, %v3974
        %3976 = vmatmul.f32.gmra.mxu0 %v1666
        %v3977 = vpop.f32.mrf.mxu0
        %v3978 = vadd.f32 0.0, %v3977
        %3979 = vmatmul.f32.gmra.mxu0 %v1668
        %v3980 = vpop.f32.mrf.mxu0
        %v3981 = vadd.f32 0.0, %v3980
        %3982 = vmatmul.f32.gmra.mxu0 %v1670
        %v3983 = vpop.f32.mrf.mxu0
        %v3984 = vadd.f32 0.0, %v3983
        %3985 = vmatmul.f32.gmra.mxu0 %v2140
        %v3986 = vpop.f32.mrf.mxu0
        %v3987 = vadd.f32 0.0, %v3986
        %3988 = vmatmul.f32.gmra.mxu0 %v2142
        %v3989 = vpop.f32.mrf.mxu0
        %v3990 = vadd.f32 0.0, %v3989
        %3991 = vmatmul.f32.gmra.mxu0 %v2612
        %v3992 = vpop.f32.mrf.mxu0
        %v3993 = vadd.f32 0.0, %v3992
        %3994 = vmatmul.f32.gmra.mxu0 %v2614
        %v3995 = vpop.f32.mrf.mxu0
        %v3996 = vadd.f32 0.0, %v3995
        %3997 = vdwg.mxu0
        %v3998 = vadd.f32 %v3853, %v3903
        %v3999 = vadd.f32 %v3854, %v3906
        %v4000 = vadd.f32 %v3855, %v3909
        %v4001 = vadd.f32 %v3856, %v3912
        %v4002 = vadd.f32 %v3857, %v3915
        %v4003 = vadd.f32 %v3858, %v3918
        %v4004 = vadd.f32 %v3859, %v3921
        %v4005 = vadd.f32 %v3860, %v3924
        %v4006 = vadd.f32 %v3861, %v3927
        %v4007 = vadd.f32 %v3862, %v3930
        %v4008 = vadd.f32 %v3863, %v3933
        %v4009 = vadd.f32 %v3864, %v3936
        %v4010 = vadd.f32 %v3865, %v3939
        %v4011 = vadd.f32 %v3866, %v3942
        %v4012 = vadd.f32 %v3867, %v3945
        %v4013 = vadd.f32 %v3868, %v3948
        %v4014 = vadd.f32 %v3869, %v3951
        %v4015 = vadd.f32 %v3870, %v3954
        %v4016 = vadd.f32 %v3871, %v3957
        %v4017 = vadd.f32 %v3872, %v3960
        %v4018 = vadd.f32 %v3873, %v3963
        %v4019 = vadd.f32 %v3874, %v3966
        %v4020 = vadd.f32 %v3875, %v3969
        %v4021 = vadd.f32 %v3876, %v3972
        %v4022 = vadd.f32 %v3877, %v3975
        %v4023 = vadd.f32 %v3878, %v3978
        %v4024 = vadd.f32 %v3879, %v3981
        %v4025 = vadd.f32 %v3880, %v3984
        %v4026 = vadd.f32 %v3881, %v3987
        %v4027 = vadd.f32 %v3882, %v3990
        %v4028 = vadd.f32 %v3883, %v3993
        %v4029 = vadd.f32 %v3884, %v3996
        %v4031 = vrot.slane %v1021, 1
        %v4032 = vrot.slane %v1022, 1
        %v4033 = vsel %vm512, %v4031, %v4032
        %v4034 = vrot.slane %v1023, 1
        %v4035 = vsel %vm512, %v4032, %v4034
        %v4036 = vsel %vm1084, %v4033, 0
        %v4038 = vsel %vm1084, %v4035, 0
        %4040 = vmatpush.msra.mxu0 0.0
        %4041 = vmatpush.msra.mxu0 0.0
        %4042 = vmatpush.msra.mxu0 0.0
        %4043 = vmatpush.msra.mxu0 0.0
        %4044 = vmatpush.msra.mxu0 0.0
        %4045 = vmatpush.msra.mxu0 0.0
        %4046 = vmatpush.msra.mxu0 0.0
        %4047 = vmatpush.msra.mxu0 0.0
        %4048 = vmatpush.msra.mxu0 0.0
        %4049 = vmatpush.msra.mxu0 0.0
        %4050 = vmatpush.msra.mxu0 0.0
        %4051 = vmatpush.msra.mxu0 0.0
        %4052 = vmatpush.msra.mxu0 0.0
        %4053 = vmatpush.msra.mxu0 0.0
        %4054 = vmatpush.msra.mxu0 0.0
        %4055 = vmatpush.msra.mxu0 %v2617
        %4056 = vmatmul.f32.gmra.mxu0 %v3094
        %v4057 = vpop.f32.mrf.mxu0
        %v4058 = vadd.f32 0.0, %v4057
        %4059 = vmatmul.f32.gmra.mxu0 %v3096
        %v4060 = vpop.f32.mrf.mxu0
        %v4061 = vadd.f32 0.0, %v4060
        %4062 = vmatmul.f32.gmra.mxu0 %v3098
        %v4063 = vpop.f32.mrf.mxu0
        %v4064 = vadd.f32 0.0, %v4063
        %4065 = vmatmul.f32.gmra.mxu0 %v3100
        %v4066 = vpop.f32.mrf.mxu0
        %v4067 = vadd.f32 0.0, %v4066
        %4068 = vmatmul.f32.gmra.mxu0 %v3102
        %v4069 = vpop.f32.mrf.mxu0
        %v4070 = vadd.f32 0.0, %v4069
        %4071 = vmatmul.f32.gmra.mxu0 %v3104
        %v4072 = vpop.f32.mrf.mxu0
        %v4073 = vadd.f32 0.0, %v4072
        %4074 = vmatmul.f32.gmra.mxu0 %v3106
        %v4075 = vpop.f32.mrf.mxu0
        %v4076 = vadd.f32 0.0, %v4075
        %4077 = vmatmul.f32.gmra.mxu0 %v3108
        %v4078 = vpop.f32.mrf.mxu0
        %v4079 = vadd.f32 0.0, %v4078
        %4080 = vmatmul.f32.gmra.mxu0 %v3110
        %v4081 = vpop.f32.mrf.mxu0
        %v4082 = vadd.f32 0.0, %v4081
        %4083 = vmatmul.f32.gmra.mxu0 %v3112
        %v4084 = vpop.f32.mrf.mxu0
        %v4085 = vadd.f32 0.0, %v4084
        %4086 = vmatmul.f32.gmra.mxu0 %v3114
        %v4087 = vpop.f32.mrf.mxu0
        %v4088 = vadd.f32 0.0, %v4087
        %4089 = vmatmul.f32.gmra.mxu0 %v3116
        %v4090 = vpop.f32.mrf.mxu0
        %v4091 = vadd.f32 0.0, %v4090
        %4092 = vmatmul.f32.gmra.mxu0 %v3118
        %v4093 = vpop.f32.mrf.mxu0
        %v4094 = vadd.f32 0.0, %v4093
        %4095 = vmatmul.f32.gmra.mxu0 %v3120
        %v4096 = vpop.f32.mrf.mxu0
        %v4097 = vadd.f32 0.0, %v4096
        %4098 = vmatmul.f32.gmra.mxu0 %v3122
        %v4099 = vpop.f32.mrf.mxu0
        %v4100 = vadd.f32 0.0, %v4099
        %4101 = vmatmul.f32.gmra.mxu0 %v3124
        %v4102 = vpop.f32.mrf.mxu0
        %v4103 = vadd.f32 0.0, %v4102
        %4104 = vmatmul.f32.gmra.mxu0 %v3126
        %v4105 = vpop.f32.mrf.mxu0
        %v4106 = vadd.f32 0.0, %v4105
        %4107 = vmatmul.f32.gmra.mxu0 %v3128
        %v4108 = vpop.f32.mrf.mxu0
        %v4109 = vadd.f32 0.0, %v4108
        %4110 = vmatmul.f32.gmra.mxu0 %v3130
        %v4111 = vpop.f32.mrf.mxu0
        %v4112 = vadd.f32 0.0, %v4111
        %4113 = vmatmul.f32.gmra.mxu0 %v3132
        %v4114 = vpop.f32.mrf.mxu0
        %v4115 = vadd.f32 0.0, %v4114
        %4116 = vmatmul.f32.gmra.mxu0 %v3134
        %v4117 = vpop.f32.mrf.mxu0
        %v4118 = vadd.f32 0.0, %v4117
        %4119 = vmatmul.f32.gmra.mxu0 %v3136
        %v4120 = vpop.f32.mrf.mxu0
        %v4121 = vadd.f32 0.0, %v4120
        %4122 = vmatmul.f32.gmra.mxu0 %v3138
        %v4123 = vpop.f32.mrf.mxu0
        %v4124 = vadd.f32 0.0, %v4123
        %4125 = vmatmul.f32.gmra.mxu0 %v3140
        %v4126 = vpop.f32.mrf.mxu0
        %v4127 = vadd.f32 0.0, %v4126
        %4128 = vmatmul.f32.gmra.mxu0 %v3142
        %v4129 = vpop.f32.mrf.mxu0
        %v4130 = vadd.f32 0.0, %v4129
        %4131 = vmatmul.f32.gmra.mxu0 %v3144
        %v4132 = vpop.f32.mrf.mxu0
        %v4133 = vadd.f32 0.0, %v4132
        %4134 = vmatmul.f32.gmra.mxu0 %v3146
        %v4135 = vpop.f32.mrf.mxu0
        %v4136 = vadd.f32 0.0, %v4135
        %4137 = vmatmul.f32.gmra.mxu0 %v3148
        %v4138 = vpop.f32.mrf.mxu0
        %v4139 = vadd.f32 0.0, %v4138
        %4140 = vmatmul.f32.gmra.mxu0 %v3591
        %v4141 = vpop.f32.mrf.mxu0
        %v4142 = vadd.f32 0.0, %v4141
        %4143 = vmatmul.f32.gmra.mxu0 %v3593
        %v4144 = vpop.f32.mrf.mxu0
        %v4145 = vadd.f32 0.0, %v4144
        %4146 = vmatmul.f32.gmra.mxu0 %v4036
        %v4147 = vpop.f32.mrf.mxu0
        %v4148 = vadd.f32 0.0, %v4147
        %4149 = vmatmul.f32.gmra.mxu0 %v4038
        %v4150 = vpop.f32.mrf.mxu0
        %v4151 = vadd.f32 0.0, %v4150
        %4152 = vdwg.mxu0
        %v4153 = vadd.f32 %v3998, %v4058
        %v4154 = vadd.f32 %v3999, %v4061
        %v4155 = vadd.f32 %v4000, %v4064
        %v4156 = vadd.f32 %v4001, %v4067
        %v4157 = vadd.f32 %v4002, %v4070
        %v4158 = vadd.f32 %v4003, %v4073
        %v4159 = vadd.f32 %v4004, %v4076
        %v4160 = vadd.f32 %v4005, %v4079
        %v4161 = vadd.f32 %v4006, %v4082
        %v4162 = vadd.f32 %v4007, %v4085
        %v4163 = vadd.f32 %v4008, %v4088
        %v4164 = vadd.f32 %v4009, %v4091
        %v4165 = vadd.f32 %v4010, %v4094
        %v4166 = vadd.f32 %v4011, %v4097
        %v4167 = vadd.f32 %v4012, %v4100
        %v4168 = vadd.f32 %v4013, %v4103
        %v4169 = vadd.f32 %v4014, %v4106
        %v4170 = vadd.f32 %v4015, %v4109
        %v4171 = vadd.f32 %v4016, %v4112
        %v4172 = vadd.f32 %v4017, %v4115
        %v4173 = vadd.f32 %v4018, %v4118
        %v4174 = vadd.f32 %v4019, %v4121
        %v4175 = vadd.f32 %v4020, %v4124
        %v4176 = vadd.f32 %v4021, %v4127
        %v4177 = vadd.f32 %v4022, %v4130
        %v4178 = vadd.f32 %v4023, %v4133
        %v4179 = vadd.f32 %v4024, %v4136
        %v4180 = vadd.f32 %v4025, %v4139
        %v4181 = vadd.f32 %v4026, %v4142
        %v4182 = vadd.f32 %v4027, %v4145
        %v4183 = vadd.f32 %v4028, %v4148
        %v4184 = vadd.f32 %v4029, %v4151
        %p4185 = scmp.eq.s32.totalorder %s19, 0
        %p4186 = scmp.eq.s32.totalorder %s20, 0
        %p4187 = pnand %p4185, %p4186
        %p4188 = pneg %p4187
        // Predicated region
        $region29: #{psp_upsample_forward.2} parent=27 // pred_check
          _
        $region30: #{psp_upsample_forward.2} parent=27 // pred_check_branch
          %4190 = sbr.rel (%p4187) target = $region32
        $region31: #{psp_upsample_forward.2} parent=27 // pred_region
          %4191 = vst [vmem:[#allocation2] sm:$0x3] 0.0
        $region32: #{psp_upsample_forward.2} parent=27 // pred_fallthru
          _
        %v4192 = vld [vmem:[#allocation2] sm:$0x1]
        %v4193 = vadd.f32 %v2732, %v2733
        %v4194 = vadd.f32 %v4193, %v2734
        %v4195 = vadd.f32 %v4194, %v2735
        %v4196 = vadd.f32 %v4195, %v2736
        %v4197 = vadd.f32 %v4196, %v2737
        %v4198 = vadd.f32 %v4197, %v2738
        %v4199 = vadd.f32 %v4198, %v2739
        %v4200 = vadd.f32 %v4199, %v2740
        %v4201 = vadd.f32 %v4200, %v2741
        %v4202 = vadd.f32 %v4201, %v2742
        %v4203 = vadd.f32 %v4202, %v2743
        %v4204 = vadd.f32 %v4203, %v2744
        %v4205 = vadd.f32 %v4204, %v2745
        %v4206 = vadd.f32 %v4205, %v2746
        %v4207 = vadd.f32 %v4206, %v2747
        %v4208 = vadd.f32 %v4207, %v2748
        %v4209 = vadd.f32 %v4208, %v2749
        %v4210 = vadd.f32 %v4209, %v2750
        %v4211 = vadd.f32 %v4210, %v2751
        %v4212 = vadd.f32 %v4211, %v2752
        %v4213 = vadd.f32 %v4212, %v2753
        %v4214 = vadd.f32 %v4213, %v2754
        %v4215 = vadd.f32 %v4214, %v2755
        %v4216 = vadd.f32 %v4215, %v2756
        %v4217 = vadd.f32 %v4216, %v2757
        %v4218 = vadd.f32 %v4217, %v2758
        %v4219 = vadd.f32 %v4218, %v2759
        %v4220 = vadd.f32 %v4219, %v2760
        %v4221 = vadd.f32 %v4220, %v2761
        %v4222 = vadd.f32 %v4221, %v2762
        %v4223 = vadd.f32 %v4222, %v2763
        %v4224 = vrot.slane %v4223, 4
        %v4225 = vadd.f32 %v4223, %v4224
        %v4226 = vrot.slane %v4225, 2
        %v4227 = vadd.f32 %v4225, %v4226
        %v4228 = vrot.slane %v4227, 1
        %v4229 = vadd.f32 %v4227, %v4228
        %v4230 = vadd.f32 %v4153, %v4154
        %v4231 = vadd.f32 %v4230, %v4155
        %v4232 = vadd.f32 %v4231, %v4156
        %v4233 = vadd.f32 %v4232, %v4157
        %v4234 = vadd.f32 %v4233, %v4158
        %v4235 = vadd.f32 %v4234, %v4159
        %v4236 = vadd.f32 %v4235, %v4160
        %v4237 = vadd.f32 %v4236, %v4161
        %v4238 = vadd.f32 %v4237, %v4162
        %v4239 = vadd.f32 %v4238, %v4163
        %v4240 = vadd.f32 %v4239, %v4164
        %v4241 = vadd.f32 %v4240, %v4165
        %v4242 = vadd.f32 %v4241, %v4166
        %v4243 = vadd.f32 %v4242, %v4167
        %v4244 = vadd.f32 %v4243, %v4168
        %v4245 = vadd.f32 %v4244, %v4169
        %v4246 = vadd.f32 %v4245, %v4170
        %v4247 = vadd.f32 %v4246, %v4171
        %v4248 = vadd.f32 %v4247, %v4172
        %v4249 = vadd.f32 %v4248, %v4173
        %v4250 = vadd.f32 %v4249, %v4174
        %v4251 = vadd.f32 %v4250, %v4175
        %v4252 = vadd.f32 %v4251, %v4176
        %v4253 = vadd.f32 %v4252, %v4177
        %v4254 = vadd.f32 %v4253, %v4178
        %v4255 = vadd.f32 %v4254, %v4179
        %v4256 = vadd.f32 %v4255, %v4180
        %v4257 = vadd.f32 %v4256, %v4181
        %v4258 = vadd.f32 %v4257, %v4182
        %v4259 = vadd.f32 %v4258, %v4183
        %v4260 = vadd.f32 %v4259, %v4184
        %v4261 = vrot.slane %v4260, 4
        %v4262 = vadd.f32 %v4260, %v4261
        %v4263 = vrot.slane %v4262, 2
        %v4264 = vadd.f32 %v4262, %v4263
        %v4265 = vrot.slane %v4264, 1
        %v4266 = vadd.f32 %v4264, %v4265
        %v4267 = vadd.f32 %v4229, %v4266
        %v4268 = vadd.f32 %v4192, %v4267
        %4269 = vst [vmem:[#allocation2] sm:$0x1] %v4268
        %v4270 = vld [vmem:[#allocation2 + $0x1] sm:$0x1]
        %v4271 = vmul.f32 %v2732, %v2732
        %v4272 = vmul.f32 %v2733, %v2733
        %v4273 = vmul.f32 %v2734, %v2734
        %v4274 = vmul.f32 %v2735, %v2735
        %v4275 = vmul.f32 %v2736, %v2736
        %v4276 = vmul.f32 %v2737, %v2737
        %v4277 = vmul.f32 %v2738, %v2738
        %v4278 = vmul.f32 %v2739, %v2739
        %v4279 = vmul.f32 %v2740, %v2740
        %v4280 = vmul.f32 %v2741, %v2741
        %v4281 = vmul.f32 %v2742, %v2742
        %v4282 = vmul.f32 %v2743, %v2743
        %v4283 = vmul.f32 %v2744, %v2744
        %v4284 = vmul.f32 %v2745, %v2745
        %v4285 = vmul.f32 %v2746, %v2746
        %v4286 = vmul.f32 %v2747, %v2747
        %v4287 = vmul.f32 %v2748, %v2748
        %v4288 = vmul.f32 %v2749, %v2749
        %v4289 = vmul.f32 %v2750, %v2750
        %v4290 = vmul.f32 %v2751, %v2751
        %v4291 = vmul.f32 %v2752, %v2752
        %v4292 = vmul.f32 %v2753, %v2753
        %v4293 = vmul.f32 %v2754, %v2754
        %v4294 = vmul.f32 %v2755, %v2755
        %v4295 = vmul.f32 %v2756, %v2756
        %v4296 = vmul.f32 %v2757, %v2757
        %v4297 = vmul.f32 %v2758, %v2758
        %v4298 = vmul.f32 %v2759, %v2759
        %v4299 = vmul.f32 %v2760, %v2760
        %v4300 = vmul.f32 %v2761, %v2761
        %v4301 = vmul.f32 %v2762, %v2762
        %v4302 = vmul.f32 %v2763, %v2763
        %v4303 = vadd.f32 %v4271, %v4272
        %v4304 = vadd.f32 %v4303, %v4273
        %v4305 = vadd.f32 %v4304, %v4274
        %v4306 = vadd.f32 %v4305, %v4275
        %v4307 = vadd.f32 %v4306, %v4276
        %v4308 = vadd.f32 %v4307, %v4277
        %v4309 = vadd.f32 %v4308, %v4278
        %v4310 = vadd.f32 %v4309, %v4279
        %v4311 = vadd.f32 %v4310, %v4280
        %v4312 = vadd.f32 %v4311, %v4281
        %v4313 = vadd.f32 %v4312, %v4282
        %v4314 = vadd.f32 %v4313, %v4283
        %v4315 = vadd.f32 %v4314, %v4284
        %v4316 = vadd.f32 %v4315, %v4285
        %v4317 = vadd.f32 %v4316, %v4286
        %v4318 = vadd.f32 %v4317, %v4287
        %v4319 = vadd.f32 %v4318, %v4288
        %v4320 = vadd.f32 %v4319, %v4289
        %v4321 = vadd.f32 %v4320, %v4290
        %v4322 = vadd.f32 %v4321, %v4291
        %v4323 = vadd.f32 %v4322, %v4292
        %v4324 = vadd.f32 %v4323, %v4293
        %v4325 = vadd.f32 %v4324, %v4294
        %v4326 = vadd.f32 %v4325, %v4295
        %v4327 = vadd.f32 %v4326, %v4296
        %v4328 = vadd.f32 %v4327, %v4297
        %v4329 = vadd.f32 %v4328, %v4298
        %v4330 = vadd.f32 %v4329, %v4299
        %v4331 = vadd.f32 %v4330, %v4300
        %v4332 = vadd.f32 %v4331, %v4301
        %v4333 = vadd.f32 %v4332, %v4302
        %v4334 = vrot.slane %v4333, 4
        %v4335 = vadd.f32 %v4333, %v4334
        %v4336 = vrot.slane %v4335, 2
        %v4337 = vadd.f32 %v4335, %v4336
        %v4338 = vrot.slane %v4337, 1
        %v4339 = vadd.f32 %v4337, %v4338
        %v4340 = vmul.f32 %v4153, %v4153
        %v4341 = vmul.f32 %v4154, %v4154
        %v4342 = vmul.f32 %v4155, %v4155
        %v4343 = vmul.f32 %v4156, %v4156
        %v4344 = vmul.f32 %v4157, %v4157
        %v4345 = vmul.f32 %v4158, %v4158
        %v4346 = vmul.f32 %v4159, %v4159
        %v4347 = vmul.f32 %v4160, %v4160
        %v4348 = vmul.f32 %v4161, %v4161
        %v4349 = vmul.f32 %v4162, %v4162
        %v4350 = vmul.f32 %v4163, %v4163
        %v4351 = vmul.f32 %v4164, %v4164
        %v4352 = vmul.f32 %v4165, %v4165
        %v4353 = vmul.f32 %v4166, %v4166
        %v4354 = vmul.f32 %v4167, %v4167
        %v4355 = vmul.f32 %v4168, %v4168
        %v4356 = vmul.f32 %v4169, %v4169
        %v4357 = vmul.f32 %v4170, %v4170
        %v4358 = vmul.f32 %v4171, %v4171
        %v4359 = vmul.f32 %v4172, %v4172
        %v4360 = vmul.f32 %v4173, %v4173
        %v4361 = vmul.f32 %v4174, %v4174
        %v4362 = vmul.f32 %v4175, %v4175
        %v4363 = vmul.f32 %v4176, %v4176
        %v4364 = vmul.f32 %v4177, %v4177
        %v4365 = vmul.f32 %v4178, %v4178
        %v4366 = vmul.f32 %v4179, %v4179
        %v4367 = vmul.f32 %v4180, %v4180
        %v4368 = vmul.f32 %v4181, %v4181
        %v4369 = vmul.f32 %v4182, %v4182
        %v4370 = vmul.f32 %v4183, %v4183
        %v4371 = vmul.f32 %v4184, %v4184
        %v4372 = vadd.f32 %v4340, %v4341
        %v4373 = vadd.f32 %v4372, %v4342
        %v4374 = vadd.f32 %v4373, %v4343
        %v4375 = vadd.f32 %v4374, %v4344
        %v4376 = vadd.f32 %v4375, %v4345
        %v4377 = vadd.f32 %v4376, %v4346
        %v4378 = vadd.f32 %v4377, %v4347
        %v4379 = vadd.f32 %v4378, %v4348
        %v4380 = vadd.f32 %v4379, %v4349
        %v4381 = vadd.f32 %v4380, %v4350
        %v4382 = vadd.f32 %v4381, %v4351
        %v4383 = vadd.f32 %v4382, %v4352
        %v4384 = vadd.f32 %v4383, %v4353
        %v4385 = vadd.f32 %v4384, %v4354
        %v4386 = vadd.f32 %v4385, %v4355
        %v4387 = vadd.f32 %v4386, %v4356
        %v4388 = vadd.f32 %v4387, %v4357
        %v4389 = vadd.f32 %v4388, %v4358
        %v4390 = vadd.f32 %v4389, %v4359
        %v4391 = vadd.f32 %v4390, %v4360
        %v4392 = vadd.f32 %v4391, %v4361
        %v4393 = vadd.f32 %v4392, %v4362
        %v4394 = vadd.f32 %v4393, %v4363
        %v4395 = vadd.f32 %v4394, %v4364
        %v4396 = vadd.f32 %v4395, %v4365
        %v4397 = vadd.f32 %v4396, %v4366
        %v4398 = vadd.f32 %v4397, %v4367
        %v4399 = vadd.f32 %v4398, %v4368
        %v4400 = vadd.f32 %v4399, %v4369
        %v4401 = vadd.f32 %v4400, %v4370
        %v4402 = vadd.f32 %v4401, %v4371
        %v4403 = vrot.slane %v4402, 4
        %v4404 = vadd.f32 %v4402, %v4403
        %v4405 = vrot.slane %v4404, 2
        %v4406 = vadd.f32 %v4404, %v4405
        %v4407 = vrot.slane %v4406, 1
        %v4408 = vadd.f32 %v4406, %v4407
        %v4409 = vadd.f32 %v4339, %v4408
        %v4410 = vadd.f32 %v4270, %v4409
        %4411 = vst [vmem:[#allocation2 + $0x1] sm:$0x1] %v4410
        %p4412 = scmp.eq.s32.totalorder %s19, 1
        %p4413 = scmp.eq.s32.totalorder %s20, 1
        %p4414 = pnand %p4412, %p4413
        %p4415 = pneg %p4414
        // Predicated region
        $region33: #{psp_upsample_forward.2} parent=27 // pred_check
          _
        $region34: #{psp_upsample_forward.2} parent=27 // pred_check_branch
          %4417 = sbr.rel (%p4414) target = $region36
        $region35: #{psp_upsample_forward.2} parent=27 // pred_region
          %v4418 = vld [vmem:[#allocation2] sm:$0x3]
          %4419 = vst [vmem:[%s3] sm:$0x3] %v4418
        $region36: #{psp_upsample_forward.2} parent=27 // pred_fallthru
          _
        %4420 = vst [vmem:[%s179] sm:$0xff] %v2732
        %4421 = vst [vmem:[%s179 + $0x8] sm:$0xff] %v2733
        %4422 = vst [vmem:[%s179 + $0x10] sm:$0xff] %v2734
        %4423 = vst [vmem:[%s179 + $0x18] sm:$0xff] %v2735
        %4424 = vst [vmem:[%s179 + $0x20] sm:$0xff] %v2736
        %4425 = vst [vmem:[%s179 + $0x28] sm:$0xff] %v2737
        %4426 = vst [vmem:[%s179 + $0x30] sm:$0xff] %v2738
        %4427 = vst [vmem:[%s179 + $0x38] sm:$0xff] %v2739
        %4428 = vst [vmem:[%s179 + $0x40] sm:$0xff] %v2740
        %4429 = vst [vmem:[%s179 + $0x48] sm:$0xff] %v2741
        %4430 = vst [vmem:[%s179 + $0x50] sm:$0xff] %v2742
        %4431 = vst [vmem:[%s179 + $0x58] sm:$0xff] %v2743
        %4432 = vst [vmem:[%s179 + $0x60] sm:$0xff] %v2744
        %4433 = vst [vmem:[%s179 + $0x68] sm:$0xff] %v2745
        %4434 = vst [vmem:[%s179 + $0x70] sm:$0xff] %v2746
        %4435 = vst [vmem:[%s179 + $0x78] sm:$0xff] %v2747
        %4436 = vst [vmem:[%s179 + $0x80] sm:$0xff] %v2748
        %4437 = vst [vmem:[%s179 + $0x88] sm:$0xff] %v2749
        %4438 = vst [vmem:[%s179 + $0x90] sm:$0xff] %v2750
        %4439 = vst [vmem:[%s179 + $0x98] sm:$0xff] %v2751
        %4440 = vst [vmem:[%s179 + $0xa0] sm:$0xff] %v2752
        %4441 = vst [vmem:[%s179 + $0xa8] sm:$0xff] %v2753
        %4442 = vst [vmem:[%s179 + $0xb0] sm:$0xff] %v2754
        %4443 = vst [vmem:[%s179 + $0xb8] sm:$0xff] %v2755
        %4444 = vst [vmem:[%s179 + $0xc0] sm:$0xff] %v2756
        %4445 = vst [vmem:[%s179 + $0xc8] sm:$0xff] %v2757
        %4446 = vst [vmem:[%s179 + $0xd0] sm:$0xff] %v2758
        %4447 = vst [vmem:[%s179 + $0xd8] sm:$0xff] %v2759
        %4448 = vst [vmem:[%s179 + $0xe0] sm:$0xff] %v2760
        %4449 = vst [vmem:[%s179 + $0xe8] sm:$0xff] %v2761
        %4450 = vst [vmem:[%s179 + $0xf0] sm:$0xff] %v2762
        %4451 = vst [vmem:[%s179 + $0xf8] sm:$0xff] %v2763
        %s4452 = scalar_lea.vmem %s179, 256 [#allocation3]
        %4453 = vst [vmem:[%s4452] sm:$0xff] %v4153
        %4454 = vst [vmem:[%s4452 + $0x8] sm:$0xff] %v4154
        %4455 = vst [vmem:[%s4452 + $0x10] sm:$0xff] %v4155
        %4456 = vst [vmem:[%s4452 + $0x18] sm:$0xff] %v4156
        %4457 = vst [vmem:[%s4452 + $0x20] sm:$0xff] %v4157
        %4458 = vst [vmem:[%s4452 + $0x28] sm:$0xff] %v4158
        %4459 = vst [vmem:[%s4452 + $0x30] sm:$0xff] %v4159
        %4460 = vst [vmem:[%s4452 + $0x38] sm:$0xff] %v4160
        %4461 = vst [vmem:[%s4452 + $0x40] sm:$0xff] %v4161
        %4462 = vst [vmem:[%s4452 + $0x48] sm:$0xff] %v4162
        %4463 = vst [vmem:[%s4452 + $0x50] sm:$0xff] %v4163
        %4464 = vst [vmem:[%s4452 + $0x58] sm:$0xff] %v4164
        %4465 = vst [vmem:[%s4452 + $0x60] sm:$0xff] %v4165
        %4466 = vst [vmem:[%s4452 + $0x68] sm:$0xff] %v4166
        %4467 = vst [vmem:[%s4452 + $0x70] sm:$0xff] %v4167
        %4468 = vst [vmem:[%s4452 + $0x78] sm:$0xff] %v4168
        %4469 = vst [vmem:[%s4452 + $0x80] sm:$0xff] %v4169
        %4470 = vst [vmem:[%s4452 + $0x88] sm:$0xff] %v4170
        %4471 = vst [vmem:[%s4452 + $0x90] sm:$0xff] %v4171
        %4472 = vst [vmem:[%s4452 + $0x98] sm:$0xff] %v4172
        %4473 = vst [vmem:[%s4452 + $0xa0] sm:$0xff] %v4173
        %4474 = vst [vmem:[%s4452 + $0xa8] sm:$0xff] %v4174
        %4475 = vst [vmem:[%s4452 + $0xb0] sm:$0xff] %v4175
        %4476 = vst [vmem:[%s4452 + $0xb8] sm:$0xff] %v4176
        %4477 = vst [vmem:[%s4452 + $0xc0] sm:$0xff] %v4177
        %4478 = vst [vmem:[%s4452 + $0xc8] sm:$0xff] %v4178
        %4479 = vst [vmem:[%s4452 + $0xd0] sm:$0xff] %v4179
        %4480 = vst [vmem:[%s4452 + $0xd8] sm:$0xff] %v4180
        %4481 = vst [vmem:[%s4452 + $0xe0] sm:$0xff] %v4181
        %4482 = vst [vmem:[%s4452 + $0xe8] sm:$0xff] %v4182
        %4483 = vst [vmem:[%s4452 + $0xf0] sm:$0xff] %v4183
        %4484 = vst [vmem:[%s4452 + $0xf8] sm:$0xff] %v4184
        %s4485 = sand.u32 %s86, 1
        %s4486 = sand.u32 %s86, 1
        %s4487 = smul.addr %s4486, 512
        %s4488 = scalar_lea.vmem [#allocation3], %s4487
        // Predicated region
        $region37: #{psp_upsample_forward.2} parent=27 // pred_check
          %p4489 = pneg %p96
        $region38: #{psp_upsample_forward.2} parent=27 // pred_check_branch
          %4491 = sbr.rel (%p4489) target = $region40
        $region39: #{psp_upsample_forward.2} parent=27 // pred_region
          %s4492 = smul.u32 16, %s20
          %s4493 = smul.addr %s4492, 2
          %s4494 = smul.addr %s19, 128
          %s4495 = sadd.s32 %s4493, %s4494
          %s4496 = smul.addr %s4495, 8
          %s4497 = scalar_lea.vmem %s2, %s4496
          // Predicated region
          $region41: #{psp_upsample_forward.2} parent=39 // pred_check
            _
          $region42: #{psp_upsample_forward.2} parent=39 // pred_check_branch
            %4499 = sbr.rel (0) target = $region44
          $region43: #{psp_upsample_forward.2} parent=39 // pred_region
            // Predicated region
            $region45: #{psp_upsample_forward.2} parent=43 // pred_check
              _
            $region46: #{psp_upsample_forward.2} parent=43 // pred_check_branch
              %4501 = sbr.rel (0) target = $region48
            $region47: #{psp_upsample_forward.2} parent=43 // pred_region
              // Predicated region
              $region60: #{psp_upsample_forward.2} parent=47 // pred_check
                _
              $region61: #{psp_upsample_forward.2} parent=47 // pred_check_branch
                %4643 = sbr.rel (0) target = $region63
              $region62: #{psp_upsample_forward.2} parent=47 // pred_region
                loop: start=0, step=1, limit=1
                $region64: #{psp_upsample_forward.2} parent=62 // loop_pre_header
                  _
                $region65: #{psp_upsample_forward.2} parent=62 // loop_header
                  %s4645 = sphi 0, %s4649
                  %p4646 = scmp.ge.s32.totalorder %s4645, 1
                  %s4650 = sphi %s4488, %s4488
                  %s4651 = sphi %s4497, %s4497
                $region66: #{psp_upsample_forward.2} parent=62 // loop_header_branch
                  %4648 = sbr.rel (%p4646) target = $region70
                $region67: #{psp_upsample_forward.2} parent=62 // loop_body
                  %v4652 = vld [vmem:[%s4650] sm:$0xff]
                  %4653 = vst [vmem:[%s4651] sm:$0xff] %v4652
                  %v4654 = vld [vmem:[%s4650 + $0x8] sm:$0xff]
                  %4655 = vst [vmem:[%s4651 + $0x8] sm:$0xff] %v4654
                  %v4656 = vld [vmem:[%s4650 + $0x10] sm:$0xff]
                  %4657 = vst [vmem:[%s4651 + $0x10] sm:$0xff] %v4656
                  %v4658 = vld [vmem:[%s4650 + $0x18] sm:$0xff]
                  %4659 = vst [vmem:[%s4651 + $0x18] sm:$0xff] %v4658
                  %v4660 = vld [vmem:[%s4650 + $0x20] sm:$0xff]
                  %4661 = vst [vmem:[%s4651 + $0x20] sm:$0xff] %v4660
                  %v4662 = vld [vmem:[%s4650 + $0x28] sm:$0xff]
                  %4663 = vst [vmem:[%s4651 + $0x28] sm:$0xff] %v4662
                  %v4664 = vld [vmem:[%s4650 + $0x30] sm:$0xff]
                  %4665 = vst [vmem:[%s4651 + $0x30] sm:$0xff] %v4664
                  %v4666 = vld [vmem:[%s4650 + $0x38] sm:$0xff]
                  %4667 = vst [vmem:[%s4651 + $0x38] sm:$0xff] %v4666
                  %v4668 = vld [vmem:[%s4650 + $0x40] sm:$0xff]
                  %4669 = vst [vmem:[%s4651 + $0x40] sm:$0xff] %v4668
                  %v4670 = vld [vmem:[%s4650 + $0x48] sm:$0xff]
                  %4671 = vst [vmem:[%s4651 + $0x48] sm:$0xff] %v4670
                  %v4672 = vld [vmem:[%s4650 + $0x50] sm:$0xff]
                  %4673 = vst [vmem:[%s4651 + $0x50] sm:$0xff] %v4672
                  %v4674 = vld [vmem:[%s4650 + $0x58] sm:$0xff]
                  %4675 = vst [vmem:[%s4651 + $0x58] sm:$0xff] %v4674
                  %v4676 = vld [vmem:[%s4650 + $0x60] sm:$0xff]
                  %4677 = vst [vmem:[%s4651 + $0x60] sm:$0xff] %v4676
                  %v4678 = vld [vmem:[%s4650 + $0x68] sm:$0xff]
                  %4679 = vst [vmem:[%s4651 + $0x68] sm:$0xff] %v4678
                  %v4680 = vld [vmem:[%s4650 + $0x70] sm:$0xff]
                  %4681 = vst [vmem:[%s4651 + $0x70] sm:$0xff] %v4680
                  %v4682 = vld [vmem:[%s4650 + $0x78] sm:$0xff]
                  %4683 = vst [vmem:[%s4651 + $0x78] sm:$0xff] %v4682
                  %v4684 = vld [vmem:[%s4650 + $0x80] sm:$0xff]
                  %4685 = vst [vmem:[%s4651 + $0x80] sm:$0xff] %v4684
                  %v4686 = vld [vmem:[%s4650 + $0x88] sm:$0xff]
                  %4687 = vst [vmem:[%s4651 + $0x88] sm:$0xff] %v4686
                  %v4688 = vld [vmem:[%s4650 + $0x90] sm:$0xff]
                  %4689 = vst [vmem:[%s4651 + $0x90] sm:$0xff] %v4688
                  %v4690 = vld [vmem:[%s4650 + $0x98] sm:$0xff]
                  %4691 = vst [vmem:[%s4651 + $0x98] sm:$0xff] %v4690
                  %v4692 = vld [vmem:[%s4650 + $0xa0] sm:$0xff]
                  %4693 = vst [vmem:[%s4651 + $0xa0] sm:$0xff] %v4692
                  %v4694 = vld [vmem:[%s4650 + $0xa8] sm:$0xff]
                  %4695 = vst [vmem:[%s4651 + $0xa8] sm:$0xff] %v4694
                  %v4696 = vld [vmem:[%s4650 + $0xb0] sm:$0xff]
                  %4697 = vst [vmem:[%s4651 + $0xb0] sm:$0xff] %v4696
                  %v4698 = vld [vmem:[%s4650 + $0xb8] sm:$0xff]
                  %4699 = vst [vmem:[%s4651 + $0xb8] sm:$0xff] %v4698
                  %v4700 = vld [vmem:[%s4650 + $0xc0] sm:$0xff]
                  %4701 = vst [vmem:[%s4651 + $0xc0] sm:$0xff] %v4700
                  %v4702 = vld [vmem:[%s4650 + $0xc8] sm:$0xff]
                  %4703 = vst [vmem:[%s4651 + $0xc8] sm:$0xff] %v4702
                  %v4704 = vld [vmem:[%s4650 + $0xd0] sm:$0xff]
                  %4705 = vst [vmem:[%s4651 + $0xd0] sm:$0xff] %v4704
                  %v4706 = vld [vmem:[%s4650 + $0xd8] sm:$0xff]
                  %4707 = vst [vmem:[%s4651 + $0xd8] sm:$0xff] %v4706
                  %v4708 = vld [vmem:[%s4650 + $0xe0] sm:$0xff]
                  %4709 = vst [vmem:[%s4651 + $0xe0] sm:$0xff] %v4708
                  %v4710 = vld [vmem:[%s4650 + $0xe8] sm:$0xff]
                  %4711 = vst [vmem:[%s4651 + $0xe8] sm:$0xff] %v4710
                  %v4712 = vld [vmem:[%s4650 + $0xf0] sm:$0xff]
                  %4713 = vst [vmem:[%s4651 + $0xf0] sm:$0xff] %v4712
                  %v4714 = vld [vmem:[%s4650 + $0xf8] sm:$0xff]
                  %4715 = vst [vmem:[%s4651 + $0xf8] sm:$0xff] %v4714
                  %v4716 = vld [vmem:[%s4650 + $0x100] sm:$0xff]
                  %4717 = vst [vmem:[%s4651 + $0x200] sm:$0xff] %v4716
                  %v4718 = vld [vmem:[%s4650 + $0x108] sm:$0xff]
                  %4719 = vst [vmem:[%s4651 + $0x208] sm:$0xff] %v4718
                  %v4720 = vld [vmem:[%s4650 + $0x110] sm:$0xff]
                  %4721 = vst [vmem:[%s4651 + $0x210] sm:$0xff] %v4720
                  %v4722 = vld [vmem:[%s4650 + $0x118] sm:$0xff]
                  %4723 = vst [vmem:[%s4651 + $0x218] sm:$0xff] %v4722
                  %v4724 = vld [vmem:[%s4650 + $0x120] sm:$0xff]
                  %4725 = vst [vmem:[%s4651 + $0x220] sm:$0xff] %v4724
                  %v4726 = vld [vmem:[%s4650 + $0x128] sm:$0xff]
                  %4727 = vst [vmem:[%s4651 + $0x228] sm:$0xff] %v4726
                  %v4728 = vld [vmem:[%s4650 + $0x130] sm:$0xff]
                  %4729 = vst [vmem:[%s4651 + $0x230] sm:$0xff] %v4728
                  %v4730 = vld [vmem:[%s4650 + $0x138] sm:$0xff]
                  %4731 = vst [vmem:[%s4651 + $0x238] sm:$0xff] %v4730
                  %v4732 = vld [vmem:[%s4650 + $0x140] sm:$0xff]
                  %4733 = vst [vmem:[%s4651 + $0x240] sm:$0xff] %v4732
                  %v4734 = vld [vmem:[%s4650 + $0x148] sm:$0xff]
                  %4735 = vst [vmem:[%s4651 + $0x248] sm:$0xff] %v4734
                  %v4736 = vld [vmem:[%s4650 + $0x150] sm:$0xff]
                  %4737 = vst [vmem:[%s4651 + $0x250] sm:$0xff] %v4736
                  %v4738 = vld [vmem:[%s4650 + $0x158] sm:$0xff]
                  %4739 = vst [vmem:[%s4651 + $0x258] sm:$0xff] %v4738
                  %v4740 = vld [vmem:[%s4650 + $0x160] sm:$0xff]
                  %4741 = vst [vmem:[%s4651 + $0x260] sm:$0xff] %v4740
                  %v4742 = vld [vmem:[%s4650 + $0x168] sm:$0xff]
                  %4743 = vst [vmem:[%s4651 + $0x268] sm:$0xff] %v4742
                  %v4744 = vld [vmem:[%s4650 + $0x170] sm:$0xff]
                  %4745 = vst [vmem:[%s4651 + $0x270] sm:$0xff] %v4744
                  %v4746 = vld [vmem:[%s4650 + $0x178] sm:$0xff]
                  %4747 = vst [vmem:[%s4651 + $0x278] sm:$0xff] %v4746
                  %v4748 = vld [vmem:[%s4650 + $0x180] sm:$0xff]
                  %4749 = vst [vmem:[%s4651 + $0x280] sm:$0xff] %v4748
                  %v4750 = vld [vmem:[%s4650 + $0x188] sm:$0xff]
                  %4751 = vst [vmem:[%s4651 + $0x288] sm:$0xff] %v4750
                  %v4752 = vld [vmem:[%s4650 + $0x190] sm:$0xff]
                  %4753 = vst [vmem:[%s4651 + $0x290] sm:$0xff] %v4752
                  %v4754 = vld [vmem:[%s4650 + $0x198] sm:$0xff]
                  %4755 = vst [vmem:[%s4651 + $0x298] sm:$0xff] %v4754
                  %v4756 = vld [vmem:[%s4650 + $0x1a0] sm:$0xff]
                  %4757 = vst [vmem:[%s4651 + $0x2a0] sm:$0xff] %v4756
                  %v4758 = vld [vmem:[%s4650 + $0x1a8] sm:$0xff]
                  %4759 = vst [vmem:[%s4651 + $0x2a8] sm:$0xff] %v4758
                  %v4760 = vld [vmem:[%s4650 + $0x1b0] sm:$0xff]
                  %4761 = vst [vmem:[%s4651 + $0x2b0] sm:$0xff] %v4760
                  %v4762 = vld [vmem:[%s4650 + $0x1b8] sm:$0xff]
                  %4763 = vst [vmem:[%s4651 + $0x2b8] sm:$0xff] %v4762
                  %v4764 = vld [vmem:[%s4650 + $0x1c0] sm:$0xff]
                  %4765 = vst [vmem:[%s4651 + $0x2c0] sm:$0xff] %v4764
                  %v4766 = vld [vmem:[%s4650 + $0x1c8] sm:$0xff]
                  %4767 = vst [vmem:[%s4651 + $0x2c8] sm:$0xff] %v4766
                  %v4768 = vld [vmem:[%s4650 + $0x1d0] sm:$0xff]
                  %4769 = vst [vmem:[%s4651 + $0x2d0] sm:$0xff] %v4768
                  %v4770 = vld [vmem:[%s4650 + $0x1d8] sm:$0xff]
                  %4771 = vst [vmem:[%s4651 + $0x2d8] sm:$0xff] %v4770
                  %v4772 = vld [vmem:[%s4650 + $0x1e0] sm:$0xff]
                  %4773 = vst [vmem:[%s4651 + $0x2e0] sm:$0xff] %v4772
                  %v4774 = vld [vmem:[%s4650 + $0x1e8] sm:$0xff]
                  %4775 = vst [vmem:[%s4651 + $0x2e8] sm:$0xff] %v4774
                  %v4776 = vld [vmem:[%s4650 + $0x1f0] sm:$0xff]
                  %4777 = vst [vmem:[%s4651 + $0x2f0] sm:$0xff] %v4776
                  %v4778 = vld [vmem:[%s4650 + $0x1f8] sm:$0xff]
                  %4779 = vst [vmem:[%s4651 + $0x2f8] sm:$0xff] %v4778
                $region68: #{psp_upsample_forward.2} parent=62 // loop_footer
                  %s4649 = sadd.s32 1, %s4645
                $region69: #{psp_upsample_forward.2} parent=62 // loop_footer_branch
                  %4644 = sbr.rel target = $region65
                $region70: #{psp_upsample_forward.2} parent=62 // loop_exit
                  _
              $region63: #{psp_upsample_forward.2} parent=47 // pred_fallthru
                _
              // Predicated region
              $region71: #{psp_upsample_forward.2} parent=47 // pred_check
                _
              $region72: #{psp_upsample_forward.2} parent=47 // pred_check_branch
                %4781 = sbr.rel target = $region74
              $region73: #{psp_upsample_forward.2} parent=47 // pred_region
                _
              $region74: #{psp_upsample_forward.2} parent=47 // pred_fallthru
                _
            $region48: #{psp_upsample_forward.2} parent=43 // pred_fallthru
              _
            // Predicated region
            $region49: #{psp_upsample_forward.2} parent=43 // pred_check
              _
            $region50: #{psp_upsample_forward.2} parent=43 // pred_check_branch
              %4503 = sbr.rel target = $region52
            $region51: #{psp_upsample_forward.2} parent=43 // pred_region
              %s4505 = ssub.s32 256, 1
              loop: start=0, step=1, limit=1
              $region53: #{psp_upsample_forward.2} parent=51 // loop_pre_header
                _
              $region54: #{psp_upsample_forward.2} parent=51 // loop_header
                %s4507 = sphi 0, %s4511
                %p4508 = scmp.ge.s32.totalorder %s4507, 1
                %s4512 = sphi %s4488, %s4488
                %s4513 = sphi %s4497, %s4497
              $region55: #{psp_upsample_forward.2} parent=51 // loop_header_branch
                %4510 = sbr.rel (%p4508) target = $region59
              $region56: #{psp_upsample_forward.2} parent=51 // loop_body
                %v4514 = vld [vmem:[%s4512] sm:%s4505]
                %4515 = vst [vmem:[%s4513] sm:%s4505] %v4514
                %v4516 = vld [vmem:[%s4512 + $0x8] sm:%s4505]
                %4517 = vst [vmem:[%s4513 + $0x8] sm:%s4505] %v4516
                %v4518 = vld [vmem:[%s4512 + $0x10] sm:%s4505]
                %4519 = vst [vmem:[%s4513 + $0x10] sm:%s4505] %v4518
                %v4520 = vld [vmem:[%s4512 + $0x18] sm:%s4505]
                %4521 = vst [vmem:[%s4513 + $0x18] sm:%s4505] %v4520
                %v4522 = vld [vmem:[%s4512 + $0x20] sm:%s4505]
                %4523 = vst [vmem:[%s4513 + $0x20] sm:%s4505] %v4522
                %v4524 = vld [vmem:[%s4512 + $0x28] sm:%s4505]
                %4525 = vst [vmem:[%s4513 + $0x28] sm:%s4505] %v4524
                %v4526 = vld [vmem:[%s4512 + $0x30] sm:%s4505]
                %4527 = vst [vmem:[%s4513 + $0x30] sm:%s4505] %v4526
                %v4528 = vld [vmem:[%s4512 + $0x38] sm:%s4505]
                %4529 = vst [vmem:[%s4513 + $0x38] sm:%s4505] %v4528
                %v4530 = vld [vmem:[%s4512 + $0x40] sm:%s4505]
                %4531 = vst [vmem:[%s4513 + $0x40] sm:%s4505] %v4530
                %v4532 = vld [vmem:[%s4512 + $0x48] sm:%s4505]
                %4533 = vst [vmem:[%s4513 + $0x48] sm:%s4505] %v4532
                %v4534 = vld [vmem:[%s4512 + $0x50] sm:%s4505]
                %4535 = vst [vmem:[%s4513 + $0x50] sm:%s4505] %v4534
                %v4536 = vld [vmem:[%s4512 + $0x58] sm:%s4505]
                %4537 = vst [vmem:[%s4513 + $0x58] sm:%s4505] %v4536
                %v4538 = vld [vmem:[%s4512 + $0x60] sm:%s4505]
                %4539 = vst [vmem:[%s4513 + $0x60] sm:%s4505] %v4538
                %v4540 = vld [vmem:[%s4512 + $0x68] sm:%s4505]
                %4541 = vst [vmem:[%s4513 + $0x68] sm:%s4505] %v4540
                %v4542 = vld [vmem:[%s4512 + $0x70] sm:%s4505]
                %4543 = vst [vmem:[%s4513 + $0x70] sm:%s4505] %v4542
                %v4544 = vld [vmem:[%s4512 + $0x78] sm:%s4505]
                %4545 = vst [vmem:[%s4513 + $0x78] sm:%s4505] %v4544
                %v4546 = vld [vmem:[%s4512 + $0x80] sm:%s4505]
                %4547 = vst [vmem:[%s4513 + $0x80] sm:%s4505] %v4546
                %v4548 = vld [vmem:[%s4512 + $0x88] sm:%s4505]
                %4549 = vst [vmem:[%s4513 + $0x88] sm:%s4505] %v4548
                %v4550 = vld [vmem:[%s4512 + $0x90] sm:%s4505]
                %4551 = vst [vmem:[%s4513 + $0x90] sm:%s4505] %v4550
                %v4552 = vld [vmem:[%s4512 + $0x98] sm:%s4505]
                %4553 = vst [vmem:[%s4513 + $0x98] sm:%s4505] %v4552
                %v4554 = vld [vmem:[%s4512 + $0xa0] sm:%s4505]
                %4555 = vst [vmem:[%s4513 + $0xa0] sm:%s4505] %v4554
                %v4556 = vld [vmem:[%s4512 + $0xa8] sm:%s4505]
                %4557 = vst [vmem:[%s4513 + $0xa8] sm:%s4505] %v4556
                %v4558 = vld [vmem:[%s4512 + $0xb0] sm:%s4505]
                %4559 = vst [vmem:[%s4513 + $0xb0] sm:%s4505] %v4558
                %v4560 = vld [vmem:[%s4512 + $0xb8] sm:%s4505]
                %4561 = vst [vmem:[%s4513 + $0xb8] sm:%s4505] %v4560
                %v4562 = vld [vmem:[%s4512 + $0xc0] sm:%s4505]
                %4563 = vst [vmem:[%s4513 + $0xc0] sm:%s4505] %v4562
                %v4564 = vld [vmem:[%s4512 + $0xc8] sm:%s4505]
                %4565 = vst [vmem:[%s4513 + $0xc8] sm:%s4505] %v4564
                %v4566 = vld [vmem:[%s4512 + $0xd0] sm:%s4505]
                %4567 = vst [vmem:[%s4513 + $0xd0] sm:%s4505] %v4566
                %v4568 = vld [vmem:[%s4512 + $0xd8] sm:%s4505]
                %4569 = vst [vmem:[%s4513 + $0xd8] sm:%s4505] %v4568
                %v4570 = vld [vmem:[%s4512 + $0xe0] sm:%s4505]
                %4571 = vst [vmem:[%s4513 + $0xe0] sm:%s4505] %v4570
                %v4572 = vld [vmem:[%s4512 + $0xe8] sm:%s4505]
                %4573 = vst [vmem:[%s4513 + $0xe8] sm:%s4505] %v4572
                %v4574 = vld [vmem:[%s4512 + $0xf0] sm:%s4505]
                %4575 = vst [vmem:[%s4513 + $0xf0] sm:%s4505] %v4574
                %v4576 = vld [vmem:[%s4512 + $0xf8] sm:%s4505]
                %4577 = vst [vmem:[%s4513 + $0xf8] sm:%s4505] %v4576
                %v4578 = vld [vmem:[%s4512 + $0x100] sm:%s4505]
                %4579 = vst [vmem:[%s4513 + $0x200] sm:%s4505] %v4578
                %v4580 = vld [vmem:[%s4512 + $0x108] sm:%s4505]
                %4581 = vst [vmem:[%s4513 + $0x208] sm:%s4505] %v4580
                %v4582 = vld [vmem:[%s4512 + $0x110] sm:%s4505]
                %4583 = vst [vmem:[%s4513 + $0x210] sm:%s4505] %v4582
                %v4584 = vld [vmem:[%s4512 + $0x118] sm:%s4505]
                %4585 = vst [vmem:[%s4513 + $0x218] sm:%s4505] %v4584
                %v4586 = vld [vmem:[%s4512 + $0x120] sm:%s4505]
                %4587 = vst [vmem:[%s4513 + $0x220] sm:%s4505] %v4586
                %v4588 = vld [vmem:[%s4512 + $0x128] sm:%s4505]
                %4589 = vst [vmem:[%s4513 + $0x228] sm:%s4505] %v4588
                %v4590 = vld [vmem:[%s4512 + $0x130] sm:%s4505]
                %4591 = vst [vmem:[%s4513 + $0x230] sm:%s4505] %v4590
                %v4592 = vld [vmem:[%s4512 + $0x138] sm:%s4505]
                %4593 = vst [vmem:[%s4513 + $0x238] sm:%s4505] %v4592
                %v4594 = vld [vmem:[%s4512 + $0x140] sm:%s4505]
                %4595 = vst [vmem:[%s4513 + $0x240] sm:%s4505] %v4594
                %v4596 = vld [vmem:[%s4512 + $0x148] sm:%s4505]
                %4597 = vst [vmem:[%s4513 + $0x248] sm:%s4505] %v4596
                %v4598 = vld [vmem:[%s4512 + $0x150] sm:%s4505]
                %4599 = vst [vmem:[%s4513 + $0x250] sm:%s4505] %v4598
                %v4600 = vld [vmem:[%s4512 + $0x158] sm:%s4505]
                %4601 = vst [vmem:[%s4513 + $0x258] sm:%s4505] %v4600
                %v4602 = vld [vmem:[%s4512 + $0x160] sm:%s4505]
                %4603 = vst [vmem:[%s4513 + $0x260] sm:%s4505] %v4602
                %v4604 = vld [vmem:[%s4512 + $0x168] sm:%s4505]
                %4605 = vst [vmem:[%s4513 + $0x268] sm:%s4505] %v4604
                %v4606 = vld [vmem:[%s4512 + $0x170] sm:%s4505]
                %4607 = vst [vmem:[%s4513 + $0x270] sm:%s4505] %v4606
                %v4608 = vld [vmem:[%s4512 + $0x178] sm:%s4505]
                %4609 = vst [vmem:[%s4513 + $0x278] sm:%s4505] %v4608
                %v4610 = vld [vmem:[%s4512 + $0x180] sm:%s4505]
                %4611 = vst [vmem:[%s4513 + $0x280] sm:%s4505] %v4610
                %v4612 = vld [vmem:[%s4512 + $0x188] sm:%s4505]
                %4613 = vst [vmem:[%s4513 + $0x288] sm:%s4505] %v4612
                %v4614 = vld [vmem:[%s4512 + $0x190] sm:%s4505]
                %4615 = vst [vmem:[%s4513 + $0x290] sm:%s4505] %v4614
                %v4616 = vld [vmem:[%s4512 + $0x198] sm:%s4505]
                %4617 = vst [vmem:[%s4513 + $0x298] sm:%s4505] %v4616
                %v4618 = vld [vmem:[%s4512 + $0x1a0] sm:%s4505]
                %4619 = vst [vmem:[%s4513 + $0x2a0] sm:%s4505] %v4618
                %v4620 = vld [vmem:[%s4512 + $0x1a8] sm:%s4505]
                %4621 = vst [vmem:[%s4513 + $0x2a8] sm:%s4505] %v4620
                %v4622 = vld [vmem:[%s4512 + $0x1b0] sm:%s4505]
                %4623 = vst [vmem:[%s4513 + $0x2b0] sm:%s4505] %v4622
                %v4624 = vld [vmem:[%s4512 + $0x1b8] sm:%s4505]
                %4625 = vst [vmem:[%s4513 + $0x2b8] sm:%s4505] %v4624
                %v4626 = vld [vmem:[%s4512 + $0x1c0] sm:%s4505]
                %4627 = vst [vmem:[%s4513 + $0x2c0] sm:%s4505] %v4626
                %v4628 = vld [vmem:[%s4512 + $0x1c8] sm:%s4505]
                %4629 = vst [vmem:[%s4513 + $0x2c8] sm:%s4505] %v4628
                %v4630 = vld [vmem:[%s4512 + $0x1d0] sm:%s4505]
                %4631 = vst [vmem:[%s4513 + $0x2d0] sm:%s4505] %v4630
                %v4632 = vld [vmem:[%s4512 + $0x1d8] sm:%s4505]
                %4633 = vst [vmem:[%s4513 + $0x2d8] sm:%s4505] %v4632
                %v4634 = vld [vmem:[%s4512 + $0x1e0] sm:%s4505]
                %4635 = vst [vmem:[%s4513 + $0x2e0] sm:%s4505] %v4634
                %v4636 = vld [vmem:[%s4512 + $0x1e8] sm:%s4505]
                %4637 = vst [vmem:[%s4513 + $0x2e8] sm:%s4505] %v4636
                %v4638 = vld [vmem:[%s4512 + $0x1f0] sm:%s4505]
                %4639 = vst [vmem:[%s4513 + $0x2f0] sm:%s4505] %v4638
                %v4640 = vld [vmem:[%s4512 + $0x1f8] sm:%s4505]
                %4641 = vst [vmem:[%s4513 + $0x2f8] sm:%s4505] %v4640
              $region57: #{psp_upsample_forward.2} parent=51 // loop_footer
                %s4511 = sadd.s32 1, %s4507
              $region58: #{psp_upsample_forward.2} parent=51 // loop_footer_branch
                %4506 = sbr.rel target = $region54
              $region59: #{psp_upsample_forward.2} parent=51 // loop_exit
                _
            $region52: #{psp_upsample_forward.2} parent=43 // pred_fallthru
              _
          $region44: #{psp_upsample_forward.2} parent=39 // pred_fallthru
            _
          %4782 = vnop
        $region40: #{psp_upsample_forward.2} parent=27 // pred_fallthru
          _
        // Predicated region
        $region75: #{psp_upsample_forward.2} parent=27 // pred_check
          %p4783 = pneg %p117
        $region76: #{psp_upsample_forward.2} parent=27 // pred_check_branch
          %4785 = sbr.rel (%p4783) target = $region78
        $region77: #{psp_upsample_forward.2} parent=27 // pred_region
          _
        $region78: #{psp_upsample_forward.2} parent=27 // pred_fallthru
          _
        // Predicated region
        $region79: #{psp_upsample_forward.2} parent=27 // pred_check
          %p4786 = pneg %p117
        $region80: #{psp_upsample_forward.2} parent=27 // pred_check_branch
          %4788 = sbr.rel (%p4786) target = $region82
        $region81: #{psp_upsample_forward.2} parent=27 // pred_region
          _
        $region82: #{psp_upsample_forward.2} parent=27 // pred_fallthru
          _
      $region28: #{psp_upsample_forward.2} parent=5 // pred_fallthru
        _
      %p4789 = scmp.le.s32.totalorder 2, %s10
      // Predicated region
      $region83: #{psp_upsample_forward.2} parent=5 // pred_check
        %p4790 = pneg %p4789
      $region84: #{psp_upsample_forward.2} parent=5 // pred_check_branch
        %4792 = sbr.rel (%p4790) target = $region86
      $region85: #{psp_upsample_forward.2} parent=5 // pred_region
        %s4793 = ssub.s32 %s10, 2
        // Predicated region
        $region87: #{psp_upsample_forward.2} parent=85 // pred_check
          %p4794 = pneg %p102
        $region88: #{psp_upsample_forward.2} parent=85 // pred_check_branch
          %4796 = sbr.rel (%p4794) target = $region90
        $region89: #{psp_upsample_forward.2} parent=85 // pred_region
          %s4797 = sand.u32 %s87, 1
          %s4798 = sand.u32 %s87, 1
          %s4799 = smul.addr %s4798, 512
          %s4800 = scalar_lea.vmem [#allocation3], %s4799
        $region90: #{psp_upsample_forward.2} parent=85 // pred_fallthru
          _
      $region86: #{psp_upsample_forward.2} parent=5 // pred_fallthru
        _
    $region6: #{psp_upsample_forward.2} parent=1 // loop_footer
      %s14 = sadd.s32 1, %s10
    $region7: #{psp_upsample_forward.2} parent=1 // loop_footer_branch
      %9 = sbr.rel target = $region3
    $region8: #{psp_upsample_forward.2} parent=1 // loop_exit
      _

</llo_original>
